<compile_context>
chip_gen: v5e
topology: v5e:2x2
jax: 0.10.0
libtpu: 0.0.40
codegen_flags: <defaults>
</compile_context>

<pallas_src>
import jax
import jax.numpy as jnp
from jax.experimental import pallas as pl
from jax.experimental.pallas import tpu as pltpu

IN_D = 400
FEATURE_D = 512
MAX_TILE = 512          # max batch-tile rows (multiple of the MXU dimension)


def tnetwork_kernel(x_ref, y_ref,
                    w1_ref, b1_ref,
                    w2_ref, b2_ref,
                    wf_ref, bf_ref,
                    wm_ref, bm_ref,
                    o_ref):
    bf16 = jnp.bfloat16

    # out1 = relu(x @ W1 + b1)   -- cast x to bf16 in-kernel, f32 accumulate.
    h1 = jnp.dot(x_ref[...].astype(bf16), w1_ref[...],
                 preferred_element_type=jnp.float32)
    h1 = jnp.maximum(h1 + b1_ref[...], 0.0)

    # out1 = sigmoid(h1 @ W2 + b2); sigmoid = 1 / (1 + exp(-z)) with the
    # approximate EUP reciprocal (exp + recip both run off the VALU slot).
    h2 = jnp.dot(h1.astype(bf16), w2_ref[...],
                 preferred_element_type=jnp.float32)
    z = h2 + b2_ref[...]
    out1 = pl.reciprocal(1.0 + jnp.exp(-z), approx=True)

    # out2 = relu(y @ Wf + bf)
    h3 = jnp.dot(y_ref[...].astype(bf16), wf_ref[...],
                 preferred_element_type=jnp.float32)
    out2 = jnp.maximum(h3 + bf_ref[...], 0.0)

    # out = relu((out1 + 1) * out2): (out1 + 1) > 0 and out2 >= 0, so the
    # outer relu of the reference module is a mathematical no-op -> dropped.
    out = (out1 + 1.0) * out2

    # out = relu(out @ Wm + bm)
    h4 = jnp.dot(out.astype(bf16), wm_ref[...],
                 preferred_element_type=jnp.float32)
    o_ref[...] = jnp.maximum(h4 + bm_ref[...], 0.0).astype(o_ref.dtype)


def _round_up(n, m):
    return ((n + m - 1) // m) * m


def prepare_params(params):
    """One-time packing: weights -> bf16 (MXU feed), biases kept f32 (1, D).

    Do this once when parameters are created/loaded, NOT per forward call.
    """
    bf16 = jnp.bfloat16
    (w1, b1), (w2, b2), (wf, bf), (wm, bm) = params
    return ((w1.astype(bf16), b1.astype(jnp.float32)),
            (w2.astype(bf16), b2.astype(jnp.float32)),
            (wf.astype(bf16), bf.astype(jnp.float32)),
            (wm.astype(bf16), bm.astype(jnp.float32)))


def tnetwork_forward(x, y, packed_params, *, max_tile=MAX_TILE,
                     out_dtype=jnp.float32):
    """x: (B, 400) f32, y: (B, 512) f32 -> (B, 512) out_dtype."""
    B = x.shape[0]
    (w1, b1), (w2, b2), (wf, bf), (wm, bm) = packed_params

    # Batch tile: aim for >= 2 grid steps (so the "parallel" batch axis shards
    # across both v7x TensorCores), multiple of 16, capped at max_tile rows.
    # No batch padding: Pallas masks the ragged last block; its (discarded)
    # rows never contaminate valid output since rows are independent.
    tb = min(max_tile, max(16, _round_up(pl.cdiv(B, 2), 16)))
    grid = (pl.cdiv(B, tb),)

    # Weights/biases: constant block index across the grid -> DMA'd once,
    # VMEM-resident for the whole kernel; only the batch rows are streamed.
    w_spec = lambda shape: pl.BlockSpec(shape, lambda i: (0, 0))

    out_itemsize = jnp.dtype(out_dtype).itemsize
    flops = 2 * B * FEATURE_D * (IN_D + 3 * FEATURE_D) + 6 * B * FEATURE_D
    bytes_accessed = (
        x.size * x.dtype.itemsize + y.size * y.dtype.itemsize
        + B * FEATURE_D * out_itemsize
        + sum(int(a.size) * a.dtype.itemsize
              for a in (w1, b1, w2, b2, wf, bf, wm, bm)))
    cost = pl.CostEstimate(flops=int(flops),
                           transcendentals=int(B * FEATURE_D),
                           bytes_accessed=int(bytes_accessed))

    return pl.pallas_call(
        tnetwork_kernel,
        out_shape=jax.ShapeDtypeStruct((B, FEATURE_D), out_dtype),
        grid=grid,
        in_specs=[
            pl.BlockSpec((tb, IN_D), lambda i: (i, 0)),       # x (f32, K=400)
            pl.BlockSpec((tb, FEATURE_D), lambda i: (i, 0)),  # y (f32)
            w_spec((IN_D, FEATURE_D)),                        # W1 (bf16)
            w_spec((1, FEATURE_D)),                           # b1
            w_spec((FEATURE_D, FEATURE_D)),                   # W2 (bf16)
            w_spec((1, FEATURE_D)),                           # b2
            w_spec((FEATURE_D, FEATURE_D)),                   # Wf (bf16)
            w_spec((1, FEATURE_D)),                           # bf
            w_spec((FEATURE_D, FEATURE_D)),                   # Wm (bf16)
            w_spec((1, FEATURE_D)),                           # bm
        ],
        out_specs=pl.BlockSpec((tb, FEATURE_D), lambda i: (i, 0)),
        compiler_params=pltpu.CompilerParams(
            dimension_semantics=("parallel",),
            vmem_limit_bytes=48 * 1024 * 1024),
        cost_estimate=cost,
    )(x, y, w1, b1, w2, b2, wf, bf, wm, bm)


def init_params(key):
    """Deterministic init; Linear weights stored as (in, out)."""
    ks = jax.random.split(key, 8)

    def linear(kw, kb, fan_in, fan_out):
        bound = 1.0 / jnp.sqrt(fan_in)
        w = jax.random.uniform(kw, (fan_in, fan_out), jnp.float32, -bound, bound)
        b = jax.random.uniform(kb, (1, fan_out), jnp.float32, -bound, bound)
        return w, b

    p_wf1 = linear(ks[0], ks[1], IN_D, FEATURE_D)       # word_feature1
    p_wf2 = linear(ks[2], ks[3], FEATURE_D, FEATURE_D)  # word_feature2
    p_ft = linear(ks[4], ks[5], FEATURE_D, FEATURE_D)   # features
    p_map = linear(ks[6], ks[7], FEATURE_D, FEATURE_D)  # map
    return p_wf1, p_wf2, p_ft, p_map


def reference_forward(x, y, params):
    """Original module semantics, full f32."""
    (w1, b1), (w2, b2), (wf, bf), (wm, bm) = params
    out1 = jax.nn.relu(x @ w1 + b1)
    out1 = jax.nn.sigmoid(out1 @ w2 + b2)
    out2 = jax.nn.relu(y @ wf + bf)
    out = jax.nn.relu((out1 + 1.0) * out2)
    out = jax.nn.relu(out @ wm + bm)
    return out


def reference_forward_bf16(x, y, params):
    """Pure-JAX reference matching the kernel's bf16-feed / f32-accumulate math."""
    (w1, b1), (w2, b2), (wf, bf), (wm, bm) = params
    bf16 = jnp.bfloat16
    dot = lambda a, b: jnp.dot(a.astype(bf16), b.astype(bf16),
                               preferred_element_type=jnp.float32)
    h1 = jax.nn.relu(dot(x, w1) + b1)
    out1 = jax.nn.sigmoid(dot(h1, w2) + b2)
    out2 = jax.nn.relu(dot(y, wf) + bf)
    out = (out1 + 1.0) * out2
    return jax.nn.relu(dot(out, wm) + bm)


if __name__ == "__main__":
    key = jax.random.PRNGKey(0)
    k_params, k_x, k_y = jax.random.split(key, 3)

    # B deliberately NOT a multiple of the chosen batch tile (tb=160 here), so
    # the multi-step grid AND the ragged (masked) last block both get exercised
    # without any wrapper-side padding or slicing.
    B = 300
    params = init_params(k_params)
    packed = prepare_params(params)          # one-time bf16 weight packing
    x = jax.random.normal(k_x, (B, IN_D), jnp.float32)
    y = jax.random.normal(k_y, (B, FEATURE_D), jnp.float32)

    out = tnetwork_forward(x, y, packed)
    out = jax.block_until_ready(out)

    assert out.shape == (B, FEATURE_D)
    assert bool(jnp.all(jnp.isfinite(out)))

    # Tight check against a reference with matching bf16-matmul numerics.
    ref_bf16 = reference_forward_bf16(x, y, params)
    assert jnp.allclose(out, ref_bf16, atol=3e-2, rtol=3e-2)

    # Loose sanity check against the original f32 module semantics
    # (bf16 MXU feeds introduce ~1% level differences).
    ref_f32 = reference_forward(x, y, params)
    assert jnp.allclose(out, ref_f32, atol=2e-1, rtol=2e-1)

    print("KERNEL_OK")
</pallas_src>

<mosaic_0001>
module attributes {stable_mosaic.version = 11 : i64} {
  func.func @tnetwork_kernel(%arg0: i32, %arg1: memref<160x400xf32, #tpu.memory_space<vmem>>, %arg2: memref<160x512xf32, #tpu.memory_space<vmem>>, %arg3: memref<400x512xbf16, #tpu.memory_space<vmem>>, %arg4: memref<1x512xf32, #tpu.memory_space<vmem>>, %arg5: memref<512x512xbf16, #tpu.memory_space<vmem>>, %arg6: memref<1x512xf32, #tpu.memory_space<vmem>>, %arg7: memref<512x512xbf16, #tpu.memory_space<vmem>>, %arg8: memref<1x512xf32, #tpu.memory_space<vmem>>, %arg9: memref<512x512xbf16, #tpu.memory_space<vmem>>, %arg10: memref<1x512xf32, #tpu.memory_space<vmem>>, %arg11: memref<160x512xf32, #tpu.memory_space<vmem>>) attributes {dimension_semantics = [#tpu.dimension_semantics<parallel>], iteration_bounds = array<i64: 2>, scalar_prefetch = 0 : i64, scratch_operands = 0 : i64, tpu.core_type = #tpu.core_type<tc>, window_params = [{transform_indices = @transform_0, window_bounds = array<i64: 160, 400>}, {transform_indices = @transform_1, window_bounds = array<i64: 160, 512>}, {pipeline_mode = #tpu.pipeline_mode<synchronous>, transform_indices = @transform_2, window_bounds = array<i64: 400, 512>}, {pipeline_mode = #tpu.pipeline_mode<synchronous>, transform_indices = @transform_3, window_bounds = array<i64: 1, 512>}, {pipeline_mode = #tpu.pipeline_mode<synchronous>, transform_indices = @transform_4, window_bounds = array<i64: 512, 512>}, {pipeline_mode = #tpu.pipeline_mode<synchronous>, transform_indices = @transform_5, window_bounds = array<i64: 1, 512>}, {pipeline_mode = #tpu.pipeline_mode<synchronous>, transform_indices = @transform_6, window_bounds = array<i64: 512, 512>}, {pipeline_mode = #tpu.pipeline_mode<synchronous>, transform_indices = @transform_7, window_bounds = array<i64: 1, 512>}, {pipeline_mode = #tpu.pipeline_mode<synchronous>, transform_indices = @transform_8, window_bounds = array<i64: 512, 512>}, {pipeline_mode = #tpu.pipeline_mode<synchronous>, transform_indices = @transform_9, window_bounds = array<i64: 1, 512>}, {transform_indices = @transform_10, window_bounds = array<i64: 160, 512>}]} {
    %c0 = arith.constant 0 : index
    %c0_0 = arith.constant 0 : index
    %0 = vector.load %arg1[%c0, %c0_0] : memref<160x400xf32, #tpu.memory_space<vmem>>, vector<160x400xf32>
    %1 = arith.truncf %0 : vector<160x400xf32> to vector<160x400xbf16>
    %c0_1 = arith.constant 0 : index
    %c0_2 = arith.constant 0 : index
    %2 = vector.load %arg3[%c0_1, %c0_2] : memref<400x512xbf16, #tpu.memory_space<vmem>>, vector<400x512xbf16>
    %cst = arith.constant dense<0.000000e+00> : vector<160x512xf32>
    %3 = tpu.matmul %1, %2, %cst {dimension_numbers = #tpu.dot_dimension_numbers<[1], [0], [0], [1], [0, 0, 1, 1], [], []>} : vector<160x400xbf16>, vector<400x512xbf16>, vector<160x512xf32> -> vector<160x512xf32>
    %c0_3 = arith.constant 0 : index
    %c0_4 = arith.constant 0 : index
    %4 = vector.load %arg4[%c0_3, %c0_4] : memref<1x512xf32, #tpu.memory_space<vmem>>, vector<1x512xf32>
    %5 = vector.broadcast %4 : vector<1x512xf32> to vector<160x512xf32>
    %6 = arith.addf %3, %5 : vector<160x512xf32>
    %cst_5 = arith.constant 0.000000e+00 : f32
    %7 = vector.broadcast %cst_5 : f32 to vector<160x512xf32>
    %8 = arith.maximumf %6, %7 : vector<160x512xf32>
    %9 = arith.truncf %8 : vector<160x512xf32> to vector<160x512xbf16>
    %c0_6 = arith.constant 0 : index
    %c0_7 = arith.constant 0 : index
    %10 = vector.load %arg5[%c0_6, %c0_7] : memref<512x512xbf16, #tpu.memory_space<vmem>>, vector<512x512xbf16>
    %cst_8 = arith.constant dense<0.000000e+00> : vector<160x512xf32>
    %11 = tpu.matmul %9, %10, %cst_8 {dimension_numbers = #tpu.dot_dimension_numbers<[1], [0], [0], [1], [0, 0, 1, 1], [], []>} : vector<160x512xbf16>, vector<512x512xbf16>, vector<160x512xf32> -> vector<160x512xf32>
    %c0_9 = arith.constant 0 : index
    %c0_10 = arith.constant 0 : index
    %12 = vector.load %arg6[%c0_9, %c0_10] : memref<1x512xf32, #tpu.memory_space<vmem>>, vector<1x512xf32>
    %13 = vector.broadcast %12 : vector<1x512xf32> to vector<160x512xf32>
    %14 = arith.addf %11, %13 : vector<160x512xf32>
    %cst_11 = arith.constant 0.000000e+00 : f32
    %15 = vector.broadcast %cst_11 : f32 to vector<160x512xf32>
    %16 = arith.subf %15, %14 : vector<160x512xf32>
    %17 = math.exp %16 : vector<160x512xf32>
    %cst_12 = arith.constant 1.000000e+00 : f32
    %18 = vector.broadcast %cst_12 : f32 to vector<160x512xf32>
    %19 = arith.addf %18, %17 : vector<160x512xf32>
    %20 = tpu.reciprocal %19 {approx = true} : vector<160x512xf32> -> vector<160x512xf32>
    %c0_13 = arith.constant 0 : index
    %c0_14 = arith.constant 0 : index
    %21 = vector.load %arg2[%c0_13, %c0_14] : memref<160x512xf32, #tpu.memory_space<vmem>>, vector<160x512xf32>
    %22 = arith.truncf %21 : vector<160x512xf32> to vector<160x512xbf16>
    %c0_15 = arith.constant 0 : index
    %c0_16 = arith.constant 0 : index
    %23 = vector.load %arg7[%c0_15, %c0_16] : memref<512x512xbf16, #tpu.memory_space<vmem>>, vector<512x512xbf16>
    %cst_17 = arith.constant dense<0.000000e+00> : vector<160x512xf32>
    %24 = tpu.matmul %22, %23, %cst_17 {dimension_numbers = #tpu.dot_dimension_numbers<[1], [0], [0], [1], [0, 0, 1, 1], [], []>} : vector<160x512xbf16>, vector<512x512xbf16>, vector<160x512xf32> -> vector<160x512xf32>
    %c0_18 = arith.constant 0 : index
    %c0_19 = arith.constant 0 : index
    %25 = vector.load %arg8[%c0_18, %c0_19] : memref<1x512xf32, #tpu.memory_space<vmem>>, vector<1x512xf32>
    %26 = vector.broadcast %25 : vector<1x512xf32> to vector<160x512xf32>
    %27 = arith.addf %24, %26 : vector<160x512xf32>
    %cst_20 = arith.constant 0.000000e+00 : f32
    %28 = vector.broadcast %cst_20 : f32 to vector<160x512xf32>
    %29 = arith.maximumf %27, %28 : vector<160x512xf32>
    %cst_21 = arith.constant 1.000000e+00 : f32
    %30 = vector.broadcast %cst_21 : f32 to vector<160x512xf32>
    %31 = arith.addf %20, %30 : vector<160x512xf32>
    %32 = arith.mulf %31, %29 : vector<160x512xf32>
    %33 = arith.truncf %32 : vector<160x512xf32> to vector<160x512xbf16>
    %c0_22 = arith.constant 0 : index
    %c0_23 = arith.constant 0 : index
    %34 = vector.load %arg9[%c0_22, %c0_23] : memref<512x512xbf16, #tpu.memory_space<vmem>>, vector<512x512xbf16>
    %cst_24 = arith.constant dense<0.000000e+00> : vector<160x512xf32>
    %35 = tpu.matmul %33, %34, %cst_24 {dimension_numbers = #tpu.dot_dimension_numbers<[1], [0], [0], [1], [0, 0, 1, 1], [], []>} : vector<160x512xbf16>, vector<512x512xbf16>, vector<160x512xf32> -> vector<160x512xf32>
    %c0_25 = arith.constant 0 : index
    %c0_26 = arith.constant 0 : index
    %36 = vector.load %arg10[%c0_25, %c0_26] : memref<1x512xf32, #tpu.memory_space<vmem>>, vector<1x512xf32>
    %37 = vector.broadcast %36 : vector<1x512xf32> to vector<160x512xf32>
    %38 = arith.addf %35, %37 : vector<160x512xf32>
    %cst_27 = arith.constant 0.000000e+00 : f32
    %39 = vector.broadcast %cst_27 : f32 to vector<160x512xf32>
    %40 = arith.maximumf %38, %39 : vector<160x512xf32>
    %c0_28 = arith.constant 0 : index
    %c0_29 = arith.constant 0 : index
    %41 = vector.load %arg11[%c0_28, %c0_29] : memref<160x512xf32, #tpu.memory_space<vmem>>, vector<160x512xf32>
    tpu.vector_store %arg11[%c0_28, %c0_29], %40 {strides = array<i32>} : memref<160x512xf32, #tpu.memory_space<vmem>>, vector<160x512xf32>,
    return
  }
  func.func @transform_0(%arg0: i32) -> (i32, i32) {
    %c0_i32 = arith.constant 0 : i32
    %c0_i32_0 = arith.constant 0 : i32
    return %arg0, %c0_i32 : i32, i32
  }
  func.func @transform_1(%arg0: i32) -> (i32, i32) {
    %c0_i32 = arith.constant 0 : i32
    %c0_i32_0 = arith.constant 0 : i32
    return %arg0, %c0_i32 : i32, i32
  }
  func.func @transform_2(%arg0: i32) -> (i32, i32) {
    %c0_i32 = arith.constant 0 : i32
    %c0_i32_0 = arith.constant 0 : i32
    %c0_i32_1 = arith.constant 0 : i32
    return %c0_i32, %c0_i32_0 : i32, i32
  }
  func.func @transform_3(%arg0: i32) -> (i32, i32) {
    %c0_i32 = arith.constant 0 : i32
    %c0_i32_0 = arith.constant 0 : i32
    %c0_i32_1 = arith.constant 0 : i32
    return %c0_i32, %c0_i32_0 : i32, i32
  }
  func.func @transform_4(%arg0: i32) -> (i32, i32) {
    %c0_i32 = arith.constant 0 : i32
    %c0_i32_0 = arith.constant 0 : i32
    %c0_i32_1 = arith.constant 0 : i32
    return %c0_i32, %c0_i32_0 : i32, i32
  }
  func.func @transform_5(%arg0: i32) -> (i32, i32) {
    %c0_i32 = arith.constant 0 : i32
    %c0_i32_0 = arith.constant 0 : i32
    %c0_i32_1 = arith.constant 0 : i32
    return %c0_i32, %c0_i32_0 : i32, i32
  }
  func.func @transform_6(%arg0: i32) -> (i32, i32) {
    %c0_i32 = arith.constant 0 : i32
    %c0_i32_0 = arith.constant 0 : i32
    %c0_i32_1 = arith.constant 0 : i32
    return %c0_i32, %c0_i32_0 : i32, i32
  }
  func.func @transform_7(%arg0: i32) -> (i32, i32) {
    %c0_i32 = arith.constant 0 : i32
    %c0_i32_0 = arith.constant 0 : i32
    %c0_i32_1 = arith.constant 0 : i32
    return %c0_i32, %c0_i32_0 : i32, i32
  }
  func.func @transform_8(%arg0: i32) -> (i32, i32) {
    %c0_i32 = arith.constant 0 : i32
    %c0_i32_0 = arith.constant 0 : i32
    %c0_i32_1 = arith.constant 0 : i32
    return %c0_i32, %c0_i32_0 : i32, i32
  }
  func.func @transform_9(%arg0: i32) -> (i32, i32) {
    %c0_i32 = arith.constant 0 : i32
    %c0_i32_0 = arith.constant 0 : i32
    %c0_i32_1 = arith.constant 0 : i32
    return %c0_i32, %c0_i32_0 : i32, i32
  }
  func.func @transform_10(%arg0: i32) -> (i32, i32) {
    %c0_i32 = arith.constant 0 : i32
    %c0_i32_0 = arith.constant 0 : i32
    return %arg0, %c0_i32 : i32, i32
  }
}

</mosaic_0001>

<llo_original>
// kernel: tpu_custom_call.1
$region0: #{tpu_custom_call.1}
  #allocation0 [shape = 'u32[]', space=smem, size = 0x4, offset = 0x4, fixed_abs, tag = 'smem constant byte address 0x4 - core index']
  #allocation1 [shape = 'u32[72,128]{1,0:T(1,128)}', space=vmem, size = 0x9000, scoped, tag = 'internal scratch']
  %s0 = inlined_call_operand.vmem [shape: f32[300,400], index: 0, kind: input, shape index: {}]
  %s1 = inlined_call_operand.vmem [shape: f32[300,512], index: 1, kind: input, shape index: {}]
  %s2 = inlined_call_operand.hbm [shape: bf16[400,512], index: 2, kind: input, shape index: {}]
  %s3 = inlined_call_operand.vmem [shape: f32[1,512], index: 3, kind: input, shape index: {}]
  %s4 = inlined_call_operand.vmem [shape: bf16[512,512], index: 4, kind: input, shape index: {}]
  %s5 = inlined_call_operand.vmem [shape: f32[1,512], index: 5, kind: input, shape index: {}]
  %s6 = inlined_call_operand.hbm [shape: bf16[512,512], index: 6, kind: input, shape index: {}]
  %s7 = inlined_call_operand.vmem [shape: f32[1,512], index: 7, kind: input, shape index: {}]
  %s8 = inlined_call_operand.hbm [shape: bf16[512,512], index: 8, kind: input, shape index: {}]
  %s9 = inlined_call_operand.vmem [shape: f32[1,512], index: 9, kind: input, shape index: {}]
  %s10 = inlined_call_operand.hbm [shape: f32[300,512], index: 10, kind: output, shape index: {}]
  %s11 = sld [smem:[#allocation0]]
  $region85: #{tpu_custom_call.1} parent=0
    _
  %s13 = ssub.s32 1, %s11
  %s14 = scalar_select 0, %s13, %s11
  $region1: #{tpu_custom_call.1} parent=0
    #allocation2 [shape = 'u8[409600]{0}', space=vmem, size = 0x64000, scoped, tag = 'input window, operand 2, single buffered']
    #allocation3 [shape = 's32[2]{0}', space=sflag, size = 0x8, scoped, tag = 'scoped memory for tpu_custom_call.1']
    #allocation4 [shape = 's32[2]{0}', space=sflag, size = 0x8, scoped, tag = 'scoped memory for tpu_custom_call.1']
    #allocation5 [shape = 'u8[524288]{0}', space=vmem, size = 0x80000, scoped, tag = 'input window, operand 6, single buffered']
    #allocation6 [shape = 's32[1]{0}', space=sflag, size = 0x4, scoped, tag = 'scoped memory for tpu_custom_call.1']
    #allocation7 [shape = 'u8[524288]{0}', space=vmem, size = 0x80000, scoped, tag = 'input window, operand 8, single buffered']
    #allocation8 [shape = 'u8[655360]{0}', space=vmem, size = 0xa0000, scoped, tag = 'output window, operand 0']
    %15 = vsyncpa [#allocation3], 0
    %16 = vsyncpa [#allocation6], 0
    %17 = vsyncpa [#allocation4], 0
    %s18 = scalar_lea.sflag [#allocation4], 1
    %19 = vsyncpa %s18, 0
    loop: start=0, step=1, limit=4
    $region2: #{tpu_custom_call.1} parent=1 // loop_pre_header
      _
    $region3: #{tpu_custom_call.1} parent=1 // loop_header
      %s21 = sphi 0, %s25
      %p22 = scmp.ge.s32.totalorder %s21, 4
      %s31 = sphi 0, %s33
      %s34 = sphi 0, %s31
      %s35 = sphi 0, %s34
      %s51 = sphi 0, %s35
      %s57 = sphi 0, %s59
      %s60 = sphi 0, %s57
      %s61 = sphi 0, %s60
      %s77 = sphi 0, %s61
      %s81 = sphi 0, %s81
      %s83 = sphi 0, %s81
      %s84 = sphi 0, %s83
      %s98 = sphi 0, %s84
      %s102 = sphi 0, %s102
      %s104 = sphi 0, %s102
      %s105 = sphi 0, %s104
      %s119 = sphi 0, %s105
      %s123 = sphi 0, %s123
      %s125 = sphi 0, %s123
      %s126 = sphi 0, %s125
      %s140 = sphi 0, %s126
      %s144 = sphi 0, %s144
      %s146 = sphi 0, %s144
      %s147 = sphi 0, %s146
      %s161 = sphi 0, %s147
      %s165 = sphi 0, %s165
      %s167 = sphi 0, %s165
      %s168 = sphi 0, %s167
      %s182 = sphi 0, %s168
      %s186 = sphi 0, %s186
      %s188 = sphi 0, %s186
      %s189 = sphi 0, %s188
      %s203 = sphi 0, %s189
      %s207 = sphi 0, %s207
      %s209 = sphi 0, %s207
      %s210 = sphi 0, %s209
      %s224 = sphi 0, %s210
      %s228 = sphi 0, %s228
      %s230 = sphi 0, %s228
      %s231 = sphi 0, %s230
      %s245 = sphi 0, %s231
      %s251 = sphi 0, %s253
      %s254 = sphi 0, %s251
      %s255 = sphi 0, %s254
      %s271 = sphi 0, %s255
    $region4: #{tpu_custom_call.1} parent=1 // loop_header_branch
      %24 = sbr.rel (%p22) target = $region8
    $region5: #{tpu_custom_call.1} parent=1 // loop_body
      %s26 = ssub.s32 %s21, 1
      %s27 = ssub.s32 %s21, 2
      %s28 = sadd.s32 %s21, 1
      %s29 = ssub.s32 %s21, %s28
      %p30 = scmp.eq.s32.totalorder %s29, 0
      %s32 = sadd.s32 %s31, 1
      %s33 = scalar_select %p30, %s31, %s32
      %p36 = pneg %p30
      %p37 = scmp.eq.s32.totalorder %s21, 1
      %p38 = por %p36, %p37
      %p39 = scmp.ne.s32.totalorder %s31, %s34
      %p40 = scmp.eq.s32.totalorder %s21, 0
      %p41 = por %p39, %p40
      %p42 = scmp.ne.s32.totalorder %s31, %s34
      %p43 = scmp.eq.s32.totalorder %s26, 1
      %p44 = por %p42, %p43
      %p45 = scmp.ne.s32.totalorder %s34, %s35
      %p46 = scmp.eq.s32.totalorder %s26, 0
      %p47 = por %p45, %p46
      %p48 = scmp.ne.s32.totalorder %s34, %s35
      %p49 = scmp.eq.s32.totalorder %s27, 1
      %p50 = por %p48, %p49
      %p52 = scmp.ne.s32.totalorder %s35, %s51
      %p53 = scmp.eq.s32.totalorder %s27, 0
      %p54 = por %p52, %p53
      %s55 = ssub.s32 %s21, %s28
      %p56 = scmp.eq.s32.totalorder %s55, 0
      %s58 = sadd.s32 %s57, 1
      %s59 = scalar_select %p56, %s57, %s58
      %p62 = pneg %p56
      %p63 = scmp.eq.s32.totalorder %s21, 1
      %p64 = por %p62, %p63
      %p65 = scmp.ne.s32.totalorder %s57, %s60
      %p66 = scmp.eq.s32.totalorder %s21, 0
      %p67 = por %p65, %p66
      %p68 = scmp.ne.s32.totalorder %s57, %s60
      %p69 = scmp.eq.s32.totalorder %s26, 1
      %p70 = por %p68, %p69
      %p71 = scmp.ne.s32.totalorder %s60, %s61
      %p72 = scmp.eq.s32.totalorder %s26, 0
      %p73 = por %p71, %p72
      %p74 = scmp.ne.s32.totalorder %s60, %s61
      %p75 = scmp.eq.s32.totalorder %s27, 1
      %p76 = por %p74, %p75
      %p78 = scmp.ne.s32.totalorder %s61, %s77
      %p79 = scmp.eq.s32.totalorder %s27, 0
      %p80 = por %p78, %p79
      %s82 = sadd.s32 %s81, 1
      %p85 = scmp.eq.s32.totalorder %s21, 1
      %p86 = scmp.ne.s32.totalorder %s81, %s83
      %p87 = scmp.eq.s32.totalorder %s21, 0
      %p88 = por %p86, %p87
      %p89 = scmp.ne.s32.totalorder %s81, %s83
      %p90 = scmp.eq.s32.totalorder %s26, 1
      %p91 = por %p89, %p90
      %p92 = scmp.ne.s32.totalorder %s83, %s84
      %p93 = scmp.eq.s32.totalorder %s26, 0
      %p94 = por %p92, %p93
      %p95 = scmp.ne.s32.totalorder %s83, %s84
      %p96 = scmp.eq.s32.totalorder %s27, 1
      %p97 = por %p95, %p96
      %p99 = scmp.ne.s32.totalorder %s84, %s98
      %p100 = scmp.eq.s32.totalorder %s27, 0
      %p101 = por %p99, %p100
      %s103 = sadd.s32 %s102, 1
      %p106 = scmp.eq.s32.totalorder %s21, 1
      %p107 = scmp.ne.s32.totalorder %s102, %s104
      %p108 = scmp.eq.s32.totalorder %s21, 0
      %p109 = por %p107, %p108
      %p110 = scmp.ne.s32.totalorder %s102, %s104
      %p111 = scmp.eq.s32.totalorder %s26, 1
      %p112 = por %p110, %p111
      %p113 = scmp.ne.s32.totalorder %s104, %s105
      %p114 = scmp.eq.s32.totalorder %s26, 0
      %p115 = por %p113, %p114
      %p116 = scmp.ne.s32.totalorder %s104, %s105
      %p117 = scmp.eq.s32.totalorder %s27, 1
      %p118 = por %p116, %p117
      %p120 = scmp.ne.s32.totalorder %s105, %s119
      %p121 = scmp.eq.s32.totalorder %s27, 0
      %p122 = por %p120, %p121
      %s124 = sadd.s32 %s123, 1
      %p127 = scmp.eq.s32.totalorder %s21, 1
      %p128 = scmp.ne.s32.totalorder %s123, %s125
      %p129 = scmp.eq.s32.totalorder %s21, 0
      %p130 = por %p128, %p129
      %p131 = scmp.ne.s32.totalorder %s123, %s125
      %p132 = scmp.eq.s32.totalorder %s26, 1
      %p133 = por %p131, %p132
      %p134 = scmp.ne.s32.totalorder %s125, %s126
      %p135 = scmp.eq.s32.totalorder %s26, 0
      %p136 = por %p134, %p135
      %p137 = scmp.ne.s32.totalorder %s125, %s126
      %p138 = scmp.eq.s32.totalorder %s27, 1
      %p139 = por %p137, %p138
      %p141 = scmp.ne.s32.totalorder %s126, %s140
      %p142 = scmp.eq.s32.totalorder %s27, 0
      %p143 = por %p141, %p142
      %s145 = sadd.s32 %s144, 1
      %p148 = scmp.eq.s32.totalorder %s21, 1
      %p149 = scmp.ne.s32.totalorder %s144, %s146
      %p150 = scmp.eq.s32.totalorder %s21, 0
      %p151 = por %p149, %p150
      %p152 = scmp.ne.s32.totalorder %s144, %s146
      %p153 = scmp.eq.s32.totalorder %s26, 1
      %p154 = por %p152, %p153
      %p155 = scmp.ne.s32.totalorder %s146, %s147
      %p156 = scmp.eq.s32.totalorder %s26, 0
      %p157 = por %p155, %p156
      %p158 = scmp.ne.s32.totalorder %s146, %s147
      %p159 = scmp.eq.s32.totalorder %s27, 1
      %p160 = por %p158, %p159
      %p162 = scmp.ne.s32.totalorder %s147, %s161
      %p163 = scmp.eq.s32.totalorder %s27, 0
      %p164 = por %p162, %p163
      %s166 = sadd.s32 %s165, 1
      %p169 = scmp.eq.s32.totalorder %s21, 1
      %p170 = scmp.ne.s32.totalorder %s165, %s167
      %p171 = scmp.eq.s32.totalorder %s21, 0
      %p172 = por %p170, %p171
      %p173 = scmp.ne.s32.totalorder %s165, %s167
      %p174 = scmp.eq.s32.totalorder %s26, 1
      %p175 = por %p173, %p174
      %p176 = scmp.ne.s32.totalorder %s167, %s168
      %p177 = scmp.eq.s32.totalorder %s26, 0
      %p178 = por %p176, %p177
      %p179 = scmp.ne.s32.totalorder %s167, %s168
      %p180 = scmp.eq.s32.totalorder %s27, 1
      %p181 = por %p179, %p180
      %p183 = scmp.ne.s32.totalorder %s168, %s182
      %p184 = scmp.eq.s32.totalorder %s27, 0
      %p185 = por %p183, %p184
      %s187 = sadd.s32 %s186, 1
      %p190 = scmp.eq.s32.totalorder %s21, 1
      %p191 = scmp.ne.s32.totalorder %s186, %s188
      %p192 = scmp.eq.s32.totalorder %s21, 0
      %p193 = por %p191, %p192
      %p194 = scmp.ne.s32.totalorder %s186, %s188
      %p195 = scmp.eq.s32.totalorder %s26, 1
      %p196 = por %p194, %p195
      %p197 = scmp.ne.s32.totalorder %s188, %s189
      %p198 = scmp.eq.s32.totalorder %s26, 0
      %p199 = por %p197, %p198
      %p200 = scmp.ne.s32.totalorder %s188, %s189
      %p201 = scmp.eq.s32.totalorder %s27, 1
      %p202 = por %p200, %p201
      %p204 = scmp.ne.s32.totalorder %s189, %s203
      %p205 = scmp.eq.s32.totalorder %s27, 0
      %p206 = por %p204, %p205
      %s208 = sadd.s32 %s207, 1
      %p211 = scmp.eq.s32.totalorder %s21, 1
      %p212 = scmp.ne.s32.totalorder %s207, %s209
      %p213 = scmp.eq.s32.totalorder %s21, 0
      %p214 = por %p212, %p213
      %p215 = scmp.ne.s32.totalorder %s207, %s209
      %p216 = scmp.eq.s32.totalorder %s26, 1
      %p217 = por %p215, %p216
      %p218 = scmp.ne.s32.totalorder %s209, %s210
      %p219 = scmp.eq.s32.totalorder %s26, 0
      %p220 = por %p218, %p219
      %p221 = scmp.ne.s32.totalorder %s209, %s210
      %p222 = scmp.eq.s32.totalorder %s27, 1
      %p223 = por %p221, %p222
      %p225 = scmp.ne.s32.totalorder %s210, %s224
      %p226 = scmp.eq.s32.totalorder %s27, 0
      %p227 = por %p225, %p226
      %s229 = sadd.s32 %s228, 1
      %p232 = scmp.eq.s32.totalorder %s21, 1
      %p233 = scmp.ne.s32.totalorder %s228, %s230
      %p234 = scmp.eq.s32.totalorder %s21, 0
      %p235 = por %p233, %p234
      %p236 = scmp.ne.s32.totalorder %s228, %s230
      %p237 = scmp.eq.s32.totalorder %s26, 1
      %p238 = por %p236, %p237
      %p239 = scmp.ne.s32.totalorder %s230, %s231
      %p240 = scmp.eq.s32.totalorder %s26, 0
      %p241 = por %p239, %p240
      %p242 = scmp.ne.s32.totalorder %s230, %s231
      %p243 = scmp.eq.s32.totalorder %s27, 1
      %p244 = por %p242, %p243
      %p246 = scmp.ne.s32.totalorder %s231, %s245
      %p247 = scmp.eq.s32.totalorder %s27, 0
      %p248 = por %p246, %p247
      %s249 = ssub.s32 %s21, %s28
      %p250 = scmp.eq.s32.totalorder %s249, 0
      %s252 = sadd.s32 %s251, 1
      %s253 = scalar_select %p250, %s251, %s252
      %p256 = pneg %p250
      %p257 = scmp.eq.s32.totalorder %s21, 1
      %p258 = por %p256, %p257
      %p259 = scmp.ne.s32.totalorder %s251, %s254
      %p260 = scmp.eq.s32.totalorder %s21, 0
      %p261 = por %p259, %p260
      %p262 = scmp.ne.s32.totalorder %s251, %s254
      %p263 = scmp.eq.s32.totalorder %s26, 1
      %p264 = por %p262, %p263
      %p265 = scmp.ne.s32.totalorder %s254, %s255
      %p266 = scmp.eq.s32.totalorder %s26, 0
      %p267 = por %p265, %p266
      %p268 = scmp.ne.s32.totalorder %s254, %s255
      %p269 = scmp.eq.s32.totalorder %s27, 1
      %p270 = por %p268, %p269
      %p272 = scmp.ne.s32.totalorder %s255, %s271
      %p273 = scmp.eq.s32.totalorder %s27, 0
      %p274 = por %p272, %p273
      %p275 = scmp.le.s32.totalorder 1, %s21
      %p276 = scmp.lt.s32.totalorder %s21, 3
      %p277 = pnand %p275, %p276
      %p278 = pneg %p277
      // Predicated region
      $region9: #{tpu_custom_call.1} parent=5 // pred_check
        _
      $region10: #{tpu_custom_call.1} parent=5 // pred_check_branch
        %280 = sbr.rel (%p277) target = $region12
      $region11: #{tpu_custom_call.1} parent=5 // pred_region
        %s281 = ssub.s32 %s21, 1
        // Predicated region
        $region13: #{tpu_custom_call.1} parent=11 // pred_check
          %p282 = pneg %p94
        $region14: #{tpu_custom_call.1} parent=11 // pred_check_branch
          %284 = sbr.rel (%p282) target = $region16
        $region15: #{tpu_custom_call.1} parent=11 // pred_region
          %286 = vsyncadd [#allocation3], 0
          %s287 = sshll.u32 %s2, 4
          %s288 = int_to_ptr.hbm [resolvable:$true] %s287
          %s289 = sshll.u32 [#allocation2], 4
          %s290 = int_to_ptr.vmem [resolvable:$true] %s289
          %295 = dma.hbm_to_vmem [thread:$0]  %s288, 12800, %s290, [#allocation3], 256, 256, 16
        $region16: #{tpu_custom_call.1} parent=11 // pred_fallthru
          _
        // Predicated region
        $region17: #{tpu_custom_call.1} parent=11 // pred_check
          %p296 = pneg %p115
        $region18: #{tpu_custom_call.1} parent=11 // pred_check_branch
          %298 = sbr.rel (%p296) target = $region20
        $region19: #{tpu_custom_call.1} parent=11 // pred_region
          _
        $region20: #{tpu_custom_call.1} parent=11 // pred_fallthru
          _
        // Predicated region
        $region21: #{tpu_custom_call.1} parent=11 // pred_check
          %p299 = pneg %p136
        $region22: #{tpu_custom_call.1} parent=11 // pred_check_branch
          %301 = sbr.rel (%p299) target = $region24
        $region23: #{tpu_custom_call.1} parent=11 // pred_region
          _
        $region24: #{tpu_custom_call.1} parent=11 // pred_fallthru
          _
        // Predicated region
        $region25: #{tpu_custom_call.1} parent=11 // pred_check
          %p302 = pneg %p157
        $region26: #{tpu_custom_call.1} parent=11 // pred_check_branch
          %304 = sbr.rel (%p302) target = $region28
        $region27: #{tpu_custom_call.1} parent=11 // pred_region
          _
        $region28: #{tpu_custom_call.1} parent=11 // pred_fallthru
          _
        // Predicated region
        $region29: #{tpu_custom_call.1} parent=11 // pred_check
          %p305 = pneg %p178
        $region30: #{tpu_custom_call.1} parent=11 // pred_check_branch
          %307 = sbr.rel (%p305) target = $region32
        $region31: #{tpu_custom_call.1} parent=11 // pred_region
          %309 = vsyncadd [#allocation6], 0
          %s310 = sshll.u32 %s6, 4
          %s311 = int_to_ptr.hbm [resolvable:$true] %s310
          %s312 = sshll.u32 [#allocation5], 4
          %s313 = int_to_ptr.vmem [resolvable:$true] %s312
          %318 = dma.hbm_to_vmem [thread:$0]  %s311, 16384, %s313, [#allocation6], 256, 256, 16
        $region32: #{tpu_custom_call.1} parent=11 // pred_fallthru
          _
        // Predicated region
        $region33: #{tpu_custom_call.1} parent=11 // pred_check
          %p319 = pneg %p199
        $region34: #{tpu_custom_call.1} parent=11 // pred_check_branch
          %321 = sbr.rel (%p319) target = $region36
        $region35: #{tpu_custom_call.1} parent=11 // pred_region
          _
        $region36: #{tpu_custom_call.1} parent=11 // pred_fallthru
          _
        // Predicated region
        $region37: #{tpu_custom_call.1} parent=11 // pred_check
          %p322 = pneg %p220
        $region38: #{tpu_custom_call.1} parent=11 // pred_check_branch
          %324 = sbr.rel (%p322) target = $region40
        $region39: #{tpu_custom_call.1} parent=11 // pred_region
          %326 = vsyncadd [#allocation6], 0
          %s327 = sshll.u32 %s8, 4
          %s328 = int_to_ptr.hbm [resolvable:$true] %s327
          %s329 = sshll.u32 [#allocation7], 4
          %s330 = int_to_ptr.vmem [resolvable:$true] %s329
          %335 = dma.hbm_to_vmem [thread:$0]  %s328, 16384, %s330, [#allocation6], 256, 256, 16
        $region40: #{tpu_custom_call.1} parent=11 // pred_fallthru
          _
        // Predicated region
        $region41: #{tpu_custom_call.1} parent=11 // pred_check
          %p336 = pneg %p241
        $region42: #{tpu_custom_call.1} parent=11 // pred_check_branch
          %338 = sbr.rel (%p336) target = $region44
        $region43: #{tpu_custom_call.1} parent=11 // pred_region
          _
        $region44: #{tpu_custom_call.1} parent=11 // pred_fallthru
          _
      $region12: #{tpu_custom_call.1} parent=5 // pred_fallthru
        _
      %p339 = scmp.lt.s32.totalorder %s21, 2
      // Predicated region
      $region45: #{tpu_custom_call.1} parent=5 // pred_check
        %p340 = pneg %p339
      $region46: #{tpu_custom_call.1} parent=5 // pred_check_branch
        %342 = sbr.rel (%p340) target = $region48
      $region47: #{tpu_custom_call.1} parent=5 // pred_region
        // Predicated region
        $region49: #{tpu_custom_call.1} parent=47 // pred_check
          %p343 = pneg %p41
        $region50: #{tpu_custom_call.1} parent=47 // pred_check_branch
          %345 = sbr.rel (%p343) target = $region52
        $region51: #{tpu_custom_call.1} parent=47 // pred_region
          %s346 = smul.u32 20, %s21
          %s347 = ssub.s32 38, %s346
          %p348 = scmp.lt.s32.totalorder %s347, 20
          %s349 = scalar_select %p348, %s347, 20
          %s350 = smul.u32 8, %s349
          %s351 = smul.u32 %s350, 4
          %p352 = scmp.lt.s32.totalorder %s346, 37
          %s353 = scalar_select %p352, %s346, 37
          %s354 = smul.addr %s353, 4
          %s355 = smul.addr %s354, 8
          %s356 = scalar_lea.vmem %s0, %s355
          %s357 = smul.u32 20, %s21
          %s358 = ssub.s32 38, %s357
          %p359 = scmp.lt.s32.totalorder %s358, 20
          %s360 = scalar_select %p359, %s358, 20
          %s361 = smul.u32 8, %s360
          %s362 = smul.u32 %s361, 4
        $region52: #{tpu_custom_call.1} parent=47 // pred_fallthru
          _
        // Predicated region
        $region53: #{tpu_custom_call.1} parent=47 // pred_check
          %p363 = pneg %p67
        $region54: #{tpu_custom_call.1} parent=47 // pred_check_branch
          %365 = sbr.rel (%p363) target = $region56
        $region55: #{tpu_custom_call.1} parent=47 // pred_region
          %s366 = smul.u32 20, %s21
          %s367 = ssub.s32 38, %s366
          %p368 = scmp.lt.s32.totalorder %s367, 20
          %s369 = scalar_select %p368, %s367, 20
          %s370 = smul.u32 8, %s369
          %s371 = smul.u32 %s370, 4
          %p372 = scmp.lt.s32.totalorder %s366, 37
          %s373 = scalar_select %p372, %s366, 37
          %s374 = smul.addr %s373, 4
          %s375 = smul.addr %s374, 8
          %s376 = scalar_lea.vmem %s1, %s375
          %s377 = smul.u32 20, %s21
          %s378 = ssub.s32 38, %s377
          %p379 = scmp.lt.s32.totalorder %s378, 20
          %s380 = scalar_select %p379, %s378, 20
          %s381 = smul.u32 8, %s380
          %s382 = smul.u32 %s381, 4
        $region56: #{tpu_custom_call.1} parent=47 // pred_fallthru
          _
      $region48: #{tpu_custom_call.1} parent=5 // pred_fallthru
        _
      %p383 = scmp.le.s32.totalorder 1, %s21
      %p384 = scmp.lt.s32.totalorder %s21, 3
      %p385 = pnand %p383, %p384
      %p386 = pneg %p385
      // Predicated region
      $region57: #{tpu_custom_call.1} parent=5 // pred_check
        _
      $region58: #{tpu_custom_call.1} parent=5 // pred_check_branch
        %388 = sbr.rel (%p385) target = $region60
      $region59: #{tpu_custom_call.1} parent=5 // pred_region
        %s389 = ssub.s32 %s21, 1
        // Predicated region
        $region61: #{tpu_custom_call.1} parent=59 // pred_check
          %p390 = pneg %p94
        $region62: #{tpu_custom_call.1} parent=59 // pred_check_branch
          %392 = sbr.rel (%p390) target = $region64
        $region63: #{tpu_custom_call.1} parent=59 // pred_region
          %394 = dma.done [#allocation3], 12800
        $region64: #{tpu_custom_call.1} parent=59 // pred_fallthru
          _
        // Predicated region
        $region65: #{tpu_custom_call.1} parent=59 // pred_check
          %p395 = pneg %p178
        $region66: #{tpu_custom_call.1} parent=59 // pred_check_branch
          %397 = sbr.rel (%p395) target = $region68
        $region67: #{tpu_custom_call.1} parent=59 // pred_region
          %399 = dma.done [#allocation6], 16384
        $region68: #{tpu_custom_call.1} parent=59 // pred_fallthru
          _
        // Predicated region
        $region69: #{tpu_custom_call.1} parent=59 // pred_check
          %p400 = pneg %p220
        $region70: #{tpu_custom_call.1} parent=59 // pred_check_branch
          %402 = sbr.rel (%p400) target = $region72
        $region71: #{tpu_custom_call.1} parent=59 // pred_region
          %404 = dma.done [#allocation6], 16384
        $region72: #{tpu_custom_call.1} parent=59 // pred_fallthru
          _
        %s405 = smul.u32 20, %s26
        %s406 = ssub.s32 38, %s405
        %p407 = scmp.lt.s32.totalorder %s406, 20
        %s408 = scalar_select %p407, %s406, 20
        %s409 = smul.u32 8, %s408
        %s410 = smul.u32 %s409, 4
        %p411 = scmp.lt.s32.totalorder %s405, 37
        %s412 = scalar_select %p411, %s405, 37
        %s413 = smul.addr %s412, 4
        %s414 = smul.addr %s413, 8
        %s415 = scalar_lea.vmem %s0, %s414
        %p416 = pneg %p47
        %p417 = pneg %p44
        %s418 = smul.u32 20, %s26
        %s419 = ssub.s32 38, %s418
        %p420 = scmp.lt.s32.totalorder %s419, 20
        %s421 = scalar_select %p420, %s419, 20
        %s422 = smul.u32 8, %s421
        %s423 = smul.u32 %s422, 4
        %p424 = scmp.lt.s32.totalorder %s418, 37
        %s425 = scalar_select %p424, %s418, 37
        %s426 = smul.addr %s425, 4
        %s427 = smul.addr %s426, 8
        %s428 = scalar_lea.vmem %s1, %s427
        %p429 = pneg %p73
        %p430 = pneg %p70
        %p431 = pneg %p94
        %p432 = pneg %p91
        %p433 = pneg %p115
        %p434 = pneg %p112
        %p435 = pneg %p136
        %p436 = pneg %p133
        %p437 = pneg %p157
        %p438 = pneg %p154
        %p439 = pneg %p178
        %p440 = pneg %p175
        %p441 = pneg %p199
        %p442 = pneg %p196
        %p443 = pneg %p220
        %p444 = pneg %p217
        %p445 = pneg %p241
        %p446 = pneg %p238
        %p447 = pneg %p267
        %p448 = pneg %p264
        %s449 = sand.u32 %s254, 1
        %s450 = scalar_lea.sflag [#allocation4], %s449
        %s451 = sand.u32 %s254, 1
        %s452 = smul.addr %s451, 640
        %s453 = scalar_lea.vmem [#allocation8], %s452
        %s454 = smul.u32 20, %s26
        %s455 = ssub.s32 38, %s454
        %p456 = scmp.lt.s32.totalorder %s455, 20
        %s457 = scalar_select %p456, %s455, 20
        %s458 = smul.u32 8, %s457
        %s459 = smul.u32 %s458, 4
        %p460 = scmp.lt.s32.totalorder %s454, 37
        %s461 = scalar_select %p460, %s454, 37
        %s462 = smul.addr %s461, 4
        %s463 = smul.addr %s462, 8
        %s464 = scalar_lea.vmem %s0, %s463
        %s465 = smul.u32 20, %s26
        %s466 = ssub.s32 38, %s465
        %p467 = scmp.lt.s32.totalorder %s466, 20
        %s468 = scalar_select %p467, %s466, 20
        %s469 = smul.u32 8, %s468
        %s470 = smul.u32 %s469, 4
        %s471 = smul.u32 20, %s26
        %s472 = ssub.s32 38, %s471
        %p473 = scmp.lt.s32.totalorder %s472, 20
        %s474 = scalar_select %p473, %s472, 20
        %s475 = smul.u32 8, %s474
        %s476 = smul.u32 %s475, 4
        %p477 = scmp.lt.s32.totalorder %s471, 37
        %s478 = scalar_select %p477, %s471, 37
        %s479 = smul.addr %s478, 4
        %s480 = smul.addr %s479, 8
        %s481 = scalar_lea.vmem %s1, %s480
        %s482 = smul.u32 20, %s26
        %s483 = ssub.s32 38, %s482
        %p484 = scmp.lt.s32.totalorder %s483, 20
        %s485 = scalar_select %p484, %s483, 20
        %s486 = smul.u32 8, %s485
        %s487 = smul.u32 %s486, 4
        %s488 = smul.u32 20, %s26
        %s489 = ssub.s32 38, %s488
        %p490 = scmp.lt.s32.totalorder %s489, 20
        %s491 = scalar_select %p490, %s489, 20
        %s492 = smul.u32 8, %s491
        %s493 = smul.u32 %s492, 4
        %v495 = vld [vmem:[%s464] sm:$0xff]
        %v496 = vld [vmem:[%s464 + $0x8] sm:$0xff]
        %v497 = vld [vmem:[%s464 + $0x10] sm:$0xff]
        %v498 = vld [vmem:[%s464 + $0x18] sm:$0xff]
        %v499 = vld [vmem:[%s464 + $0x20] sm:$0xff]
        %v500 = vld [vmem:[%s464 + $0x28] sm:$0xff]
        %v501 = vld [vmem:[%s464 + $0x30] sm:$0xff]
        %v502 = vld [vmem:[%s464 + $0x38] sm:$0xff]
        %v503 = vld [vmem:[%s464 + $0x40] sm:$0xff]
        %v504 = vld [vmem:[%s464 + $0x48] sm:$0xff]
        %v505 = vld [vmem:[%s464 + $0x50] sm:$0xff]
        %v506 = vld [vmem:[%s464 + $0x58] sm:$0xff]
        %v507 = vld [vmem:[%s464 + $0x60] sm:$0xff]
        %v508 = vld [vmem:[%s464 + $0x68] sm:$0xff]
        %v509 = vld [vmem:[%s464 + $0x70] sm:$0xff]
        %v510 = vld [vmem:[%s464 + $0x78] sm:$0xff]
        %v511 = vld [vmem:[%s464 + $0x80] sm:$0xff]
        %v512 = vld [vmem:[%s464 + $0x88] sm:$0xff]
        %v513 = vld [vmem:[%s464 + $0x90] sm:$0xff]
        %v514 = vld [vmem:[%s464 + $0x98] sm:$0xff]
        %v515 = vld [vmem:[%s464 + $0xa0] sm:$0xff]
        %v516 = vld [vmem:[%s464 + $0xa8] sm:$0xff]
        %v517 = vld [vmem:[%s464 + $0xb0] sm:$0xff]
        %v518 = vld [vmem:[%s464 + $0xb8] sm:$0xff]
        %v519 = vld [vmem:[%s464 + $0xc0] sm:$0xff]
        %v520 = vld [vmem:[%s464 + $0xc8] sm:$0xff]
        %v521 = vld [vmem:[%s464 + $0xd0] sm:$0xff]
        %v522 = vld [vmem:[%s464 + $0xd8] sm:$0xff]
        %v523 = vld [vmem:[%s464 + $0xe0] sm:$0xff]
        %v524 = vld [vmem:[%s464 + $0xe8] sm:$0xff]
        %v525 = vld [vmem:[%s464 + $0xf0] sm:$0xff]
        %v526 = vld [vmem:[%s464 + $0xf8] sm:$0xff]
        %v527 = vld [vmem:[%s464 + $0x100] sm:$0xff]
        %v528 = vld [vmem:[%s464 + $0x108] sm:$0xff]
        %v529 = vld [vmem:[%s464 + $0x110] sm:$0xff]
        %v530 = vld [vmem:[%s464 + $0x118] sm:$0xff]
        %v531 = vld [vmem:[%s464 + $0x120] sm:$0xff]
        %v532 = vld [vmem:[%s464 + $0x128] sm:$0xff]
        %v533 = vld [vmem:[%s464 + $0x130] sm:$0xff]
        %v534 = vld [vmem:[%s464 + $0x138] sm:$0xff]
        %v535 = vld [vmem:[%s464 + $0x140] sm:$0xff]
        %v536 = vld [vmem:[%s464 + $0x148] sm:$0xff]
        %v537 = vld [vmem:[%s464 + $0x150] sm:$0xff]
        %v538 = vld [vmem:[%s464 + $0x158] sm:$0xff]
        %v539 = vld [vmem:[%s464 + $0x160] sm:$0xff]
        %v540 = vld [vmem:[%s464 + $0x168] sm:$0xff]
        %v541 = vld [vmem:[%s464 + $0x170] sm:$0xff]
        %v542 = vld [vmem:[%s464 + $0x178] sm:$0xff]
        %v543 = vld [vmem:[%s464 + $0x180] sm:$0xff]
        %v544 = vld [vmem:[%s464 + $0x188] sm:$0xff]
        %v545 = vld [vmem:[%s464 + $0x190] sm:$0xff]
        %v546 = vld [vmem:[%s464 + $0x198] sm:$0xff]
        %v547 = vld [vmem:[%s464 + $0x1a0] sm:$0xff]
        %v548 = vld [vmem:[%s464 + $0x1a8] sm:$0xff]
        %v549 = vld [vmem:[%s464 + $0x1b0] sm:$0xff]
        %v550 = vld [vmem:[%s464 + $0x1b8] sm:$0xff]
        %v551 = vld [vmem:[%s464 + $0x1c0] sm:$0xff]
        %v552 = vld [vmem:[%s464 + $0x1c8] sm:$0xff]
        %v553 = vld [vmem:[%s464 + $0x1d0] sm:$0xff]
        %v554 = vld [vmem:[%s464 + $0x1d8] sm:$0xff]
        %v555 = vld [vmem:[%s464 + $0x1e0] sm:$0xff]
        %v556 = vld [vmem:[%s464 + $0x1e8] sm:$0xff]
        %v557 = vld [vmem:[%s464 + $0x1f0] sm:$0xff]
        %v558 = vld [vmem:[%s464 + $0x1f8] sm:$0xff]
        %v559 = vld [vmem:[%s464 + $0x200] sm:$0xff]
        %v560 = vld [vmem:[%s464 + $0x208] sm:$0xff]
        %v561 = vld [vmem:[%s464 + $0x210] sm:$0xff]
        %v562 = vld [vmem:[%s464 + $0x218] sm:$0xff]
        %v563 = vld [vmem:[%s464 + $0x220] sm:$0xff]
        %v564 = vld [vmem:[%s464 + $0x228] sm:$0xff]
        %v565 = vld [vmem:[%s464 + $0x230] sm:$0xff]
        %v566 = vld [vmem:[%s464 + $0x238] sm:$0xff]
        %v567 = vld [vmem:[%s464 + $0x240] sm:$0xff]
        %v568 = vld [vmem:[%s464 + $0x248] sm:$0xff]
        %v569 = vld [vmem:[%s464 + $0x250] sm:$0xff]
        %v570 = vld [vmem:[%s464 + $0x258] sm:$0xff]
        %v571 = vld [vmem:[%s464 + $0x260] sm:$0xff]
        %v572 = vld [vmem:[%s464 + $0x268] sm:$0xff]
        %v573 = vld [vmem:[%s464 + $0x270] sm:$0xff]
        %v574 = vld [vmem:[%s464 + $0x278] sm:$0xff]
        %v575 = vpack.c.bf16 %v499, %v495
        %v576 = vpack.c.bf16 %v500, %v496
        %v577 = vpack.c.bf16 %v501, %v497
        %v578 = vpack.c.bf16 %v502, %v498
        %v579 = vpack.c.bf16 %v507, %v503
        %v580 = vpack.c.bf16 %v508, %v504
        %v581 = vpack.c.bf16 %v509, %v505
        %v582 = vpack.c.bf16 %v510, %v506
        %v583 = vpack.c.bf16 %v515, %v511
        %v584 = vpack.c.bf16 %v516, %v512
        %v585 = vpack.c.bf16 %v517, %v513
        %v586 = vpack.c.bf16 %v518, %v514
        %v587 = vpack.c.bf16 %v523, %v519
        %v588 = vpack.c.bf16 %v524, %v520
        %v589 = vpack.c.bf16 %v525, %v521
        %v590 = vpack.c.bf16 %v526, %v522
        %v591 = vpack.c.bf16 %v531, %v527
        %v592 = vpack.c.bf16 %v532, %v528
        %v593 = vpack.c.bf16 %v533, %v529
        %v594 = vpack.c.bf16 %v534, %v530
        %v595 = vpack.c.bf16 %v539, %v535
        %v596 = vpack.c.bf16 %v540, %v536
        %v597 = vpack.c.bf16 %v541, %v537
        %v598 = vpack.c.bf16 %v542, %v538
        %v599 = vpack.c.bf16 %v547, %v543
        %v600 = vpack.c.bf16 %v548, %v544
        %v601 = vpack.c.bf16 %v549, %v545
        %v602 = vpack.c.bf16 %v550, %v546
        %v603 = vpack.c.bf16 %v555, %v551
        %v604 = vpack.c.bf16 %v556, %v552
        %v605 = vpack.c.bf16 %v557, %v553
        %v606 = vpack.c.bf16 %v558, %v554
        %v607 = vpack.c.bf16 %v563, %v559
        %v608 = vpack.c.bf16 %v564, %v560
        %v609 = vpack.c.bf16 %v565, %v561
        %v610 = vpack.c.bf16 %v566, %v562
        %v611 = vpack.c.bf16 %v571, %v567
        %v612 = vpack.c.bf16 %v572, %v568
        %v613 = vpack.c.bf16 %v573, %v569
        %v614 = vpack.c.bf16 %v574, %v570
        %v615 = vld [vmem:[#allocation2] sm:$0xff]
        %v616 = vld [vmem:[#allocation2 + $0x8] sm:$0xff]
        %v617 = vld [vmem:[#allocation2 + $0x10] sm:$0xff]
        %v618 = vld [vmem:[#allocation2 + $0x18] sm:$0xff]
        %v619 = vld [vmem:[#allocation2 + $0x20] sm:$0xff]
        %v620 = vld [vmem:[#allocation2 + $0x28] sm:$0xff]
        %v621 = vld [vmem:[#allocation2 + $0x30] sm:$0xff]
        %v622 = vld [vmem:[#allocation2 + $0x38] sm:$0xff]
        %v623 = vld [vmem:[#allocation2 + $0x40] sm:$0xff]
        %v624 = vld [vmem:[#allocation2 + $0x48] sm:$0xff]
        %v625 = vld [vmem:[#allocation2 + $0x50] sm:$0xff]
        %v626 = vld [vmem:[#allocation2 + $0x58] sm:$0xff]
        %v627 = vld [vmem:[#allocation2 + $0x60] sm:$0xff]
        %v628 = vld [vmem:[#allocation2 + $0x68] sm:$0xff]
        %v629 = vld [vmem:[#allocation2 + $0x70] sm:$0xff]
        %v630 = vld [vmem:[#allocation2 + $0x78] sm:$0xff]
        %v631 = vld [vmem:[#allocation2 + $0x80] sm:$0xff]
        %v632 = vld [vmem:[#allocation2 + $0x88] sm:$0xff]
        %v633 = vld [vmem:[#allocation2 + $0x90] sm:$0xff]
        %v634 = vld [vmem:[#allocation2 + $0x98] sm:$0xff]
        %v635 = vld [vmem:[#allocation2 + $0xa0] sm:$0xff]
        %v636 = vld [vmem:[#allocation2 + $0xa8] sm:$0xff]
        %v637 = vld [vmem:[#allocation2 + $0xb0] sm:$0xff]
        %v638 = vld [vmem:[#allocation2 + $0xb8] sm:$0xff]
        %v639 = vld [vmem:[#allocation2 + $0xc0] sm:$0xff]
        %v640 = vld [vmem:[#allocation2 + $0xc8] sm:$0xff]
        %v641 = vld [vmem:[#allocation2 + $0xd0] sm:$0xff]
        %v642 = vld [vmem:[#allocation2 + $0xd8] sm:$0xff]
        %v643 = vld [vmem:[#allocation2 + $0xe0] sm:$0xff]
        %v644 = vld [vmem:[#allocation2 + $0xe8] sm:$0xff]
        %v645 = vld [vmem:[#allocation2 + $0xf0] sm:$0xff]
        %v646 = vld [vmem:[#allocation2 + $0xf8] sm:$0xff]
        %v647 = vld [vmem:[#allocation2 + $0x100] sm:$0xff]
        %v648 = vld [vmem:[#allocation2 + $0x108] sm:$0xff]
        %v649 = vld [vmem:[#allocation2 + $0x110] sm:$0xff]
        %v650 = vld [vmem:[#allocation2 + $0x118] sm:$0xff]
        %v651 = vld [vmem:[#allocation2 + $0x120] sm:$0xff]
        %v652 = vld [vmem:[#allocation2 + $0x128] sm:$0xff]
        %v653 = vld [vmem:[#allocation2 + $0x130] sm:$0xff]
        %v654 = vld [vmem:[#allocation2 + $0x138] sm:$0xff]
        %v655 = vld [vmem:[#allocation2 + $0x140] sm:$0xff]
        %v656 = vld [vmem:[#allocation2 + $0x148] sm:$0xff]
        %v657 = vld [vmem:[#allocation2 + $0x150] sm:$0xff]
        %v658 = vld [vmem:[#allocation2 + $0x158] sm:$0xff]
        %v659 = vld [vmem:[#allocation2 + $0x160] sm:$0xff]
        %v660 = vld [vmem:[#allocation2 + $0x168] sm:$0xff]
        %v661 = vld [vmem:[#allocation2 + $0x170] sm:$0xff]
        %v662 = vld [vmem:[#allocation2 + $0x178] sm:$0xff]
        %v663 = vld [vmem:[#allocation2 + $0x180] sm:$0xff]
        %v664 = vld [vmem:[#allocation2 + $0x188] sm:$0xff]
        %v665 = vld [vmem:[#allocation2 + $0x190] sm:$0xff]
        %v666 = vld [vmem:[#allocation2 + $0x198] sm:$0xff]
        %v667 = vld [vmem:[#allocation2 + $0x1a0] sm:$0xff]
        %v668 = vld [vmem:[#allocation2 + $0x1a8] sm:$0xff]
        %v669 = vld [vmem:[#allocation2 + $0x1b0] sm:$0xff]
        %v670 = vld [vmem:[#allocation2 + $0x1b8] sm:$0xff]
        %v671 = vld [vmem:[#allocation2 + $0x1c0] sm:$0xff]
        %v672 = vld [vmem:[#allocation2 + $0x1c8] sm:$0xff]
        %v673 = vld [vmem:[#allocation2 + $0x1d0] sm:$0xff]
        %v674 = vld [vmem:[#allocation2 + $0x1d8] sm:$0xff]
        %v675 = vld [vmem:[#allocation2 + $0x1e0] sm:$0xff]
        %v676 = vld [vmem:[#allocation2 + $0x1e8] sm:$0xff]
        %v677 = vld [vmem:[#allocation2 + $0x1f0] sm:$0xff]
        %v678 = vld [vmem:[#allocation2 + $0x1f8] sm:$0xff]
        %v679 = vld [vmem:[#allocation2 + $0x200] sm:$0xff]
        %v680 = vld [vmem:[#allocation2 + $0x208] sm:$0xff]
        %v681 = vld [vmem:[#allocation2 + $0x210] sm:$0xff]
        %v682 = vld [vmem:[#allocation2 + $0x218] sm:$0xff]
        %v683 = vld [vmem:[#allocation2 + $0x220] sm:$0xff]
        %v684 = vld [vmem:[#allocation2 + $0x228] sm:$0xff]
        %v685 = vld [vmem:[#allocation2 + $0x230] sm:$0xff]
        %v686 = vld [vmem:[#allocation2 + $0x238] sm:$0xff]
        %v687 = vld [vmem:[#allocation2 + $0x240] sm:$0xff]
        %v688 = vld [vmem:[#allocation2 + $0x248] sm:$0xff]
        %v689 = vld [vmem:[#allocation2 + $0x250] sm:$0xff]
        %v690 = vld [vmem:[#allocation2 + $0x258] sm:$0xff]
        %v691 = vld [vmem:[#allocation2 + $0x260] sm:$0xff]
        %v692 = vld [vmem:[#allocation2 + $0x268] sm:$0xff]
        %v693 = vld [vmem:[#allocation2 + $0x270] sm:$0xff]
        %v694 = vld [vmem:[#allocation2 + $0x278] sm:$0xff]
        %v695 = vld [vmem:[#allocation2 + $0x280] sm:$0xff]
        %v696 = vld [vmem:[#allocation2 + $0x288] sm:$0xff]
        %v697 = vld [vmem:[#allocation2 + $0x290] sm:$0xff]
        %v698 = vld [vmem:[#allocation2 + $0x298] sm:$0xff]
        %v699 = vld [vmem:[#allocation2 + $0x2a0] sm:$0xff]
        %v700 = vld [vmem:[#allocation2 + $0x2a8] sm:$0xff]
        %v701 = vld [vmem:[#allocation2 + $0x2b0] sm:$0xff]
        %v702 = vld [vmem:[#allocation2 + $0x2b8] sm:$0xff]
        %v703 = vld [vmem:[#allocation2 + $0x2c0] sm:$0xff]
        %v704 = vld [vmem:[#allocation2 + $0x2c8] sm:$0xff]
        %v705 = vld [vmem:[#allocation2 + $0x2d0] sm:$0xff]
        %v706 = vld [vmem:[#allocation2 + $0x2d8] sm:$0xff]
        %v707 = vld [vmem:[#allocation2 + $0x2e0] sm:$0xff]
        %v708 = vld [vmem:[#allocation2 + $0x2e8] sm:$0xff]
        %v709 = vld [vmem:[#allocation2 + $0x2f0] sm:$0xff]
        %v710 = vld [vmem:[#allocation2 + $0x2f8] sm:$0xff]
        %v711 = vld [vmem:[#allocation2 + $0x300] sm:$0xff]
        %v712 = vld [vmem:[#allocation2 + $0x308] sm:$0xff]
        %v713 = vld [vmem:[#allocation2 + $0x310] sm:$0xff]
        %v714 = vld [vmem:[#allocation2 + $0x318] sm:$0xff]
        %v715 = vld [vmem:[%s3] sm:$0xf]
        %v717 = vperm.slane %v715, 0
        %v718 = vperm.slane %v715, 1
        %v719 = vperm.slane %v715, 2
        %v720 = vperm.slane %v715, 3
        %v825 = vunpack.c.l.b16 %v615
        %v826 = vunpack.c.h.b16 %v615
        %v827 = vunpack.c.l.b16 %v616
        %v828 = vunpack.c.h.b16 %v616
        %v829 = vunpack.c.l.b16 %v617
        %v830 = vunpack.c.h.b16 %v617
        %v831 = vunpack.c.l.b16 %v618
        %v832 = vunpack.c.h.b16 %v618
        %v833 = vunpack.c.l.b16 %v619
        %v834 = vunpack.c.h.b16 %v619
        %v835 = vunpack.c.l.b16 %v620
        %v836 = vunpack.c.h.b16 %v620
        %v837 = vunpack.c.l.b16 %v621
        %v838 = vunpack.c.h.b16 %v621
        %v839 = vunpack.c.l.b16 %v622
        %v840 = vunpack.c.h.b16 %v622
        %v841 = vunpack.c.l.b16 %v623
        %v842 = vunpack.c.h.b16 %v623
        %v843 = vunpack.c.l.b16 %v624
        %v844 = vunpack.c.h.b16 %v624
        %v845 = vunpack.c.l.b16 %v625
        %v846 = vunpack.c.h.b16 %v625
        %v847 = vunpack.c.l.b16 %v626
        %v848 = vunpack.c.h.b16 %v626
        %v849 = vunpack.c.l.b16 %v627
        %v850 = vunpack.c.h.b16 %v627
        %v851 = vunpack.c.l.b16 %v628
        %v852 = vunpack.c.h.b16 %v628
        %v853 = vunpack.c.l.b16 %v629
        %v854 = vunpack.c.h.b16 %v629
        %v855 = vunpack.c.l.b16 %v630
        %v856 = vunpack.c.h.b16 %v630
        %v857 = vunpack.c.l.b16 %v631
        %v858 = vunpack.c.h.b16 %v631
        %v859 = vunpack.c.l.b16 %v632
        %v860 = vunpack.c.h.b16 %v632
        %v861 = vunpack.c.l.b16 %v633
        %v862 = vunpack.c.h.b16 %v633
        %v863 = vunpack.c.l.b16 %v634
        %v864 = vunpack.c.h.b16 %v634
        %v865 = vunpack.c.l.b16 %v635
        %v866 = vunpack.c.h.b16 %v635
        %v867 = vunpack.c.l.b16 %v636
        %v868 = vunpack.c.h.b16 %v636
        %v869 = vunpack.c.l.b16 %v637
        %v870 = vunpack.c.h.b16 %v637
        %v871 = vunpack.c.l.b16 %v638
        %v872 = vunpack.c.h.b16 %v638
        %v873 = vunpack.c.l.b16 %v639
        %v874 = vunpack.c.h.b16 %v639
        %v875 = vunpack.c.l.b16 %v640
        %v876 = vunpack.c.h.b16 %v640
        %v877 = vunpack.c.l.b16 %v641
        %v878 = vunpack.c.h.b16 %v641
        %v879 = vunpack.c.l.b16 %v642
        %v880 = vunpack.c.h.b16 %v642
        %v881 = vunpack.c.l.b16 %v643
        %v882 = vunpack.c.h.b16 %v643
        %v883 = vunpack.c.l.b16 %v644
        %v884 = vunpack.c.h.b16 %v644
        %v885 = vunpack.c.l.b16 %v645
        %v886 = vunpack.c.h.b16 %v645
        %v887 = vunpack.c.l.b16 %v646
        %v888 = vunpack.c.h.b16 %v646
        %v889 = vunpack.c.l.b16 %v647
        %v890 = vunpack.c.h.b16 %v647
        %v891 = vunpack.c.l.b16 %v648
        %v892 = vunpack.c.h.b16 %v648
        %v893 = vunpack.c.l.b16 %v649
        %v894 = vunpack.c.h.b16 %v649
        %v895 = vunpack.c.l.b16 %v650
        %v896 = vunpack.c.h.b16 %v650
        %v897 = vunpack.c.l.b16 %v651
        %v898 = vunpack.c.h.b16 %v651
        %v899 = vunpack.c.l.b16 %v652
        %v900 = vunpack.c.h.b16 %v652
        %v901 = vunpack.c.l.b16 %v653
        %v902 = vunpack.c.h.b16 %v653
        %v903 = vunpack.c.l.b16 %v654
        %v904 = vunpack.c.h.b16 %v654
        %v905 = vunpack.c.l.b16 %v655
        %v906 = vunpack.c.h.b16 %v655
        %v907 = vunpack.c.l.b16 %v656
        %v908 = vunpack.c.h.b16 %v656
        %v909 = vunpack.c.l.b16 %v657
        %v910 = vunpack.c.h.b16 %v657
        %v911 = vunpack.c.l.b16 %v658
        %v912 = vunpack.c.h.b16 %v658
        %v913 = vunpack.c.l.b16 %v659
        %v914 = vunpack.c.h.b16 %v659
        %v915 = vunpack.c.l.b16 %v660
        %v916 = vunpack.c.h.b16 %v660
        %v917 = vunpack.c.l.b16 %v661
        %v918 = vunpack.c.h.b16 %v661
        %v919 = vunpack.c.l.b16 %v662
        %v920 = vunpack.c.h.b16 %v662
        %v921 = vunpack.c.l.b16 %v663
        %v922 = vunpack.c.h.b16 %v663
        %v923 = vunpack.c.l.b16 %v664
        %v924 = vunpack.c.h.b16 %v664
        %v925 = vunpack.c.l.b16 %v665
        %v926 = vunpack.c.h.b16 %v665
        %v927 = vunpack.c.l.b16 %v666
        %v928 = vunpack.c.h.b16 %v666
        %v929 = vunpack.c.l.b16 %v667
        %v930 = vunpack.c.h.b16 %v667
        %v931 = vunpack.c.l.b16 %v668
        %v932 = vunpack.c.h.b16 %v668
        %v933 = vunpack.c.l.b16 %v669
        %v934 = vunpack.c.h.b16 %v669
        %v935 = vunpack.c.l.b16 %v670
        %v936 = vunpack.c.h.b16 %v670
        %v937 = vunpack.c.l.b16 %v671
        %v938 = vunpack.c.h.b16 %v671
        %v939 = vunpack.c.l.b16 %v672
        %v940 = vunpack.c.h.b16 %v672
        %v941 = vunpack.c.l.b16 %v673
        %v942 = vunpack.c.h.b16 %v673
        %v943 = vunpack.c.l.b16 %v674
        %v944 = vunpack.c.h.b16 %v674
        %v945 = vunpack.c.l.b16 %v675
        %v946 = vunpack.c.h.b16 %v675
        %v947 = vunpack.c.l.b16 %v676
        %v948 = vunpack.c.h.b16 %v676
        %v949 = vunpack.c.l.b16 %v677
        %v950 = vunpack.c.h.b16 %v677
        %v951 = vunpack.c.l.b16 %v678
        %v952 = vunpack.c.h.b16 %v678
        %v953 = vunpack.c.l.b16 %v679
        %v954 = vunpack.c.h.b16 %v679
        %v955 = vunpack.c.l.b16 %v680
        %v956 = vunpack.c.h.b16 %v680
        %v957 = vunpack.c.l.b16 %v681
        %v958 = vunpack.c.h.b16 %v681
        %v959 = vunpack.c.l.b16 %v682
        %v960 = vunpack.c.h.b16 %v682
        %v961 = vunpack.c.l.b16 %v683
        %v962 = vunpack.c.h.b16 %v683
        %v963 = vunpack.c.l.b16 %v684
        %v964 = vunpack.c.h.b16 %v684
        %v965 = vunpack.c.l.b16 %v685
        %v966 = vunpack.c.h.b16 %v685
        %v967 = vunpack.c.l.b16 %v686
        %v968 = vunpack.c.h.b16 %v686
        %v969 = vunpack.c.l.b16 %v687
        %v970 = vunpack.c.h.b16 %v687
        %v971 = vunpack.c.l.b16 %v688
        %v972 = vunpack.c.h.b16 %v688
        %v973 = vunpack.c.l.b16 %v689
        %v974 = vunpack.c.h.b16 %v689
        %v975 = vunpack.c.l.b16 %v690
        %v976 = vunpack.c.h.b16 %v690
        %v977 = vunpack.c.l.b16 %v691
        %v978 = vunpack.c.h.b16 %v691
        %v979 = vunpack.c.l.b16 %v692
        %v980 = vunpack.c.h.b16 %v692
        %v981 = vunpack.c.l.b16 %v693
        %v982 = vunpack.c.h.b16 %v693
        %v983 = vunpack.c.l.b16 %v694
        %v984 = vunpack.c.h.b16 %v694
        %v985 = vunpack.c.l.b16 %v695
        %v986 = vunpack.c.h.b16 %v695
        %v987 = vunpack.c.l.b16 %v696
        %v988 = vunpack.c.h.b16 %v696
        %v989 = vunpack.c.l.b16 %v697
        %v990 = vunpack.c.h.b16 %v697
        %v991 = vunpack.c.l.b16 %v698
        %v992 = vunpack.c.h.b16 %v698
        %v993 = vunpack.c.l.b16 %v699
        %v994 = vunpack.c.h.b16 %v699
        %v995 = vunpack.c.l.b16 %v700
        %v996 = vunpack.c.h.b16 %v700
        %v997 = vunpack.c.l.b16 %v701
        %v998 = vunpack.c.h.b16 %v701
        %v999 = vunpack.c.l.b16 %v702
        %v1000 = vunpack.c.h.b16 %v702
        %v1001 = vunpack.c.l.b16 %v703
        %v1002 = vunpack.c.h.b16 %v703
        %v1003 = vunpack.c.l.b16 %v704
        %v1004 = vunpack.c.h.b16 %v704
        %v1005 = vunpack.c.l.b16 %v705
        %v1006 = vunpack.c.h.b16 %v705
        %v1007 = vunpack.c.l.b16 %v706
        %v1008 = vunpack.c.h.b16 %v706
        %v1009 = vunpack.c.l.b16 %v707
        %v1010 = vunpack.c.h.b16 %v707
        %v1011 = vunpack.c.l.b16 %v708
        %v1012 = vunpack.c.h.b16 %v708
        %v1013 = vunpack.c.l.b16 %v709
        %v1014 = vunpack.c.h.b16 %v709
        %v1015 = vunpack.c.l.b16 %v710
        %v1016 = vunpack.c.h.b16 %v710
        %v1017 = vunpack.c.l.b16 %v711
        %v1018 = vunpack.c.h.b16 %v711
        %v1019 = vunpack.c.l.b16 %v712
        %v1020 = vunpack.c.h.b16 %v712
        %v1021 = vunpack.c.l.b16 %v713
        %v1022 = vunpack.c.h.b16 %v713
        %v1023 = vunpack.c.l.b16 %v714
        %v1024 = vunpack.c.h.b16 %v714
        %v1025 = vpack.c.b16 %v829, %v825
        %v1026 = vpack.c.b16 %v830, %v826
        %v1027 = vpack.c.b16 %v831, %v827
        %v1028 = vpack.c.b16 %v832, %v828
        %v1029 = vpack.c.b16 %v837, %v833
        %v1030 = vpack.c.b16 %v838, %v834
        %v1031 = vpack.c.b16 %v839, %v835
        %v1032 = vpack.c.b16 %v840, %v836
        %v1033 = vpack.c.b16 %v845, %v841
        %v1034 = vpack.c.b16 %v846, %v842
        %v1035 = vpack.c.b16 %v847, %v843
        %v1036 = vpack.c.b16 %v848, %v844
        %v1037 = vpack.c.b16 %v853, %v849
        %v1038 = vpack.c.b16 %v854, %v850
        %v1039 = vpack.c.b16 %v855, %v851
        %v1040 = vpack.c.b16 %v856, %v852
        %v1041 = vpack.c.b16 %v861, %v857
        %v1042 = vpack.c.b16 %v862, %v858
        %v1043 = vpack.c.b16 %v863, %v859
        %v1044 = vpack.c.b16 %v864, %v860
        %v1045 = vpack.c.b16 %v869, %v865
        %v1046 = vpack.c.b16 %v870, %v866
        %v1047 = vpack.c.b16 %v871, %v867
        %v1048 = vpack.c.b16 %v872, %v868
        %v1049 = vpack.c.b16 %v877, %v873
        %v1050 = vpack.c.b16 %v878, %v874
        %v1051 = vpack.c.b16 %v879, %v875
        %v1052 = vpack.c.b16 %v880, %v876
        %v1053 = vpack.c.b16 %v885, %v881
        %v1054 = vpack.c.b16 %v886, %v882
        %v1055 = vpack.c.b16 %v887, %v883
        %v1056 = vpack.c.b16 %v888, %v884
        %v1057 = vpack.c.b16 %v893, %v889
        %v1058 = vpack.c.b16 %v894, %v890
        %v1059 = vpack.c.b16 %v895, %v891
        %v1060 = vpack.c.b16 %v896, %v892
        %v1061 = vpack.c.b16 %v901, %v897
        %v1062 = vpack.c.b16 %v902, %v898
        %v1063 = vpack.c.b16 %v903, %v899
        %v1064 = vpack.c.b16 %v904, %v900
        %v1065 = vpack.c.b16 %v909, %v905
        %v1066 = vpack.c.b16 %v910, %v906
        %v1067 = vpack.c.b16 %v911, %v907
        %v1068 = vpack.c.b16 %v912, %v908
        %v1069 = vpack.c.b16 %v917, %v913
        %v1070 = vpack.c.b16 %v918, %v914
        %v1071 = vpack.c.b16 %v919, %v915
        %v1072 = vpack.c.b16 %v920, %v916
        %v1073 = vpack.c.b16 %v925, %v921
        %v1074 = vpack.c.b16 %v926, %v922
        %v1075 = vpack.c.b16 %v927, %v923
        %v1076 = vpack.c.b16 %v928, %v924
        %v1077 = vpack.c.b16 %v933, %v929
        %v1078 = vpack.c.b16 %v934, %v930
        %v1079 = vpack.c.b16 %v935, %v931
        %v1080 = vpack.c.b16 %v936, %v932
        %v1081 = vpack.c.b16 %v941, %v937
        %v1082 = vpack.c.b16 %v942, %v938
        %v1083 = vpack.c.b16 %v943, %v939
        %v1084 = vpack.c.b16 %v944, %v940
        %v1085 = vpack.c.b16 %v949, %v945
        %v1086 = vpack.c.b16 %v950, %v946
        %v1087 = vpack.c.b16 %v951, %v947
        %v1088 = vpack.c.b16 %v952, %v948
        %v1089 = vpack.c.b16 %v957, %v953
        %v1090 = vpack.c.b16 %v958, %v954
        %v1091 = vpack.c.b16 %v959, %v955
        %v1092 = vpack.c.b16 %v960, %v956
        %v1093 = vpack.c.b16 %v965, %v961
        %v1094 = vpack.c.b16 %v966, %v962
        %v1095 = vpack.c.b16 %v967, %v963
        %v1096 = vpack.c.b16 %v968, %v964
        %v1097 = vpack.c.b16 %v973, %v969
        %v1098 = vpack.c.b16 %v974, %v970
        %v1099 = vpack.c.b16 %v975, %v971
        %v1100 = vpack.c.b16 %v976, %v972
        %v1101 = vpack.c.b16 %v981, %v977
        %v1102 = vpack.c.b16 %v982, %v978
        %v1103 = vpack.c.b16 %v983, %v979
        %v1104 = vpack.c.b16 %v984, %v980
        %v1105 = vpack.c.b16 %v989, %v985
        %v1106 = vpack.c.b16 %v990, %v986
        %v1107 = vpack.c.b16 %v991, %v987
        %v1108 = vpack.c.b16 %v992, %v988
        %v1109 = vpack.c.b16 %v997, %v993
        %v1110 = vpack.c.b16 %v998, %v994
        %v1111 = vpack.c.b16 %v999, %v995
        %v1112 = vpack.c.b16 %v1000, %v996
        %v1113 = vpack.c.b16 %v1005, %v1001
        %v1114 = vpack.c.b16 %v1006, %v1002
        %v1115 = vpack.c.b16 %v1007, %v1003
        %v1116 = vpack.c.b16 %v1008, %v1004
        %v1117 = vpack.c.b16 %v1013, %v1009
        %v1118 = vpack.c.b16 %v1014, %v1010
        %v1119 = vpack.c.b16 %v1015, %v1011
        %v1120 = vpack.c.b16 %v1016, %v1012
        %v1121 = vpack.c.b16 %v1021, %v1017
        %v1122 = vpack.c.b16 %v1022, %v1018
        %v1123 = vpack.c.b16 %v1023, %v1019
        %v1124 = vpack.c.b16 %v1024, %v1020
        %vm1225 = vcmask 130048
        %v1227 = vsel %vm1225, %v578, 0
        %v1230 = vsel %vm1225, %v582, 0
        %v1233 = vsel %vm1225, %v586, 0
        %v1236 = vsel %vm1225, %v590, 0
        %v1239 = vsel %vm1225, %v594, 0
        %v1242 = vsel %vm1225, %v598, 0
        %v1245 = vsel %vm1225, %v602, 0
        %v1248 = vsel %vm1225, %v606, 0
        %v1251 = vsel %vm1225, %v610, 0
        %v1254 = vsel %vm1225, %v614, 0
        %1256 = vmatpush.bf16.msra.mxu0 %v1053
        %1257 = vmatpush.bf16.msra.mxu0 %v1049
        %1258 = vmatpush.bf16.msra.mxu0 %v1045
        %1259 = vmatpush.bf16.msra.mxu0 %v1041
        %1260 = vmatpush.bf16.msra.mxu0 %v1037
        %1261 = vmatpush.bf16.msra.mxu0 %v1033
        %1262 = vmatpush.bf16.msra.mxu0 %v1029
        %1263 = vmatpush.bf16.msra.mxu0 %v1025
        %1264 = vmatmul.bf16.gmra.mxu0 %v575
        %v1265 = vpop.f32.mrf.mxu0
        %v1266 = vadd.f32 %v717, %v1265
        %v1267 = vpop.f32.mrf.mxu0
        %v1268 = vadd.f32 %v717, %v1267
        %1269 = vmatmul.bf16.gmra.mxu0 %v579
        %v1270 = vpop.f32.mrf.mxu0
        %v1271 = vadd.f32 %v717, %v1270
        %v1272 = vpop.f32.mrf.mxu0
        %v1273 = vadd.f32 %v717, %v1272
        %1274 = vmatmul.bf16.gmra.mxu0 %v583
        %v1275 = vpop.f32.mrf.mxu0
        %v1276 = vadd.f32 %v717, %v1275
        %v1277 = vpop.f32.mrf.mxu0
        %v1278 = vadd.f32 %v717, %v1277
        %1279 = vmatmul.bf16.gmra.mxu0 %v587
        %v1280 = vpop.f32.mrf.mxu0
        %v1281 = vadd.f32 %v717, %v1280
        %v1282 = vpop.f32.mrf.mxu0
        %v1283 = vadd.f32 %v717, %v1282
        %1284 = vmatmul.bf16.gmra.mxu0 %v591
        %v1285 = vpop.f32.mrf.mxu0
        %v1286 = vadd.f32 %v717, %v1285
        %v1287 = vpop.f32.mrf.mxu0
        %v1288 = vadd.f32 %v717, %v1287
        %1289 = vmatmul.bf16.gmra.mxu0 %v595
        %v1290 = vpop.f32.mrf.mxu0
        %v1291 = vadd.f32 %v717, %v1290
        %v1292 = vpop.f32.mrf.mxu0
        %v1293 = vadd.f32 %v717, %v1292
        %1294 = vmatmul.bf16.gmra.mxu0 %v599
        %v1295 = vpop.f32.mrf.mxu0
        %v1296 = vadd.f32 %v717, %v1295
        %v1297 = vpop.f32.mrf.mxu0
        %v1298 = vadd.f32 %v717, %v1297
        %1299 = vmatmul.bf16.gmra.mxu0 %v603
        %v1300 = vpop.f32.mrf.mxu0
        %v1301 = vadd.f32 %v717, %v1300
        %v1302 = vpop.f32.mrf.mxu0
        %v1303 = vadd.f32 %v717, %v1302
        %1304 = vmatmul.bf16.gmra.mxu0 %v607
        %v1305 = vpop.f32.mrf.mxu0
        %v1306 = vadd.f32 %v717, %v1305
        %v1307 = vpop.f32.mrf.mxu0
        %v1308 = vadd.f32 %v717, %v1307
        %1309 = vmatmul.bf16.gmra.mxu0 %v611
        %v1310 = vpop.f32.mrf.mxu0
        %v1311 = vadd.f32 %v717, %v1310
        %v1312 = vpop.f32.mrf.mxu0
        %v1313 = vadd.f32 %v717, %v1312
        %1314 = vdwg.mxu0
        %1315 = vmatpush.bf16.msra.mxu0 %v1085
        %1316 = vmatpush.bf16.msra.mxu0 %v1081
        %1317 = vmatpush.bf16.msra.mxu0 %v1077
        %1318 = vmatpush.bf16.msra.mxu0 %v1073
        %1319 = vmatpush.bf16.msra.mxu0 %v1069
        %1320 = vmatpush.bf16.msra.mxu0 %v1065
        %1321 = vmatpush.bf16.msra.mxu0 %v1061
        %1322 = vmatpush.bf16.msra.mxu0 %v1057
        %1323 = vmatmul.bf16.gmra.mxu0 %v576
        %v1324 = vpop.f32.mrf.mxu0
        %v1325 = vadd.f32 %v1266, %v1324
        %v1326 = vpop.f32.mrf.mxu0
        %v1327 = vadd.f32 %v1268, %v1326
        %1328 = vmatmul.bf16.gmra.mxu0 %v580
        %v1329 = vpop.f32.mrf.mxu0
        %v1330 = vadd.f32 %v1271, %v1329
        %v1331 = vpop.f32.mrf.mxu0
        %v1332 = vadd.f32 %v1273, %v1331
        %1333 = vmatmul.bf16.gmra.mxu0 %v584
        %v1334 = vpop.f32.mrf.mxu0
        %v1335 = vadd.f32 %v1276, %v1334
        %v1336 = vpop.f32.mrf.mxu0
        %v1337 = vadd.f32 %v1278, %v1336
        %1338 = vmatmul.bf16.gmra.mxu0 %v588
        %v1339 = vpop.f32.mrf.mxu0
        %v1340 = vadd.f32 %v1281, %v1339
        %v1341 = vpop.f32.mrf.mxu0
        %v1342 = vadd.f32 %v1283, %v1341
        %1343 = vmatmul.bf16.gmra.mxu0 %v592
        %v1344 = vpop.f32.mrf.mxu0
        %v1345 = vadd.f32 %v1286, %v1344
        %v1346 = vpop.f32.mrf.mxu0
        %v1347 = vadd.f32 %v1288, %v1346
        %1348 = vmatmul.bf16.gmra.mxu0 %v596
        %v1349 = vpop.f32.mrf.mxu0
        %v1350 = vadd.f32 %v1291, %v1349
        %v1351 = vpop.f32.mrf.mxu0
        %v1352 = vadd.f32 %v1293, %v1351
        %1353 = vmatmul.bf16.gmra.mxu0 %v600
        %v1354 = vpop.f32.mrf.mxu0
        %v1355 = vadd.f32 %v1296, %v1354
        %v1356 = vpop.f32.mrf.mxu0
        %v1357 = vadd.f32 %v1298, %v1356
        %1358 = vmatmul.bf16.gmra.mxu0 %v604
        %v1359 = vpop.f32.mrf.mxu0
        %v1360 = vadd.f32 %v1301, %v1359
        %v1361 = vpop.f32.mrf.mxu0
        %v1362 = vadd.f32 %v1303, %v1361
        %1363 = vmatmul.bf16.gmra.mxu0 %v608
        %v1364 = vpop.f32.mrf.mxu0
        %v1365 = vadd.f32 %v1306, %v1364
        %v1366 = vpop.f32.mrf.mxu0
        %v1367 = vadd.f32 %v1308, %v1366
        %1368 = vmatmul.bf16.gmra.mxu0 %v612
        %v1369 = vpop.f32.mrf.mxu0
        %v1370 = vadd.f32 %v1311, %v1369
        %v1371 = vpop.f32.mrf.mxu0
        %v1372 = vadd.f32 %v1313, %v1371
        %1373 = vdwg.mxu0
        %1374 = vmatpush.bf16.msra.mxu0 %v1117
        %1375 = vmatpush.bf16.msra.mxu0 %v1113
        %1376 = vmatpush.bf16.msra.mxu0 %v1109
        %1377 = vmatpush.bf16.msra.mxu0 %v1105
        %1378 = vmatpush.bf16.msra.mxu0 %v1101
        %1379 = vmatpush.bf16.msra.mxu0 %v1097
        %1380 = vmatpush.bf16.msra.mxu0 %v1093
        %1381 = vmatpush.bf16.msra.mxu0 %v1089
        %1382 = vmatmul.bf16.gmra.mxu0 %v577
        %v1383 = vpop.f32.mrf.mxu0
        %v1384 = vadd.f32 %v1325, %v1383
        %v1385 = vpop.f32.mrf.mxu0
        %v1386 = vadd.f32 %v1327, %v1385
        %1387 = vmatmul.bf16.gmra.mxu0 %v581
        %v1388 = vpop.f32.mrf.mxu0
        %v1389 = vadd.f32 %v1330, %v1388
        %v1390 = vpop.f32.mrf.mxu0
        %v1391 = vadd.f32 %v1332, %v1390
        %1392 = vmatmul.bf16.gmra.mxu0 %v585
        %v1393 = vpop.f32.mrf.mxu0
        %v1394 = vadd.f32 %v1335, %v1393
        %v1395 = vpop.f32.mrf.mxu0
        %v1396 = vadd.f32 %v1337, %v1395
        %1397 = vmatmul.bf16.gmra.mxu0 %v589
        %v1398 = vpop.f32.mrf.mxu0
        %v1399 = vadd.f32 %v1340, %v1398
        %v1400 = vpop.f32.mrf.mxu0
        %v1401 = vadd.f32 %v1342, %v1400
        %1402 = vmatmul.bf16.gmra.mxu0 %v593
        %v1403 = vpop.f32.mrf.mxu0
        %v1404 = vadd.f32 %v1345, %v1403
        %v1405 = vpop.f32.mrf.mxu0
        %v1406 = vadd.f32 %v1347, %v1405
        %1407 = vmatmul.bf16.gmra.mxu0 %v597
        %v1408 = vpop.f32.mrf.mxu0
        %v1409 = vadd.f32 %v1350, %v1408
        %v1410 = vpop.f32.mrf.mxu0
        %v1411 = vadd.f32 %v1352, %v1410
        %1412 = vmatmul.bf16.gmra.mxu0 %v601
        %v1413 = vpop.f32.mrf.mxu0
        %v1414 = vadd.f32 %v1355, %v1413
        %v1415 = vpop.f32.mrf.mxu0
        %v1416 = vadd.f32 %v1357, %v1415
        %1417 = vmatmul.bf16.gmra.mxu0 %v605
        %v1418 = vpop.f32.mrf.mxu0
        %v1419 = vadd.f32 %v1360, %v1418
        %v1420 = vpop.f32.mrf.mxu0
        %v1421 = vadd.f32 %v1362, %v1420
        %1422 = vmatmul.bf16.gmra.mxu0 %v609
        %v1423 = vpop.f32.mrf.mxu0
        %v1424 = vadd.f32 %v1365, %v1423
        %v1425 = vpop.f32.mrf.mxu0
        %v1426 = vadd.f32 %v1367, %v1425
        %1427 = vmatmul.bf16.gmra.mxu0 %v613
        %v1428 = vpop.f32.mrf.mxu0
        %v1429 = vadd.f32 %v1370, %v1428
        %v1430 = vpop.f32.mrf.mxu0
        %v1431 = vadd.f32 %v1372, %v1430
        %1432 = vdwg.mxu0
        %1433 = vmatpush.bf16.msra.mxu0 0
        %1434 = vmatpush.bf16.msra.mxu0 0
        %1435 = vmatpush.bf16.msra.mxu0 0
        %1436 = vmatpush.bf16.msra.mxu0 0
        %1437 = vmatpush.bf16.msra.mxu0 0
        %1438 = vmatpush.bf16.msra.mxu0 0
        %1439 = vmatpush.bf16.msra.mxu0 0
        %1440 = vmatpush.bf16.msra.mxu0 %v1121
        %1441 = vmatmul.bf16.gmra.mxu0 %v1227
        %v1442 = vpop.f32.mrf.mxu0
        %v1443 = vadd.f32 %v1384, %v1442
        %v1444 = vpop.f32.mrf.mxu0
        %v1445 = vadd.f32 %v1386, %v1444
        %1446 = vmatmul.bf16.gmra.mxu0 %v1230
        %v1447 = vpop.f32.mrf.mxu0
        %v1448 = vadd.f32 %v1389, %v1447
        %v1449 = vpop.f32.mrf.mxu0
        %v1450 = vadd.f32 %v1391, %v1449
        %1451 = vmatmul.bf16.gmra.mxu0 %v1233
        %v1452 = vpop.f32.mrf.mxu0
        %v1453 = vadd.f32 %v1394, %v1452
        %v1454 = vpop.f32.mrf.mxu0
        %v1455 = vadd.f32 %v1396, %v1454
        %1456 = vmatmul.bf16.gmra.mxu0 %v1236
        %v1457 = vpop.f32.mrf.mxu0
        %v1458 = vadd.f32 %v1399, %v1457
        %v1459 = vpop.f32.mrf.mxu0
        %v1460 = vadd.f32 %v1401, %v1459
        %1461 = vmatmul.bf16.gmra.mxu0 %v1239
        %v1462 = vpop.f32.mrf.mxu0
        %v1463 = vadd.f32 %v1404, %v1462
        %v1464 = vpop.f32.mrf.mxu0
        %v1465 = vadd.f32 %v1406, %v1464
        %1466 = vmatmul.bf16.gmra.mxu0 %v1242
        %v1467 = vpop.f32.mrf.mxu0
        %v1468 = vadd.f32 %v1409, %v1467
        %v1469 = vpop.f32.mrf.mxu0
        %v1470 = vadd.f32 %v1411, %v1469
        %1471 = vmatmul.bf16.gmra.mxu0 %v1245
        %v1472 = vpop.f32.mrf.mxu0
        %v1473 = vadd.f32 %v1414, %v1472
        %v1474 = vpop.f32.mrf.mxu0
        %v1475 = vadd.f32 %v1416, %v1474
        %1476 = vmatmul.bf16.gmra.mxu0 %v1248
        %v1477 = vpop.f32.mrf.mxu0
        %v1478 = vadd.f32 %v1419, %v1477
        %v1479 = vpop.f32.mrf.mxu0
        %v1480 = vadd.f32 %v1421, %v1479
        %1481 = vmatmul.bf16.gmra.mxu0 %v1251
        %v1482 = vpop.f32.mrf.mxu0
        %v1483 = vadd.f32 %v1424, %v1482
        %v1484 = vpop.f32.mrf.mxu0
        %v1485 = vadd.f32 %v1426, %v1484
        %1486 = vmatmul.bf16.gmra.mxu0 %v1254
        %v1487 = vpop.f32.mrf.mxu0
        %v1488 = vadd.f32 %v1429, %v1487
        %v1489 = vpop.f32.mrf.mxu0
        %v1490 = vadd.f32 %v1431, %v1489
        %1491 = vdwg.mxu0
        %1492 = vmatpush.bf16.msra.mxu0 %v1054
        %1493 = vmatpush.bf16.msra.mxu0 %v1050
        %1494 = vmatpush.bf16.msra.mxu0 %v1046
        %1495 = vmatpush.bf16.msra.mxu0 %v1042
        %1496 = vmatpush.bf16.msra.mxu0 %v1038
        %1497 = vmatpush.bf16.msra.mxu0 %v1034
        %1498 = vmatpush.bf16.msra.mxu0 %v1030
        %1499 = vmatpush.bf16.msra.mxu0 %v1026
        %1500 = vmatmul.bf16.gmra.mxu0 %v575
        %v1501 = vpop.f32.mrf.mxu0
        %v1502 = vadd.f32 %v718, %v1501
        %v1503 = vpop.f32.mrf.mxu0
        %v1504 = vadd.f32 %v718, %v1503
        %1505 = vmatmul.bf16.gmra.mxu0 %v579
        %v1506 = vpop.f32.mrf.mxu0
        %v1507 = vadd.f32 %v718, %v1506
        %v1508 = vpop.f32.mrf.mxu0
        %v1509 = vadd.f32 %v718, %v1508
        %1510 = vmatmul.bf16.gmra.mxu0 %v583
        %v1511 = vpop.f32.mrf.mxu0
        %v1512 = vadd.f32 %v718, %v1511
        %v1513 = vpop.f32.mrf.mxu0
        %v1514 = vadd.f32 %v718, %v1513
        %1515 = vmatmul.bf16.gmra.mxu0 %v587
        %v1516 = vpop.f32.mrf.mxu0
        %v1517 = vadd.f32 %v718, %v1516
        %v1518 = vpop.f32.mrf.mxu0
        %v1519 = vadd.f32 %v718, %v1518
        %1520 = vmatmul.bf16.gmra.mxu0 %v591
        %v1521 = vpop.f32.mrf.mxu0
        %v1522 = vadd.f32 %v718, %v1521
        %v1523 = vpop.f32.mrf.mxu0
        %v1524 = vadd.f32 %v718, %v1523
        %1525 = vmatmul.bf16.gmra.mxu0 %v595
        %v1526 = vpop.f32.mrf.mxu0
        %v1527 = vadd.f32 %v718, %v1526
        %v1528 = vpop.f32.mrf.mxu0
        %v1529 = vadd.f32 %v718, %v1528
        %1530 = vmatmul.bf16.gmra.mxu0 %v599
        %v1531 = vpop.f32.mrf.mxu0
        %v1532 = vadd.f32 %v718, %v1531
        %v1533 = vpop.f32.mrf.mxu0
        %v1534 = vadd.f32 %v718, %v1533
        %1535 = vmatmul.bf16.gmra.mxu0 %v603
        %v1536 = vpop.f32.mrf.mxu0
        %v1537 = vadd.f32 %v718, %v1536
        %v1538 = vpop.f32.mrf.mxu0
        %v1539 = vadd.f32 %v718, %v1538
        %1540 = vmatmul.bf16.gmra.mxu0 %v607
        %v1541 = vpop.f32.mrf.mxu0
        %v1542 = vadd.f32 %v718, %v1541
        %v1543 = vpop.f32.mrf.mxu0
        %v1544 = vadd.f32 %v718, %v1543
        %1545 = vmatmul.bf16.gmra.mxu0 %v611
        %v1546 = vpop.f32.mrf.mxu0
        %v1547 = vadd.f32 %v718, %v1546
        %v1548 = vpop.f32.mrf.mxu0
        %v1549 = vadd.f32 %v718, %v1548
        %1550 = vdwg.mxu0
        %1551 = vmatpush.bf16.msra.mxu0 %v1086
        %1552 = vmatpush.bf16.msra.mxu0 %v1082
        %1553 = vmatpush.bf16.msra.mxu0 %v1078
        %1554 = vmatpush.bf16.msra.mxu0 %v1074
        %1555 = vmatpush.bf16.msra.mxu0 %v1070
        %1556 = vmatpush.bf16.msra.mxu0 %v1066
        %1557 = vmatpush.bf16.msra.mxu0 %v1062
        %1558 = vmatpush.bf16.msra.mxu0 %v1058
        %1559 = vmatmul.bf16.gmra.mxu0 %v576
        %v1560 = vpop.f32.mrf.mxu0
        %v1561 = vadd.f32 %v1502, %v1560
        %v1562 = vpop.f32.mrf.mxu0
        %v1563 = vadd.f32 %v1504, %v1562
        %1564 = vmatmul.bf16.gmra.mxu0 %v580
        %v1565 = vpop.f32.mrf.mxu0
        %v1566 = vadd.f32 %v1507, %v1565
        %v1567 = vpop.f32.mrf.mxu0
        %v1568 = vadd.f32 %v1509, %v1567
        %1569 = vmatmul.bf16.gmra.mxu0 %v584
        %v1570 = vpop.f32.mrf.mxu0
        %v1571 = vadd.f32 %v1512, %v1570
        %v1572 = vpop.f32.mrf.mxu0
        %v1573 = vadd.f32 %v1514, %v1572
        %1574 = vmatmul.bf16.gmra.mxu0 %v588
        %v1575 = vpop.f32.mrf.mxu0
        %v1576 = vadd.f32 %v1517, %v1575
        %v1577 = vpop.f32.mrf.mxu0
        %v1578 = vadd.f32 %v1519, %v1577
        %1579 = vmatmul.bf16.gmra.mxu0 %v592
        %v1580 = vpop.f32.mrf.mxu0
        %v1581 = vadd.f32 %v1522, %v1580
        %v1582 = vpop.f32.mrf.mxu0
        %v1583 = vadd.f32 %v1524, %v1582
        %1584 = vmatmul.bf16.gmra.mxu0 %v596
        %v1585 = vpop.f32.mrf.mxu0
        %v1586 = vadd.f32 %v1527, %v1585
        %v1587 = vpop.f32.mrf.mxu0
        %v1588 = vadd.f32 %v1529, %v1587
        %1589 = vmatmul.bf16.gmra.mxu0 %v600
        %v1590 = vpop.f32.mrf.mxu0
        %v1591 = vadd.f32 %v1532, %v1590
        %v1592 = vpop.f32.mrf.mxu0
        %v1593 = vadd.f32 %v1534, %v1592
        %1594 = vmatmul.bf16.gmra.mxu0 %v604
        %v1595 = vpop.f32.mrf.mxu0
        %v1596 = vadd.f32 %v1537, %v1595
        %v1597 = vpop.f32.mrf.mxu0
        %v1598 = vadd.f32 %v1539, %v1597
        %1599 = vmatmul.bf16.gmra.mxu0 %v608
        %v1600 = vpop.f32.mrf.mxu0
        %v1601 = vadd.f32 %v1542, %v1600
        %v1602 = vpop.f32.mrf.mxu0
        %v1603 = vadd.f32 %v1544, %v1602
        %1604 = vmatmul.bf16.gmra.mxu0 %v612
        %v1605 = vpop.f32.mrf.mxu0
        %v1606 = vadd.f32 %v1547, %v1605
        %v1607 = vpop.f32.mrf.mxu0
        %v1608 = vadd.f32 %v1549, %v1607
        %1609 = vdwg.mxu0
        %1610 = vmatpush.bf16.msra.mxu0 %v1118
        %1611 = vmatpush.bf16.msra.mxu0 %v1114
        %1612 = vmatpush.bf16.msra.mxu0 %v1110
        %1613 = vmatpush.bf16.msra.mxu0 %v1106
        %1614 = vmatpush.bf16.msra.mxu0 %v1102
        %1615 = vmatpush.bf16.msra.mxu0 %v1098
        %1616 = vmatpush.bf16.msra.mxu0 %v1094
        %1617 = vmatpush.bf16.msra.mxu0 %v1090
        %1618 = vmatmul.bf16.gmra.mxu0 %v577
        %v1619 = vpop.f32.mrf.mxu0
        %v1620 = vadd.f32 %v1561, %v1619
        %v1621 = vpop.f32.mrf.mxu0
        %v1622 = vadd.f32 %v1563, %v1621
        %1623 = vmatmul.bf16.gmra.mxu0 %v581
        %v1624 = vpop.f32.mrf.mxu0
        %v1625 = vadd.f32 %v1566, %v1624
        %v1626 = vpop.f32.mrf.mxu0
        %v1627 = vadd.f32 %v1568, %v1626
        %1628 = vmatmul.bf16.gmra.mxu0 %v585
        %v1629 = vpop.f32.mrf.mxu0
        %v1630 = vadd.f32 %v1571, %v1629
        %v1631 = vpop.f32.mrf.mxu0
        %v1632 = vadd.f32 %v1573, %v1631
        %1633 = vmatmul.bf16.gmra.mxu0 %v589
        %v1634 = vpop.f32.mrf.mxu0
        %v1635 = vadd.f32 %v1576, %v1634
        %v1636 = vpop.f32.mrf.mxu0
        %v1637 = vadd.f32 %v1578, %v1636
        %1638 = vmatmul.bf16.gmra.mxu0 %v593
        %v1639 = vpop.f32.mrf.mxu0
        %v1640 = vadd.f32 %v1581, %v1639
        %v1641 = vpop.f32.mrf.mxu0
        %v1642 = vadd.f32 %v1583, %v1641
        %1643 = vmatmul.bf16.gmra.mxu0 %v597
        %v1644 = vpop.f32.mrf.mxu0
        %v1645 = vadd.f32 %v1586, %v1644
        %v1646 = vpop.f32.mrf.mxu0
        %v1647 = vadd.f32 %v1588, %v1646
        %1648 = vmatmul.bf16.gmra.mxu0 %v601
        %v1649 = vpop.f32.mrf.mxu0
        %v1650 = vadd.f32 %v1591, %v1649
        %v1651 = vpop.f32.mrf.mxu0
        %v1652 = vadd.f32 %v1593, %v1651
        %1653 = vmatmul.bf16.gmra.mxu0 %v605
        %v1654 = vpop.f32.mrf.mxu0
        %v1655 = vadd.f32 %v1596, %v1654
        %v1656 = vpop.f32.mrf.mxu0
        %v1657 = vadd.f32 %v1598, %v1656
        %1658 = vmatmul.bf16.gmra.mxu0 %v609
        %v1659 = vpop.f32.mrf.mxu0
        %v1660 = vadd.f32 %v1601, %v1659
        %v1661 = vpop.f32.mrf.mxu0
        %v1662 = vadd.f32 %v1603, %v1661
        %1663 = vmatmul.bf16.gmra.mxu0 %v613
        %v1664 = vpop.f32.mrf.mxu0
        %v1665 = vadd.f32 %v1606, %v1664
        %v1666 = vpop.f32.mrf.mxu0
        %v1667 = vadd.f32 %v1608, %v1666
        %1668 = vdwg.mxu0
        %1669 = vmatpush.bf16.msra.mxu0 0
        %1670 = vmatpush.bf16.msra.mxu0 0
        %1671 = vmatpush.bf16.msra.mxu0 0
        %1672 = vmatpush.bf16.msra.mxu0 0
        %1673 = vmatpush.bf16.msra.mxu0 0
        %1674 = vmatpush.bf16.msra.mxu0 0
        %1675 = vmatpush.bf16.msra.mxu0 0
        %1676 = vmatpush.bf16.msra.mxu0 %v1122
        %1677 = vmatmul.bf16.gmra.mxu0 %v1227
        %v1678 = vpop.f32.mrf.mxu0
        %v1679 = vadd.f32 %v1620, %v1678
        %v1680 = vpop.f32.mrf.mxu0
        %v1681 = vadd.f32 %v1622, %v1680
        %1682 = vmatmul.bf16.gmra.mxu0 %v1230
        %v1683 = vpop.f32.mrf.mxu0
        %v1684 = vadd.f32 %v1625, %v1683
        %v1685 = vpop.f32.mrf.mxu0
        %v1686 = vadd.f32 %v1627, %v1685
        %1687 = vmatmul.bf16.gmra.mxu0 %v1233
        %v1688 = vpop.f32.mrf.mxu0
        %v1689 = vadd.f32 %v1630, %v1688
        %v1690 = vpop.f32.mrf.mxu0
        %v1691 = vadd.f32 %v1632, %v1690
        %1692 = vmatmul.bf16.gmra.mxu0 %v1236
        %v1693 = vpop.f32.mrf.mxu0
        %v1694 = vadd.f32 %v1635, %v1693
        %v1695 = vpop.f32.mrf.mxu0
        %v1696 = vadd.f32 %v1637, %v1695
        %1697 = vmatmul.bf16.gmra.mxu0 %v1239
        %v1698 = vpop.f32.mrf.mxu0
        %v1699 = vadd.f32 %v1640, %v1698
        %v1700 = vpop.f32.mrf.mxu0
        %v1701 = vadd.f32 %v1642, %v1700
        %1702 = vmatmul.bf16.gmra.mxu0 %v1242
        %v1703 = vpop.f32.mrf.mxu0
        %v1704 = vadd.f32 %v1645, %v1703
        %v1705 = vpop.f32.mrf.mxu0
        %v1706 = vadd.f32 %v1647, %v1705
        %1707 = vmatmul.bf16.gmra.mxu0 %v1245
        %v1708 = vpop.f32.mrf.mxu0
        %v1709 = vadd.f32 %v1650, %v1708
        %v1710 = vpop.f32.mrf.mxu0
        %v1711 = vadd.f32 %v1652, %v1710
        %1712 = vmatmul.bf16.gmra.mxu0 %v1248
        %v1713 = vpop.f32.mrf.mxu0
        %v1714 = vadd.f32 %v1655, %v1713
        %v1715 = vpop.f32.mrf.mxu0
        %v1716 = vadd.f32 %v1657, %v1715
        %1717 = vmatmul.bf16.gmra.mxu0 %v1251
        %v1718 = vpop.f32.mrf.mxu0
        %v1719 = vadd.f32 %v1660, %v1718
        %v1720 = vpop.f32.mrf.mxu0
        %v1721 = vadd.f32 %v1662, %v1720
        %1722 = vmatmul.bf16.gmra.mxu0 %v1254
        %v1723 = vpop.f32.mrf.mxu0
        %v1724 = vadd.f32 %v1665, %v1723
        %v1725 = vpop.f32.mrf.mxu0
        %v1726 = vadd.f32 %v1667, %v1725
        %1727 = vdwg.mxu0
        %1728 = vmatpush.bf16.msra.mxu0 %v1055
        %1729 = vmatpush.bf16.msra.mxu0 %v1051
        %1730 = vmatpush.bf16.msra.mxu0 %v1047
        %1731 = vmatpush.bf16.msra.mxu0 %v1043
        %1732 = vmatpush.bf16.msra.mxu0 %v1039
        %1733 = vmatpush.bf16.msra.mxu0 %v1035
        %1734 = vmatpush.bf16.msra.mxu0 %v1031
        %1735 = vmatpush.bf16.msra.mxu0 %v1027
        %1736 = vmatmul.bf16.gmra.mxu0 %v575
        %v1737 = vpop.f32.mrf.mxu0
        %v1738 = vadd.f32 %v719, %v1737
        %v1739 = vpop.f32.mrf.mxu0
        %v1740 = vadd.f32 %v719, %v1739
        %1741 = vmatmul.bf16.gmra.mxu0 %v579
        %v1742 = vpop.f32.mrf.mxu0
        %v1743 = vadd.f32 %v719, %v1742
        %v1744 = vpop.f32.mrf.mxu0
        %v1745 = vadd.f32 %v719, %v1744
        %1746 = vmatmul.bf16.gmra.mxu0 %v583
        %v1747 = vpop.f32.mrf.mxu0
        %v1748 = vadd.f32 %v719, %v1747
        %v1749 = vpop.f32.mrf.mxu0
        %v1750 = vadd.f32 %v719, %v1749
        %1751 = vmatmul.bf16.gmra.mxu0 %v587
        %v1752 = vpop.f32.mrf.mxu0
        %v1753 = vadd.f32 %v719, %v1752
        %v1754 = vpop.f32.mrf.mxu0
        %v1755 = vadd.f32 %v719, %v1754
        %1756 = vmatmul.bf16.gmra.mxu0 %v591
        %v1757 = vpop.f32.mrf.mxu0
        %v1758 = vadd.f32 %v719, %v1757
        %v1759 = vpop.f32.mrf.mxu0
        %v1760 = vadd.f32 %v719, %v1759
        %1761 = vmatmul.bf16.gmra.mxu0 %v595
        %v1762 = vpop.f32.mrf.mxu0
        %v1763 = vadd.f32 %v719, %v1762
        %v1764 = vpop.f32.mrf.mxu0
        %v1765 = vadd.f32 %v719, %v1764
        %1766 = vmatmul.bf16.gmra.mxu0 %v599
        %v1767 = vpop.f32.mrf.mxu0
        %v1768 = vadd.f32 %v719, %v1767
        %v1769 = vpop.f32.mrf.mxu0
        %v1770 = vadd.f32 %v719, %v1769
        %1771 = vmatmul.bf16.gmra.mxu0 %v603
        %v1772 = vpop.f32.mrf.mxu0
        %v1773 = vadd.f32 %v719, %v1772
        %v1774 = vpop.f32.mrf.mxu0
        %v1775 = vadd.f32 %v719, %v1774
        %1776 = vmatmul.bf16.gmra.mxu0 %v607
        %v1777 = vpop.f32.mrf.mxu0
        %v1778 = vadd.f32 %v719, %v1777
        %v1779 = vpop.f32.mrf.mxu0
        %v1780 = vadd.f32 %v719, %v1779
        %1781 = vmatmul.bf16.gmra.mxu0 %v611
        %v1782 = vpop.f32.mrf.mxu0
        %v1783 = vadd.f32 %v719, %v1782
        %v1784 = vpop.f32.mrf.mxu0
        %v1785 = vadd.f32 %v719, %v1784
        %1786 = vdwg.mxu0
        %1787 = vmatpush.bf16.msra.mxu0 %v1087
        %1788 = vmatpush.bf16.msra.mxu0 %v1083
        %1789 = vmatpush.bf16.msra.mxu0 %v1079
        %1790 = vmatpush.bf16.msra.mxu0 %v1075
        %1791 = vmatpush.bf16.msra.mxu0 %v1071
        %1792 = vmatpush.bf16.msra.mxu0 %v1067
        %1793 = vmatpush.bf16.msra.mxu0 %v1063
        %1794 = vmatpush.bf16.msra.mxu0 %v1059
        %1795 = vmatmul.bf16.gmra.mxu0 %v576
        %v1796 = vpop.f32.mrf.mxu0
        %v1797 = vadd.f32 %v1738, %v1796
        %v1798 = vpop.f32.mrf.mxu0
        %v1799 = vadd.f32 %v1740, %v1798
        %1800 = vmatmul.bf16.gmra.mxu0 %v580
        %v1801 = vpop.f32.mrf.mxu0
        %v1802 = vadd.f32 %v1743, %v1801
        %v1803 = vpop.f32.mrf.mxu0
        %v1804 = vadd.f32 %v1745, %v1803
        %1805 = vmatmul.bf16.gmra.mxu0 %v584
        %v1806 = vpop.f32.mrf.mxu0
        %v1807 = vadd.f32 %v1748, %v1806
        %v1808 = vpop.f32.mrf.mxu0
        %v1809 = vadd.f32 %v1750, %v1808
        %1810 = vmatmul.bf16.gmra.mxu0 %v588
        %v1811 = vpop.f32.mrf.mxu0
        %v1812 = vadd.f32 %v1753, %v1811
        %v1813 = vpop.f32.mrf.mxu0
        %v1814 = vadd.f32 %v1755, %v1813
        %1815 = vmatmul.bf16.gmra.mxu0 %v592
        %v1816 = vpop.f32.mrf.mxu0
        %v1817 = vadd.f32 %v1758, %v1816
        %v1818 = vpop.f32.mrf.mxu0
        %v1819 = vadd.f32 %v1760, %v1818
        %1820 = vmatmul.bf16.gmra.mxu0 %v596
        %v1821 = vpop.f32.mrf.mxu0
        %v1822 = vadd.f32 %v1763, %v1821
        %v1823 = vpop.f32.mrf.mxu0
        %v1824 = vadd.f32 %v1765, %v1823
        %1825 = vmatmul.bf16.gmra.mxu0 %v600
        %v1826 = vpop.f32.mrf.mxu0
        %v1827 = vadd.f32 %v1768, %v1826
        %v1828 = vpop.f32.mrf.mxu0
        %v1829 = vadd.f32 %v1770, %v1828
        %1830 = vmatmul.bf16.gmra.mxu0 %v604
        %v1831 = vpop.f32.mrf.mxu0
        %v1832 = vadd.f32 %v1773, %v1831
        %v1833 = vpop.f32.mrf.mxu0
        %v1834 = vadd.f32 %v1775, %v1833
        %1835 = vmatmul.bf16.gmra.mxu0 %v608
        %v1836 = vpop.f32.mrf.mxu0
        %v1837 = vadd.f32 %v1778, %v1836
        %v1838 = vpop.f32.mrf.mxu0
        %v1839 = vadd.f32 %v1780, %v1838
        %1840 = vmatmul.bf16.gmra.mxu0 %v612
        %v1841 = vpop.f32.mrf.mxu0
        %v1842 = vadd.f32 %v1783, %v1841
        %v1843 = vpop.f32.mrf.mxu0
        %v1844 = vadd.f32 %v1785, %v1843
        %1845 = vdwg.mxu0
        %1846 = vmatpush.bf16.msra.mxu0 %v1119
        %1847 = vmatpush.bf16.msra.mxu0 %v1115
        %1848 = vmatpush.bf16.msra.mxu0 %v1111
        %1849 = vmatpush.bf16.msra.mxu0 %v1107
        %1850 = vmatpush.bf16.msra.mxu0 %v1103
        %1851 = vmatpush.bf16.msra.mxu0 %v1099
        %1852 = vmatpush.bf16.msra.mxu0 %v1095
        %1853 = vmatpush.bf16.msra.mxu0 %v1091
        %1854 = vmatmul.bf16.gmra.mxu0 %v577
        %v1855 = vpop.f32.mrf.mxu0
        %v1856 = vadd.f32 %v1797, %v1855
        %v1857 = vpop.f32.mrf.mxu0
        %v1858 = vadd.f32 %v1799, %v1857
        %1859 = vmatmul.bf16.gmra.mxu0 %v581
        %v1860 = vpop.f32.mrf.mxu0
        %v1861 = vadd.f32 %v1802, %v1860
        %v1862 = vpop.f32.mrf.mxu0
        %v1863 = vadd.f32 %v1804, %v1862
        %1864 = vmatmul.bf16.gmra.mxu0 %v585
        %v1865 = vpop.f32.mrf.mxu0
        %v1866 = vadd.f32 %v1807, %v1865
        %v1867 = vpop.f32.mrf.mxu0
        %v1868 = vadd.f32 %v1809, %v1867
        %1869 = vmatmul.bf16.gmra.mxu0 %v589
        %v1870 = vpop.f32.mrf.mxu0
        %v1871 = vadd.f32 %v1812, %v1870
        %v1872 = vpop.f32.mrf.mxu0
        %v1873 = vadd.f32 %v1814, %v1872
        %1874 = vmatmul.bf16.gmra.mxu0 %v593
        %v1875 = vpop.f32.mrf.mxu0
        %v1876 = vadd.f32 %v1817, %v1875
        %v1877 = vpop.f32.mrf.mxu0
        %v1878 = vadd.f32 %v1819, %v1877
        %1879 = vmatmul.bf16.gmra.mxu0 %v597
        %v1880 = vpop.f32.mrf.mxu0
        %v1881 = vadd.f32 %v1822, %v1880
        %v1882 = vpop.f32.mrf.mxu0
        %v1883 = vadd.f32 %v1824, %v1882
        %1884 = vmatmul.bf16.gmra.mxu0 %v601
        %v1885 = vpop.f32.mrf.mxu0
        %v1886 = vadd.f32 %v1827, %v1885
        %v1887 = vpop.f32.mrf.mxu0
        %v1888 = vadd.f32 %v1829, %v1887
        %1889 = vmatmul.bf16.gmra.mxu0 %v605
        %v1890 = vpop.f32.mrf.mxu0
        %v1891 = vadd.f32 %v1832, %v1890
        %v1892 = vpop.f32.mrf.mxu0
        %v1893 = vadd.f32 %v1834, %v1892
        %1894 = vmatmul.bf16.gmra.mxu0 %v609
        %v1895 = vpop.f32.mrf.mxu0
        %v1896 = vadd.f32 %v1837, %v1895
        %v1897 = vpop.f32.mrf.mxu0
        %v1898 = vadd.f32 %v1839, %v1897
        %1899 = vmatmul.bf16.gmra.mxu0 %v613
        %v1900 = vpop.f32.mrf.mxu0
        %v1901 = vadd.f32 %v1842, %v1900
        %v1902 = vpop.f32.mrf.mxu0
        %v1903 = vadd.f32 %v1844, %v1902
        %1904 = vdwg.mxu0
        %1905 = vmatpush.bf16.msra.mxu0 0
        %1906 = vmatpush.bf16.msra.mxu0 0
        %1907 = vmatpush.bf16.msra.mxu0 0
        %1908 = vmatpush.bf16.msra.mxu0 0
        %1909 = vmatpush.bf16.msra.mxu0 0
        %1910 = vmatpush.bf16.msra.mxu0 0
        %1911 = vmatpush.bf16.msra.mxu0 0
        %1912 = vmatpush.bf16.msra.mxu0 %v1123
        %1913 = vmatmul.bf16.gmra.mxu0 %v1227
        %v1914 = vpop.f32.mrf.mxu0
        %v1915 = vadd.f32 %v1856, %v1914
        %v1916 = vpop.f32.mrf.mxu0
        %v1917 = vadd.f32 %v1858, %v1916
        %1918 = vmatmul.bf16.gmra.mxu0 %v1230
        %v1919 = vpop.f32.mrf.mxu0
        %v1920 = vadd.f32 %v1861, %v1919
        %v1921 = vpop.f32.mrf.mxu0
        %v1922 = vadd.f32 %v1863, %v1921
        %1923 = vmatmul.bf16.gmra.mxu0 %v1233
        %v1924 = vpop.f32.mrf.mxu0
        %v1925 = vadd.f32 %v1866, %v1924
        %v1926 = vpop.f32.mrf.mxu0
        %v1927 = vadd.f32 %v1868, %v1926
        %1928 = vmatmul.bf16.gmra.mxu0 %v1236
        %v1929 = vpop.f32.mrf.mxu0
        %v1930 = vadd.f32 %v1871, %v1929
        %v1931 = vpop.f32.mrf.mxu0
        %v1932 = vadd.f32 %v1873, %v1931
        %1933 = vmatmul.bf16.gmra.mxu0 %v1239
        %v1934 = vpop.f32.mrf.mxu0
        %v1935 = vadd.f32 %v1876, %v1934
        %v1936 = vpop.f32.mrf.mxu0
        %v1937 = vadd.f32 %v1878, %v1936
        %1938 = vmatmul.bf16.gmra.mxu0 %v1242
        %v1939 = vpop.f32.mrf.mxu0
        %v1940 = vadd.f32 %v1881, %v1939
        %v1941 = vpop.f32.mrf.mxu0
        %v1942 = vadd.f32 %v1883, %v1941
        %1943 = vmatmul.bf16.gmra.mxu0 %v1245
        %v1944 = vpop.f32.mrf.mxu0
        %v1945 = vadd.f32 %v1886, %v1944
        %v1946 = vpop.f32.mrf.mxu0
        %v1947 = vadd.f32 %v1888, %v1946
        %1948 = vmatmul.bf16.gmra.mxu0 %v1248
        %v1949 = vpop.f32.mrf.mxu0
        %v1950 = vadd.f32 %v1891, %v1949
        %v1951 = vpop.f32.mrf.mxu0
        %v1952 = vadd.f32 %v1893, %v1951
        %1953 = vmatmul.bf16.gmra.mxu0 %v1251
        %v1954 = vpop.f32.mrf.mxu0
        %v1955 = vadd.f32 %v1896, %v1954
        %v1956 = vpop.f32.mrf.mxu0
        %v1957 = vadd.f32 %v1898, %v1956
        %1958 = vmatmul.bf16.gmra.mxu0 %v1254
        %v1959 = vpop.f32.mrf.mxu0
        %v1960 = vadd.f32 %v1901, %v1959
        %v1961 = vpop.f32.mrf.mxu0
        %v1962 = vadd.f32 %v1903, %v1961
        %1963 = vdwg.mxu0
        %1964 = vmatpush.bf16.msra.mxu0 %v1056
        %1965 = vmatpush.bf16.msra.mxu0 %v1052
        %1966 = vmatpush.bf16.msra.mxu0 %v1048
        %1967 = vmatpush.bf16.msra.mxu0 %v1044
        %1968 = vmatpush.bf16.msra.mxu0 %v1040
        %1969 = vmatpush.bf16.msra.mxu0 %v1036
        %1970 = vmatpush.bf16.msra.mxu0 %v1032
        %1971 = vmatpush.bf16.msra.mxu0 %v1028
        %1972 = vmatmul.bf16.gmra.mxu0 %v575
        %v1973 = vpop.f32.mrf.mxu0
        %v1974 = vadd.f32 %v720, %v1973
        %v1975 = vpop.f32.mrf.mxu0
        %v1976 = vadd.f32 %v720, %v1975
        %1977 = vmatmul.bf16.gmra.mxu0 %v579
        %v1978 = vpop.f32.mrf.mxu0
        %v1979 = vadd.f32 %v720, %v1978
        %v1980 = vpop.f32.mrf.mxu0
        %v1981 = vadd.f32 %v720, %v1980
        %1982 = vmatmul.bf16.gmra.mxu0 %v583
        %v1983 = vpop.f32.mrf.mxu0
        %v1984 = vadd.f32 %v720, %v1983
        %v1985 = vpop.f32.mrf.mxu0
        %v1986 = vadd.f32 %v720, %v1985
        %1987 = vmatmul.bf16.gmra.mxu0 %v587
        %v1988 = vpop.f32.mrf.mxu0
        %v1989 = vadd.f32 %v720, %v1988
        %v1990 = vpop.f32.mrf.mxu0
        %v1991 = vadd.f32 %v720, %v1990
        %1992 = vmatmul.bf16.gmra.mxu0 %v591
        %v1993 = vpop.f32.mrf.mxu0
        %v1994 = vadd.f32 %v720, %v1993
        %v1995 = vpop.f32.mrf.mxu0
        %v1996 = vadd.f32 %v720, %v1995
        %1997 = vmatmul.bf16.gmra.mxu0 %v595
        %v1998 = vpop.f32.mrf.mxu0
        %v1999 = vadd.f32 %v720, %v1998
        %v2000 = vpop.f32.mrf.mxu0
        %v2001 = vadd.f32 %v720, %v2000
        %2002 = vmatmul.bf16.gmra.mxu0 %v599
        %v2003 = vpop.f32.mrf.mxu0
        %v2004 = vadd.f32 %v720, %v2003
        %v2005 = vpop.f32.mrf.mxu0
        %v2006 = vadd.f32 %v720, %v2005
        %2007 = vmatmul.bf16.gmra.mxu0 %v603
        %v2008 = vpop.f32.mrf.mxu0
        %v2009 = vadd.f32 %v720, %v2008
        %v2010 = vpop.f32.mrf.mxu0
        %v2011 = vadd.f32 %v720, %v2010
        %2012 = vmatmul.bf16.gmra.mxu0 %v607
        %v2013 = vpop.f32.mrf.mxu0
        %v2014 = vadd.f32 %v720, %v2013
        %v2015 = vpop.f32.mrf.mxu0
        %v2016 = vadd.f32 %v720, %v2015
        %2017 = vmatmul.bf16.gmra.mxu0 %v611
        %v2018 = vpop.f32.mrf.mxu0
        %v2019 = vadd.f32 %v720, %v2018
        %v2020 = vpop.f32.mrf.mxu0
        %v2021 = vadd.f32 %v720, %v2020
        %2022 = vdwg.mxu0
        %2023 = vmatpush.bf16.msra.mxu0 %v1088
        %2024 = vmatpush.bf16.msra.mxu0 %v1084
        %2025 = vmatpush.bf16.msra.mxu0 %v1080
        %2026 = vmatpush.bf16.msra.mxu0 %v1076
        %2027 = vmatpush.bf16.msra.mxu0 %v1072
        %2028 = vmatpush.bf16.msra.mxu0 %v1068
        %2029 = vmatpush.bf16.msra.mxu0 %v1064
        %2030 = vmatpush.bf16.msra.mxu0 %v1060
        %2031 = vmatmul.bf16.gmra.mxu0 %v576
        %v2032 = vpop.f32.mrf.mxu0
        %v2033 = vadd.f32 %v1974, %v2032
        %v2034 = vpop.f32.mrf.mxu0
        %v2035 = vadd.f32 %v1976, %v2034
        %2036 = vmatmul.bf16.gmra.mxu0 %v580
        %v2037 = vpop.f32.mrf.mxu0
        %v2038 = vadd.f32 %v1979, %v2037
        %v2039 = vpop.f32.mrf.mxu0
        %v2040 = vadd.f32 %v1981, %v2039
        %2041 = vmatmul.bf16.gmra.mxu0 %v584
        %v2042 = vpop.f32.mrf.mxu0
        %v2043 = vadd.f32 %v1984, %v2042
        %v2044 = vpop.f32.mrf.mxu0
        %v2045 = vadd.f32 %v1986, %v2044
        %2046 = vmatmul.bf16.gmra.mxu0 %v588
        %v2047 = vpop.f32.mrf.mxu0
        %v2048 = vadd.f32 %v1989, %v2047
        %v2049 = vpop.f32.mrf.mxu0
        %v2050 = vadd.f32 %v1991, %v2049
        %2051 = vmatmul.bf16.gmra.mxu0 %v592
        %v2052 = vpop.f32.mrf.mxu0
        %v2053 = vadd.f32 %v1994, %v2052
        %v2054 = vpop.f32.mrf.mxu0
        %v2055 = vadd.f32 %v1996, %v2054
        %2056 = vmatmul.bf16.gmra.mxu0 %v596
        %v2057 = vpop.f32.mrf.mxu0
        %v2058 = vadd.f32 %v1999, %v2057
        %v2059 = vpop.f32.mrf.mxu0
        %v2060 = vadd.f32 %v2001, %v2059
        %2061 = vmatmul.bf16.gmra.mxu0 %v600
        %v2062 = vpop.f32.mrf.mxu0
        %v2063 = vadd.f32 %v2004, %v2062
        %v2064 = vpop.f32.mrf.mxu0
        %v2065 = vadd.f32 %v2006, %v2064
        %2066 = vmatmul.bf16.gmra.mxu0 %v604
        %v2067 = vpop.f32.mrf.mxu0
        %v2068 = vadd.f32 %v2009, %v2067
        %v2069 = vpop.f32.mrf.mxu0
        %v2070 = vadd.f32 %v2011, %v2069
        %2071 = vmatmul.bf16.gmra.mxu0 %v608
        %v2072 = vpop.f32.mrf.mxu0
        %v2073 = vadd.f32 %v2014, %v2072
        %v2074 = vpop.f32.mrf.mxu0
        %v2075 = vadd.f32 %v2016, %v2074
        %2076 = vmatmul.bf16.gmra.mxu0 %v612
        %v2077 = vpop.f32.mrf.mxu0
        %v2078 = vadd.f32 %v2019, %v2077
        %v2079 = vpop.f32.mrf.mxu0
        %v2080 = vadd.f32 %v2021, %v2079
        %2081 = vdwg.mxu0
        %2082 = vmatpush.bf16.msra.mxu0 %v1120
        %2083 = vmatpush.bf16.msra.mxu0 %v1116
        %2084 = vmatpush.bf16.msra.mxu0 %v1112
        %2085 = vmatpush.bf16.msra.mxu0 %v1108
        %2086 = vmatpush.bf16.msra.mxu0 %v1104
        %2087 = vmatpush.bf16.msra.mxu0 %v1100
        %2088 = vmatpush.bf16.msra.mxu0 %v1096
        %2089 = vmatpush.bf16.msra.mxu0 %v1092
        %2090 = vmatmul.bf16.gmra.mxu0 %v577
        %v2091 = vpop.f32.mrf.mxu0
        %v2092 = vadd.f32 %v2033, %v2091
        %v2093 = vpop.f32.mrf.mxu0
        %v2094 = vadd.f32 %v2035, %v2093
        %2095 = vmatmul.bf16.gmra.mxu0 %v581
        %v2096 = vpop.f32.mrf.mxu0
        %v2097 = vadd.f32 %v2038, %v2096
        %v2098 = vpop.f32.mrf.mxu0
        %v2099 = vadd.f32 %v2040, %v2098
        %2100 = vmatmul.bf16.gmra.mxu0 %v585
        %v2101 = vpop.f32.mrf.mxu0
        %v2102 = vadd.f32 %v2043, %v2101
        %v2103 = vpop.f32.mrf.mxu0
        %v2104 = vadd.f32 %v2045, %v2103
        %2105 = vmatmul.bf16.gmra.mxu0 %v589
        %v2106 = vpop.f32.mrf.mxu0
        %v2107 = vadd.f32 %v2048, %v2106
        %v2108 = vpop.f32.mrf.mxu0
        %v2109 = vadd.f32 %v2050, %v2108
        %2110 = vmatmul.bf16.gmra.mxu0 %v593
        %v2111 = vpop.f32.mrf.mxu0
        %v2112 = vadd.f32 %v2053, %v2111
        %v2113 = vpop.f32.mrf.mxu0
        %v2114 = vadd.f32 %v2055, %v2113
        %2115 = vmatmul.bf16.gmra.mxu0 %v597
        %v2116 = vpop.f32.mrf.mxu0
        %v2117 = vadd.f32 %v2058, %v2116
        %v2118 = vpop.f32.mrf.mxu0
        %v2119 = vadd.f32 %v2060, %v2118
        %2120 = vmatmul.bf16.gmra.mxu0 %v601
        %v2121 = vpop.f32.mrf.mxu0
        %v2122 = vadd.f32 %v2063, %v2121
        %v2123 = vpop.f32.mrf.mxu0
        %v2124 = vadd.f32 %v2065, %v2123
        %2125 = vmatmul.bf16.gmra.mxu0 %v605
        %v2126 = vpop.f32.mrf.mxu0
        %v2127 = vadd.f32 %v2068, %v2126
        %v2128 = vpop.f32.mrf.mxu0
        %v2129 = vadd.f32 %v2070, %v2128
        %2130 = vmatmul.bf16.gmra.mxu0 %v609
        %v2131 = vpop.f32.mrf.mxu0
        %v2132 = vadd.f32 %v2073, %v2131
        %v2133 = vpop.f32.mrf.mxu0
        %v2134 = vadd.f32 %v2075, %v2133
        %2135 = vmatmul.bf16.gmra.mxu0 %v613
        %v2136 = vpop.f32.mrf.mxu0
        %v2137 = vadd.f32 %v2078, %v2136
        %v2138 = vpop.f32.mrf.mxu0
        %v2139 = vadd.f32 %v2080, %v2138
        %2140 = vdwg.mxu0
        %2141 = vmatpush.bf16.msra.mxu0 0
        %2142 = vmatpush.bf16.msra.mxu0 0
        %2143 = vmatpush.bf16.msra.mxu0 0
        %2144 = vmatpush.bf16.msra.mxu0 0
        %2145 = vmatpush.bf16.msra.mxu0 0
        %2146 = vmatpush.bf16.msra.mxu0 0
        %2147 = vmatpush.bf16.msra.mxu0 0
        %2148 = vmatpush.bf16.msra.mxu0 %v1124
        %2149 = vmatmul.bf16.gmra.mxu0 %v1227
        %v2150 = vpop.f32.mrf.mxu0
        %v2151 = vadd.f32 %v2092, %v2150
        %v2152 = vpop.f32.mrf.mxu0
        %v2153 = vadd.f32 %v2094, %v2152
        %2154 = vmatmul.bf16.gmra.mxu0 %v1230
        %v2155 = vpop.f32.mrf.mxu0
        %v2156 = vadd.f32 %v2097, %v2155
        %v2157 = vpop.f32.mrf.mxu0
        %v2158 = vadd.f32 %v2099, %v2157
        %2159 = vmatmul.bf16.gmra.mxu0 %v1233
        %v2160 = vpop.f32.mrf.mxu0
        %v2161 = vadd.f32 %v2102, %v2160
        %v2162 = vpop.f32.mrf.mxu0
        %v2163 = vadd.f32 %v2104, %v2162
        %2164 = vmatmul.bf16.gmra.mxu0 %v1236
        %v2165 = vpop.f32.mrf.mxu0
        %v2166 = vadd.f32 %v2107, %v2165
        %v2167 = vpop.f32.mrf.mxu0
        %v2168 = vadd.f32 %v2109, %v2167
        %2169 = vmatmul.bf16.gmra.mxu0 %v1239
        %v2170 = vpop.f32.mrf.mxu0
        %v2171 = vadd.f32 %v2112, %v2170
        %v2172 = vpop.f32.mrf.mxu0
        %v2173 = vadd.f32 %v2114, %v2172
        %2174 = vmatmul.bf16.gmra.mxu0 %v1242
        %v2175 = vpop.f32.mrf.mxu0
        %v2176 = vadd.f32 %v2117, %v2175
        %v2177 = vpop.f32.mrf.mxu0
        %v2178 = vadd.f32 %v2119, %v2177
        %2179 = vmatmul.bf16.gmra.mxu0 %v1245
        %v2180 = vpop.f32.mrf.mxu0
        %v2181 = vadd.f32 %v2122, %v2180
        %v2182 = vpop.f32.mrf.mxu0
        %v2183 = vadd.f32 %v2124, %v2182
        %2184 = vmatmul.bf16.gmra.mxu0 %v1248
        %v2185 = vpop.f32.mrf.mxu0
        %v2186 = vadd.f32 %v2127, %v2185
        %v2187 = vpop.f32.mrf.mxu0
        %v2188 = vadd.f32 %v2129, %v2187
        %2189 = vmatmul.bf16.gmra.mxu0 %v1251
        %v2190 = vpop.f32.mrf.mxu0
        %v2191 = vadd.f32 %v2132, %v2190
        %v2192 = vpop.f32.mrf.mxu0
        %v2193 = vadd.f32 %v2134, %v2192
        %2194 = vmatmul.bf16.gmra.mxu0 %v1254
        %v2195 = vpop.f32.mrf.mxu0
        %v2196 = vadd.f32 %v2137, %v2195
        %v2197 = vpop.f32.mrf.mxu0
        %v2198 = vadd.f32 %v2139, %v2197
        %2199 = vdwg.mxu0
        %v2200 = vmax.f32 %v1443, 0.0
        %v2201 = vmax.f32 %v1679, 0.0
        %v2202 = vmax.f32 %v1915, 0.0
        %v2203 = vmax.f32 %v2151, 0.0
        %v2204 = vmax.f32 %v1445, 0.0
        %v2205 = vmax.f32 %v1681, 0.0
        %v2206 = vmax.f32 %v1917, 0.0
        %v2207 = vmax.f32 %v2153, 0.0
        %v2208 = vmax.f32 %v1448, 0.0
        %v2209 = vmax.f32 %v1684, 0.0
        %v2210 = vmax.f32 %v1920, 0.0
        %v2211 = vmax.f32 %v2156, 0.0
        %v2212 = vmax.f32 %v1450, 0.0
        %v2213 = vmax.f32 %v1686, 0.0
        %v2214 = vmax.f32 %v1922, 0.0
        %v2215 = vmax.f32 %v2158, 0.0
        %v2216 = vmax.f32 %v1453, 0.0
        %v2217 = vmax.f32 %v1689, 0.0
        %v2218 = vmax.f32 %v1925, 0.0
        %v2219 = vmax.f32 %v2161, 0.0
        %v2220 = vmax.f32 %v1455, 0.0
        %v2221 = vmax.f32 %v1691, 0.0
        %v2222 = vmax.f32 %v1927, 0.0
        %v2223 = vmax.f32 %v2163, 0.0
        %v2224 = vmax.f32 %v1458, 0.0
        %v2225 = vmax.f32 %v1694, 0.0
        %v2226 = vmax.f32 %v1930, 0.0
        %v2227 = vmax.f32 %v2166, 0.0
        %v2228 = vmax.f32 %v1460, 0.0
        %v2229 = vmax.f32 %v1696, 0.0
        %v2230 = vmax.f32 %v1932, 0.0
        %v2231 = vmax.f32 %v2168, 0.0
        %v2232 = vmax.f32 %v1463, 0.0
        %v2233 = vmax.f32 %v1699, 0.0
        %v2234 = vmax.f32 %v1935, 0.0
        %v2235 = vmax.f32 %v2171, 0.0
        %v2236 = vmax.f32 %v1465, 0.0
        %v2237 = vmax.f32 %v1701, 0.0
        %v2238 = vmax.f32 %v1937, 0.0
        %v2239 = vmax.f32 %v2173, 0.0
        %v2240 = vmax.f32 %v1468, 0.0
        %v2241 = vmax.f32 %v1704, 0.0
        %v2242 = vmax.f32 %v1940, 0.0
        %v2243 = vmax.f32 %v2176, 0.0
        %v2244 = vmax.f32 %v1470, 0.0
        %v2245 = vmax.f32 %v1706, 0.0
        %v2246 = vmax.f32 %v1942, 0.0
        %v2247 = vmax.f32 %v2178, 0.0
        %v2248 = vmax.f32 %v1473, 0.0
        %v2249 = vmax.f32 %v1709, 0.0
        %v2250 = vmax.f32 %v1945, 0.0
        %v2251 = vmax.f32 %v2181, 0.0
        %v2252 = vmax.f32 %v1475, 0.0
        %v2253 = vmax.f32 %v1711, 0.0
        %v2254 = vmax.f32 %v1947, 0.0
        %v2255 = vmax.f32 %v2183, 0.0
        %v2256 = vmax.f32 %v1478, 0.0
        %v2257 = vmax.f32 %v1714, 0.0
        %v2258 = vmax.f32 %v1950, 0.0
        %v2259 = vmax.f32 %v2186, 0.0
        %v2260 = vmax.f32 %v1480, 0.0
        %v2261 = vmax.f32 %v1716, 0.0
        %v2262 = vmax.f32 %v1952, 0.0
        %v2263 = vmax.f32 %v2188, 0.0
        %v2264 = vmax.f32 %v1483, 0.0
        %v2265 = vmax.f32 %v1719, 0.0
        %v2266 = vmax.f32 %v1955, 0.0
        %v2267 = vmax.f32 %v2191, 0.0
        %v2268 = vmax.f32 %v1485, 0.0
        %v2269 = vmax.f32 %v1721, 0.0
        %v2270 = vmax.f32 %v1957, 0.0
        %v2271 = vmax.f32 %v2193, 0.0
        %v2272 = vmax.f32 %v1488, 0.0
        %v2273 = vmax.f32 %v1724, 0.0
        %v2274 = vmax.f32 %v1960, 0.0
        %v2275 = vmax.f32 %v2196, 0.0
        %v2276 = vmax.f32 %v1490, 0.0
        %v2277 = vmax.f32 %v1726, 0.0
        %v2278 = vmax.f32 %v1962, 0.0
        %v2279 = vmax.f32 %v2198, 0.0
        %v2280 = vpack.c.bf16 %v2204, %v2200
        %v2281 = vpack.c.bf16 %v2205, %v2201
        %v2282 = vpack.c.bf16 %v2206, %v2202
        %v2283 = vpack.c.bf16 %v2207, %v2203
        %v2284 = vpack.c.bf16 %v2212, %v2208
        %v2285 = vpack.c.bf16 %v2213, %v2209
        %v2286 = vpack.c.bf16 %v2214, %v2210
        %v2287 = vpack.c.bf16 %v2215, %v2211
        %v2288 = vpack.c.bf16 %v2220, %v2216
        %v2289 = vpack.c.bf16 %v2221, %v2217
        %v2290 = vpack.c.bf16 %v2222, %v2218
        %v2291 = vpack.c.bf16 %v2223, %v2219
        %v2292 = vpack.c.bf16 %v2228, %v2224
        %v2293 = vpack.c.bf16 %v2229, %v2225
        %v2294 = vpack.c.bf16 %v2230, %v2226
        %v2295 = vpack.c.bf16 %v2231, %v2227
        %v2296 = vpack.c.bf16 %v2236, %v2232
        %v2297 = vpack.c.bf16 %v2237, %v2233
        %v2298 = vpack.c.bf16 %v2238, %v2234
        %v2299 = vpack.c.bf16 %v2239, %v2235
        %v2300 = vpack.c.bf16 %v2244, %v2240
        %v2301 = vpack.c.bf16 %v2245, %v2241
        %v2302 = vpack.c.bf16 %v2246, %v2242
        %v2303 = vpack.c.bf16 %v2247, %v2243
        %v2304 = vpack.c.bf16 %v2252, %v2248
        %v2305 = vpack.c.bf16 %v2253, %v2249
        %v2306 = vpack.c.bf16 %v2254, %v2250
        %v2307 = vpack.c.bf16 %v2255, %v2251
        %v2308 = vpack.c.bf16 %v2260, %v2256
        %v2309 = vpack.c.bf16 %v2261, %v2257
        %v2310 = vpack.c.bf16 %v2262, %v2258
        %v2311 = vpack.c.bf16 %v2263, %v2259
        %v2312 = vpack.c.bf16 %v2268, %v2264
        %v2313 = vpack.c.bf16 %v2269, %v2265
        %v2314 = vpack.c.bf16 %v2270, %v2266
        %v2315 = vpack.c.bf16 %v2271, %v2267
        %v2316 = vpack.c.bf16 %v2276, %v2272
        %v2317 = vpack.c.bf16 %v2277, %v2273
        %v2318 = vpack.c.bf16 %v2278, %v2274
        %v2319 = vpack.c.bf16 %v2279, %v2275
        %v2320 = vld [vmem:[%s4] sm:$0xff]
        %v2321 = vld [vmem:[%s4 + $0x8] sm:$0xff]
        %v2322 = vld [vmem:[%s4 + $0x10] sm:$0xff]
        %v2323 = vld [vmem:[%s4 + $0x18] sm:$0xff]
        %v2324 = vld [vmem:[%s4 + $0x20] sm:$0xff]
        %v2325 = vld [vmem:[%s4 + $0x28] sm:$0xff]
        %v2326 = vld [vmem:[%s4 + $0x30] sm:$0xff]
        %v2327 = vld [vmem:[%s4 + $0x38] sm:$0xff]
        %v2328 = vld [vmem:[%s4 + $0x40] sm:$0xff]
        %v2329 = vld [vmem:[%s4 + $0x48] sm:$0xff]
        %v2330 = vld [vmem:[%s4 + $0x50] sm:$0xff]
        %v2331 = vld [vmem:[%s4 + $0x58] sm:$0xff]
        %v2332 = vld [vmem:[%s4 + $0x60] sm:$0xff]
        %v2333 = vld [vmem:[%s4 + $0x68] sm:$0xff]
        %v2334 = vld [vmem:[%s4 + $0x70] sm:$0xff]
        %v2335 = vld [vmem:[%s4 + $0x78] sm:$0xff]
        %v2336 = vld [vmem:[%s4 + $0x80] sm:$0xff]
        %v2337 = vld [vmem:[%s4 + $0x88] sm:$0xff]
        %v2338 = vld [vmem:[%s4 + $0x90] sm:$0xff]
        %v2339 = vld [vmem:[%s4 + $0x98] sm:$0xff]
        %v2340 = vld [vmem:[%s4 + $0xa0] sm:$0xff]
        %v2341 = vld [vmem:[%s4 + $0xa8] sm:$0xff]
        %v2342 = vld [vmem:[%s4 + $0xb0] sm:$0xff]
        %v2343 = vld [vmem:[%s4 + $0xb8] sm:$0xff]
        %v2344 = vld [vmem:[%s4 + $0xc0] sm:$0xff]
        %v2345 = vld [vmem:[%s4 + $0xc8] sm:$0xff]
        %v2346 = vld [vmem:[%s4 + $0xd0] sm:$0xff]
        %v2347 = vld [vmem:[%s4 + $0xd8] sm:$0xff]
        %v2348 = vld [vmem:[%s4 + $0xe0] sm:$0xff]
        %v2349 = vld [vmem:[%s4 + $0xe8] sm:$0xff]
        %v2350 = vld [vmem:[%s4 + $0xf0] sm:$0xff]
        %v2351 = vld [vmem:[%s4 + $0xf8] sm:$0xff]
        %v2352 = vld [vmem:[%s4 + $0x100] sm:$0xff]
        %v2353 = vld [vmem:[%s4 + $0x108] sm:$0xff]
        %v2354 = vld [vmem:[%s4 + $0x110] sm:$0xff]
        %v2355 = vld [vmem:[%s4 + $0x118] sm:$0xff]
        %v2356 = vld [vmem:[%s4 + $0x120] sm:$0xff]
        %v2357 = vld [vmem:[%s4 + $0x128] sm:$0xff]
        %v2358 = vld [vmem:[%s4 + $0x130] sm:$0xff]
        %v2359 = vld [vmem:[%s4 + $0x138] sm:$0xff]
        %v2360 = vld [vmem:[%s4 + $0x140] sm:$0xff]
        %v2361 = vld [vmem:[%s4 + $0x148] sm:$0xff]
        %v2362 = vld [vmem:[%s4 + $0x150] sm:$0xff]
        %v2363 = vld [vmem:[%s4 + $0x158] sm:$0xff]
        %v2364 = vld [vmem:[%s4 + $0x160] sm:$0xff]
        %v2365 = vld [vmem:[%s4 + $0x168] sm:$0xff]
        %v2366 = vld [vmem:[%s4 + $0x170] sm:$0xff]
        %v2367 = vld [vmem:[%s4 + $0x178] sm:$0xff]
        %v2368 = vld [vmem:[%s4 + $0x180] sm:$0xff]
        %v2369 = vld [vmem:[%s4 + $0x188] sm:$0xff]
        %v2370 = vld [vmem:[%s4 + $0x190] sm:$0xff]
        %v2371 = vld [vmem:[%s4 + $0x198] sm:$0xff]
        %v2372 = vld [vmem:[%s4 + $0x1a0] sm:$0xff]
        %v2373 = vld [vmem:[%s4 + $0x1a8] sm:$0xff]
        %v2374 = vld [vmem:[%s4 + $0x1b0] sm:$0xff]
        %v2375 = vld [vmem:[%s4 + $0x1b8] sm:$0xff]
        %v2376 = vld [vmem:[%s4 + $0x1c0] sm:$0xff]
        %v2377 = vld [vmem:[%s4 + $0x1c8] sm:$0xff]
        %v2378 = vld [vmem:[%s4 + $0x1d0] sm:$0xff]
        %v2379 = vld [vmem:[%s4 + $0x1d8] sm:$0xff]
        %v2380 = vld [vmem:[%s4 + $0x1e0] sm:$0xff]
        %v2381 = vld [vmem:[%s4 + $0x1e8] sm:$0xff]
        %v2382 = vld [vmem:[%s4 + $0x1f0] sm:$0xff]
        %v2383 = vld [vmem:[%s4 + $0x1f8] sm:$0xff]
        %v2384 = vld [vmem:[%s4 + $0x200] sm:$0xff]
        %v2385 = vld [vmem:[%s4 + $0x208] sm:$0xff]
        %v2386 = vld [vmem:[%s4 + $0x210] sm:$0xff]
        %v2387 = vld [vmem:[%s4 + $0x218] sm:$0xff]
        %v2388 = vld [vmem:[%s4 + $0x220] sm:$0xff]
        %v2389 = vld [vmem:[%s4 + $0x228] sm:$0xff]
        %v2390 = vld [vmem:[%s4 + $0x230] sm:$0xff]
        %v2391 = vld [vmem:[%s4 + $0x238] sm:$0xff]
        %v2392 = vld [vmem:[%s4 + $0x240] sm:$0xff]
        %v2393 = vld [vmem:[%s4 + $0x248] sm:$0xff]
        %v2394 = vld [vmem:[%s4 + $0x250] sm:$0xff]
        %v2395 = vld [vmem:[%s4 + $0x258] sm:$0xff]
        %v2396 = vld [vmem:[%s4 + $0x260] sm:$0xff]
        %v2397 = vld [vmem:[%s4 + $0x268] sm:$0xff]
        %v2398 = vld [vmem:[%s4 + $0x270] sm:$0xff]
        %v2399 = vld [vmem:[%s4 + $0x278] sm:$0xff]
        %v2400 = vld [vmem:[%s4 + $0x280] sm:$0xff]
        %v2401 = vld [vmem:[%s4 + $0x288] sm:$0xff]
        %v2402 = vld [vmem:[%s4 + $0x290] sm:$0xff]
        %v2403 = vld [vmem:[%s4 + $0x298] sm:$0xff]
        %v2404 = vld [vmem:[%s4 + $0x2a0] sm:$0xff]
        %v2405 = vld [vmem:[%s4 + $0x2a8] sm:$0xff]
        %v2406 = vld [vmem:[%s4 + $0x2b0] sm:$0xff]
        %v2407 = vld [vmem:[%s4 + $0x2b8] sm:$0xff]
        %v2408 = vld [vmem:[%s4 + $0x2c0] sm:$0xff]
        %v2409 = vld [vmem:[%s4 + $0x2c8] sm:$0xff]
        %v2410 = vld [vmem:[%s4 + $0x2d0] sm:$0xff]
        %v2411 = vld [vmem:[%s4 + $0x2d8] sm:$0xff]
        %v2412 = vld [vmem:[%s4 + $0x2e0] sm:$0xff]
        %v2413 = vld [vmem:[%s4 + $0x2e8] sm:$0xff]
        %v2414 = vld [vmem:[%s4 + $0x2f0] sm:$0xff]
        %v2415 = vld [vmem:[%s4 + $0x2f8] sm:$0xff]
        %v2416 = vld [vmem:[%s4 + $0x300] sm:$0xff]
        %v2417 = vld [vmem:[%s4 + $0x308] sm:$0xff]
        %v2418 = vld [vmem:[%s4 + $0x310] sm:$0xff]
        %v2419 = vld [vmem:[%s4 + $0x318] sm:$0xff]
        %v2420 = vld [vmem:[%s4 + $0x320] sm:$0xff]
        %v2421 = vld [vmem:[%s4 + $0x328] sm:$0xff]
        %v2422 = vld [vmem:[%s4 + $0x330] sm:$0xff]
        %v2423 = vld [vmem:[%s4 + $0x338] sm:$0xff]
        %v2424 = vld [vmem:[%s4 + $0x340] sm:$0xff]
        %v2425 = vld [vmem:[%s4 + $0x348] sm:$0xff]
        %v2426 = vld [vmem:[%s4 + $0x350] sm:$0xff]
        %v2427 = vld [vmem:[%s4 + $0x358] sm:$0xff]
        %v2428 = vld [vmem:[%s4 + $0x360] sm:$0xff]
        %v2429 = vld [vmem:[%s4 + $0x368] sm:$0xff]
        %v2430 = vld [vmem:[%s4 + $0x370] sm:$0xff]
        %v2431 = vld [vmem:[%s4 + $0x378] sm:$0xff]
        %v2432 = vld [vmem:[%s4 + $0x380] sm:$0xff]
        %v2433 = vld [vmem:[%s4 + $0x388] sm:$0xff]
        %v2434 = vld [vmem:[%s4 + $0x390] sm:$0xff]
        %v2435 = vld [vmem:[%s4 + $0x398] sm:$0xff]
        %v2436 = vld [vmem:[%s4 + $0x3a0] sm:$0xff]
        %v2437 = vld [vmem:[%s4 + $0x3a8] sm:$0xff]
        %v2438 = vld [vmem:[%s4 + $0x3b0] sm:$0xff]
        %v2439 = vld [vmem:[%s4 + $0x3b8] sm:$0xff]
        %v2440 = vld [vmem:[%s4 + $0x3c0] sm:$0xff]
        %v2441 = vld [vmem:[%s4 + $0x3c8] sm:$0xff]
        %v2442 = vld [vmem:[%s4 + $0x3d0] sm:$0xff]
        %v2443 = vld [vmem:[%s4 + $0x3d8] sm:$0xff]
        %v2444 = vld [vmem:[%s4 + $0x3e0] sm:$0xff]
        %v2445 = vld [vmem:[%s4 + $0x3e8] sm:$0xff]
        %v2446 = vld [vmem:[%s4 + $0x3f0] sm:$0xff]
        %v2447 = vld [vmem:[%s4 + $0x3f8] sm:$0xff]
        %v2448 = vld [vmem:[%s5] sm:$0xf]
        %v2450 = vperm.slane %v2448, 0
        %v2451 = vperm.slane %v2448, 1
        %v2452 = vperm.slane %v2448, 2
        %v2453 = vperm.slane %v2448, 3
        %v2586 = vunpack.c.l.b16 %v2320
        %v2587 = vunpack.c.h.b16 %v2320
        %v2588 = vunpack.c.l.b16 %v2321
        %v2589 = vunpack.c.h.b16 %v2321
        %v2590 = vunpack.c.l.b16 %v2322
        %v2591 = vunpack.c.h.b16 %v2322
        %v2592 = vunpack.c.l.b16 %v2323
        %v2593 = vunpack.c.h.b16 %v2323
        %v2594 = vunpack.c.l.b16 %v2324
        %v2595 = vunpack.c.h.b16 %v2324
        %v2596 = vunpack.c.l.b16 %v2325
        %v2597 = vunpack.c.h.b16 %v2325
        %v2598 = vunpack.c.l.b16 %v2326
        %v2599 = vunpack.c.h.b16 %v2326
        %v2600 = vunpack.c.l.b16 %v2327
        %v2601 = vunpack.c.h.b16 %v2327
        %v2602 = vunpack.c.l.b16 %v2328
        %v2603 = vunpack.c.h.b16 %v2328
        %v2604 = vunpack.c.l.b16 %v2329
        %v2605 = vunpack.c.h.b16 %v2329
        %v2606 = vunpack.c.l.b16 %v2330
        %v2607 = vunpack.c.h.b16 %v2330
        %v2608 = vunpack.c.l.b16 %v2331
        %v2609 = vunpack.c.h.b16 %v2331
        %v2610 = vunpack.c.l.b16 %v2332
        %v2611 = vunpack.c.h.b16 %v2332
        %v2612 = vunpack.c.l.b16 %v2333
        %v2613 = vunpack.c.h.b16 %v2333
        %v2614 = vunpack.c.l.b16 %v2334
        %v2615 = vunpack.c.h.b16 %v2334
        %v2616 = vunpack.c.l.b16 %v2335
        %v2617 = vunpack.c.h.b16 %v2335
        %v2618 = vunpack.c.l.b16 %v2336
        %v2619 = vunpack.c.h.b16 %v2336
        %v2620 = vunpack.c.l.b16 %v2337
        %v2621 = vunpack.c.h.b16 %v2337
        %v2622 = vunpack.c.l.b16 %v2338
        %v2623 = vunpack.c.h.b16 %v2338
        %v2624 = vunpack.c.l.b16 %v2339
        %v2625 = vunpack.c.h.b16 %v2339
        %v2626 = vunpack.c.l.b16 %v2340
        %v2627 = vunpack.c.h.b16 %v2340
        %v2628 = vunpack.c.l.b16 %v2341
        %v2629 = vunpack.c.h.b16 %v2341
        %v2630 = vunpack.c.l.b16 %v2342
        %v2631 = vunpack.c.h.b16 %v2342
        %v2632 = vunpack.c.l.b16 %v2343
        %v2633 = vunpack.c.h.b16 %v2343
        %v2634 = vunpack.c.l.b16 %v2344
        %v2635 = vunpack.c.h.b16 %v2344
        %v2636 = vunpack.c.l.b16 %v2345
        %v2637 = vunpack.c.h.b16 %v2345
        %v2638 = vunpack.c.l.b16 %v2346
        %v2639 = vunpack.c.h.b16 %v2346
        %v2640 = vunpack.c.l.b16 %v2347
        %v2641 = vunpack.c.h.b16 %v2347
        %v2642 = vunpack.c.l.b16 %v2348
        %v2643 = vunpack.c.h.b16 %v2348
        %v2644 = vunpack.c.l.b16 %v2349
        %v2645 = vunpack.c.h.b16 %v2349
        %v2646 = vunpack.c.l.b16 %v2350
        %v2647 = vunpack.c.h.b16 %v2350
        %v2648 = vunpack.c.l.b16 %v2351
        %v2649 = vunpack.c.h.b16 %v2351
        %v2650 = vunpack.c.l.b16 %v2352
        %v2651 = vunpack.c.h.b16 %v2352
        %v2652 = vunpack.c.l.b16 %v2353
        %v2653 = vunpack.c.h.b16 %v2353
        %v2654 = vunpack.c.l.b16 %v2354
        %v2655 = vunpack.c.h.b16 %v2354
        %v2656 = vunpack.c.l.b16 %v2355
        %v2657 = vunpack.c.h.b16 %v2355
        %v2658 = vunpack.c.l.b16 %v2356
        %v2659 = vunpack.c.h.b16 %v2356
        %v2660 = vunpack.c.l.b16 %v2357
        %v2661 = vunpack.c.h.b16 %v2357
        %v2662 = vunpack.c.l.b16 %v2358
        %v2663 = vunpack.c.h.b16 %v2358
        %v2664 = vunpack.c.l.b16 %v2359
        %v2665 = vunpack.c.h.b16 %v2359
        %v2666 = vunpack.c.l.b16 %v2360
        %v2667 = vunpack.c.h.b16 %v2360
        %v2668 = vunpack.c.l.b16 %v2361
        %v2669 = vunpack.c.h.b16 %v2361
        %v2670 = vunpack.c.l.b16 %v2362
        %v2671 = vunpack.c.h.b16 %v2362
        %v2672 = vunpack.c.l.b16 %v2363
        %v2673 = vunpack.c.h.b16 %v2363
        %v2674 = vunpack.c.l.b16 %v2364
        %v2675 = vunpack.c.h.b16 %v2364
        %v2676 = vunpack.c.l.b16 %v2365
        %v2677 = vunpack.c.h.b16 %v2365
        %v2678 = vunpack.c.l.b16 %v2366
        %v2679 = vunpack.c.h.b16 %v2366
        %v2680 = vunpack.c.l.b16 %v2367
        %v2681 = vunpack.c.h.b16 %v2367
        %v2682 = vunpack.c.l.b16 %v2368
        %v2683 = vunpack.c.h.b16 %v2368
        %v2684 = vunpack.c.l.b16 %v2369
        %v2685 = vunpack.c.h.b16 %v2369
        %v2686 = vunpack.c.l.b16 %v2370
        %v2687 = vunpack.c.h.b16 %v2370
        %v2688 = vunpack.c.l.b16 %v2371
        %v2689 = vunpack.c.h.b16 %v2371
        %v2690 = vunpack.c.l.b16 %v2372
        %v2691 = vunpack.c.h.b16 %v2372
        %v2692 = vunpack.c.l.b16 %v2373
        %v2693 = vunpack.c.h.b16 %v2373
        %v2694 = vunpack.c.l.b16 %v2374
        %v2695 = vunpack.c.h.b16 %v2374
        %v2696 = vunpack.c.l.b16 %v2375
        %v2697 = vunpack.c.h.b16 %v2375
        %v2698 = vunpack.c.l.b16 %v2376
        %v2699 = vunpack.c.h.b16 %v2376
        %v2700 = vunpack.c.l.b16 %v2377
        %v2701 = vunpack.c.h.b16 %v2377
        %v2702 = vunpack.c.l.b16 %v2378
        %v2703 = vunpack.c.h.b16 %v2378
        %v2704 = vunpack.c.l.b16 %v2379
        %v2705 = vunpack.c.h.b16 %v2379
        %v2706 = vunpack.c.l.b16 %v2380
        %v2707 = vunpack.c.h.b16 %v2380
        %v2708 = vunpack.c.l.b16 %v2381
        %v2709 = vunpack.c.h.b16 %v2381
        %v2710 = vunpack.c.l.b16 %v2382
        %v2711 = vunpack.c.h.b16 %v2382
        %v2712 = vunpack.c.l.b16 %v2383
        %v2713 = vunpack.c.h.b16 %v2383
        %v2714 = vunpack.c.l.b16 %v2384
        %v2715 = vunpack.c.h.b16 %v2384
        %v2716 = vunpack.c.l.b16 %v2385
        %v2717 = vunpack.c.h.b16 %v2385
        %v2718 = vunpack.c.l.b16 %v2386
        %v2719 = vunpack.c.h.b16 %v2386
        %v2720 = vunpack.c.l.b16 %v2387
        %v2721 = vunpack.c.h.b16 %v2387
        %v2722 = vunpack.c.l.b16 %v2388
        %v2723 = vunpack.c.h.b16 %v2388
        %v2724 = vunpack.c.l.b16 %v2389
        %v2725 = vunpack.c.h.b16 %v2389
        %v2726 = vunpack.c.l.b16 %v2390
        %v2727 = vunpack.c.h.b16 %v2390
        %v2728 = vunpack.c.l.b16 %v2391
        %v2729 = vunpack.c.h.b16 %v2391
        %v2730 = vunpack.c.l.b16 %v2392
        %v2731 = vunpack.c.h.b16 %v2392
        %v2732 = vunpack.c.l.b16 %v2393
        %v2733 = vunpack.c.h.b16 %v2393
        %v2734 = vunpack.c.l.b16 %v2394
        %v2735 = vunpack.c.h.b16 %v2394
        %v2736 = vunpack.c.l.b16 %v2395
        %v2737 = vunpack.c.h.b16 %v2395
        %v2738 = vunpack.c.l.b16 %v2396
        %v2739 = vunpack.c.h.b16 %v2396
        %v2740 = vunpack.c.l.b16 %v2397
        %v2741 = vunpack.c.h.b16 %v2397
        %v2742 = vunpack.c.l.b16 %v2398
        %v2743 = vunpack.c.h.b16 %v2398
        %v2744 = vunpack.c.l.b16 %v2399
        %v2745 = vunpack.c.h.b16 %v2399
        %v2746 = vunpack.c.l.b16 %v2400
        %v2747 = vunpack.c.h.b16 %v2400
        %v2748 = vunpack.c.l.b16 %v2401
        %v2749 = vunpack.c.h.b16 %v2401
        %v2750 = vunpack.c.l.b16 %v2402
        %v2751 = vunpack.c.h.b16 %v2402
        %v2752 = vunpack.c.l.b16 %v2403
        %v2753 = vunpack.c.h.b16 %v2403
        %v2754 = vunpack.c.l.b16 %v2404
        %v2755 = vunpack.c.h.b16 %v2404
        %v2756 = vunpack.c.l.b16 %v2405
        %v2757 = vunpack.c.h.b16 %v2405
        %v2758 = vunpack.c.l.b16 %v2406
        %v2759 = vunpack.c.h.b16 %v2406
        %v2760 = vunpack.c.l.b16 %v2407
        %v2761 = vunpack.c.h.b16 %v2407
        %v2762 = vunpack.c.l.b16 %v2408
        %v2763 = vunpack.c.h.b16 %v2408
        %v2764 = vunpack.c.l.b16 %v2409
        %v2765 = vunpack.c.h.b16 %v2409
        %v2766 = vunpack.c.l.b16 %v2410
        %v2767 = vunpack.c.h.b16 %v2410
        %v2768 = vunpack.c.l.b16 %v2411
        %v2769 = vunpack.c.h.b16 %v2411
        %v2770 = vunpack.c.l.b16 %v2412
        %v2771 = vunpack.c.h.b16 %v2412
        %v2772 = vunpack.c.l.b16 %v2413
        %v2773 = vunpack.c.h.b16 %v2413
        %v2774 = vunpack.c.l.b16 %v2414
        %v2775 = vunpack.c.h.b16 %v2414
        %v2776 = vunpack.c.l.b16 %v2415
        %v2777 = vunpack.c.h.b16 %v2415
        %v2778 = vunpack.c.l.b16 %v2416
        %v2779 = vunpack.c.h.b16 %v2416
        %v2780 = vunpack.c.l.b16 %v2417
        %v2781 = vunpack.c.h.b16 %v2417
        %v2782 = vunpack.c.l.b16 %v2418
        %v2783 = vunpack.c.h.b16 %v2418
        %v2784 = vunpack.c.l.b16 %v2419
        %v2785 = vunpack.c.h.b16 %v2419
        %v2786 = vunpack.c.l.b16 %v2420
        %v2787 = vunpack.c.h.b16 %v2420
        %v2788 = vunpack.c.l.b16 %v2421
        %v2789 = vunpack.c.h.b16 %v2421
        %v2790 = vunpack.c.l.b16 %v2422
        %v2791 = vunpack.c.h.b16 %v2422
        %v2792 = vunpack.c.l.b16 %v2423
        %v2793 = vunpack.c.h.b16 %v2423
        %v2794 = vunpack.c.l.b16 %v2424
        %v2795 = vunpack.c.h.b16 %v2424
        %v2796 = vunpack.c.l.b16 %v2425
        %v2797 = vunpack.c.h.b16 %v2425
        %v2798 = vunpack.c.l.b16 %v2426
        %v2799 = vunpack.c.h.b16 %v2426
        %v2800 = vunpack.c.l.b16 %v2427
        %v2801 = vunpack.c.h.b16 %v2427
        %v2802 = vunpack.c.l.b16 %v2428
        %v2803 = vunpack.c.h.b16 %v2428
        %v2804 = vunpack.c.l.b16 %v2429
        %v2805 = vunpack.c.h.b16 %v2429
        %v2806 = vunpack.c.l.b16 %v2430
        %v2807 = vunpack.c.h.b16 %v2430
        %v2808 = vunpack.c.l.b16 %v2431
        %v2809 = vunpack.c.h.b16 %v2431
        %v2810 = vunpack.c.l.b16 %v2432
        %v2811 = vunpack.c.h.b16 %v2432
        %v2812 = vunpack.c.l.b16 %v2433
        %v2813 = vunpack.c.h.b16 %v2433
        %v2814 = vunpack.c.l.b16 %v2434
        %v2815 = vunpack.c.h.b16 %v2434
        %v2816 = vunpack.c.l.b16 %v2435
        %v2817 = vunpack.c.h.b16 %v2435
        %v2818 = vunpack.c.l.b16 %v2436
        %v2819 = vunpack.c.h.b16 %v2436
        %v2820 = vunpack.c.l.b16 %v2437
        %v2821 = vunpack.c.h.b16 %v2437
        %v2822 = vunpack.c.l.b16 %v2438
        %v2823 = vunpack.c.h.b16 %v2438
        %v2824 = vunpack.c.l.b16 %v2439
        %v2825 = vunpack.c.h.b16 %v2439
        %v2826 = vunpack.c.l.b16 %v2440
        %v2827 = vunpack.c.h.b16 %v2440
        %v2828 = vunpack.c.l.b16 %v2441
        %v2829 = vunpack.c.h.b16 %v2441
        %v2830 = vunpack.c.l.b16 %v2442
        %v2831 = vunpack.c.h.b16 %v2442
        %v2832 = vunpack.c.l.b16 %v2443
        %v2833 = vunpack.c.h.b16 %v2443
        %v2834 = vunpack.c.l.b16 %v2444
        %v2835 = vunpack.c.h.b16 %v2444
        %v2836 = vunpack.c.l.b16 %v2445
        %v2837 = vunpack.c.h.b16 %v2445
        %v2838 = vunpack.c.l.b16 %v2446
        %v2839 = vunpack.c.h.b16 %v2446
        %v2840 = vunpack.c.l.b16 %v2447
        %v2841 = vunpack.c.h.b16 %v2447
        %v2842 = vpack.c.b16 %v2590, %v2586
        %v2843 = vpack.c.b16 %v2591, %v2587
        %v2844 = vpack.c.b16 %v2592, %v2588
        %v2845 = vpack.c.b16 %v2593, %v2589
        %v2846 = vpack.c.b16 %v2598, %v2594
        %v2847 = vpack.c.b16 %v2599, %v2595
        %v2848 = vpack.c.b16 %v2600, %v2596
        %v2849 = vpack.c.b16 %v2601, %v2597
        %v2850 = vpack.c.b16 %v2606, %v2602
        %v2851 = vpack.c.b16 %v2607, %v2603
        %v2852 = vpack.c.b16 %v2608, %v2604
        %v2853 = vpack.c.b16 %v2609, %v2605
        %v2854 = vpack.c.b16 %v2614, %v2610
        %v2855 = vpack.c.b16 %v2615, %v2611
        %v2856 = vpack.c.b16 %v2616, %v2612
        %v2857 = vpack.c.b16 %v2617, %v2613
        %v2858 = vpack.c.b16 %v2622, %v2618
        %v2859 = vpack.c.b16 %v2623, %v2619
        %v2860 = vpack.c.b16 %v2624, %v2620
        %v2861 = vpack.c.b16 %v2625, %v2621
        %v2862 = vpack.c.b16 %v2630, %v2626
        %v2863 = vpack.c.b16 %v2631, %v2627
        %v2864 = vpack.c.b16 %v2632, %v2628
        %v2865 = vpack.c.b16 %v2633, %v2629
        %v2866 = vpack.c.b16 %v2638, %v2634
        %v2867 = vpack.c.b16 %v2639, %v2635
        %v2868 = vpack.c.b16 %v2640, %v2636
        %v2869 = vpack.c.b16 %v2641, %v2637
        %v2870 = vpack.c.b16 %v2646, %v2642
        %v2871 = vpack.c.b16 %v2647, %v2643
        %v2872 = vpack.c.b16 %v2648, %v2644
        %v2873 = vpack.c.b16 %v2649, %v2645
        %v2874 = vpack.c.b16 %v2654, %v2650
        %v2875 = vpack.c.b16 %v2655, %v2651
        %v2876 = vpack.c.b16 %v2656, %v2652
        %v2877 = vpack.c.b16 %v2657, %v2653
        %v2878 = vpack.c.b16 %v2662, %v2658
        %v2879 = vpack.c.b16 %v2663, %v2659
        %v2880 = vpack.c.b16 %v2664, %v2660
        %v2881 = vpack.c.b16 %v2665, %v2661
        %v2882 = vpack.c.b16 %v2670, %v2666
        %v2883 = vpack.c.b16 %v2671, %v2667
        %v2884 = vpack.c.b16 %v2672, %v2668
        %v2885 = vpack.c.b16 %v2673, %v2669
        %v2886 = vpack.c.b16 %v2678, %v2674
        %v2887 = vpack.c.b16 %v2679, %v2675
        %v2888 = vpack.c.b16 %v2680, %v2676
        %v2889 = vpack.c.b16 %v2681, %v2677
        %v2890 = vpack.c.b16 %v2686, %v2682
        %v2891 = vpack.c.b16 %v2687, %v2683
        %v2892 = vpack.c.b16 %v2688, %v2684
        %v2893 = vpack.c.b16 %v2689, %v2685
        %v2894 = vpack.c.b16 %v2694, %v2690
        %v2895 = vpack.c.b16 %v2695, %v2691
        %v2896 = vpack.c.b16 %v2696, %v2692
        %v2897 = vpack.c.b16 %v2697, %v2693
        %v2898 = vpack.c.b16 %v2702, %v2698
        %v2899 = vpack.c.b16 %v2703, %v2699
        %v2900 = vpack.c.b16 %v2704, %v2700
        %v2901 = vpack.c.b16 %v2705, %v2701
        %v2902 = vpack.c.b16 %v2710, %v2706
        %v2903 = vpack.c.b16 %v2711, %v2707
        %v2904 = vpack.c.b16 %v2712, %v2708
        %v2905 = vpack.c.b16 %v2713, %v2709
        %v2906 = vpack.c.b16 %v2718, %v2714
        %v2907 = vpack.c.b16 %v2719, %v2715
        %v2908 = vpack.c.b16 %v2720, %v2716
        %v2909 = vpack.c.b16 %v2721, %v2717
        %v2910 = vpack.c.b16 %v2726, %v2722
        %v2911 = vpack.c.b16 %v2727, %v2723
        %v2912 = vpack.c.b16 %v2728, %v2724
        %v2913 = vpack.c.b16 %v2729, %v2725
        %v2914 = vpack.c.b16 %v2734, %v2730
        %v2915 = vpack.c.b16 %v2735, %v2731
        %v2916 = vpack.c.b16 %v2736, %v2732
        %v2917 = vpack.c.b16 %v2737, %v2733
        %v2918 = vpack.c.b16 %v2742, %v2738
        %v2919 = vpack.c.b16 %v2743, %v2739
        %v2920 = vpack.c.b16 %v2744, %v2740
        %v2921 = vpack.c.b16 %v2745, %v2741
        %v2922 = vpack.c.b16 %v2750, %v2746
        %v2923 = vpack.c.b16 %v2751, %v2747
        %v2924 = vpack.c.b16 %v2752, %v2748
        %v2925 = vpack.c.b16 %v2753, %v2749
        %v2926 = vpack.c.b16 %v2758, %v2754
        %v2927 = vpack.c.b16 %v2759, %v2755
        %v2928 = vpack.c.b16 %v2760, %v2756
        %v2929 = vpack.c.b16 %v2761, %v2757
        %v2930 = vpack.c.b16 %v2766, %v2762
        %v2931 = vpack.c.b16 %v2767, %v2763
        %v2932 = vpack.c.b16 %v2768, %v2764
        %v2933 = vpack.c.b16 %v2769, %v2765
        %v2934 = vpack.c.b16 %v2774, %v2770
        %v2935 = vpack.c.b16 %v2775, %v2771
        %v2936 = vpack.c.b16 %v2776, %v2772
        %v2937 = vpack.c.b16 %v2777, %v2773
        %v2938 = vpack.c.b16 %v2782, %v2778
        %v2939 = vpack.c.b16 %v2783, %v2779
        %v2940 = vpack.c.b16 %v2784, %v2780
        %v2941 = vpack.c.b16 %v2785, %v2781
        %v2942 = vpack.c.b16 %v2790, %v2786
        %v2943 = vpack.c.b16 %v2791, %v2787
        %v2944 = vpack.c.b16 %v2792, %v2788
        %v2945 = vpack.c.b16 %v2793, %v2789
        %v2946 = vpack.c.b16 %v2798, %v2794
        %v2947 = vpack.c.b16 %v2799, %v2795
        %v2948 = vpack.c.b16 %v2800, %v2796
        %v2949 = vpack.c.b16 %v2801, %v2797
        %v2950 = vpack.c.b16 %v2806, %v2802
        %v2951 = vpack.c.b16 %v2807, %v2803
        %v2952 = vpack.c.b16 %v2808, %v2804
        %v2953 = vpack.c.b16 %v2809, %v2805
        %v2954 = vpack.c.b16 %v2814, %v2810
        %v2955 = vpack.c.b16 %v2815, %v2811
        %v2956 = vpack.c.b16 %v2816, %v2812
        %v2957 = vpack.c.b16 %v2817, %v2813
        %v2958 = vpack.c.b16 %v2822, %v2818
        %v2959 = vpack.c.b16 %v2823, %v2819
        %v2960 = vpack.c.b16 %v2824, %v2820
        %v2961 = vpack.c.b16 %v2825, %v2821
        %v2962 = vpack.c.b16 %v2830, %v2826
        %v2963 = vpack.c.b16 %v2831, %v2827
        %v2964 = vpack.c.b16 %v2832, %v2828
        %v2965 = vpack.c.b16 %v2833, %v2829
        %v2966 = vpack.c.b16 %v2838, %v2834
        %v2967 = vpack.c.b16 %v2839, %v2835
        %v2968 = vpack.c.b16 %v2840, %v2836
        %v2969 = vpack.c.b16 %v2841, %v2837
        %3098 = vmatpush.bf16.msra.mxu0 %v2870
        %3099 = vmatpush.bf16.msra.mxu0 %v2866
        %3100 = vmatpush.bf16.msra.mxu0 %v2862
        %3101 = vmatpush.bf16.msra.mxu0 %v2858
        %3102 = vmatpush.bf16.msra.mxu0 %v2854
        %3103 = vmatpush.bf16.msra.mxu0 %v2850
        %3104 = vmatpush.bf16.msra.mxu0 %v2846
        %3105 = vmatpush.bf16.msra.mxu0 %v2842
        %3106 = vmatmul.bf16.gmra.mxu0 %v2280
        %v3107 = vpop.f32.mrf.mxu0
        %v3108 = vadd.f32 %v2450, %v3107
        %v3109 = vpop.f32.mrf.mxu0
        %v3110 = vadd.f32 %v2450, %v3109
        %3111 = vmatmul.bf16.gmra.mxu0 %v2284
        %v3112 = vpop.f32.mrf.mxu0
        %v3113 = vadd.f32 %v2450, %v3112
        %v3114 = vpop.f32.mrf.mxu0
        %v3115 = vadd.f32 %v2450, %v3114
        %3116 = vmatmul.bf16.gmra.mxu0 %v2288
        %v3117 = vpop.f32.mrf.mxu0
        %v3118 = vadd.f32 %v2450, %v3117
        %v3119 = vpop.f32.mrf.mxu0
        %v3120 = vadd.f32 %v2450, %v3119
        %3121 = vmatmul.bf16.gmra.mxu0 %v2292
        %v3122 = vpop.f32.mrf.mxu0
        %v3123 = vadd.f32 %v2450, %v3122
        %v3124 = vpop.f32.mrf.mxu0
        %v3125 = vadd.f32 %v2450, %v3124
        %3126 = vmatmul.bf16.gmra.mxu0 %v2296
        %v3127 = vpop.f32.mrf.mxu0
        %v3128 = vadd.f32 %v2450, %v3127
        %v3129 = vpop.f32.mrf.mxu0
        %v3130 = vadd.f32 %v2450, %v3129
        %3131 = vmatmul.bf16.gmra.mxu0 %v2300
        %v3132 = vpop.f32.mrf.mxu0
        %v3133 = vadd.f32 %v2450, %v3132
        %v3134 = vpop.f32.mrf.mxu0
        %v3135 = vadd.f32 %v2450, %v3134
        %3136 = vmatmul.bf16.gmra.mxu0 %v2304
        %v3137 = vpop.f32.mrf.mxu0
        %v3138 = vadd.f32 %v2450, %v3137
        %v3139 = vpop.f32.mrf.mxu0
        %v3140 = vadd.f32 %v2450, %v3139
        %3141 = vmatmul.bf16.gmra.mxu0 %v2308
        %v3142 = vpop.f32.mrf.mxu0
        %v3143 = vadd.f32 %v2450, %v3142
        %v3144 = vpop.f32.mrf.mxu0
        %v3145 = vadd.f32 %v2450, %v3144
        %3146 = vmatmul.bf16.gmra.mxu0 %v2312
        %v3147 = vpop.f32.mrf.mxu0
        %v3148 = vadd.f32 %v2450, %v3147
        %v3149 = vpop.f32.mrf.mxu0
        %v3150 = vadd.f32 %v2450, %v3149
        %3151 = vmatmul.bf16.gmra.mxu0 %v2316
        %v3152 = vpop.f32.mrf.mxu0
        %v3153 = vadd.f32 %v2450, %v3152
        %v3154 = vpop.f32.mrf.mxu0
        %v3155 = vadd.f32 %v2450, %v3154
        %3156 = vdwg.mxu0
        %3157 = vmatpush.bf16.msra.mxu0 %v2902
        %3158 = vmatpush.bf16.msra.mxu0 %v2898
        %3159 = vmatpush.bf16.msra.mxu0 %v2894
        %3160 = vmatpush.bf16.msra.mxu0 %v2890
        %3161 = vmatpush.bf16.msra.mxu0 %v2886
        %3162 = vmatpush.bf16.msra.mxu0 %v2882
        %3163 = vmatpush.bf16.msra.mxu0 %v2878
        %3164 = vmatpush.bf16.msra.mxu0 %v2874
        %3165 = vmatmul.bf16.gmra.mxu0 %v2281
        %v3166 = vpop.f32.mrf.mxu0
        %v3167 = vadd.f32 %v3108, %v3166
        %v3168 = vpop.f32.mrf.mxu0
        %v3169 = vadd.f32 %v3110, %v3168
        %3170 = vmatmul.bf16.gmra.mxu0 %v2285
        %v3171 = vpop.f32.mrf.mxu0
        %v3172 = vadd.f32 %v3113, %v3171
        %v3173 = vpop.f32.mrf.mxu0
        %v3174 = vadd.f32 %v3115, %v3173
        %3175 = vmatmul.bf16.gmra.mxu0 %v2289
        %v3176 = vpop.f32.mrf.mxu0
        %v3177 = vadd.f32 %v3118, %v3176
        %v3178 = vpop.f32.mrf.mxu0
        %v3179 = vadd.f32 %v3120, %v3178
        %3180 = vmatmul.bf16.gmra.mxu0 %v2293
        %v3181 = vpop.f32.mrf.mxu0
        %v3182 = vadd.f32 %v3123, %v3181
        %v3183 = vpop.f32.mrf.mxu0
        %v3184 = vadd.f32 %v3125, %v3183
        %3185 = vmatmul.bf16.gmra.mxu0 %v2297
        %v3186 = vpop.f32.mrf.mxu0
        %v3187 = vadd.f32 %v3128, %v3186
        %v3188 = vpop.f32.mrf.mxu0
        %v3189 = vadd.f32 %v3130, %v3188
        %3190 = vmatmul.bf16.gmra.mxu0 %v2301
        %v3191 = vpop.f32.mrf.mxu0
        %v3192 = vadd.f32 %v3133, %v3191
        %v3193 = vpop.f32.mrf.mxu0
        %v3194 = vadd.f32 %v3135, %v3193
        %3195 = vmatmul.bf16.gmra.mxu0 %v2305
        %v3196 = vpop.f32.mrf.mxu0
        %v3197 = vadd.f32 %v3138, %v3196
        %v3198 = vpop.f32.mrf.mxu0
        %v3199 = vadd.f32 %v3140, %v3198
        %3200 = vmatmul.bf16.gmra.mxu0 %v2309
        %v3201 = vpop.f32.mrf.mxu0
        %v3202 = vadd.f32 %v3143, %v3201
        %v3203 = vpop.f32.mrf.mxu0
        %v3204 = vadd.f32 %v3145, %v3203
        %3205 = vmatmul.bf16.gmra.mxu0 %v2313
        %v3206 = vpop.f32.mrf.mxu0
        %v3207 = vadd.f32 %v3148, %v3206
        %v3208 = vpop.f32.mrf.mxu0
        %v3209 = vadd.f32 %v3150, %v3208
        %3210 = vmatmul.bf16.gmra.mxu0 %v2317
        %v3211 = vpop.f32.mrf.mxu0
        %v3212 = vadd.f32 %v3153, %v3211
        %v3213 = vpop.f32.mrf.mxu0
        %v3214 = vadd.f32 %v3155, %v3213
        %3215 = vdwg.mxu0
        %3216 = vmatpush.bf16.msra.mxu0 %v2934
        %3217 = vmatpush.bf16.msra.mxu0 %v2930
        %3218 = vmatpush.bf16.msra.mxu0 %v2926
        %3219 = vmatpush.bf16.msra.mxu0 %v2922
        %3220 = vmatpush.bf16.msra.mxu0 %v2918
        %3221 = vmatpush.bf16.msra.mxu0 %v2914
        %3222 = vmatpush.bf16.msra.mxu0 %v2910
        %3223 = vmatpush.bf16.msra.mxu0 %v2906
        %3224 = vmatmul.bf16.gmra.mxu0 %v2282
        %v3225 = vpop.f32.mrf.mxu0
        %v3226 = vadd.f32 %v3167, %v3225
        %v3227 = vpop.f32.mrf.mxu0
        %v3228 = vadd.f32 %v3169, %v3227
        %3229 = vmatmul.bf16.gmra.mxu0 %v2286
        %v3230 = vpop.f32.mrf.mxu0
        %v3231 = vadd.f32 %v3172, %v3230
        %v3232 = vpop.f32.mrf.mxu0
        %v3233 = vadd.f32 %v3174, %v3232
        %3234 = vmatmul.bf16.gmra.mxu0 %v2290
        %v3235 = vpop.f32.mrf.mxu0
        %v3236 = vadd.f32 %v3177, %v3235
        %v3237 = vpop.f32.mrf.mxu0
        %v3238 = vadd.f32 %v3179, %v3237
        %3239 = vmatmul.bf16.gmra.mxu0 %v2294
        %v3240 = vpop.f32.mrf.mxu0
        %v3241 = vadd.f32 %v3182, %v3240
        %v3242 = vpop.f32.mrf.mxu0
        %v3243 = vadd.f32 %v3184, %v3242
        %3244 = vmatmul.bf16.gmra.mxu0 %v2298
        %v3245 = vpop.f32.mrf.mxu0
        %v3246 = vadd.f32 %v3187, %v3245
        %v3247 = vpop.f32.mrf.mxu0
        %v3248 = vadd.f32 %v3189, %v3247
        %3249 = vmatmul.bf16.gmra.mxu0 %v2302
        %v3250 = vpop.f32.mrf.mxu0
        %v3251 = vadd.f32 %v3192, %v3250
        %v3252 = vpop.f32.mrf.mxu0
        %v3253 = vadd.f32 %v3194, %v3252
        %3254 = vmatmul.bf16.gmra.mxu0 %v2306
        %v3255 = vpop.f32.mrf.mxu0
        %v3256 = vadd.f32 %v3197, %v3255
        %v3257 = vpop.f32.mrf.mxu0
        %v3258 = vadd.f32 %v3199, %v3257
        %3259 = vmatmul.bf16.gmra.mxu0 %v2310
        %v3260 = vpop.f32.mrf.mxu0
        %v3261 = vadd.f32 %v3202, %v3260
        %v3262 = vpop.f32.mrf.mxu0
        %v3263 = vadd.f32 %v3204, %v3262
        %3264 = vmatmul.bf16.gmra.mxu0 %v2314
        %v3265 = vpop.f32.mrf.mxu0
        %v3266 = vadd.f32 %v3207, %v3265
        %v3267 = vpop.f32.mrf.mxu0
        %v3268 = vadd.f32 %v3209, %v3267
        %3269 = vmatmul.bf16.gmra.mxu0 %v2318
        %v3270 = vpop.f32.mrf.mxu0
        %v3271 = vadd.f32 %v3212, %v3270
        %v3272 = vpop.f32.mrf.mxu0
        %v3273 = vadd.f32 %v3214, %v3272
        %3274 = vdwg.mxu0
        %3275 = vmatpush.bf16.msra.mxu0 %v2966
        %3276 = vmatpush.bf16.msra.mxu0 %v2962
        %3277 = vmatpush.bf16.msra.mxu0 %v2958
        %3278 = vmatpush.bf16.msra.mxu0 %v2954
        %3279 = vmatpush.bf16.msra.mxu0 %v2950
        %3280 = vmatpush.bf16.msra.mxu0 %v2946
        %3281 = vmatpush.bf16.msra.mxu0 %v2942
        %3282 = vmatpush.bf16.msra.mxu0 %v2938
        %3283 = vmatmul.bf16.gmra.mxu0 %v2283
        %v3284 = vpop.f32.mrf.mxu0
        %v3285 = vadd.f32 %v3226, %v3284
        %v3286 = vpop.f32.mrf.mxu0
        %v3287 = vadd.f32 %v3228, %v3286
        %3288 = vmatmul.bf16.gmra.mxu0 %v2287
        %v3289 = vpop.f32.mrf.mxu0
        %v3290 = vadd.f32 %v3231, %v3289
        %v3291 = vpop.f32.mrf.mxu0
        %v3292 = vadd.f32 %v3233, %v3291
        %3293 = vmatmul.bf16.gmra.mxu0 %v2291
        %v3294 = vpop.f32.mrf.mxu0
        %v3295 = vadd.f32 %v3236, %v3294
        %v3296 = vpop.f32.mrf.mxu0
        %v3297 = vadd.f32 %v3238, %v3296
        %3298 = vmatmul.bf16.gmra.mxu0 %v2295
        %v3299 = vpop.f32.mrf.mxu0
        %v3300 = vadd.f32 %v3241, %v3299
        %v3301 = vpop.f32.mrf.mxu0
        %v3302 = vadd.f32 %v3243, %v3301
        %3303 = vmatmul.bf16.gmra.mxu0 %v2299
        %v3304 = vpop.f32.mrf.mxu0
        %v3305 = vadd.f32 %v3246, %v3304
        %v3306 = vpop.f32.mrf.mxu0
        %v3307 = vadd.f32 %v3248, %v3306
        %3308 = vmatmul.bf16.gmra.mxu0 %v2303
        %v3309 = vpop.f32.mrf.mxu0
        %v3310 = vadd.f32 %v3251, %v3309
        %v3311 = vpop.f32.mrf.mxu0
        %v3312 = vadd.f32 %v3253, %v3311
        %3313 = vmatmul.bf16.gmra.mxu0 %v2307
        %v3314 = vpop.f32.mrf.mxu0
        %v3315 = vadd.f32 %v3256, %v3314
        %v3316 = vpop.f32.mrf.mxu0
        %v3317 = vadd.f32 %v3258, %v3316
        %3318 = vmatmul.bf16.gmra.mxu0 %v2311
        %v3319 = vpop.f32.mrf.mxu0
        %v3320 = vadd.f32 %v3261, %v3319
        %v3321 = vpop.f32.mrf.mxu0
        %v3322 = vadd.f32 %v3263, %v3321
        %3323 = vmatmul.bf16.gmra.mxu0 %v2315
        %v3324 = vpop.f32.mrf.mxu0
        %v3325 = vadd.f32 %v3266, %v3324
        %v3326 = vpop.f32.mrf.mxu0
        %v3327 = vadd.f32 %v3268, %v3326
        %3328 = vmatmul.bf16.gmra.mxu0 %v2319
        %v3329 = vpop.f32.mrf.mxu0
        %v3330 = vadd.f32 %v3271, %v3329
        %v3331 = vpop.f32.mrf.mxu0
        %v3332 = vadd.f32 %v3273, %v3331
        %3333 = vdwg.mxu0
        %3334 = vmatpush.bf16.msra.mxu0 %v2871
        %3335 = vmatpush.bf16.msra.mxu0 %v2867
        %3336 = vmatpush.bf16.msra.mxu0 %v2863
        %3337 = vmatpush.bf16.msra.mxu0 %v2859
        %3338 = vmatpush.bf16.msra.mxu0 %v2855
        %3339 = vmatpush.bf16.msra.mxu0 %v2851
        %3340 = vmatpush.bf16.msra.mxu0 %v2847
        %3341 = vmatpush.bf16.msra.mxu0 %v2843
        %3342 = vmatmul.bf16.gmra.mxu0 %v2280
        %v3343 = vpop.f32.mrf.mxu0
        %v3344 = vadd.f32 %v2451, %v3343
        %v3345 = vpop.f32.mrf.mxu0
        %v3346 = vadd.f32 %v2451, %v3345
        %3347 = vmatmul.bf16.gmra.mxu0 %v2284
        %v3348 = vpop.f32.mrf.mxu0
        %v3349 = vadd.f32 %v2451, %v3348
        %v3350 = vpop.f32.mrf.mxu0
        %v3351 = vadd.f32 %v2451, %v3350
        %3352 = vmatmul.bf16.gmra.mxu0 %v2288
        %v3353 = vpop.f32.mrf.mxu0
        %v3354 = vadd.f32 %v2451, %v3353
        %v3355 = vpop.f32.mrf.mxu0
        %v3356 = vadd.f32 %v2451, %v3355
        %3357 = vmatmul.bf16.gmra.mxu0 %v2292
        %v3358 = vpop.f32.mrf.mxu0
        %v3359 = vadd.f32 %v2451, %v3358
        %v3360 = vpop.f32.mrf.mxu0
        %v3361 = vadd.f32 %v2451, %v3360
        %3362 = vmatmul.bf16.gmra.mxu0 %v2296
        %v3363 = vpop.f32.mrf.mxu0
        %v3364 = vadd.f32 %v2451, %v3363
        %v3365 = vpop.f32.mrf.mxu0
        %v3366 = vadd.f32 %v2451, %v3365
        %3367 = vmatmul.bf16.gmra.mxu0 %v2300
        %v3368 = vpop.f32.mrf.mxu0
        %v3369 = vadd.f32 %v2451, %v3368
        %v3370 = vpop.f32.mrf.mxu0
        %v3371 = vadd.f32 %v2451, %v3370
        %3372 = vmatmul.bf16.gmra.mxu0 %v2304
        %v3373 = vpop.f32.mrf.mxu0
        %v3374 = vadd.f32 %v2451, %v3373
        %v3375 = vpop.f32.mrf.mxu0
        %v3376 = vadd.f32 %v2451, %v3375
        %3377 = vmatmul.bf16.gmra.mxu0 %v2308
        %v3378 = vpop.f32.mrf.mxu0
        %v3379 = vadd.f32 %v2451, %v3378
        %v3380 = vpop.f32.mrf.mxu0
        %v3381 = vadd.f32 %v2451, %v3380
        %3382 = vmatmul.bf16.gmra.mxu0 %v2312
        %v3383 = vpop.f32.mrf.mxu0
        %v3384 = vadd.f32 %v2451, %v3383
        %v3385 = vpop.f32.mrf.mxu0
        %v3386 = vadd.f32 %v2451, %v3385
        %3387 = vmatmul.bf16.gmra.mxu0 %v2316
        %v3388 = vpop.f32.mrf.mxu0
        %v3389 = vadd.f32 %v2451, %v3388
        %v3390 = vpop.f32.mrf.mxu0
        %v3391 = vadd.f32 %v2451, %v3390
        %3392 = vdwg.mxu0
        %3393 = vmatpush.bf16.msra.mxu0 %v2903
        %3394 = vmatpush.bf16.msra.mxu0 %v2899
        %3395 = vmatpush.bf16.msra.mxu0 %v2895
        %3396 = vmatpush.bf16.msra.mxu0 %v2891
        %3397 = vmatpush.bf16.msra.mxu0 %v2887
        %3398 = vmatpush.bf16.msra.mxu0 %v2883
        %3399 = vmatpush.bf16.msra.mxu0 %v2879
        %3400 = vmatpush.bf16.msra.mxu0 %v2875
        %3401 = vmatmul.bf16.gmra.mxu0 %v2281
        %v3402 = vpop.f32.mrf.mxu0
        %v3403 = vadd.f32 %v3344, %v3402
        %v3404 = vpop.f32.mrf.mxu0
        %v3405 = vadd.f32 %v3346, %v3404
        %3406 = vmatmul.bf16.gmra.mxu0 %v2285
        %v3407 = vpop.f32.mrf.mxu0
        %v3408 = vadd.f32 %v3349, %v3407
        %v3409 = vpop.f32.mrf.mxu0
        %v3410 = vadd.f32 %v3351, %v3409
        %3411 = vmatmul.bf16.gmra.mxu0 %v2289
        %v3412 = vpop.f32.mrf.mxu0
        %v3413 = vadd.f32 %v3354, %v3412
        %v3414 = vpop.f32.mrf.mxu0
        %v3415 = vadd.f32 %v3356, %v3414
        %3416 = vmatmul.bf16.gmra.mxu0 %v2293
        %v3417 = vpop.f32.mrf.mxu0
        %v3418 = vadd.f32 %v3359, %v3417
        %v3419 = vpop.f32.mrf.mxu0
        %v3420 = vadd.f32 %v3361, %v3419
        %3421 = vmatmul.bf16.gmra.mxu0 %v2297
        %v3422 = vpop.f32.mrf.mxu0
        %v3423 = vadd.f32 %v3364, %v3422
        %v3424 = vpop.f32.mrf.mxu0
        %v3425 = vadd.f32 %v3366, %v3424
        %3426 = vmatmul.bf16.gmra.mxu0 %v2301
        %v3427 = vpop.f32.mrf.mxu0
        %v3428 = vadd.f32 %v3369, %v3427
        %v3429 = vpop.f32.mrf.mxu0
        %v3430 = vadd.f32 %v3371, %v3429
        %3431 = vmatmul.bf16.gmra.mxu0 %v2305
        %v3432 = vpop.f32.mrf.mxu0
        %v3433 = vadd.f32 %v3374, %v3432
        %v3434 = vpop.f32.mrf.mxu0
        %v3435 = vadd.f32 %v3376, %v3434
        %3436 = vmatmul.bf16.gmra.mxu0 %v2309
        %v3437 = vpop.f32.mrf.mxu0
        %v3438 = vadd.f32 %v3379, %v3437
        %v3439 = vpop.f32.mrf.mxu0
        %v3440 = vadd.f32 %v3381, %v3439
        %3441 = vmatmul.bf16.gmra.mxu0 %v2313
        %v3442 = vpop.f32.mrf.mxu0
        %v3443 = vadd.f32 %v3384, %v3442
        %v3444 = vpop.f32.mrf.mxu0
        %v3445 = vadd.f32 %v3386, %v3444
        %3446 = vmatmul.bf16.gmra.mxu0 %v2317
        %v3447 = vpop.f32.mrf.mxu0
        %v3448 = vadd.f32 %v3389, %v3447
        %v3449 = vpop.f32.mrf.mxu0
        %v3450 = vadd.f32 %v3391, %v3449
        %3451 = vdwg.mxu0
        %3452 = vmatpush.bf16.msra.mxu0 %v2935
        %3453 = vmatpush.bf16.msra.mxu0 %v2931
        %3454 = vmatpush.bf16.msra.mxu0 %v2927
        %3455 = vmatpush.bf16.msra.mxu0 %v2923
        %3456 = vmatpush.bf16.msra.mxu0 %v2919
        %3457 = vmatpush.bf16.msra.mxu0 %v2915
        %3458 = vmatpush.bf16.msra.mxu0 %v2911
        %3459 = vmatpush.bf16.msra.mxu0 %v2907
        %3460 = vmatmul.bf16.gmra.mxu0 %v2282
        %v3461 = vpop.f32.mrf.mxu0
        %v3462 = vadd.f32 %v3403, %v3461
        %v3463 = vpop.f32.mrf.mxu0
        %v3464 = vadd.f32 %v3405, %v3463
        %3465 = vmatmul.bf16.gmra.mxu0 %v2286
        %v3466 = vpop.f32.mrf.mxu0
        %v3467 = vadd.f32 %v3408, %v3466
        %v3468 = vpop.f32.mrf.mxu0
        %v3469 = vadd.f32 %v3410, %v3468
        %3470 = vmatmul.bf16.gmra.mxu0 %v2290
        %v3471 = vpop.f32.mrf.mxu0
        %v3472 = vadd.f32 %v3413, %v3471
        %v3473 = vpop.f32.mrf.mxu0
        %v3474 = vadd.f32 %v3415, %v3473
        %3475 = vmatmul.bf16.gmra.mxu0 %v2294
        %v3476 = vpop.f32.mrf.mxu0
        %v3477 = vadd.f32 %v3418, %v3476
        %v3478 = vpop.f32.mrf.mxu0
        %v3479 = vadd.f32 %v3420, %v3478
        %3480 = vmatmul.bf16.gmra.mxu0 %v2298
        %v3481 = vpop.f32.mrf.mxu0
        %v3482 = vadd.f32 %v3423, %v3481
        %v3483 = vpop.f32.mrf.mxu0
        %v3484 = vadd.f32 %v3425, %v3483
        %3485 = vmatmul.bf16.gmra.mxu0 %v2302
        %v3486 = vpop.f32.mrf.mxu0
        %v3487 = vadd.f32 %v3428, %v3486
        %v3488 = vpop.f32.mrf.mxu0
        %v3489 = vadd.f32 %v3430, %v3488
        %3490 = vmatmul.bf16.gmra.mxu0 %v2306
        %v3491 = vpop.f32.mrf.mxu0
        %v3492 = vadd.f32 %v3433, %v3491
        %v3493 = vpop.f32.mrf.mxu0
        %v3494 = vadd.f32 %v3435, %v3493
        %3495 = vmatmul.bf16.gmra.mxu0 %v2310
        %v3496 = vpop.f32.mrf.mxu0
        %v3497 = vadd.f32 %v3438, %v3496
        %v3498 = vpop.f32.mrf.mxu0
        %v3499 = vadd.f32 %v3440, %v3498
        %3500 = vmatmul.bf16.gmra.mxu0 %v2314
        %v3501 = vpop.f32.mrf.mxu0
        %v3502 = vadd.f32 %v3443, %v3501
        %v3503 = vpop.f32.mrf.mxu0
        %v3504 = vadd.f32 %v3445, %v3503
        %3505 = vmatmul.bf16.gmra.mxu0 %v2318
        %v3506 = vpop.f32.mrf.mxu0
        %v3507 = vadd.f32 %v3448, %v3506
        %v3508 = vpop.f32.mrf.mxu0
        %v3509 = vadd.f32 %v3450, %v3508
        %3510 = vdwg.mxu0
        %3511 = vmatpush.bf16.msra.mxu0 %v2967
        %3512 = vmatpush.bf16.msra.mxu0 %v2963
        %3513 = vmatpush.bf16.msra.mxu0 %v2959
        %3514 = vmatpush.bf16.msra.mxu0 %v2955
        %3515 = vmatpush.bf16.msra.mxu0 %v2951
        %3516 = vmatpush.bf16.msra.mxu0 %v2947
        %3517 = vmatpush.bf16.msra.mxu0 %v2943
        %3518 = vmatpush.bf16.msra.mxu0 %v2939
        %3519 = vmatmul.bf16.gmra.mxu0 %v2283
        %v3520 = vpop.f32.mrf.mxu0
        %v3521 = vadd.f32 %v3462, %v3520
        %v3522 = vpop.f32.mrf.mxu0
        %v3523 = vadd.f32 %v3464, %v3522
        %3524 = vmatmul.bf16.gmra.mxu0 %v2287
        %v3525 = vpop.f32.mrf.mxu0
        %v3526 = vadd.f32 %v3467, %v3525
        %v3527 = vpop.f32.mrf.mxu0
        %v3528 = vadd.f32 %v3469, %v3527
        %3529 = vmatmul.bf16.gmra.mxu0 %v2291
        %v3530 = vpop.f32.mrf.mxu0
        %v3531 = vadd.f32 %v3472, %v3530
        %v3532 = vpop.f32.mrf.mxu0
        %v3533 = vadd.f32 %v3474, %v3532
        %3534 = vmatmul.bf16.gmra.mxu0 %v2295
        %v3535 = vpop.f32.mrf.mxu0
        %v3536 = vadd.f32 %v3477, %v3535
        %v3537 = vpop.f32.mrf.mxu0
        %v3538 = vadd.f32 %v3479, %v3537
        %3539 = vmatmul.bf16.gmra.mxu0 %v2299
        %v3540 = vpop.f32.mrf.mxu0
        %v3541 = vadd.f32 %v3482, %v3540
        %v3542 = vpop.f32.mrf.mxu0
        %v3543 = vadd.f32 %v3484, %v3542
        %3544 = vmatmul.bf16.gmra.mxu0 %v2303
        %v3545 = vpop.f32.mrf.mxu0
        %v3546 = vadd.f32 %v3487, %v3545
        %v3547 = vpop.f32.mrf.mxu0
        %v3548 = vadd.f32 %v3489, %v3547
        %3549 = vmatmul.bf16.gmra.mxu0 %v2307
        %v3550 = vpop.f32.mrf.mxu0
        %v3551 = vadd.f32 %v3492, %v3550
        %v3552 = vpop.f32.mrf.mxu0
        %v3553 = vadd.f32 %v3494, %v3552
        %3554 = vmatmul.bf16.gmra.mxu0 %v2311
        %v3555 = vpop.f32.mrf.mxu0
        %v3556 = vadd.f32 %v3497, %v3555
        %v3557 = vpop.f32.mrf.mxu0
        %v3558 = vadd.f32 %v3499, %v3557
        %3559 = vmatmul.bf16.gmra.mxu0 %v2315
        %v3560 = vpop.f32.mrf.mxu0
        %v3561 = vadd.f32 %v3502, %v3560
        %v3562 = vpop.f32.mrf.mxu0
        %v3563 = vadd.f32 %v3504, %v3562
        %3564 = vmatmul.bf16.gmra.mxu0 %v2319
        %v3565 = vpop.f32.mrf.mxu0
        %v3566 = vadd.f32 %v3507, %v3565
        %v3567 = vpop.f32.mrf.mxu0
        %v3568 = vadd.f32 %v3509, %v3567
        %3569 = vdwg.mxu0
        %3570 = vmatpush.bf16.msra.mxu0 %v2872
        %3571 = vmatpush.bf16.msra.mxu0 %v2868
        %3572 = vmatpush.bf16.msra.mxu0 %v2864
        %3573 = vmatpush.bf16.msra.mxu0 %v2860
        %3574 = vmatpush.bf16.msra.mxu0 %v2856
        %3575 = vmatpush.bf16.msra.mxu0 %v2852
        %3576 = vmatpush.bf16.msra.mxu0 %v2848
        %3577 = vmatpush.bf16.msra.mxu0 %v2844
        %3578 = vmatmul.bf16.gmra.mxu0 %v2280
        %v3579 = vpop.f32.mrf.mxu0
        %v3580 = vadd.f32 %v2452, %v3579
        %v3581 = vpop.f32.mrf.mxu0
        %v3582 = vadd.f32 %v2452, %v3581
        %3583 = vmatmul.bf16.gmra.mxu0 %v2284
        %v3584 = vpop.f32.mrf.mxu0
        %v3585 = vadd.f32 %v2452, %v3584
        %v3586 = vpop.f32.mrf.mxu0
        %v3587 = vadd.f32 %v2452, %v3586
        %3588 = vmatmul.bf16.gmra.mxu0 %v2288
        %v3589 = vpop.f32.mrf.mxu0
        %v3590 = vadd.f32 %v2452, %v3589
        %v3591 = vpop.f32.mrf.mxu0
        %v3592 = vadd.f32 %v2452, %v3591
        %3593 = vmatmul.bf16.gmra.mxu0 %v2292
        %v3594 = vpop.f32.mrf.mxu0
        %v3595 = vadd.f32 %v2452, %v3594
        %v3596 = vpop.f32.mrf.mxu0
        %v3597 = vadd.f32 %v2452, %v3596
        %3598 = vmatmul.bf16.gmra.mxu0 %v2296
        %v3599 = vpop.f32.mrf.mxu0
        %v3600 = vadd.f32 %v2452, %v3599
        %v3601 = vpop.f32.mrf.mxu0
        %v3602 = vadd.f32 %v2452, %v3601
        %3603 = vmatmul.bf16.gmra.mxu0 %v2300
        %v3604 = vpop.f32.mrf.mxu0
        %v3605 = vadd.f32 %v2452, %v3604
        %v3606 = vpop.f32.mrf.mxu0
        %v3607 = vadd.f32 %v2452, %v3606
        %3608 = vmatmul.bf16.gmra.mxu0 %v2304
        %v3609 = vpop.f32.mrf.mxu0
        %v3610 = vadd.f32 %v2452, %v3609
        %v3611 = vpop.f32.mrf.mxu0
        %v3612 = vadd.f32 %v2452, %v3611
        %3613 = vmatmul.bf16.gmra.mxu0 %v2308
        %v3614 = vpop.f32.mrf.mxu0
        %v3615 = vadd.f32 %v2452, %v3614
        %v3616 = vpop.f32.mrf.mxu0
        %v3617 = vadd.f32 %v2452, %v3616
        %3618 = vmatmul.bf16.gmra.mxu0 %v2312
        %v3619 = vpop.f32.mrf.mxu0
        %v3620 = vadd.f32 %v2452, %v3619
        %v3621 = vpop.f32.mrf.mxu0
        %v3622 = vadd.f32 %v2452, %v3621
        %3623 = vmatmul.bf16.gmra.mxu0 %v2316
        %v3624 = vpop.f32.mrf.mxu0
        %v3625 = vadd.f32 %v2452, %v3624
        %v3626 = vpop.f32.mrf.mxu0
        %v3627 = vadd.f32 %v2452, %v3626
        %3628 = vdwg.mxu0
        %3629 = vmatpush.bf16.msra.mxu0 %v2904
        %3630 = vmatpush.bf16.msra.mxu0 %v2900
        %3631 = vmatpush.bf16.msra.mxu0 %v2896
        %3632 = vmatpush.bf16.msra.mxu0 %v2892
        %3633 = vmatpush.bf16.msra.mxu0 %v2888
        %3634 = vmatpush.bf16.msra.mxu0 %v2884
        %3635 = vmatpush.bf16.msra.mxu0 %v2880
        %3636 = vmatpush.bf16.msra.mxu0 %v2876
        %3637 = vmatmul.bf16.gmra.mxu0 %v2281
        %v3638 = vpop.f32.mrf.mxu0
        %v3639 = vadd.f32 %v3580, %v3638
        %v3640 = vpop.f32.mrf.mxu0
        %v3641 = vadd.f32 %v3582, %v3640
        %3642 = vmatmul.bf16.gmra.mxu0 %v2285
        %v3643 = vpop.f32.mrf.mxu0
        %v3644 = vadd.f32 %v3585, %v3643
        %v3645 = vpop.f32.mrf.mxu0
        %v3646 = vadd.f32 %v3587, %v3645
        %3647 = vmatmul.bf16.gmra.mxu0 %v2289
        %v3648 = vpop.f32.mrf.mxu0
        %v3649 = vadd.f32 %v3590, %v3648
        %v3650 = vpop.f32.mrf.mxu0
        %v3651 = vadd.f32 %v3592, %v3650
        %3652 = vmatmul.bf16.gmra.mxu0 %v2293
        %v3653 = vpop.f32.mrf.mxu0
        %v3654 = vadd.f32 %v3595, %v3653
        %v3655 = vpop.f32.mrf.mxu0
        %v3656 = vadd.f32 %v3597, %v3655
        %3657 = vmatmul.bf16.gmra.mxu0 %v2297
        %v3658 = vpop.f32.mrf.mxu0
        %v3659 = vadd.f32 %v3600, %v3658
        %v3660 = vpop.f32.mrf.mxu0
        %v3661 = vadd.f32 %v3602, %v3660
        %3662 = vmatmul.bf16.gmra.mxu0 %v2301
        %v3663 = vpop.f32.mrf.mxu0
        %v3664 = vadd.f32 %v3605, %v3663
        %v3665 = vpop.f32.mrf.mxu0
        %v3666 = vadd.f32 %v3607, %v3665
        %3667 = vmatmul.bf16.gmra.mxu0 %v2305
        %v3668 = vpop.f32.mrf.mxu0
        %v3669 = vadd.f32 %v3610, %v3668
        %v3670 = vpop.f32.mrf.mxu0
        %v3671 = vadd.f32 %v3612, %v3670
        %3672 = vmatmul.bf16.gmra.mxu0 %v2309
        %v3673 = vpop.f32.mrf.mxu0
        %v3674 = vadd.f32 %v3615, %v3673
        %v3675 = vpop.f32.mrf.mxu0
        %v3676 = vadd.f32 %v3617, %v3675
        %3677 = vmatmul.bf16.gmra.mxu0 %v2313
        %v3678 = vpop.f32.mrf.mxu0
        %v3679 = vadd.f32 %v3620, %v3678
        %v3680 = vpop.f32.mrf.mxu0
        %v3681 = vadd.f32 %v3622, %v3680
        %3682 = vmatmul.bf16.gmra.mxu0 %v2317
        %v3683 = vpop.f32.mrf.mxu0
        %v3684 = vadd.f32 %v3625, %v3683
        %v3685 = vpop.f32.mrf.mxu0
        %v3686 = vadd.f32 %v3627, %v3685
        %3687 = vdwg.mxu0
        %3688 = vmatpush.bf16.msra.mxu0 %v2936
        %3689 = vmatpush.bf16.msra.mxu0 %v2932
        %3690 = vmatpush.bf16.msra.mxu0 %v2928
        %3691 = vmatpush.bf16.msra.mxu0 %v2924
        %3692 = vmatpush.bf16.msra.mxu0 %v2920
        %3693 = vmatpush.bf16.msra.mxu0 %v2916
        %3694 = vmatpush.bf16.msra.mxu0 %v2912
        %3695 = vmatpush.bf16.msra.mxu0 %v2908
        %3696 = vmatmul.bf16.gmra.mxu0 %v2282
        %v3697 = vpop.f32.mrf.mxu0
        %v3698 = vadd.f32 %v3639, %v3697
        %v3699 = vpop.f32.mrf.mxu0
        %v3700 = vadd.f32 %v3641, %v3699
        %3701 = vmatmul.bf16.gmra.mxu0 %v2286
        %v3702 = vpop.f32.mrf.mxu0
        %v3703 = vadd.f32 %v3644, %v3702
        %v3704 = vpop.f32.mrf.mxu0
        %v3705 = vadd.f32 %v3646, %v3704
        %3706 = vmatmul.bf16.gmra.mxu0 %v2290
        %v3707 = vpop.f32.mrf.mxu0
        %v3708 = vadd.f32 %v3649, %v3707
        %v3709 = vpop.f32.mrf.mxu0
        %v3710 = vadd.f32 %v3651, %v3709
        %3711 = vmatmul.bf16.gmra.mxu0 %v2294
        %v3712 = vpop.f32.mrf.mxu0
        %v3713 = vadd.f32 %v3654, %v3712
        %v3714 = vpop.f32.mrf.mxu0
        %v3715 = vadd.f32 %v3656, %v3714
        %3716 = vmatmul.bf16.gmra.mxu0 %v2298
        %v3717 = vpop.f32.mrf.mxu0
        %v3718 = vadd.f32 %v3659, %v3717
        %v3719 = vpop.f32.mrf.mxu0
        %v3720 = vadd.f32 %v3661, %v3719
        %3721 = vmatmul.bf16.gmra.mxu0 %v2302
        %v3722 = vpop.f32.mrf.mxu0
        %v3723 = vadd.f32 %v3664, %v3722
        %v3724 = vpop.f32.mrf.mxu0
        %v3725 = vadd.f32 %v3666, %v3724
        %3726 = vmatmul.bf16.gmra.mxu0 %v2306
        %v3727 = vpop.f32.mrf.mxu0
        %v3728 = vadd.f32 %v3669, %v3727
        %v3729 = vpop.f32.mrf.mxu0
        %v3730 = vadd.f32 %v3671, %v3729
        %3731 = vmatmul.bf16.gmra.mxu0 %v2310
        %v3732 = vpop.f32.mrf.mxu0
        %v3733 = vadd.f32 %v3674, %v3732
        %v3734 = vpop.f32.mrf.mxu0
        %v3735 = vadd.f32 %v3676, %v3734
        %3736 = vmatmul.bf16.gmra.mxu0 %v2314
        %v3737 = vpop.f32.mrf.mxu0
        %v3738 = vadd.f32 %v3679, %v3737
        %v3739 = vpop.f32.mrf.mxu0
        %v3740 = vadd.f32 %v3681, %v3739
        %3741 = vmatmul.bf16.gmra.mxu0 %v2318
        %v3742 = vpop.f32.mrf.mxu0
        %v3743 = vadd.f32 %v3684, %v3742
        %v3744 = vpop.f32.mrf.mxu0
        %v3745 = vadd.f32 %v3686, %v3744
        %3746 = vdwg.mxu0
        %3747 = vmatpush.bf16.msra.mxu0 %v2968
        %3748 = vmatpush.bf16.msra.mxu0 %v2964
        %3749 = vmatpush.bf16.msra.mxu0 %v2960
        %3750 = vmatpush.bf16.msra.mxu0 %v2956
        %3751 = vmatpush.bf16.msra.mxu0 %v2952
        %3752 = vmatpush.bf16.msra.mxu0 %v2948
        %3753 = vmatpush.bf16.msra.mxu0 %v2944
        %3754 = vmatpush.bf16.msra.mxu0 %v2940
        %3755 = vmatmul.bf16.gmra.mxu0 %v2283
        %v3756 = vpop.f32.mrf.mxu0
        %v3757 = vadd.f32 %v3698, %v3756
        %v3758 = vpop.f32.mrf.mxu0
        %v3759 = vadd.f32 %v3700, %v3758
        %3760 = vmatmul.bf16.gmra.mxu0 %v2287
        %v3761 = vpop.f32.mrf.mxu0
        %v3762 = vadd.f32 %v3703, %v3761
        %v3763 = vpop.f32.mrf.mxu0
        %v3764 = vadd.f32 %v3705, %v3763
        %3765 = vmatmul.bf16.gmra.mxu0 %v2291
        %v3766 = vpop.f32.mrf.mxu0
        %v3767 = vadd.f32 %v3708, %v3766
        %v3768 = vpop.f32.mrf.mxu0
        %v3769 = vadd.f32 %v3710, %v3768
        %3770 = vmatmul.bf16.gmra.mxu0 %v2295
        %v3771 = vpop.f32.mrf.mxu0
        %v3772 = vadd.f32 %v3713, %v3771
        %v3773 = vpop.f32.mrf.mxu0
        %v3774 = vadd.f32 %v3715, %v3773
        %3775 = vmatmul.bf16.gmra.mxu0 %v2299
        %v3776 = vpop.f32.mrf.mxu0
        %v3777 = vadd.f32 %v3718, %v3776
        %v3778 = vpop.f32.mrf.mxu0
        %v3779 = vadd.f32 %v3720, %v3778
        %3780 = vmatmul.bf16.gmra.mxu0 %v2303
        %v3781 = vpop.f32.mrf.mxu0
        %v3782 = vadd.f32 %v3723, %v3781
        %v3783 = vpop.f32.mrf.mxu0
        %v3784 = vadd.f32 %v3725, %v3783
        %3785 = vmatmul.bf16.gmra.mxu0 %v2307
        %v3786 = vpop.f32.mrf.mxu0
        %v3787 = vadd.f32 %v3728, %v3786
        %v3788 = vpop.f32.mrf.mxu0
        %v3789 = vadd.f32 %v3730, %v3788
        %3790 = vmatmul.bf16.gmra.mxu0 %v2311
        %v3791 = vpop.f32.mrf.mxu0
        %v3792 = vadd.f32 %v3733, %v3791
        %v3793 = vpop.f32.mrf.mxu0
        %v3794 = vadd.f32 %v3735, %v3793
        %3795 = vmatmul.bf16.gmra.mxu0 %v2315
        %v3796 = vpop.f32.mrf.mxu0
        %v3797 = vadd.f32 %v3738, %v3796
        %v3798 = vpop.f32.mrf.mxu0
        %v3799 = vadd.f32 %v3740, %v3798
        %3800 = vmatmul.bf16.gmra.mxu0 %v2319
        %v3801 = vpop.f32.mrf.mxu0
        %v3802 = vadd.f32 %v3743, %v3801
        %v3803 = vpop.f32.mrf.mxu0
        %v3804 = vadd.f32 %v3745, %v3803
        %3805 = vdwg.mxu0
        %3806 = vmatpush.bf16.msra.mxu0 %v2873
        %3807 = vmatpush.bf16.msra.mxu0 %v2869
        %3808 = vmatpush.bf16.msra.mxu0 %v2865
        %3809 = vmatpush.bf16.msra.mxu0 %v2861
        %3810 = vmatpush.bf16.msra.mxu0 %v2857
        %3811 = vmatpush.bf16.msra.mxu0 %v2853
        %3812 = vmatpush.bf16.msra.mxu0 %v2849
        %3813 = vmatpush.bf16.msra.mxu0 %v2845
        %3814 = vmatmul.bf16.gmra.mxu0 %v2280
        %v3815 = vpop.f32.mrf.mxu0
        %v3816 = vadd.f32 %v2453, %v3815
        %v3817 = vpop.f32.mrf.mxu0
        %v3818 = vadd.f32 %v2453, %v3817
        %3819 = vmatmul.bf16.gmra.mxu0 %v2284
        %v3820 = vpop.f32.mrf.mxu0
        %v3821 = vadd.f32 %v2453, %v3820
        %v3822 = vpop.f32.mrf.mxu0
        %v3823 = vadd.f32 %v2453, %v3822
        %3824 = vmatmul.bf16.gmra.mxu0 %v2288
        %v3825 = vpop.f32.mrf.mxu0
        %v3826 = vadd.f32 %v2453, %v3825
        %v3827 = vpop.f32.mrf.mxu0
        %v3828 = vadd.f32 %v2453, %v3827
        %3829 = vmatmul.bf16.gmra.mxu0 %v2292
        %v3830 = vpop.f32.mrf.mxu0
        %v3831 = vadd.f32 %v2453, %v3830
        %v3832 = vpop.f32.mrf.mxu0
        %v3833 = vadd.f32 %v2453, %v3832
        %3834 = vmatmul.bf16.gmra.mxu0 %v2296
        %v3835 = vpop.f32.mrf.mxu0
        %v3836 = vadd.f32 %v2453, %v3835
        %v3837 = vpop.f32.mrf.mxu0
        %v3838 = vadd.f32 %v2453, %v3837
        %3839 = vmatmul.bf16.gmra.mxu0 %v2300
        %v3840 = vpop.f32.mrf.mxu0
        %v3841 = vadd.f32 %v2453, %v3840
        %v3842 = vpop.f32.mrf.mxu0
        %v3843 = vadd.f32 %v2453, %v3842
        %3844 = vmatmul.bf16.gmra.mxu0 %v2304
        %v3845 = vpop.f32.mrf.mxu0
        %v3846 = vadd.f32 %v2453, %v3845
        %v3847 = vpop.f32.mrf.mxu0
        %v3848 = vadd.f32 %v2453, %v3847
        %3849 = vmatmul.bf16.gmra.mxu0 %v2308
        %v3850 = vpop.f32.mrf.mxu0
        %v3851 = vadd.f32 %v2453, %v3850
        %v3852 = vpop.f32.mrf.mxu0
        %v3853 = vadd.f32 %v2453, %v3852
        %3854 = vmatmul.bf16.gmra.mxu0 %v2312
        %v3855 = vpop.f32.mrf.mxu0
        %v3856 = vadd.f32 %v2453, %v3855
        %v3857 = vpop.f32.mrf.mxu0
        %v3858 = vadd.f32 %v2453, %v3857
        %3859 = vmatmul.bf16.gmra.mxu0 %v2316
        %v3860 = vpop.f32.mrf.mxu0
        %v3861 = vadd.f32 %v2453, %v3860
        %v3862 = vpop.f32.mrf.mxu0
        %v3863 = vadd.f32 %v2453, %v3862
        %3864 = vdwg.mxu0
        %3865 = vmatpush.bf16.msra.mxu0 %v2905
        %3866 = vmatpush.bf16.msra.mxu0 %v2901
        %3867 = vmatpush.bf16.msra.mxu0 %v2897
        %3868 = vmatpush.bf16.msra.mxu0 %v2893
        %3869 = vmatpush.bf16.msra.mxu0 %v2889
        %3870 = vmatpush.bf16.msra.mxu0 %v2885
        %3871 = vmatpush.bf16.msra.mxu0 %v2881
        %3872 = vmatpush.bf16.msra.mxu0 %v2877
        %3873 = vmatmul.bf16.gmra.mxu0 %v2281
        %v3874 = vpop.f32.mrf.mxu0
        %v3875 = vadd.f32 %v3816, %v3874
        %v3876 = vpop.f32.mrf.mxu0
        %v3877 = vadd.f32 %v3818, %v3876
        %3878 = vmatmul.bf16.gmra.mxu0 %v2285
        %v3879 = vpop.f32.mrf.mxu0
        %v3880 = vadd.f32 %v3821, %v3879
        %v3881 = vpop.f32.mrf.mxu0
        %v3882 = vadd.f32 %v3823, %v3881
        %3883 = vmatmul.bf16.gmra.mxu0 %v2289
        %v3884 = vpop.f32.mrf.mxu0
        %v3885 = vadd.f32 %v3826, %v3884
        %v3886 = vpop.f32.mrf.mxu0
        %v3887 = vadd.f32 %v3828, %v3886
        %3888 = vmatmul.bf16.gmra.mxu0 %v2293
        %v3889 = vpop.f32.mrf.mxu0
        %v3890 = vadd.f32 %v3831, %v3889
        %v3891 = vpop.f32.mrf.mxu0
        %v3892 = vadd.f32 %v3833, %v3891
        %3893 = vmatmul.bf16.gmra.mxu0 %v2297
        %v3894 = vpop.f32.mrf.mxu0
        %v3895 = vadd.f32 %v3836, %v3894
        %v3896 = vpop.f32.mrf.mxu0
        %v3897 = vadd.f32 %v3838, %v3896
        %3898 = vmatmul.bf16.gmra.mxu0 %v2301
        %v3899 = vpop.f32.mrf.mxu0
        %v3900 = vadd.f32 %v3841, %v3899
        %v3901 = vpop.f32.mrf.mxu0
        %v3902 = vadd.f32 %v3843, %v3901
        %3903 = vmatmul.bf16.gmra.mxu0 %v2305
        %v3904 = vpop.f32.mrf.mxu0
        %v3905 = vadd.f32 %v3846, %v3904
        %v3906 = vpop.f32.mrf.mxu0
        %v3907 = vadd.f32 %v3848, %v3906
        %3908 = vmatmul.bf16.gmra.mxu0 %v2309
        %v3909 = vpop.f32.mrf.mxu0
        %v3910 = vadd.f32 %v3851, %v3909
        %v3911 = vpop.f32.mrf.mxu0
        %v3912 = vadd.f32 %v3853, %v3911
        %3913 = vmatmul.bf16.gmra.mxu0 %v2313
        %v3914 = vpop.f32.mrf.mxu0
        %v3915 = vadd.f32 %v3856, %v3914
        %v3916 = vpop.f32.mrf.mxu0
        %v3917 = vadd.f32 %v3858, %v3916
        %3918 = vmatmul.bf16.gmra.mxu0 %v2317
        %v3919 = vpop.f32.mrf.mxu0
        %v3920 = vadd.f32 %v3861, %v3919
        %v3921 = vpop.f32.mrf.mxu0
        %v3922 = vadd.f32 %v3863, %v3921
        %3923 = vdwg.mxu0
        %3924 = vmatpush.bf16.msra.mxu0 %v2937
        %3925 = vmatpush.bf16.msra.mxu0 %v2933
        %3926 = vmatpush.bf16.msra.mxu0 %v2929
        %3927 = vmatpush.bf16.msra.mxu0 %v2925
        %3928 = vmatpush.bf16.msra.mxu0 %v2921
        %3929 = vmatpush.bf16.msra.mxu0 %v2917
        %3930 = vmatpush.bf16.msra.mxu0 %v2913
        %3931 = vmatpush.bf16.msra.mxu0 %v2909
        %3932 = vmatmul.bf16.gmra.mxu0 %v2282
        %v3933 = vpop.f32.mrf.mxu0
        %v3934 = vadd.f32 %v3875, %v3933
        %v3935 = vpop.f32.mrf.mxu0
        %v3936 = vadd.f32 %v3877, %v3935
        %3937 = vmatmul.bf16.gmra.mxu0 %v2286
        %v3938 = vpop.f32.mrf.mxu0
        %v3939 = vadd.f32 %v3880, %v3938
        %v3940 = vpop.f32.mrf.mxu0
        %v3941 = vadd.f32 %v3882, %v3940
        %3942 = vmatmul.bf16.gmra.mxu0 %v2290
        %v3943 = vpop.f32.mrf.mxu0
        %v3944 = vadd.f32 %v3885, %v3943
        %v3945 = vpop.f32.mrf.mxu0
        %v3946 = vadd.f32 %v3887, %v3945
        %3947 = vmatmul.bf16.gmra.mxu0 %v2294
        %v3948 = vpop.f32.mrf.mxu0
        %v3949 = vadd.f32 %v3890, %v3948
        %v3950 = vpop.f32.mrf.mxu0
        %v3951 = vadd.f32 %v3892, %v3950
        %3952 = vmatmul.bf16.gmra.mxu0 %v2298
        %v3953 = vpop.f32.mrf.mxu0
        %v3954 = vadd.f32 %v3895, %v3953
        %v3955 = vpop.f32.mrf.mxu0
        %v3956 = vadd.f32 %v3897, %v3955
        %3957 = vmatmul.bf16.gmra.mxu0 %v2302
        %v3958 = vpop.f32.mrf.mxu0
        %v3959 = vadd.f32 %v3900, %v3958
        %v3960 = vpop.f32.mrf.mxu0
        %v3961 = vadd.f32 %v3902, %v3960
        %3962 = vmatmul.bf16.gmra.mxu0 %v2306
        %v3963 = vpop.f32.mrf.mxu0
        %v3964 = vadd.f32 %v3905, %v3963
        %v3965 = vpop.f32.mrf.mxu0
        %v3966 = vadd.f32 %v3907, %v3965
        %3967 = vmatmul.bf16.gmra.mxu0 %v2310
        %v3968 = vpop.f32.mrf.mxu0
        %v3969 = vadd.f32 %v3910, %v3968
        %v3970 = vpop.f32.mrf.mxu0
        %v3971 = vadd.f32 %v3912, %v3970
        %3972 = vmatmul.bf16.gmra.mxu0 %v2314
        %v3973 = vpop.f32.mrf.mxu0
        %v3974 = vadd.f32 %v3915, %v3973
        %v3975 = vpop.f32.mrf.mxu0
        %v3976 = vadd.f32 %v3917, %v3975
        %3977 = vmatmul.bf16.gmra.mxu0 %v2318
        %v3978 = vpop.f32.mrf.mxu0
        %v3979 = vadd.f32 %v3920, %v3978
        %v3980 = vpop.f32.mrf.mxu0
        %v3981 = vadd.f32 %v3922, %v3980
        %3982 = vdwg.mxu0
        %3983 = vmatpush.bf16.msra.mxu0 %v2969
        %3984 = vmatpush.bf16.msra.mxu0 %v2965
        %3985 = vmatpush.bf16.msra.mxu0 %v2961
        %3986 = vmatpush.bf16.msra.mxu0 %v2957
        %3987 = vmatpush.bf16.msra.mxu0 %v2953
        %3988 = vmatpush.bf16.msra.mxu0 %v2949
        %3989 = vmatpush.bf16.msra.mxu0 %v2945
        %3990 = vmatpush.bf16.msra.mxu0 %v2941
        %3991 = vmatmul.bf16.gmra.mxu0 %v2283
        %v3992 = vpop.f32.mrf.mxu0
        %v3993 = vadd.f32 %v3934, %v3992
        %v3994 = vpop.f32.mrf.mxu0
        %v3995 = vadd.f32 %v3936, %v3994
        %3996 = vmatmul.bf16.gmra.mxu0 %v2287
        %v3997 = vpop.f32.mrf.mxu0
        %v3998 = vadd.f32 %v3939, %v3997
        %v3999 = vpop.f32.mrf.mxu0
        %v4000 = vadd.f32 %v3941, %v3999
        %4001 = vmatmul.bf16.gmra.mxu0 %v2291
        %v4002 = vpop.f32.mrf.mxu0
        %v4003 = vadd.f32 %v3944, %v4002
        %v4004 = vpop.f32.mrf.mxu0
        %v4005 = vadd.f32 %v3946, %v4004
        %4006 = vmatmul.bf16.gmra.mxu0 %v2295
        %v4007 = vpop.f32.mrf.mxu0
        %v4008 = vadd.f32 %v3949, %v4007
        %v4009 = vpop.f32.mrf.mxu0
        %v4010 = vadd.f32 %v3951, %v4009
        %4011 = vmatmul.bf16.gmra.mxu0 %v2299
        %v4012 = vpop.f32.mrf.mxu0
        %v4013 = vadd.f32 %v3954, %v4012
        %v4014 = vpop.f32.mrf.mxu0
        %v4015 = vadd.f32 %v3956, %v4014
        %4016 = vmatmul.bf16.gmra.mxu0 %v2303
        %v4017 = vpop.f32.mrf.mxu0
        %v4018 = vadd.f32 %v3959, %v4017
        %v4019 = vpop.f32.mrf.mxu0
        %v4020 = vadd.f32 %v3961, %v4019
        %4021 = vmatmul.bf16.gmra.mxu0 %v2307
        %v4022 = vpop.f32.mrf.mxu0
        %v4023 = vadd.f32 %v3964, %v4022
        %v4024 = vpop.f32.mrf.mxu0
        %v4025 = vadd.f32 %v3966, %v4024
        %4026 = vmatmul.bf16.gmra.mxu0 %v2311
        %v4027 = vpop.f32.mrf.mxu0
        %v4028 = vadd.f32 %v3969, %v4027
        %v4029 = vpop.f32.mrf.mxu0
        %v4030 = vadd.f32 %v3971, %v4029
        %4031 = vmatmul.bf16.gmra.mxu0 %v2315
        %v4032 = vpop.f32.mrf.mxu0
        %v4033 = vadd.f32 %v3974, %v4032
        %v4034 = vpop.f32.mrf.mxu0
        %v4035 = vadd.f32 %v3976, %v4034
        %4036 = vmatmul.bf16.gmra.mxu0 %v2319
        %v4037 = vpop.f32.mrf.mxu0
        %v4038 = vadd.f32 %v3979, %v4037
        %v4039 = vpop.f32.mrf.mxu0
        %v4040 = vadd.f32 %v3981, %v4039
        %4041 = vdwg.mxu0
        %v4042 = vsub.f32 0.0, %v3285
        %v4043 = vsub.f32 0.0, %v3521
        %v4044 = vsub.f32 0.0, %v3757
        %v4045 = vsub.f32 0.0, %v3993
        %v4046 = vsub.f32 0.0, %v3287
        %v4047 = vsub.f32 0.0, %v3523
        %v4048 = vsub.f32 0.0, %v3759
        %v4049 = vsub.f32 0.0, %v3995
        %v4050 = vsub.f32 0.0, %v3290
        %v4051 = vsub.f32 0.0, %v3526
        %v4052 = vsub.f32 0.0, %v3762
        %v4053 = vsub.f32 0.0, %v3998
        %v4054 = vsub.f32 0.0, %v3292
        %v4055 = vsub.f32 0.0, %v3528
        %v4056 = vsub.f32 0.0, %v3764
        %v4057 = vsub.f32 0.0, %v4000
        %v4058 = vsub.f32 0.0, %v3295
        %v4059 = vsub.f32 0.0, %v3531
        %v4060 = vsub.f32 0.0, %v3767
        %v4061 = vsub.f32 0.0, %v4003
        %v4062 = vsub.f32 0.0, %v3297
        %v4063 = vsub.f32 0.0, %v3533
        %v4064 = vsub.f32 0.0, %v3769
        %v4065 = vsub.f32 0.0, %v4005
        %v4066 = vsub.f32 0.0, %v3300
        %v4067 = vsub.f32 0.0, %v3536
        %v4068 = vsub.f32 0.0, %v3772
        %v4069 = vsub.f32 0.0, %v4008
        %v4070 = vsub.f32 0.0, %v3302
        %v4071 = vsub.f32 0.0, %v3538
        %v4072 = vsub.f32 0.0, %v3774
        %v4073 = vsub.f32 0.0, %v4010
        %v4074 = vsub.f32 0.0, %v3305
        %v4075 = vsub.f32 0.0, %v3541
        %v4076 = vsub.f32 0.0, %v3777
        %v4077 = vsub.f32 0.0, %v4013
        %v4078 = vsub.f32 0.0, %v3307
        %v4079 = vsub.f32 0.0, %v3543
        %v4080 = vsub.f32 0.0, %v3779
        %v4081 = vsub.f32 0.0, %v4015
        %v4082 = vsub.f32 0.0, %v3310
        %v4083 = vsub.f32 0.0, %v3546
        %v4084 = vsub.f32 0.0, %v3782
        %v4085 = vsub.f32 0.0, %v4018
        %v4086 = vsub.f32 0.0, %v3312
        %v4087 = vsub.f32 0.0, %v3548
        %v4088 = vsub.f32 0.0, %v3784
        %v4089 = vsub.f32 0.0, %v4020
        %v4090 = vsub.f32 0.0, %v3315
        %v4091 = vsub.f32 0.0, %v3551
        %v4092 = vsub.f32 0.0, %v3787
        %v4093 = vsub.f32 0.0, %v4023
        %v4094 = vsub.f32 0.0, %v3317
        %v4095 = vsub.f32 0.0, %v3553
        %v4096 = vsub.f32 0.0, %v3789
        %v4097 = vsub.f32 0.0, %v4025
        %v4098 = vsub.f32 0.0, %v3320
        %v4099 = vsub.f32 0.0, %v3556
        %v4100 = vsub.f32 0.0, %v3792
        %v4101 = vsub.f32 0.0, %v4028
        %v4102 = vsub.f32 0.0, %v3322
        %v4103 = vsub.f32 0.0, %v3558
        %v4104 = vsub.f32 0.0, %v3794
        %v4105 = vsub.f32 0.0, %v4030
        %v4106 = vsub.f32 0.0, %v3325
        %v4107 = vsub.f32 0.0, %v3561
        %v4108 = vsub.f32 0.0, %v3797
        %v4109 = vsub.f32 0.0, %v4033
        %v4110 = vsub.f32 0.0, %v3327
        %v4111 = vsub.f32 0.0, %v3563
        %v4112 = vsub.f32 0.0, %v3799
        %v4113 = vsub.f32 0.0, %v4035
        %v4114 = vsub.f32 0.0, %v3330
        %v4115 = vsub.f32 0.0, %v3566
        %v4116 = vsub.f32 0.0, %v3802
        %v4117 = vsub.f32 0.0, %v4038
        %v4118 = vsub.f32 0.0, %v3332
        %v4119 = vsub.f32 0.0, %v3568
        %v4120 = vsub.f32 0.0, %v3804
        %v4121 = vsub.f32 0.0, %v4040
        %v4122 = vmul.f32 %v4042, 1.442695
        %v4123 = vpow.pop %v4122
        %v4124 = vmul.f32 %v4043, 1.442695
        %v4125 = vpow.pop %v4124
        %v4126 = vmul.f32 %v4044, 1.442695
        %v4127 = vpow.pop %v4126
        %v4128 = vmul.f32 %v4045, 1.442695
        %v4129 = vpow.pop %v4128
        %v4130 = vmul.f32 %v4046, 1.442695
        %v4131 = vpow.pop %v4130
        %v4132 = vmul.f32 %v4047, 1.442695
        %v4133 = vpow.pop %v4132
        %v4134 = vmul.f32 %v4048, 1.442695
        %v4135 = vpow.pop %v4134
        %v4136 = vmul.f32 %v4049, 1.442695
        %v4137 = vpow.pop %v4136
        %v4138 = vmul.f32 %v4050, 1.442695
        %v4139 = vpow.pop %v4138
        %v4140 = vmul.f32 %v4051, 1.442695
        %v4141 = vpow.pop %v4140
        %v4142 = vmul.f32 %v4052, 1.442695
        %v4143 = vpow.pop %v4142
        %v4144 = vmul.f32 %v4053, 1.442695
        %v4145 = vpow.pop %v4144
        %v4146 = vmul.f32 %v4054, 1.442695
        %v4147 = vpow.pop %v4146
        %v4148 = vmul.f32 %v4055, 1.442695
        %v4149 = vpow.pop %v4148
        %v4150 = vmul.f32 %v4056, 1.442695
        %v4151 = vpow.pop %v4150
        %v4152 = vmul.f32 %v4057, 1.442695
        %v4153 = vpow.pop %v4152
        %v4154 = vmul.f32 %v4058, 1.442695
        %v4155 = vpow.pop %v4154
        %v4156 = vmul.f32 %v4059, 1.442695
        %v4157 = vpow.pop %v4156
        %v4158 = vmul.f32 %v4060, 1.442695
        %v4159 = vpow.pop %v4158
        %v4160 = vmul.f32 %v4061, 1.442695
        %v4161 = vpow.pop %v4160
        %v4162 = vmul.f32 %v4062, 1.442695
        %v4163 = vpow.pop %v4162
        %v4164 = vmul.f32 %v4063, 1.442695
        %v4165 = vpow.pop %v4164
        %v4166 = vmul.f32 %v4064, 1.442695
        %v4167 = vpow.pop %v4166
        %v4168 = vmul.f32 %v4065, 1.442695
        %v4169 = vpow.pop %v4168
        %v4170 = vmul.f32 %v4066, 1.442695
        %v4171 = vpow.pop %v4170
        %v4172 = vmul.f32 %v4067, 1.442695
        %v4173 = vpow.pop %v4172
        %v4174 = vmul.f32 %v4068, 1.442695
        %v4175 = vpow.pop %v4174
        %v4176 = vmul.f32 %v4069, 1.442695
        %v4177 = vpow.pop %v4176
        %v4178 = vmul.f32 %v4070, 1.442695
        %v4179 = vpow.pop %v4178
        %v4180 = vmul.f32 %v4071, 1.442695
        %v4181 = vpow.pop %v4180
        %v4182 = vmul.f32 %v4072, 1.442695
        %v4183 = vpow.pop %v4182
        %v4184 = vmul.f32 %v4073, 1.442695
        %v4185 = vpow.pop %v4184
        %v4186 = vmul.f32 %v4074, 1.442695
        %v4187 = vpow.pop %v4186
        %v4188 = vmul.f32 %v4075, 1.442695
        %v4189 = vpow.pop %v4188
        %v4190 = vmul.f32 %v4076, 1.442695
        %v4191 = vpow.pop %v4190
        %v4192 = vmul.f32 %v4077, 1.442695
        %v4193 = vpow.pop %v4192
        %v4194 = vmul.f32 %v4078, 1.442695
        %v4195 = vpow.pop %v4194
        %v4196 = vmul.f32 %v4079, 1.442695
        %v4197 = vpow.pop %v4196
        %v4198 = vmul.f32 %v4080, 1.442695
        %v4199 = vpow.pop %v4198
        %v4200 = vmul.f32 %v4081, 1.442695
        %v4201 = vpow.pop %v4200
        %v4202 = vmul.f32 %v4082, 1.442695
        %v4203 = vpow.pop %v4202
        %v4204 = vmul.f32 %v4083, 1.442695
        %v4205 = vpow.pop %v4204
        %v4206 = vmul.f32 %v4084, 1.442695
        %v4207 = vpow.pop %v4206
        %v4208 = vmul.f32 %v4085, 1.442695
        %v4209 = vpow.pop %v4208
        %v4210 = vmul.f32 %v4086, 1.442695
        %v4211 = vpow.pop %v4210
        %v4212 = vmul.f32 %v4087, 1.442695
        %v4213 = vpow.pop %v4212
        %v4214 = vmul.f32 %v4088, 1.442695
        %v4215 = vpow.pop %v4214
        %v4216 = vmul.f32 %v4089, 1.442695
        %v4217 = vpow.pop %v4216
        %v4218 = vmul.f32 %v4090, 1.442695
        %v4219 = vpow.pop %v4218
        %v4220 = vmul.f32 %v4091, 1.442695
        %v4221 = vpow.pop %v4220
        %v4222 = vmul.f32 %v4092, 1.442695
        %v4223 = vpow.pop %v4222
        %v4224 = vmul.f32 %v4093, 1.442695
        %v4225 = vpow.pop %v4224
        %v4226 = vmul.f32 %v4094, 1.442695
        %v4227 = vpow.pop %v4226
        %v4228 = vmul.f32 %v4095, 1.442695
        %v4229 = vpow.pop %v4228
        %v4230 = vmul.f32 %v4096, 1.442695
        %v4231 = vpow.pop %v4230
        %v4232 = vmul.f32 %v4097, 1.442695
        %v4233 = vpow.pop %v4232
        %v4234 = vmul.f32 %v4098, 1.442695
        %v4235 = vpow.pop %v4234
        %v4236 = vmul.f32 %v4099, 1.442695
        %v4237 = vpow.pop %v4236
        %v4238 = vmul.f32 %v4100, 1.442695
        %v4239 = vpow.pop %v4238
        %v4240 = vmul.f32 %v4101, 1.442695
        %v4241 = vpow.pop %v4240
        %v4242 = vmul.f32 %v4102, 1.442695
        %v4243 = vpow.pop %v4242
        %v4244 = vmul.f32 %v4103, 1.442695
        %v4245 = vpow.pop %v4244
        %v4246 = vmul.f32 %v4104, 1.442695
        %v4247 = vpow.pop %v4246
        %v4248 = vmul.f32 %v4105, 1.442695
        %v4249 = vpow.pop %v4248
        %v4250 = vmul.f32 %v4106, 1.442695
        %v4251 = vpow.pop %v4250
        %v4252 = vmul.f32 %v4107, 1.442695
        %v4253 = vpow.pop %v4252
        %v4254 = vmul.f32 %v4108, 1.442695
        %v4255 = vpow.pop %v4254
        %v4256 = vmul.f32 %v4109, 1.442695
        %v4257 = vpow.pop %v4256
        %v4258 = vmul.f32 %v4110, 1.442695
        %v4259 = vpow.pop %v4258
        %v4260 = vmul.f32 %v4111, 1.442695
        %v4261 = vpow.pop %v4260
        %v4262 = vmul.f32 %v4112, 1.442695
        %v4263 = vpow.pop %v4262
        %v4264 = vmul.f32 %v4113, 1.442695
        %v4265 = vpow.pop %v4264
        %v4266 = vmul.f32 %v4114, 1.442695
        %v4267 = vpow.pop %v4266
        %v4268 = vmul.f32 %v4115, 1.442695
        %v4269 = vpow.pop %v4268
        %v4270 = vmul.f32 %v4116, 1.442695
        %v4271 = vpow.pop %v4270
        %v4272 = vmul.f32 %v4117, 1.442695
        %v4273 = vpow.pop %v4272
        %v4274 = vmul.f32 %v4118, 1.442695
        %v4275 = vpow.pop %v4274
        %v4276 = vmul.f32 %v4119, 1.442695
        %v4277 = vpow.pop %v4276
        %v4278 = vmul.f32 %v4120, 1.442695
        %v4279 = vpow.pop %v4278
        %v4280 = vmul.f32 %v4121, 1.442695
        %v4281 = vpow.pop %v4280
        %v4282 = vadd.f32 %v4123, 1.0
        %v4283 = vadd.f32 %v4125, 1.0
        %v4284 = vadd.f32 %v4127, 1.0
        %v4285 = vadd.f32 %v4129, 1.0
        %v4286 = vadd.f32 %v4131, 1.0
        %v4287 = vadd.f32 %v4133, 1.0
        %v4288 = vadd.f32 %v4135, 1.0
        %v4289 = vadd.f32 %v4137, 1.0
        %v4290 = vadd.f32 %v4139, 1.0
        %v4291 = vadd.f32 %v4141, 1.0
        %v4292 = vadd.f32 %v4143, 1.0
        %v4293 = vadd.f32 %v4145, 1.0
        %v4294 = vadd.f32 %v4147, 1.0
        %v4295 = vadd.f32 %v4149, 1.0
        %v4296 = vadd.f32 %v4151, 1.0
        %v4297 = vadd.f32 %v4153, 1.0
        %v4298 = vadd.f32 %v4155, 1.0
        %v4299 = vadd.f32 %v4157, 1.0
        %v4300 = vadd.f32 %v4159, 1.0
        %v4301 = vadd.f32 %v4161, 1.0
        %v4302 = vadd.f32 %v4163, 1.0
        %v4303 = vadd.f32 %v4165, 1.0
        %v4304 = vadd.f32 %v4167, 1.0
        %v4305 = vadd.f32 %v4169, 1.0
        %v4306 = vadd.f32 %v4171, 1.0
        %v4307 = vadd.f32 %v4173, 1.0
        %v4308 = vadd.f32 %v4175, 1.0
        %v4309 = vadd.f32 %v4177, 1.0
        %v4310 = vadd.f32 %v4179, 1.0
        %v4311 = vadd.f32 %v4181, 1.0
        %v4312 = vadd.f32 %v4183, 1.0
        %v4313 = vadd.f32 %v4185, 1.0
        %v4314 = vadd.f32 %v4187, 1.0
        %v4315 = vadd.f32 %v4189, 1.0
        %v4316 = vadd.f32 %v4191, 1.0
        %v4317 = vadd.f32 %v4193, 1.0
        %v4318 = vadd.f32 %v4195, 1.0
        %v4319 = vadd.f32 %v4197, 1.0
        %v4320 = vadd.f32 %v4199, 1.0
        %v4321 = vadd.f32 %v4201, 1.0
        %v4322 = vadd.f32 %v4203, 1.0
        %v4323 = vadd.f32 %v4205, 1.0
        %v4324 = vadd.f32 %v4207, 1.0
        %v4325 = vadd.f32 %v4209, 1.0
        %v4326 = vadd.f32 %v4211, 1.0
        %v4327 = vadd.f32 %v4213, 1.0
        %v4328 = vadd.f32 %v4215, 1.0
        %v4329 = vadd.f32 %v4217, 1.0
        %v4330 = vadd.f32 %v4219, 1.0
        %v4331 = vadd.f32 %v4221, 1.0
        %v4332 = vadd.f32 %v4223, 1.0
        %v4333 = vadd.f32 %v4225, 1.0
        %v4334 = vadd.f32 %v4227, 1.0
        %v4335 = vadd.f32 %v4229, 1.0
        %v4336 = vadd.f32 %v4231, 1.0
        %v4337 = vadd.f32 %v4233, 1.0
        %v4338 = vadd.f32 %v4235, 1.0
        %v4339 = vadd.f32 %v4237, 1.0
        %v4340 = vadd.f32 %v4239, 1.0
        %v4341 = vadd.f32 %v4241, 1.0
        %v4342 = vadd.f32 %v4243, 1.0
        %v4343 = vadd.f32 %v4245, 1.0
        %v4344 = vadd.f32 %v4247, 1.0
        %v4345 = vadd.f32 %v4249, 1.0
        %v4346 = vadd.f32 %v4251, 1.0
        %v4347 = vadd.f32 %v4253, 1.0
        %v4348 = vadd.f32 %v4255, 1.0
        %v4349 = vadd.f32 %v4257, 1.0
        %v4350 = vadd.f32 %v4259, 1.0
        %v4351 = vadd.f32 %v4261, 1.0
        %v4352 = vadd.f32 %v4263, 1.0
        %v4353 = vadd.f32 %v4265, 1.0
        %v4354 = vadd.f32 %v4267, 1.0
        %v4355 = vadd.f32 %v4269, 1.0
        %v4356 = vadd.f32 %v4271, 1.0
        %v4357 = vadd.f32 %v4273, 1.0
        %v4358 = vadd.f32 %v4275, 1.0
        %v4359 = vadd.f32 %v4277, 1.0
        %v4360 = vadd.f32 %v4279, 1.0
        %v4361 = vadd.f32 %v4281, 1.0
        %v4362 = vrcp.pop %v4282
        %v4363 = vrcp.pop %v4283
        %v4364 = vrcp.pop %v4284
        %v4365 = vrcp.pop %v4285
        %v4366 = vrcp.pop %v4286
        %v4367 = vrcp.pop %v4287
        %v4368 = vrcp.pop %v4288
        %v4369 = vrcp.pop %v4289
        %v4370 = vrcp.pop %v4290
        %v4371 = vrcp.pop %v4291
        %v4372 = vrcp.pop %v4292
        %v4373 = vrcp.pop %v4293
        %v4374 = vrcp.pop %v4294
        %v4375 = vrcp.pop %v4295
        %v4376 = vrcp.pop %v4296
        %v4377 = vrcp.pop %v4297
        %v4378 = vrcp.pop %v4298
        %v4379 = vrcp.pop %v4299
        %v4380 = vrcp.pop %v4300
        %v4381 = vrcp.pop %v4301
        %v4382 = vrcp.pop %v4302
        %v4383 = vrcp.pop %v4303
        %v4384 = vrcp.pop %v4304
        %v4385 = vrcp.pop %v4305
        %v4386 = vrcp.pop %v4306
        %v4387 = vrcp.pop %v4307
        %v4388 = vrcp.pop %v4308
        %v4389 = vrcp.pop %v4309
        %v4390 = vrcp.pop %v4310
        %v4391 = vrcp.pop %v4311
        %v4392 = vrcp.pop %v4312
        %v4393 = vrcp.pop %v4313
        %v4394 = vrcp.pop %v4314
        %v4395 = vrcp.pop %v4315
        %v4396 = vrcp.pop %v4316
        %v4397 = vrcp.pop %v4317
        %v4398 = vrcp.pop %v4318
        %v4399 = vrcp.pop %v4319
        %v4400 = vrcp.pop %v4320
        %v4401 = vrcp.pop %v4321
        %v4402 = vrcp.pop %v4322
        %v4403 = vrcp.pop %v4323
        %v4404 = vrcp.pop %v4324
        %v4405 = vrcp.pop %v4325
        %v4406 = vrcp.pop %v4326
        %v4407 = vrcp.pop %v4327
        %v4408 = vrcp.pop %v4328
        %v4409 = vrcp.pop %v4329
        %v4410 = vrcp.pop %v4330
        %v4411 = vrcp.pop %v4331
        %v4412 = vrcp.pop %v4332
        %v4413 = vrcp.pop %v4333
        %v4414 = vrcp.pop %v4334
        %v4415 = vrcp.pop %v4335
        %v4416 = vrcp.pop %v4336
        %v4417 = vrcp.pop %v4337
        %v4418 = vrcp.pop %v4338
        %v4419 = vrcp.pop %v4339
        %v4420 = vrcp.pop %v4340
        %v4421 = vrcp.pop %v4341
        %v4422 = vrcp.pop %v4342
        %v4423 = vrcp.pop %v4343
        %v4424 = vrcp.pop %v4344
        %v4425 = vrcp.pop %v4345
        %v4426 = vrcp.pop %v4346
        %v4427 = vrcp.pop %v4347
        %v4428 = vrcp.pop %v4348
        %v4429 = vrcp.pop %v4349
        %v4430 = vrcp.pop %v4350
        %v4431 = vrcp.pop %v4351
        %v4432 = vrcp.pop %v4352
        %v4433 = vrcp.pop %v4353
        %v4434 = vrcp.pop %v4354
        %v4435 = vrcp.pop %v4355
        %v4436 = vrcp.pop %v4356
        %v4437 = vrcp.pop %v4357
        %v4438 = vrcp.pop %v4358
        %v4439 = vrcp.pop %v4359
        %v4440 = vrcp.pop %v4360
        %v4441 = vrcp.pop %v4361
        %v4442 = vld [vmem:[%s481] sm:$0xff]
        %v4443 = vld [vmem:[%s481 + $0x8] sm:$0xff]
        %v4444 = vld [vmem:[%s481 + $0x10] sm:$0xff]
        %v4445 = vld [vmem:[%s481 + $0x18] sm:$0xff]
        %v4446 = vld [vmem:[%s481 + $0x20] sm:$0xff]
        %v4447 = vld [vmem:[%s481 + $0x28] sm:$0xff]
        %v4448 = vld [vmem:[%s481 + $0x30] sm:$0xff]
        %v4449 = vld [vmem:[%s481 + $0x38] sm:$0xff]
        %v4450 = vld [vmem:[%s481 + $0x40] sm:$0xff]
        %v4451 = vld [vmem:[%s481 + $0x48] sm:$0xff]
        %v4452 = vld [vmem:[%s481 + $0x50] sm:$0xff]
        %v4453 = vld [vmem:[%s481 + $0x58] sm:$0xff]
        %v4454 = vld [vmem:[%s481 + $0x60] sm:$0xff]
        %v4455 = vld [vmem:[%s481 + $0x68] sm:$0xff]
        %v4456 = vld [vmem:[%s481 + $0x70] sm:$0xff]
        %v4457 = vld [vmem:[%s481 + $0x78] sm:$0xff]
        %v4458 = vld [vmem:[%s481 + $0x80] sm:$0xff]
        %v4459 = vld [vmem:[%s481 + $0x88] sm:$0xff]
        %v4460 = vld [vmem:[%s481 + $0x90] sm:$0xff]
        %v4461 = vld [vmem:[%s481 + $0x98] sm:$0xff]
        %v4462 = vld [vmem:[%s481 + $0xa0] sm:$0xff]
        %v4463 = vld [vmem:[%s481 + $0xa8] sm:$0xff]
        %v4464 = vld [vmem:[%s481 + $0xb0] sm:$0xff]
        %v4465 = vld [vmem:[%s481 + $0xb8] sm:$0xff]
        %v4466 = vld [vmem:[%s481 + $0xc0] sm:$0xff]
        %v4467 = vld [vmem:[%s481 + $0xc8] sm:$0xff]
        %v4468 = vld [vmem:[%s481 + $0xd0] sm:$0xff]
        %v4469 = vld [vmem:[%s481 + $0xd8] sm:$0xff]
        %v4470 = vld [vmem:[%s481 + $0xe0] sm:$0xff]
        %v4471 = vld [vmem:[%s481 + $0xe8] sm:$0xff]
        %v4472 = vld [vmem:[%s481 + $0xf0] sm:$0xff]
        %v4473 = vld [vmem:[%s481 + $0xf8] sm:$0xff]
        %v4474 = vld [vmem:[%s481 + $0x100] sm:$0xff]
        %v4475 = vld [vmem:[%s481 + $0x108] sm:$0xff]
        %v4476 = vld [vmem:[%s481 + $0x110] sm:$0xff]
        %v4477 = vld [vmem:[%s481 + $0x118] sm:$0xff]
        %v4478 = vld [vmem:[%s481 + $0x120] sm:$0xff]
        %v4479 = vld [vmem:[%s481 + $0x128] sm:$0xff]
        %v4480 = vld [vmem:[%s481 + $0x130] sm:$0xff]
        %v4481 = vld [vmem:[%s481 + $0x138] sm:$0xff]
        %v4482 = vld [vmem:[%s481 + $0x140] sm:$0xff]
        %v4483 = vld [vmem:[%s481 + $0x148] sm:$0xff]
        %v4484 = vld [vmem:[%s481 + $0x150] sm:$0xff]
        %v4485 = vld [vmem:[%s481 + $0x158] sm:$0xff]
        %v4486 = vld [vmem:[%s481 + $0x160] sm:$0xff]
        %v4487 = vld [vmem:[%s481 + $0x168] sm:$0xff]
        %v4488 = vld [vmem:[%s481 + $0x170] sm:$0xff]
        %v4489 = vld [vmem:[%s481 + $0x178] sm:$0xff]
        %v4490 = vld [vmem:[%s481 + $0x180] sm:$0xff]
        %v4491 = vld [vmem:[%s481 + $0x188] sm:$0xff]
        %v4492 = vld [vmem:[%s481 + $0x190] sm:$0xff]
        %v4493 = vld [vmem:[%s481 + $0x198] sm:$0xff]
        %v4494 = vld [vmem:[%s481 + $0x1a0] sm:$0xff]
        %v4495 = vld [vmem:[%s481 + $0x1a8] sm:$0xff]
        %v4496 = vld [vmem:[%s481 + $0x1b0] sm:$0xff]
        %v4497 = vld [vmem:[%s481 + $0x1b8] sm:$0xff]
        %v4498 = vld [vmem:[%s481 + $0x1c0] sm:$0xff]
        %v4499 = vld [vmem:[%s481 + $0x1c8] sm:$0xff]
        %v4500 = vld [vmem:[%s481 + $0x1d0] sm:$0xff]
        %v4501 = vld [vmem:[%s481 + $0x1d8] sm:$0xff]
        %v4502 = vld [vmem:[%s481 + $0x1e0] sm:$0xff]
        %v4503 = vld [vmem:[%s481 + $0x1e8] sm:$0xff]
        %v4504 = vld [vmem:[%s481 + $0x1f0] sm:$0xff]
        %v4505 = vld [vmem:[%s481 + $0x1f8] sm:$0xff]
        %v4506 = vld [vmem:[%s481 + $0x200] sm:$0xff]
        %v4507 = vld [vmem:[%s481 + $0x208] sm:$0xff]
        %v4508 = vld [vmem:[%s481 + $0x210] sm:$0xff]
        %v4509 = vld [vmem:[%s481 + $0x218] sm:$0xff]
        %v4510 = vld [vmem:[%s481 + $0x220] sm:$0xff]
        %v4511 = vld [vmem:[%s481 + $0x228] sm:$0xff]
        %v4512 = vld [vmem:[%s481 + $0x230] sm:$0xff]
        %v4513 = vld [vmem:[%s481 + $0x238] sm:$0xff]
        %v4514 = vld [vmem:[%s481 + $0x240] sm:$0xff]
        %v4515 = vld [vmem:[%s481 + $0x248] sm:$0xff]
        %v4516 = vld [vmem:[%s481 + $0x250] sm:$0xff]
        %v4517 = vld [vmem:[%s481 + $0x258] sm:$0xff]
        %v4518 = vld [vmem:[%s481 + $0x260] sm:$0xff]
        %v4519 = vld [vmem:[%s481 + $0x268] sm:$0xff]
        %v4520 = vld [vmem:[%s481 + $0x270] sm:$0xff]
        %v4521 = vld [vmem:[%s481 + $0x278] sm:$0xff]
        %v4522 = vpack.c.bf16 %v4446, %v4442
        %v4523 = vpack.c.bf16 %v4447, %v4443
        %v4524 = vpack.c.bf16 %v4448, %v4444
        %v4525 = vpack.c.bf16 %v4449, %v4445
        %v4526 = vpack.c.bf16 %v4454, %v4450
        %v4527 = vpack.c.bf16 %v4455, %v4451
        %v4528 = vpack.c.bf16 %v4456, %v4452
        %v4529 = vpack.c.bf16 %v4457, %v4453
        %v4530 = vpack.c.bf16 %v4462, %v4458
        %v4531 = vpack.c.bf16 %v4463, %v4459
        %v4532 = vpack.c.bf16 %v4464, %v4460
        %v4533 = vpack.c.bf16 %v4465, %v4461
        %v4534 = vpack.c.bf16 %v4470, %v4466
        %v4535 = vpack.c.bf16 %v4471, %v4467
        %v4536 = vpack.c.bf16 %v4472, %v4468
        %v4537 = vpack.c.bf16 %v4473, %v4469
        %v4538 = vpack.c.bf16 %v4478, %v4474
        %v4539 = vpack.c.bf16 %v4479, %v4475
        %v4540 = vpack.c.bf16 %v4480, %v4476
        %v4541 = vpack.c.bf16 %v4481, %v4477
        %v4542 = vpack.c.bf16 %v4486, %v4482
        %v4543 = vpack.c.bf16 %v4487, %v4483
        %v4544 = vpack.c.bf16 %v4488, %v4484
        %v4545 = vpack.c.bf16 %v4489, %v4485
        %v4546 = vpack.c.bf16 %v4494, %v4490
        %v4547 = vpack.c.bf16 %v4495, %v4491
        %v4548 = vpack.c.bf16 %v4496, %v4492
        %v4549 = vpack.c.bf16 %v4497, %v4493
        %v4550 = vpack.c.bf16 %v4502, %v4498
        %v4551 = vpack.c.bf16 %v4503, %v4499
        %v4552 = vpack.c.bf16 %v4504, %v4500
        %v4553 = vpack.c.bf16 %v4505, %v4501
        %v4554 = vpack.c.bf16 %v4510, %v4506
        %v4555 = vpack.c.bf16 %v4511, %v4507
        %v4556 = vpack.c.bf16 %v4512, %v4508
        %v4557 = vpack.c.bf16 %v4513, %v4509
        %v4558 = vpack.c.bf16 %v4518, %v4514
        %v4559 = vpack.c.bf16 %v4519, %v4515
        %v4560 = vpack.c.bf16 %v4520, %v4516
        %v4561 = vpack.c.bf16 %v4521, %v4517
        %v4562 = vld [vmem:[#allocation5] sm:$0xff]
        %v4563 = vld [vmem:[#allocation5 + $0x8] sm:$0xff]
        %v4564 = vld [vmem:[#allocation5 + $0x10] sm:$0xff]
        %v4565 = vld [vmem:[#allocation5 + $0x18] sm:$0xff]
        %v4566 = vld [vmem:[#allocation5 + $0x20] sm:$0xff]
        %v4567 = vld [vmem:[#allocation5 + $0x28] sm:$0xff]
        %v4568 = vld [vmem:[#allocation5 + $0x30] sm:$0xff]
        %v4569 = vld [vmem:[#allocation5 + $0x38] sm:$0xff]
        %v4570 = vld [vmem:[#allocation5 + $0x40] sm:$0xff]
        %v4571 = vld [vmem:[#allocation5 + $0x48] sm:$0xff]
        %v4572 = vld [vmem:[#allocation5 + $0x50] sm:$0xff]
        %v4573 = vld [vmem:[#allocation5 + $0x58] sm:$0xff]
        %v4574 = vld [vmem:[#allocation5 + $0x60] sm:$0xff]
        %v4575 = vld [vmem:[#allocation5 + $0x68] sm:$0xff]
        %v4576 = vld [vmem:[#allocation5 + $0x70] sm:$0xff]
        %v4577 = vld [vmem:[#allocation5 + $0x78] sm:$0xff]
        %v4578 = vld [vmem:[#allocation5 + $0x80] sm:$0xff]
        %v4579 = vld [vmem:[#allocation5 + $0x88] sm:$0xff]
        %v4580 = vld [vmem:[#allocation5 + $0x90] sm:$0xff]
        %v4581 = vld [vmem:[#allocation5 + $0x98] sm:$0xff]
        %v4582 = vld [vmem:[#allocation5 + $0xa0] sm:$0xff]
        %v4583 = vld [vmem:[#allocation5 + $0xa8] sm:$0xff]
        %v4584 = vld [vmem:[#allocation5 + $0xb0] sm:$0xff]
        %v4585 = vld [vmem:[#allocation5 + $0xb8] sm:$0xff]
        %v4586 = vld [vmem:[#allocation5 + $0xc0] sm:$0xff]
        %v4587 = vld [vmem:[#allocation5 + $0xc8] sm:$0xff]
        %v4588 = vld [vmem:[#allocation5 + $0xd0] sm:$0xff]
        %v4589 = vld [vmem:[#allocation5 + $0xd8] sm:$0xff]
        %v4590 = vld [vmem:[#allocation5 + $0xe0] sm:$0xff]
        %v4591 = vld [vmem:[#allocation5 + $0xe8] sm:$0xff]
        %v4592 = vld [vmem:[#allocation5 + $0xf0] sm:$0xff]
        %v4593 = vld [vmem:[#allocation5 + $0xf8] sm:$0xff]
        %v4594 = vld [vmem:[#allocation5 + $0x100] sm:$0xff]
        %v4595 = vld [vmem:[#allocation5 + $0x108] sm:$0xff]
        %v4596 = vld [vmem:[#allocation5 + $0x110] sm:$0xff]
        %v4597 = vld [vmem:[#allocation5 + $0x118] sm:$0xff]
        %v4598 = vld [vmem:[#allocation5 + $0x120] sm:$0xff]
        %v4599 = vld [vmem:[#allocation5 + $0x128] sm:$0xff]
        %v4600 = vld [vmem:[#allocation5 + $0x130] sm:$0xff]
        %v4601 = vld [vmem:[#allocation5 + $0x138] sm:$0xff]
        %v4602 = vld [vmem:[#allocation5 + $0x140] sm:$0xff]
        %v4603 = vld [vmem:[#allocation5 + $0x148] sm:$0xff]
        %v4604 = vld [vmem:[#allocation5 + $0x150] sm:$0xff]
        %v4605 = vld [vmem:[#allocation5 + $0x158] sm:$0xff]
        %v4606 = vld [vmem:[#allocation5 + $0x160] sm:$0xff]
        %v4607 = vld [vmem:[#allocation5 + $0x168] sm:$0xff]
        %v4608 = vld [vmem:[#allocation5 + $0x170] sm:$0xff]
        %v4609 = vld [vmem:[#allocation5 + $0x178] sm:$0xff]
        %v4610 = vld [vmem:[#allocation5 + $0x180] sm:$0xff]
        %v4611 = vld [vmem:[#allocation5 + $0x188] sm:$0xff]
        %v4612 = vld [vmem:[#allocation5 + $0x190] sm:$0xff]
        %v4613 = vld [vmem:[#allocation5 + $0x198] sm:$0xff]
        %v4614 = vld [vmem:[#allocation5 + $0x1a0] sm:$0xff]
        %v4615 = vld [vmem:[#allocation5 + $0x1a8] sm:$0xff]
        %v4616 = vld [vmem:[#allocation5 + $0x1b0] sm:$0xff]
        %v4617 = vld [vmem:[#allocation5 + $0x1b8] sm:$0xff]
        %v4618 = vld [vmem:[#allocation5 + $0x1c0] sm:$0xff]
        %v4619 = vld [vmem:[#allocation5 + $0x1c8] sm:$0xff]
        %v4620 = vld [vmem:[#allocation5 + $0x1d0] sm:$0xff]
        %v4621 = vld [vmem:[#allocation5 + $0x1d8] sm:$0xff]
        %v4622 = vld [vmem:[#allocation5 + $0x1e0] sm:$0xff]
        %v4623 = vld [vmem:[#allocation5 + $0x1e8] sm:$0xff]
        %v4624 = vld [vmem:[#allocation5 + $0x1f0] sm:$0xff]
        %v4625 = vld [vmem:[#allocation5 + $0x1f8] sm:$0xff]
        %v4626 = vld [vmem:[#allocation5 + $0x200] sm:$0xff]
        %v4627 = vld [vmem:[#allocation5 + $0x208] sm:$0xff]
        %v4628 = vld [vmem:[#allocation5 + $0x210] sm:$0xff]
        %v4629 = vld [vmem:[#allocation5 + $0x218] sm:$0xff]
        %v4630 = vld [vmem:[#allocation5 + $0x220] sm:$0xff]
        %v4631 = vld [vmem:[#allocation5 + $0x228] sm:$0xff]
        %v4632 = vld [vmem:[#allocation5 + $0x230] sm:$0xff]
        %v4633 = vld [vmem:[#allocation5 + $0x238] sm:$0xff]
        %v4634 = vld [vmem:[#allocation5 + $0x240] sm:$0xff]
        %v4635 = vld [vmem:[#allocation5 + $0x248] sm:$0xff]
        %v4636 = vld [vmem:[#allocation5 + $0x250] sm:$0xff]
        %v4637 = vld [vmem:[#allocation5 + $0x258] sm:$0xff]
        %v4638 = vld [vmem:[#allocation5 + $0x260] sm:$0xff]
        %v4639 = vld [vmem:[#allocation5 + $0x268] sm:$0xff]
        %v4640 = vld [vmem:[#allocation5 + $0x270] sm:$0xff]
        %v4641 = vld [vmem:[#allocation5 + $0x278] sm:$0xff]
        %v4642 = vld [vmem:[#allocation5 + $0x280] sm:$0xff]
        %v4643 = vld [vmem:[#allocation5 + $0x288] sm:$0xff]
        %v4644 = vld [vmem:[#allocation5 + $0x290] sm:$0xff]
        %v4645 = vld [vmem:[#allocation5 + $0x298] sm:$0xff]
        %v4646 = vld [vmem:[#allocation5 + $0x2a0] sm:$0xff]
        %v4647 = vld [vmem:[#allocation5 + $0x2a8] sm:$0xff]
        %v4648 = vld [vmem:[#allocation5 + $0x2b0] sm:$0xff]
        %v4649 = vld [vmem:[#allocation5 + $0x2b8] sm:$0xff]
        %v4650 = vld [vmem:[#allocation5 + $0x2c0] sm:$0xff]
        %v4651 = vld [vmem:[#allocation5 + $0x2c8] sm:$0xff]
        %v4652 = vld [vmem:[#allocation5 + $0x2d0] sm:$0xff]
        %v4653 = vld [vmem:[#allocation5 + $0x2d8] sm:$0xff]
        %v4654 = vld [vmem:[#allocation5 + $0x2e0] sm:$0xff]
        %v4655 = vld [vmem:[#allocation5 + $0x2e8] sm:$0xff]
        %v4656 = vld [vmem:[#allocation5 + $0x2f0] sm:$0xff]
        %v4657 = vld [vmem:[#allocation5 + $0x2f8] sm:$0xff]
        %v4658 = vld [vmem:[#allocation5 + $0x300] sm:$0xff]
        %v4659 = vld [vmem:[#allocation5 + $0x308] sm:$0xff]
        %v4660 = vld [vmem:[#allocation5 + $0x310] sm:$0xff]
        %v4661 = vld [vmem:[#allocation5 + $0x318] sm:$0xff]
        %v4662 = vld [vmem:[#allocation5 + $0x320] sm:$0xff]
        %v4663 = vld [vmem:[#allocation5 + $0x328] sm:$0xff]
        %v4664 = vld [vmem:[#allocation5 + $0x330] sm:$0xff]
        %v4665 = vld [vmem:[#allocation5 + $0x338] sm:$0xff]
        %v4666 = vld [vmem:[#allocation5 + $0x340] sm:$0xff]
        %v4667 = vld [vmem:[#allocation5 + $0x348] sm:$0xff]
        %v4668 = vld [vmem:[#allocation5 + $0x350] sm:$0xff]
        %v4669 = vld [vmem:[#allocation5 + $0x358] sm:$0xff]
        %v4670 = vld [vmem:[#allocation5 + $0x360] sm:$0xff]
        %v4671 = vld [vmem:[#allocation5 + $0x368] sm:$0xff]
        %v4672 = vld [vmem:[#allocation5 + $0x370] sm:$0xff]
        %v4673 = vld [vmem:[#allocation5 + $0x378] sm:$0xff]
        %v4674 = vld [vmem:[#allocation5 + $0x380] sm:$0xff]
        %v4675 = vld [vmem:[#allocation5 + $0x388] sm:$0xff]
        %v4676 = vld [vmem:[#allocation5 + $0x390] sm:$0xff]
        %v4677 = vld [vmem:[#allocation5 + $0x398] sm:$0xff]
        %v4678 = vld [vmem:[#allocation5 + $0x3a0] sm:$0xff]
        %v4679 = vld [vmem:[#allocation5 + $0x3a8] sm:$0xff]
        %v4680 = vld [vmem:[#allocation5 + $0x3b0] sm:$0xff]
        %v4681 = vld [vmem:[#allocation5 + $0x3b8] sm:$0xff]
        %v4682 = vld [vmem:[#allocation5 + $0x3c0] sm:$0xff]
        %v4683 = vld [vmem:[#allocation5 + $0x3c8] sm:$0xff]
        %v4684 = vld [vmem:[#allocation5 + $0x3d0] sm:$0xff]
        %v4685 = vld [vmem:[#allocation5 + $0x3d8] sm:$0xff]
        %v4686 = vld [vmem:[#allocation5 + $0x3e0] sm:$0xff]
        %v4687 = vld [vmem:[#allocation5 + $0x3e8] sm:$0xff]
        %v4688 = vld [vmem:[#allocation5 + $0x3f0] sm:$0xff]
        %v4689 = vld [vmem:[#allocation5 + $0x3f8] sm:$0xff]
        %v4690 = vld [vmem:[%s7] sm:$0xf]
        %v4692 = vperm.slane %v4690, 0
        %v4693 = vperm.slane %v4690, 1
        %v4694 = vperm.slane %v4690, 2
        %v4695 = vperm.slane %v4690, 3
        %v4828 = vunpack.c.l.b16 %v4562
        %v4829 = vunpack.c.h.b16 %v4562
        %v4830 = vunpack.c.l.b16 %v4563
        %v4831 = vunpack.c.h.b16 %v4563
        %v4832 = vunpack.c.l.b16 %v4564
        %v4833 = vunpack.c.h.b16 %v4564
        %v4834 = vunpack.c.l.b16 %v4565
        %v4835 = vunpack.c.h.b16 %v4565
        %v4836 = vunpack.c.l.b16 %v4566
        %v4837 = vunpack.c.h.b16 %v4566
        %v4838 = vunpack.c.l.b16 %v4567
        %v4839 = vunpack.c.h.b16 %v4567
        %v4840 = vunpack.c.l.b16 %v4568
        %v4841 = vunpack.c.h.b16 %v4568
        %v4842 = vunpack.c.l.b16 %v4569
        %v4843 = vunpack.c.h.b16 %v4569
        %v4844 = vunpack.c.l.b16 %v4570
        %v4845 = vunpack.c.h.b16 %v4570
        %v4846 = vunpack.c.l.b16 %v4571
        %v4847 = vunpack.c.h.b16 %v4571
        %v4848 = vunpack.c.l.b16 %v4572
        %v4849 = vunpack.c.h.b16 %v4572
        %v4850 = vunpack.c.l.b16 %v4573
        %v4851 = vunpack.c.h.b16 %v4573
        %v4852 = vunpack.c.l.b16 %v4574
        %v4853 = vunpack.c.h.b16 %v4574
        %v4854 = vunpack.c.l.b16 %v4575
        %v4855 = vunpack.c.h.b16 %v4575
        %v4856 = vunpack.c.l.b16 %v4576
        %v4857 = vunpack.c.h.b16 %v4576
        %v4858 = vunpack.c.l.b16 %v4577
        %v4859 = vunpack.c.h.b16 %v4577
        %v4860 = vunpack.c.l.b16 %v4578
        %v4861 = vunpack.c.h.b16 %v4578
        %v4862 = vunpack.c.l.b16 %v4579
        %v4863 = vunpack.c.h.b16 %v4579
        %v4864 = vunpack.c.l.b16 %v4580
        %v4865 = vunpack.c.h.b16 %v4580
        %v4866 = vunpack.c.l.b16 %v4581
        %v4867 = vunpack.c.h.b16 %v4581
        %v4868 = vunpack.c.l.b16 %v4582
        %v4869 = vunpack.c.h.b16 %v4582
        %v4870 = vunpack.c.l.b16 %v4583
        %v4871 = vunpack.c.h.b16 %v4583
        %v4872 = vunpack.c.l.b16 %v4584
        %v4873 = vunpack.c.h.b16 %v4584
        %v4874 = vunpack.c.l.b16 %v4585
        %v4875 = vunpack.c.h.b16 %v4585
        %v4876 = vunpack.c.l.b16 %v4586
        %v4877 = vunpack.c.h.b16 %v4586
        %v4878 = vunpack.c.l.b16 %v4587
        %v4879 = vunpack.c.h.b16 %v4587
        %v4880 = vunpack.c.l.b16 %v4588
        %v4881 = vunpack.c.h.b16 %v4588
        %v4882 = vunpack.c.l.b16 %v4589
        %v4883 = vunpack.c.h.b16 %v4589
        %v4884 = vunpack.c.l.b16 %v4590
        %v4885 = vunpack.c.h.b16 %v4590
        %v4886 = vunpack.c.l.b16 %v4591
        %v4887 = vunpack.c.h.b16 %v4591
        %v4888 = vunpack.c.l.b16 %v4592
        %v4889 = vunpack.c.h.b16 %v4592
        %v4890 = vunpack.c.l.b16 %v4593
        %v4891 = vunpack.c.h.b16 %v4593
        %v4892 = vunpack.c.l.b16 %v4594
        %v4893 = vunpack.c.h.b16 %v4594
        %v4894 = vunpack.c.l.b16 %v4595
        %v4895 = vunpack.c.h.b16 %v4595
        %v4896 = vunpack.c.l.b16 %v4596
        %v4897 = vunpack.c.h.b16 %v4596
        %v4898 = vunpack.c.l.b16 %v4597
        %v4899 = vunpack.c.h.b16 %v4597
        %v4900 = vunpack.c.l.b16 %v4598
        %v4901 = vunpack.c.h.b16 %v4598
        %v4902 = vunpack.c.l.b16 %v4599
        %v4903 = vunpack.c.h.b16 %v4599
        %v4904 = vunpack.c.l.b16 %v4600
        %v4905 = vunpack.c.h.b16 %v4600
        %v4906 = vunpack.c.l.b16 %v4601
        %v4907 = vunpack.c.h.b16 %v4601
        %v4908 = vunpack.c.l.b16 %v4602
        %v4909 = vunpack.c.h.b16 %v4602
        %v4910 = vunpack.c.l.b16 %v4603
        %v4911 = vunpack.c.h.b16 %v4603
        %v4912 = vunpack.c.l.b16 %v4604
        %v4913 = vunpack.c.h.b16 %v4604
        %v4914 = vunpack.c.l.b16 %v4605
        %v4915 = vunpack.c.h.b16 %v4605
        %v4916 = vunpack.c.l.b16 %v4606
        %v4917 = vunpack.c.h.b16 %v4606
        %v4918 = vunpack.c.l.b16 %v4607
        %v4919 = vunpack.c.h.b16 %v4607
        %v4920 = vunpack.c.l.b16 %v4608
        %v4921 = vunpack.c.h.b16 %v4608
        %v4922 = vunpack.c.l.b16 %v4609
        %v4923 = vunpack.c.h.b16 %v4609
        %v4924 = vunpack.c.l.b16 %v4610
        %v4925 = vunpack.c.h.b16 %v4610
        %v4926 = vunpack.c.l.b16 %v4611
        %v4927 = vunpack.c.h.b16 %v4611
        %v4928 = vunpack.c.l.b16 %v4612
        %v4929 = vunpack.c.h.b16 %v4612
        %v4930 = vunpack.c.l.b16 %v4613
        %v4931 = vunpack.c.h.b16 %v4613
        %v4932 = vunpack.c.l.b16 %v4614
        %v4933 = vunpack.c.h.b16 %v4614
        %v4934 = vunpack.c.l.b16 %v4615
        %v4935 = vunpack.c.h.b16 %v4615
        %v4936 = vunpack.c.l.b16 %v4616
        %v4937 = vunpack.c.h.b16 %v4616
        %v4938 = vunpack.c.l.b16 %v4617
        %v4939 = vunpack.c.h.b16 %v4617
        %v4940 = vunpack.c.l.b16 %v4618
        %v4941 = vunpack.c.h.b16 %v4618
        %v4942 = vunpack.c.l.b16 %v4619
        %v4943 = vunpack.c.h.b16 %v4619
        %v4944 = vunpack.c.l.b16 %v4620
        %v4945 = vunpack.c.h.b16 %v4620
        %v4946 = vunpack.c.l.b16 %v4621
        %v4947 = vunpack.c.h.b16 %v4621
        %v4948 = vunpack.c.l.b16 %v4622
        %v4949 = vunpack.c.h.b16 %v4622
        %v4950 = vunpack.c.l.b16 %v4623
        %v4951 = vunpack.c.h.b16 %v4623
        %v4952 = vunpack.c.l.b16 %v4624
        %v4953 = vunpack.c.h.b16 %v4624
        %v4954 = vunpack.c.l.b16 %v4625
        %v4955 = vunpack.c.h.b16 %v4625
        %v4956 = vunpack.c.l.b16 %v4626
        %v4957 = vunpack.c.h.b16 %v4626
        %v4958 = vunpack.c.l.b16 %v4627
        %v4959 = vunpack.c.h.b16 %v4627
        %v4960 = vunpack.c.l.b16 %v4628
        %v4961 = vunpack.c.h.b16 %v4628
        %v4962 = vunpack.c.l.b16 %v4629
        %v4963 = vunpack.c.h.b16 %v4629
        %v4964 = vunpack.c.l.b16 %v4630
        %v4965 = vunpack.c.h.b16 %v4630
        %v4966 = vunpack.c.l.b16 %v4631
        %v4967 = vunpack.c.h.b16 %v4631
        %v4968 = vunpack.c.l.b16 %v4632
        %v4969 = vunpack.c.h.b16 %v4632
        %v4970 = vunpack.c.l.b16 %v4633
        %v4971 = vunpack.c.h.b16 %v4633
        %v4972 = vunpack.c.l.b16 %v4634
        %v4973 = vunpack.c.h.b16 %v4634
        %v4974 = vunpack.c.l.b16 %v4635
        %v4975 = vunpack.c.h.b16 %v4635
        %v4976 = vunpack.c.l.b16 %v4636
        %v4977 = vunpack.c.h.b16 %v4636
        %v4978 = vunpack.c.l.b16 %v4637
        %v4979 = vunpack.c.h.b16 %v4637
        %v4980 = vunpack.c.l.b16 %v4638
        %v4981 = vunpack.c.h.b16 %v4638
        %v4982 = vunpack.c.l.b16 %v4639
        %v4983 = vunpack.c.h.b16 %v4639
        %v4984 = vunpack.c.l.b16 %v4640
        %v4985 = vunpack.c.h.b16 %v4640
        %v4986 = vunpack.c.l.b16 %v4641
        %v4987 = vunpack.c.h.b16 %v4641
        %v4988 = vunpack.c.l.b16 %v4642
        %v4989 = vunpack.c.h.b16 %v4642
        %v4990 = vunpack.c.l.b16 %v4643
        %v4991 = vunpack.c.h.b16 %v4643
        %v4992 = vunpack.c.l.b16 %v4644
        %v4993 = vunpack.c.h.b16 %v4644
        %v4994 = vunpack.c.l.b16 %v4645
        %v4995 = vunpack.c.h.b16 %v4645
        %v4996 = vunpack.c.l.b16 %v4646
        %v4997 = vunpack.c.h.b16 %v4646
        %v4998 = vunpack.c.l.b16 %v4647
        %v4999 = vunpack.c.h.b16 %v4647
        %v5000 = vunpack.c.l.b16 %v4648
        %v5001 = vunpack.c.h.b16 %v4648
        %v5002 = vunpack.c.l.b16 %v4649
        %v5003 = vunpack.c.h.b16 %v4649
        %v5004 = vunpack.c.l.b16 %v4650
        %v5005 = vunpack.c.h.b16 %v4650
        %v5006 = vunpack.c.l.b16 %v4651
        %v5007 = vunpack.c.h.b16 %v4651
        %v5008 = vunpack.c.l.b16 %v4652
        %v5009 = vunpack.c.h.b16 %v4652
        %v5010 = vunpack.c.l.b16 %v4653
        %v5011 = vunpack.c.h.b16 %v4653
        %v5012 = vunpack.c.l.b16 %v4654
        %v5013 = vunpack.c.h.b16 %v4654
        %v5014 = vunpack.c.l.b16 %v4655
        %v5015 = vunpack.c.h.b16 %v4655
        %v5016 = vunpack.c.l.b16 %v4656
        %v5017 = vunpack.c.h.b16 %v4656
        %v5018 = vunpack.c.l.b16 %v4657
        %v5019 = vunpack.c.h.b16 %v4657
        %v5020 = vunpack.c.l.b16 %v4658
        %v5021 = vunpack.c.h.b16 %v4658
        %v5022 = vunpack.c.l.b16 %v4659
        %v5023 = vunpack.c.h.b16 %v4659
        %v5024 = vunpack.c.l.b16 %v4660
        %v5025 = vunpack.c.h.b16 %v4660
        %v5026 = vunpack.c.l.b16 %v4661
        %v5027 = vunpack.c.h.b16 %v4661
        %v5028 = vunpack.c.l.b16 %v4662
        %v5029 = vunpack.c.h.b16 %v4662
        %v5030 = vunpack.c.l.b16 %v4663
        %v5031 = vunpack.c.h.b16 %v4663
        %v5032 = vunpack.c.l.b16 %v4664
        %v5033 = vunpack.c.h.b16 %v4664
        %v5034 = vunpack.c.l.b16 %v4665
        %v5035 = vunpack.c.h.b16 %v4665
        %v5036 = vunpack.c.l.b16 %v4666
        %v5037 = vunpack.c.h.b16 %v4666
        %v5038 = vunpack.c.l.b16 %v4667
        %v5039 = vunpack.c.h.b16 %v4667
        %v5040 = vunpack.c.l.b16 %v4668
        %v5041 = vunpack.c.h.b16 %v4668
        %v5042 = vunpack.c.l.b16 %v4669
        %v5043 = vunpack.c.h.b16 %v4669
        %v5044 = vunpack.c.l.b16 %v4670
        %v5045 = vunpack.c.h.b16 %v4670
        %v5046 = vunpack.c.l.b16 %v4671
        %v5047 = vunpack.c.h.b16 %v4671
        %v5048 = vunpack.c.l.b16 %v4672
        %v5049 = vunpack.c.h.b16 %v4672
        %v5050 = vunpack.c.l.b16 %v4673
        %v5051 = vunpack.c.h.b16 %v4673
        %v5052 = vunpack.c.l.b16 %v4674
        %v5053 = vunpack.c.h.b16 %v4674
        %v5054 = vunpack.c.l.b16 %v4675
        %v5055 = vunpack.c.h.b16 %v4675
        %v5056 = vunpack.c.l.b16 %v4676
        %v5057 = vunpack.c.h.b16 %v4676
        %v5058 = vunpack.c.l.b16 %v4677
        %v5059 = vunpack.c.h.b16 %v4677
        %v5060 = vunpack.c.l.b16 %v4678
        %v5061 = vunpack.c.h.b16 %v4678
        %v5062 = vunpack.c.l.b16 %v4679
        %v5063 = vunpack.c.h.b16 %v4679
        %v5064 = vunpack.c.l.b16 %v4680
        %v5065 = vunpack.c.h.b16 %v4680
        %v5066 = vunpack.c.l.b16 %v4681
        %v5067 = vunpack.c.h.b16 %v4681
        %v5068 = vunpack.c.l.b16 %v4682
        %v5069 = vunpack.c.h.b16 %v4682
        %v5070 = vunpack.c.l.b16 %v4683
        %v5071 = vunpack.c.h.b16 %v4683
        %v5072 = vunpack.c.l.b16 %v4684
        %v5073 = vunpack.c.h.b16 %v4684
        %v5074 = vunpack.c.l.b16 %v4685
        %v5075 = vunpack.c.h.b16 %v4685
        %v5076 = vunpack.c.l.b16 %v4686
        %v5077 = vunpack.c.h.b16 %v4686
        %v5078 = vunpack.c.l.b16 %v4687
        %v5079 = vunpack.c.h.b16 %v4687
        %v5080 = vunpack.c.l.b16 %v4688
        %v5081 = vunpack.c.h.b16 %v4688
        %v5082 = vunpack.c.l.b16 %v4689
        %v5083 = vunpack.c.h.b16 %v4689
        %v5084 = vpack.c.b16 %v4832, %v4828
        %v5085 = vpack.c.b16 %v4833, %v4829
        %v5086 = vpack.c.b16 %v4834, %v4830
        %v5087 = vpack.c.b16 %v4835, %v4831
        %v5088 = vpack.c.b16 %v4840, %v4836
        %v5089 = vpack.c.b16 %v4841, %v4837
        %v5090 = vpack.c.b16 %v4842, %v4838
        %v5091 = vpack.c.b16 %v4843, %v4839
        %v5092 = vpack.c.b16 %v4848, %v4844
        %v5093 = vpack.c.b16 %v4849, %v4845
        %v5094 = vpack.c.b16 %v4850, %v4846
        %v5095 = vpack.c.b16 %v4851, %v4847
        %v5096 = vpack.c.b16 %v4856, %v4852
        %v5097 = vpack.c.b16 %v4857, %v4853
        %v5098 = vpack.c.b16 %v4858, %v4854
        %v5099 = vpack.c.b16 %v4859, %v4855
        %v5100 = vpack.c.b16 %v4864, %v4860
        %v5101 = vpack.c.b16 %v4865, %v4861
        %v5102 = vpack.c.b16 %v4866, %v4862
        %v5103 = vpack.c.b16 %v4867, %v4863
        %v5104 = vpack.c.b16 %v4872, %v4868
        %v5105 = vpack.c.b16 %v4873, %v4869
        %v5106 = vpack.c.b16 %v4874, %v4870
        %v5107 = vpack.c.b16 %v4875, %v4871
        %v5108 = vpack.c.b16 %v4880, %v4876
        %v5109 = vpack.c.b16 %v4881, %v4877
        %v5110 = vpack.c.b16 %v4882, %v4878
        %v5111 = vpack.c.b16 %v4883, %v4879
        %v5112 = vpack.c.b16 %v4888, %v4884
        %v5113 = vpack.c.b16 %v4889, %v4885
        %v5114 = vpack.c.b16 %v4890, %v4886
        %v5115 = vpack.c.b16 %v4891, %v4887
        %v5116 = vpack.c.b16 %v4896, %v4892
        %v5117 = vpack.c.b16 %v4897, %v4893
        %v5118 = vpack.c.b16 %v4898, %v4894
        %v5119 = vpack.c.b16 %v4899, %v4895
        %v5120 = vpack.c.b16 %v4904, %v4900
        %v5121 = vpack.c.b16 %v4905, %v4901
        %v5122 = vpack.c.b16 %v4906, %v4902
        %v5123 = vpack.c.b16 %v4907, %v4903
        %v5124 = vpack.c.b16 %v4912, %v4908
        %v5125 = vpack.c.b16 %v4913, %v4909
        %v5126 = vpack.c.b16 %v4914, %v4910
        %v5127 = vpack.c.b16 %v4915, %v4911
        %v5128 = vpack.c.b16 %v4920, %v4916
        %v5129 = vpack.c.b16 %v4921, %v4917
        %v5130 = vpack.c.b16 %v4922, %v4918
        %v5131 = vpack.c.b16 %v4923, %v4919
        %v5132 = vpack.c.b16 %v4928, %v4924
        %v5133 = vpack.c.b16 %v4929, %v4925
        %v5134 = vpack.c.b16 %v4930, %v4926
        %v5135 = vpack.c.b16 %v4931, %v4927
        %v5136 = vpack.c.b16 %v4936, %v4932
        %v5137 = vpack.c.b16 %v4937, %v4933
        %v5138 = vpack.c.b16 %v4938, %v4934
        %v5139 = vpack.c.b16 %v4939, %v4935
        %v5140 = vpack.c.b16 %v4944, %v4940
        %v5141 = vpack.c.b16 %v4945, %v4941
        %v5142 = vpack.c.b16 %v4946, %v4942
        %v5143 = vpack.c.b16 %v4947, %v4943
        %v5144 = vpack.c.b16 %v4952, %v4948
        %v5145 = vpack.c.b16 %v4953, %v4949
        %v5146 = vpack.c.b16 %v4954, %v4950
        %v5147 = vpack.c.b16 %v4955, %v4951
        %v5148 = vpack.c.b16 %v4960, %v4956
        %v5149 = vpack.c.b16 %v4961, %v4957
        %v5150 = vpack.c.b16 %v4962, %v4958
        %v5151 = vpack.c.b16 %v4963, %v4959
        %v5152 = vpack.c.b16 %v4968, %v4964
        %v5153 = vpack.c.b16 %v4969, %v4965
        %v5154 = vpack.c.b16 %v4970, %v4966
        %v5155 = vpack.c.b16 %v4971, %v4967
        %v5156 = vpack.c.b16 %v4976, %v4972
        %v5157 = vpack.c.b16 %v4977, %v4973
        %v5158 = vpack.c.b16 %v4978, %v4974
        %v5159 = vpack.c.b16 %v4979, %v4975
        %v5160 = vpack.c.b16 %v4984, %v4980
        %v5161 = vpack.c.b16 %v4985, %v4981
        %v5162 = vpack.c.b16 %v4986, %v4982
        %v5163 = vpack.c.b16 %v4987, %v4983
        %v5164 = vpack.c.b16 %v4992, %v4988
        %v5165 = vpack.c.b16 %v4993, %v4989
        %v5166 = vpack.c.b16 %v4994, %v4990
        %v5167 = vpack.c.b16 %v4995, %v4991
        %v5168 = vpack.c.b16 %v5000, %v4996
        %v5169 = vpack.c.b16 %v5001, %v4997
        %v5170 = vpack.c.b16 %v5002, %v4998
        %v5171 = vpack.c.b16 %v5003, %v4999
        %v5172 = vpack.c.b16 %v5008, %v5004
        %v5173 = vpack.c.b16 %v5009, %v5005
        %v5174 = vpack.c.b16 %v5010, %v5006
        %v5175 = vpack.c.b16 %v5011, %v5007
        %v5176 = vpack.c.b16 %v5016, %v5012
        %v5177 = vpack.c.b16 %v5017, %v5013
        %v5178 = vpack.c.b16 %v5018, %v5014
        %v5179 = vpack.c.b16 %v5019, %v5015
        %v5180 = vpack.c.b16 %v5024, %v5020
        %v5181 = vpack.c.b16 %v5025, %v5021
        %v5182 = vpack.c.b16 %v5026, %v5022
        %v5183 = vpack.c.b16 %v5027, %v5023
        %v5184 = vpack.c.b16 %v5032, %v5028
        %v5185 = vpack.c.b16 %v5033, %v5029
        %v5186 = vpack.c.b16 %v5034, %v5030
        %v5187 = vpack.c.b16 %v5035, %v5031
        %v5188 = vpack.c.b16 %v5040, %v5036
        %v5189 = vpack.c.b16 %v5041, %v5037
        %v5190 = vpack.c.b16 %v5042, %v5038
        %v5191 = vpack.c.b16 %v5043, %v5039
        %v5192 = vpack.c.b16 %v5048, %v5044
        %v5193 = vpack.c.b16 %v5049, %v5045
        %v5194 = vpack.c.b16 %v5050, %v5046
        %v5195 = vpack.c.b16 %v5051, %v5047
        %v5196 = vpack.c.b16 %v5056, %v5052
        %v5197 = vpack.c.b16 %v5057, %v5053
        %v5198 = vpack.c.b16 %v5058, %v5054
        %v5199 = vpack.c.b16 %v5059, %v5055
        %v5200 = vpack.c.b16 %v5064, %v5060
        %v5201 = vpack.c.b16 %v5065, %v5061
        %v5202 = vpack.c.b16 %v5066, %v5062
        %v5203 = vpack.c.b16 %v5067, %v5063
        %v5204 = vpack.c.b16 %v5072, %v5068
        %v5205 = vpack.c.b16 %v5073, %v5069
        %v5206 = vpack.c.b16 %v5074, %v5070
        %v5207 = vpack.c.b16 %v5075, %v5071
        %v5208 = vpack.c.b16 %v5080, %v5076
        %v5209 = vpack.c.b16 %v5081, %v5077
        %v5210 = vpack.c.b16 %v5082, %v5078
        %v5211 = vpack.c.b16 %v5083, %v5079
        %5340 = vmatpush.bf16.msra.mxu0 %v5112
        %5341 = vmatpush.bf16.msra.mxu0 %v5108
        %5342 = vmatpush.bf16.msra.mxu0 %v5104
        %5343 = vmatpush.bf16.msra.mxu0 %v5100
        %5344 = vmatpush.bf16.msra.mxu0 %v5096
        %5345 = vmatpush.bf16.msra.mxu0 %v5092
        %5346 = vmatpush.bf16.msra.mxu0 %v5088
        %5347 = vmatpush.bf16.msra.mxu0 %v5084
        %5348 = vmatmul.bf16.gmra.mxu0 %v4522
        %v5349 = vpop.f32.mrf.mxu0
        %v5350 = vadd.f32 %v4692, %v5349
        %v5351 = vpop.f32.mrf.mxu0
        %v5352 = vadd.f32 %v4692, %v5351
        %5353 = vmatmul.bf16.gmra.mxu0 %v4526
        %v5354 = vpop.f32.mrf.mxu0
        %v5355 = vadd.f32 %v4692, %v5354
        %v5356 = vpop.f32.mrf.mxu0
        %v5357 = vadd.f32 %v4692, %v5356
        %5358 = vmatmul.bf16.gmra.mxu0 %v4530
        %v5359 = vpop.f32.mrf.mxu0
        %v5360 = vadd.f32 %v4692, %v5359
        %v5361 = vpop.f32.mrf.mxu0
        %v5362 = vadd.f32 %v4692, %v5361
        %5363 = vmatmul.bf16.gmra.mxu0 %v4534
        %v5364 = vpop.f32.mrf.mxu0
        %v5365 = vadd.f32 %v4692, %v5364
        %v5366 = vpop.f32.mrf.mxu0
        %v5367 = vadd.f32 %v4692, %v5366
        %5368 = vmatmul.bf16.gmra.mxu0 %v4538
        %v5369 = vpop.f32.mrf.mxu0
        %v5370 = vadd.f32 %v4692, %v5369
        %v5371 = vpop.f32.mrf.mxu0
        %v5372 = vadd.f32 %v4692, %v5371
        %5373 = vmatmul.bf16.gmra.mxu0 %v4542
        %v5374 = vpop.f32.mrf.mxu0
        %v5375 = vadd.f32 %v4692, %v5374
        %v5376 = vpop.f32.mrf.mxu0
        %v5377 = vadd.f32 %v4692, %v5376
        %5378 = vmatmul.bf16.gmra.mxu0 %v4546
        %v5379 = vpop.f32.mrf.mxu0
        %v5380 = vadd.f32 %v4692, %v5379
        %v5381 = vpop.f32.mrf.mxu0
        %v5382 = vadd.f32 %v4692, %v5381
        %5383 = vmatmul.bf16.gmra.mxu0 %v4550
        %v5384 = vpop.f32.mrf.mxu0
        %v5385 = vadd.f32 %v4692, %v5384
        %v5386 = vpop.f32.mrf.mxu0
        %v5387 = vadd.f32 %v4692, %v5386
        %5388 = vmatmul.bf16.gmra.mxu0 %v4554
        %v5389 = vpop.f32.mrf.mxu0
        %v5390 = vadd.f32 %v4692, %v5389
        %v5391 = vpop.f32.mrf.mxu0
        %v5392 = vadd.f32 %v4692, %v5391
        %5393 = vmatmul.bf16.gmra.mxu0 %v4558
        %v5394 = vpop.f32.mrf.mxu0
        %v5395 = vadd.f32 %v4692, %v5394
        %v5396 = vpop.f32.mrf.mxu0
        %v5397 = vadd.f32 %v4692, %v5396
        %5398 = vdwg.mxu0
        %5399 = vmatpush.bf16.msra.mxu0 %v5144
        %5400 = vmatpush.bf16.msra.mxu0 %v5140
        %5401 = vmatpush.bf16.msra.mxu0 %v5136
        %5402 = vmatpush.bf16.msra.mxu0 %v5132
        %5403 = vmatpush.bf16.msra.mxu0 %v5128
        %5404 = vmatpush.bf16.msra.mxu0 %v5124
        %5405 = vmatpush.bf16.msra.mxu0 %v5120
        %5406 = vmatpush.bf16.msra.mxu0 %v5116
        %5407 = vmatmul.bf16.gmra.mxu0 %v4523
        %v5408 = vpop.f32.mrf.mxu0
        %v5409 = vadd.f32 %v5350, %v5408
        %v5410 = vpop.f32.mrf.mxu0
        %v5411 = vadd.f32 %v5352, %v5410
        %5412 = vmatmul.bf16.gmra.mxu0 %v4527
        %v5413 = vpop.f32.mrf.mxu0
        %v5414 = vadd.f32 %v5355, %v5413
        %v5415 = vpop.f32.mrf.mxu0
        %v5416 = vadd.f32 %v5357, %v5415
        %5417 = vmatmul.bf16.gmra.mxu0 %v4531
        %v5418 = vpop.f32.mrf.mxu0
        %v5419 = vadd.f32 %v5360, %v5418
        %v5420 = vpop.f32.mrf.mxu0
        %v5421 = vadd.f32 %v5362, %v5420
        %5422 = vmatmul.bf16.gmra.mxu0 %v4535
        %v5423 = vpop.f32.mrf.mxu0
        %v5424 = vadd.f32 %v5365, %v5423
        %v5425 = vpop.f32.mrf.mxu0
        %v5426 = vadd.f32 %v5367, %v5425
        %5427 = vmatmul.bf16.gmra.mxu0 %v4539
        %v5428 = vpop.f32.mrf.mxu0
        %v5429 = vadd.f32 %v5370, %v5428
        %v5430 = vpop.f32.mrf.mxu0
        %v5431 = vadd.f32 %v5372, %v5430
        %5432 = vmatmul.bf16.gmra.mxu0 %v4543
        %v5433 = vpop.f32.mrf.mxu0
        %v5434 = vadd.f32 %v5375, %v5433
        %v5435 = vpop.f32.mrf.mxu0
        %v5436 = vadd.f32 %v5377, %v5435
        %5437 = vmatmul.bf16.gmra.mxu0 %v4547
        %v5438 = vpop.f32.mrf.mxu0
        %v5439 = vadd.f32 %v5380, %v5438
        %v5440 = vpop.f32.mrf.mxu0
        %v5441 = vadd.f32 %v5382, %v5440
        %5442 = vmatmul.bf16.gmra.mxu0 %v4551
        %v5443 = vpop.f32.mrf.mxu0
        %v5444 = vadd.f32 %v5385, %v5443
        %v5445 = vpop.f32.mrf.mxu0
        %v5446 = vadd.f32 %v5387, %v5445
        %5447 = vmatmul.bf16.gmra.mxu0 %v4555
        %v5448 = vpop.f32.mrf.mxu0
        %v5449 = vadd.f32 %v5390, %v5448
        %v5450 = vpop.f32.mrf.mxu0
        %v5451 = vadd.f32 %v5392, %v5450
        %5452 = vmatmul.bf16.gmra.mxu0 %v4559
        %v5453 = vpop.f32.mrf.mxu0
        %v5454 = vadd.f32 %v5395, %v5453
        %v5455 = vpop.f32.mrf.mxu0
        %v5456 = vadd.f32 %v5397, %v5455
        %5457 = vdwg.mxu0
        %5458 = vmatpush.bf16.msra.mxu0 %v5176
        %5459 = vmatpush.bf16.msra.mxu0 %v5172
        %5460 = vmatpush.bf16.msra.mxu0 %v5168
        %5461 = vmatpush.bf16.msra.mxu0 %v5164
        %5462 = vmatpush.bf16.msra.mxu0 %v5160
        %5463 = vmatpush.bf16.msra.mxu0 %v5156
        %5464 = vmatpush.bf16.msra.mxu0 %v5152
        %5465 = vmatpush.bf16.msra.mxu0 %v5148
        %5466 = vmatmul.bf16.gmra.mxu0 %v4524
        %v5467 = vpop.f32.mrf.mxu0
        %v5468 = vadd.f32 %v5409, %v5467
        %v5469 = vpop.f32.mrf.mxu0
        %v5470 = vadd.f32 %v5411, %v5469
        %5471 = vmatmul.bf16.gmra.mxu0 %v4528
        %v5472 = vpop.f32.mrf.mxu0
        %v5473 = vadd.f32 %v5414, %v5472
        %v5474 = vpop.f32.mrf.mxu0
        %v5475 = vadd.f32 %v5416, %v5474
        %5476 = vmatmul.bf16.gmra.mxu0 %v4532
        %v5477 = vpop.f32.mrf.mxu0
        %v5478 = vadd.f32 %v5419, %v5477
        %v5479 = vpop.f32.mrf.mxu0
        %v5480 = vadd.f32 %v5421, %v5479
        %5481 = vmatmul.bf16.gmra.mxu0 %v4536
        %v5482 = vpop.f32.mrf.mxu0
        %v5483 = vadd.f32 %v5424, %v5482
        %v5484 = vpop.f32.mrf.mxu0
        %v5485 = vadd.f32 %v5426, %v5484
        %5486 = vmatmul.bf16.gmra.mxu0 %v4540
        %v5487 = vpop.f32.mrf.mxu0
        %v5488 = vadd.f32 %v5429, %v5487
        %v5489 = vpop.f32.mrf.mxu0
        %v5490 = vadd.f32 %v5431, %v5489
        %5491 = vmatmul.bf16.gmra.mxu0 %v4544
        %v5492 = vpop.f32.mrf.mxu0
        %v5493 = vadd.f32 %v5434, %v5492
        %v5494 = vpop.f32.mrf.mxu0
        %v5495 = vadd.f32 %v5436, %v5494
        %5496 = vmatmul.bf16.gmra.mxu0 %v4548
        %v5497 = vpop.f32.mrf.mxu0
        %v5498 = vadd.f32 %v5439, %v5497
        %v5499 = vpop.f32.mrf.mxu0
        %v5500 = vadd.f32 %v5441, %v5499
        %5501 = vmatmul.bf16.gmra.mxu0 %v4552
        %v5502 = vpop.f32.mrf.mxu0
        %v5503 = vadd.f32 %v5444, %v5502
        %v5504 = vpop.f32.mrf.mxu0
        %v5505 = vadd.f32 %v5446, %v5504
        %5506 = vmatmul.bf16.gmra.mxu0 %v4556
        %v5507 = vpop.f32.mrf.mxu0
        %v5508 = vadd.f32 %v5449, %v5507
        %v5509 = vpop.f32.mrf.mxu0
        %v5510 = vadd.f32 %v5451, %v5509
        %5511 = vmatmul.bf16.gmra.mxu0 %v4560
        %v5512 = vpop.f32.mrf.mxu0
        %v5513 = vadd.f32 %v5454, %v5512
        %v5514 = vpop.f32.mrf.mxu0
        %v5515 = vadd.f32 %v5456, %v5514
        %5516 = vdwg.mxu0
        %5517 = vmatpush.bf16.msra.mxu0 %v5208
        %5518 = vmatpush.bf16.msra.mxu0 %v5204
        %5519 = vmatpush.bf16.msra.mxu0 %v5200
        %5520 = vmatpush.bf16.msra.mxu0 %v5196
        %5521 = vmatpush.bf16.msra.mxu0 %v5192
        %5522 = vmatpush.bf16.msra.mxu0 %v5188
        %5523 = vmatpush.bf16.msra.mxu0 %v5184
        %5524 = vmatpush.bf16.msra.mxu0 %v5180
        %5525 = vmatmul.bf16.gmra.mxu0 %v4525
        %v5526 = vpop.f32.mrf.mxu0
        %v5527 = vadd.f32 %v5468, %v5526
        %v5528 = vpop.f32.mrf.mxu0
        %v5529 = vadd.f32 %v5470, %v5528
        %5530 = vmatmul.bf16.gmra.mxu0 %v4529
        %v5531 = vpop.f32.mrf.mxu0
        %v5532 = vadd.f32 %v5473, %v5531
        %v5533 = vpop.f32.mrf.mxu0
        %v5534 = vadd.f32 %v5475, %v5533
        %5535 = vmatmul.bf16.gmra.mxu0 %v4533
        %v5536 = vpop.f32.mrf.mxu0
        %v5537 = vadd.f32 %v5478, %v5536
        %v5538 = vpop.f32.mrf.mxu0
        %v5539 = vadd.f32 %v5480, %v5538
        %5540 = vmatmul.bf16.gmra.mxu0 %v4537
        %v5541 = vpop.f32.mrf.mxu0
        %v5542 = vadd.f32 %v5483, %v5541
        %v5543 = vpop.f32.mrf.mxu0
        %v5544 = vadd.f32 %v5485, %v5543
        %5545 = vmatmul.bf16.gmra.mxu0 %v4541
        %v5546 = vpop.f32.mrf.mxu0
        %v5547 = vadd.f32 %v5488, %v5546
        %v5548 = vpop.f32.mrf.mxu0
        %v5549 = vadd.f32 %v5490, %v5548
        %5550 = vmatmul.bf16.gmra.mxu0 %v4545
        %v5551 = vpop.f32.mrf.mxu0
        %v5552 = vadd.f32 %v5493, %v5551
        %v5553 = vpop.f32.mrf.mxu0
        %v5554 = vadd.f32 %v5495, %v5553
        %5555 = vmatmul.bf16.gmra.mxu0 %v4549
        %v5556 = vpop.f32.mrf.mxu0
        %v5557 = vadd.f32 %v5498, %v5556
        %v5558 = vpop.f32.mrf.mxu0
        %v5559 = vadd.f32 %v5500, %v5558
        %5560 = vmatmul.bf16.gmra.mxu0 %v4553
        %v5561 = vpop.f32.mrf.mxu0
        %v5562 = vadd.f32 %v5503, %v5561
        %v5563 = vpop.f32.mrf.mxu0
        %v5564 = vadd.f32 %v5505, %v5563
        %5565 = vmatmul.bf16.gmra.mxu0 %v4557
        %v5566 = vpop.f32.mrf.mxu0
        %v5567 = vadd.f32 %v5508, %v5566
        %v5568 = vpop.f32.mrf.mxu0
        %v5569 = vadd.f32 %v5510, %v5568
        %5570 = vmatmul.bf16.gmra.mxu0 %v4561
        %v5571 = vpop.f32.mrf.mxu0
        %v5572 = vadd.f32 %v5513, %v5571
        %v5573 = vpop.f32.mrf.mxu0
        %v5574 = vadd.f32 %v5515, %v5573
        %5575 = vdwg.mxu0
        %5576 = vmatpush.bf16.msra.mxu0 %v5113
        %5577 = vmatpush.bf16.msra.mxu0 %v5109
        %5578 = vmatpush.bf16.msra.mxu0 %v5105
        %5579 = vmatpush.bf16.msra.mxu0 %v5101
        %5580 = vmatpush.bf16.msra.mxu0 %v5097
        %5581 = vmatpush.bf16.msra.mxu0 %v5093
        %5582 = vmatpush.bf16.msra.mxu0 %v5089
        %5583 = vmatpush.bf16.msra.mxu0 %v5085
        %5584 = vmatmul.bf16.gmra.mxu0 %v4522
        %v5585 = vpop.f32.mrf.mxu0
        %v5586 = vadd.f32 %v4693, %v5585
        %v5587 = vpop.f32.mrf.mxu0
        %v5588 = vadd.f32 %v4693, %v5587
        %5589 = vmatmul.bf16.gmra.mxu0 %v4526
        %v5590 = vpop.f32.mrf.mxu0
        %v5591 = vadd.f32 %v4693, %v5590
        %v5592 = vpop.f32.mrf.mxu0
        %v5593 = vadd.f32 %v4693, %v5592
        %5594 = vmatmul.bf16.gmra.mxu0 %v4530
        %v5595 = vpop.f32.mrf.mxu0
        %v5596 = vadd.f32 %v4693, %v5595
        %v5597 = vpop.f32.mrf.mxu0
        %v5598 = vadd.f32 %v4693, %v5597
        %5599 = vmatmul.bf16.gmra.mxu0 %v4534
        %v5600 = vpop.f32.mrf.mxu0
        %v5601 = vadd.f32 %v4693, %v5600
        %v5602 = vpop.f32.mrf.mxu0
        %v5603 = vadd.f32 %v4693, %v5602
        %5604 = vmatmul.bf16.gmra.mxu0 %v4538
        %v5605 = vpop.f32.mrf.mxu0
        %v5606 = vadd.f32 %v4693, %v5605
        %v5607 = vpop.f32.mrf.mxu0
        %v5608 = vadd.f32 %v4693, %v5607
        %5609 = vmatmul.bf16.gmra.mxu0 %v4542
        %v5610 = vpop.f32.mrf.mxu0
        %v5611 = vadd.f32 %v4693, %v5610
        %v5612 = vpop.f32.mrf.mxu0
        %v5613 = vadd.f32 %v4693, %v5612
        %5614 = vmatmul.bf16.gmra.mxu0 %v4546
        %v5615 = vpop.f32.mrf.mxu0
        %v5616 = vadd.f32 %v4693, %v5615
        %v5617 = vpop.f32.mrf.mxu0
        %v5618 = vadd.f32 %v4693, %v5617
        %5619 = vmatmul.bf16.gmra.mxu0 %v4550
        %v5620 = vpop.f32.mrf.mxu0
        %v5621 = vadd.f32 %v4693, %v5620
        %v5622 = vpop.f32.mrf.mxu0
        %v5623 = vadd.f32 %v4693, %v5622
        %5624 = vmatmul.bf16.gmra.mxu0 %v4554
        %v5625 = vpop.f32.mrf.mxu0
        %v5626 = vadd.f32 %v4693, %v5625
        %v5627 = vpop.f32.mrf.mxu0
        %v5628 = vadd.f32 %v4693, %v5627
        %5629 = vmatmul.bf16.gmra.mxu0 %v4558
        %v5630 = vpop.f32.mrf.mxu0
        %v5631 = vadd.f32 %v4693, %v5630
        %v5632 = vpop.f32.mrf.mxu0
        %v5633 = vadd.f32 %v4693, %v5632
        %5634 = vdwg.mxu0
        %5635 = vmatpush.bf16.msra.mxu0 %v5145
        %5636 = vmatpush.bf16.msra.mxu0 %v5141
        %5637 = vmatpush.bf16.msra.mxu0 %v5137
        %5638 = vmatpush.bf16.msra.mxu0 %v5133
        %5639 = vmatpush.bf16.msra.mxu0 %v5129
        %5640 = vmatpush.bf16.msra.mxu0 %v5125
        %5641 = vmatpush.bf16.msra.mxu0 %v5121
        %5642 = vmatpush.bf16.msra.mxu0 %v5117
        %5643 = vmatmul.bf16.gmra.mxu0 %v4523
        %v5644 = vpop.f32.mrf.mxu0
        %v5645 = vadd.f32 %v5586, %v5644
        %v5646 = vpop.f32.mrf.mxu0
        %v5647 = vadd.f32 %v5588, %v5646
        %5648 = vmatmul.bf16.gmra.mxu0 %v4527
        %v5649 = vpop.f32.mrf.mxu0
        %v5650 = vadd.f32 %v5591, %v5649
        %v5651 = vpop.f32.mrf.mxu0
        %v5652 = vadd.f32 %v5593, %v5651
        %5653 = vmatmul.bf16.gmra.mxu0 %v4531
        %v5654 = vpop.f32.mrf.mxu0
        %v5655 = vadd.f32 %v5596, %v5654
        %v5656 = vpop.f32.mrf.mxu0
        %v5657 = vadd.f32 %v5598, %v5656
        %5658 = vmatmul.bf16.gmra.mxu0 %v4535
        %v5659 = vpop.f32.mrf.mxu0
        %v5660 = vadd.f32 %v5601, %v5659
        %v5661 = vpop.f32.mrf.mxu0
        %v5662 = vadd.f32 %v5603, %v5661
        %5663 = vmatmul.bf16.gmra.mxu0 %v4539
        %v5664 = vpop.f32.mrf.mxu0
        %v5665 = vadd.f32 %v5606, %v5664
        %v5666 = vpop.f32.mrf.mxu0
        %v5667 = vadd.f32 %v5608, %v5666
        %5668 = vmatmul.bf16.gmra.mxu0 %v4543
        %v5669 = vpop.f32.mrf.mxu0
        %v5670 = vadd.f32 %v5611, %v5669
        %v5671 = vpop.f32.mrf.mxu0
        %v5672 = vadd.f32 %v5613, %v5671
        %5673 = vmatmul.bf16.gmra.mxu0 %v4547
        %v5674 = vpop.f32.mrf.mxu0
        %v5675 = vadd.f32 %v5616, %v5674
        %v5676 = vpop.f32.mrf.mxu0
        %v5677 = vadd.f32 %v5618, %v5676
        %5678 = vmatmul.bf16.gmra.mxu0 %v4551
        %v5679 = vpop.f32.mrf.mxu0
        %v5680 = vadd.f32 %v5621, %v5679
        %v5681 = vpop.f32.mrf.mxu0
        %v5682 = vadd.f32 %v5623, %v5681
        %5683 = vmatmul.bf16.gmra.mxu0 %v4555
        %v5684 = vpop.f32.mrf.mxu0
        %v5685 = vadd.f32 %v5626, %v5684
        %v5686 = vpop.f32.mrf.mxu0
        %v5687 = vadd.f32 %v5628, %v5686
        %5688 = vmatmul.bf16.gmra.mxu0 %v4559
        %v5689 = vpop.f32.mrf.mxu0
        %v5690 = vadd.f32 %v5631, %v5689
        %v5691 = vpop.f32.mrf.mxu0
        %v5692 = vadd.f32 %v5633, %v5691
        %5693 = vdwg.mxu0
        %5694 = vmatpush.bf16.msra.mxu0 %v5177
        %5695 = vmatpush.bf16.msra.mxu0 %v5173
        %5696 = vmatpush.bf16.msra.mxu0 %v5169
        %5697 = vmatpush.bf16.msra.mxu0 %v5165
        %5698 = vmatpush.bf16.msra.mxu0 %v5161
        %5699 = vmatpush.bf16.msra.mxu0 %v5157
        %5700 = vmatpush.bf16.msra.mxu0 %v5153
        %5701 = vmatpush.bf16.msra.mxu0 %v5149
        %5702 = vmatmul.bf16.gmra.mxu0 %v4524
        %v5703 = vpop.f32.mrf.mxu0
        %v5704 = vadd.f32 %v5645, %v5703
        %v5705 = vpop.f32.mrf.mxu0
        %v5706 = vadd.f32 %v5647, %v5705
        %5707 = vmatmul.bf16.gmra.mxu0 %v4528
        %v5708 = vpop.f32.mrf.mxu0
        %v5709 = vadd.f32 %v5650, %v5708
        %v5710 = vpop.f32.mrf.mxu0
        %v5711 = vadd.f32 %v5652, %v5710
        %5712 = vmatmul.bf16.gmra.mxu0 %v4532
        %v5713 = vpop.f32.mrf.mxu0
        %v5714 = vadd.f32 %v5655, %v5713
        %v5715 = vpop.f32.mrf.mxu0
        %v5716 = vadd.f32 %v5657, %v5715
        %5717 = vmatmul.bf16.gmra.mxu0 %v4536
        %v5718 = vpop.f32.mrf.mxu0
        %v5719 = vadd.f32 %v5660, %v5718
        %v5720 = vpop.f32.mrf.mxu0
        %v5721 = vadd.f32 %v5662, %v5720
        %5722 = vmatmul.bf16.gmra.mxu0 %v4540
        %v5723 = vpop.f32.mrf.mxu0
        %v5724 = vadd.f32 %v5665, %v5723
        %v5725 = vpop.f32.mrf.mxu0
        %v5726 = vadd.f32 %v5667, %v5725
        %5727 = vmatmul.bf16.gmra.mxu0 %v4544
        %v5728 = vpop.f32.mrf.mxu0
        %v5729 = vadd.f32 %v5670, %v5728
        %v5730 = vpop.f32.mrf.mxu0
        %v5731 = vadd.f32 %v5672, %v5730
        %5732 = vmatmul.bf16.gmra.mxu0 %v4548
        %v5733 = vpop.f32.mrf.mxu0
        %v5734 = vadd.f32 %v5675, %v5733
        %v5735 = vpop.f32.mrf.mxu0
        %v5736 = vadd.f32 %v5677, %v5735
        %5737 = vmatmul.bf16.gmra.mxu0 %v4552
        %v5738 = vpop.f32.mrf.mxu0
        %v5739 = vadd.f32 %v5680, %v5738
        %v5740 = vpop.f32.mrf.mxu0
        %v5741 = vadd.f32 %v5682, %v5740
        %5742 = vmatmul.bf16.gmra.mxu0 %v4556
        %v5743 = vpop.f32.mrf.mxu0
        %v5744 = vadd.f32 %v5685, %v5743
        %v5745 = vpop.f32.mrf.mxu0
        %v5746 = vadd.f32 %v5687, %v5745
        %5747 = vmatmul.bf16.gmra.mxu0 %v4560
        %v5748 = vpop.f32.mrf.mxu0
        %v5749 = vadd.f32 %v5690, %v5748
        %v5750 = vpop.f32.mrf.mxu0
        %v5751 = vadd.f32 %v5692, %v5750
        %5752 = vdwg.mxu0
        %5753 = vmatpush.bf16.msra.mxu0 %v5209
        %5754 = vmatpush.bf16.msra.mxu0 %v5205
        %5755 = vmatpush.bf16.msra.mxu0 %v5201
        %5756 = vmatpush.bf16.msra.mxu0 %v5197
        %5757 = vmatpush.bf16.msra.mxu0 %v5193
        %5758 = vmatpush.bf16.msra.mxu0 %v5189
        %5759 = vmatpush.bf16.msra.mxu0 %v5185
        %5760 = vmatpush.bf16.msra.mxu0 %v5181
        %5761 = vmatmul.bf16.gmra.mxu0 %v4525
        %v5762 = vpop.f32.mrf.mxu0
        %v5763 = vadd.f32 %v5704, %v5762
        %v5764 = vpop.f32.mrf.mxu0
        %v5765 = vadd.f32 %v5706, %v5764
        %5766 = vmatmul.bf16.gmra.mxu0 %v4529
        %v5767 = vpop.f32.mrf.mxu0
        %v5768 = vadd.f32 %v5709, %v5767
        %v5769 = vpop.f32.mrf.mxu0
        %v5770 = vadd.f32 %v5711, %v5769
        %5771 = vmatmul.bf16.gmra.mxu0 %v4533
        %v5772 = vpop.f32.mrf.mxu0
        %v5773 = vadd.f32 %v5714, %v5772
        %v5774 = vpop.f32.mrf.mxu0
        %v5775 = vadd.f32 %v5716, %v5774
        %5776 = vmatmul.bf16.gmra.mxu0 %v4537
        %v5777 = vpop.f32.mrf.mxu0
        %v5778 = vadd.f32 %v5719, %v5777
        %v5779 = vpop.f32.mrf.mxu0
        %v5780 = vadd.f32 %v5721, %v5779
        %5781 = vmatmul.bf16.gmra.mxu0 %v4541
        %v5782 = vpop.f32.mrf.mxu0
        %v5783 = vadd.f32 %v5724, %v5782
        %v5784 = vpop.f32.mrf.mxu0
        %v5785 = vadd.f32 %v5726, %v5784
        %5786 = vmatmul.bf16.gmra.mxu0 %v4545
        %v5787 = vpop.f32.mrf.mxu0
        %v5788 = vadd.f32 %v5729, %v5787
        %v5789 = vpop.f32.mrf.mxu0
        %v5790 = vadd.f32 %v5731, %v5789
        %5791 = vmatmul.bf16.gmra.mxu0 %v4549
        %v5792 = vpop.f32.mrf.mxu0
        %v5793 = vadd.f32 %v5734, %v5792
        %v5794 = vpop.f32.mrf.mxu0
        %v5795 = vadd.f32 %v5736, %v5794
        %5796 = vmatmul.bf16.gmra.mxu0 %v4553
        %v5797 = vpop.f32.mrf.mxu0
        %v5798 = vadd.f32 %v5739, %v5797
        %v5799 = vpop.f32.mrf.mxu0
        %v5800 = vadd.f32 %v5741, %v5799
        %5801 = vmatmul.bf16.gmra.mxu0 %v4557
        %v5802 = vpop.f32.mrf.mxu0
        %v5803 = vadd.f32 %v5744, %v5802
        %v5804 = vpop.f32.mrf.mxu0
        %v5805 = vadd.f32 %v5746, %v5804
        %5806 = vmatmul.bf16.gmra.mxu0 %v4561
        %v5807 = vpop.f32.mrf.mxu0
        %v5808 = vadd.f32 %v5749, %v5807
        %v5809 = vpop.f32.mrf.mxu0
        %v5810 = vadd.f32 %v5751, %v5809
        %5811 = vdwg.mxu0
        %5812 = vmatpush.bf16.msra.mxu0 %v5114
        %5813 = vmatpush.bf16.msra.mxu0 %v5110
        %5814 = vmatpush.bf16.msra.mxu0 %v5106
        %5815 = vmatpush.bf16.msra.mxu0 %v5102
        %5816 = vmatpush.bf16.msra.mxu0 %v5098
        %5817 = vmatpush.bf16.msra.mxu0 %v5094
        %5818 = vmatpush.bf16.msra.mxu0 %v5090
        %5819 = vmatpush.bf16.msra.mxu0 %v5086
        %5820 = vmatmul.bf16.gmra.mxu0 %v4522
        %v5821 = vpop.f32.mrf.mxu0
        %v5822 = vadd.f32 %v4694, %v5821
        %v5823 = vpop.f32.mrf.mxu0
        %v5824 = vadd.f32 %v4694, %v5823
        %5825 = vmatmul.bf16.gmra.mxu0 %v4526
        %v5826 = vpop.f32.mrf.mxu0
        %v5827 = vadd.f32 %v4694, %v5826
        %v5828 = vpop.f32.mrf.mxu0
        %v5829 = vadd.f32 %v4694, %v5828
        %5830 = vmatmul.bf16.gmra.mxu0 %v4530
        %v5831 = vpop.f32.mrf.mxu0
        %v5832 = vadd.f32 %v4694, %v5831
        %v5833 = vpop.f32.mrf.mxu0
        %v5834 = vadd.f32 %v4694, %v5833
        %5835 = vmatmul.bf16.gmra.mxu0 %v4534
        %v5836 = vpop.f32.mrf.mxu0
        %v5837 = vadd.f32 %v4694, %v5836
        %v5838 = vpop.f32.mrf.mxu0
        %v5839 = vadd.f32 %v4694, %v5838
        %5840 = vmatmul.bf16.gmra.mxu0 %v4538
        %v5841 = vpop.f32.mrf.mxu0
        %v5842 = vadd.f32 %v4694, %v5841
        %v5843 = vpop.f32.mrf.mxu0
        %v5844 = vadd.f32 %v4694, %v5843
        %5845 = vmatmul.bf16.gmra.mxu0 %v4542
        %v5846 = vpop.f32.mrf.mxu0
        %v5847 = vadd.f32 %v4694, %v5846
        %v5848 = vpop.f32.mrf.mxu0
        %v5849 = vadd.f32 %v4694, %v5848
        %5850 = vmatmul.bf16.gmra.mxu0 %v4546
        %v5851 = vpop.f32.mrf.mxu0
        %v5852 = vadd.f32 %v4694, %v5851
        %v5853 = vpop.f32.mrf.mxu0
        %v5854 = vadd.f32 %v4694, %v5853
        %5855 = vmatmul.bf16.gmra.mxu0 %v4550
        %v5856 = vpop.f32.mrf.mxu0
        %v5857 = vadd.f32 %v4694, %v5856
        %v5858 = vpop.f32.mrf.mxu0
        %v5859 = vadd.f32 %v4694, %v5858
        %5860 = vmatmul.bf16.gmra.mxu0 %v4554
        %v5861 = vpop.f32.mrf.mxu0
        %v5862 = vadd.f32 %v4694, %v5861
        %v5863 = vpop.f32.mrf.mxu0
        %v5864 = vadd.f32 %v4694, %v5863
        %5865 = vmatmul.bf16.gmra.mxu0 %v4558
        %v5866 = vpop.f32.mrf.mxu0
        %v5867 = vadd.f32 %v4694, %v5866
        %v5868 = vpop.f32.mrf.mxu0
        %v5869 = vadd.f32 %v4694, %v5868
        %5870 = vdwg.mxu0
        %5871 = vmatpush.bf16.msra.mxu0 %v5146
        %5872 = vmatpush.bf16.msra.mxu0 %v5142
        %5873 = vmatpush.bf16.msra.mxu0 %v5138
        %5874 = vmatpush.bf16.msra.mxu0 %v5134
        %5875 = vmatpush.bf16.msra.mxu0 %v5130
        %5876 = vmatpush.bf16.msra.mxu0 %v5126
        %5877 = vmatpush.bf16.msra.mxu0 %v5122
        %5878 = vmatpush.bf16.msra.mxu0 %v5118
        %5879 = vmatmul.bf16.gmra.mxu0 %v4523
        %v5880 = vpop.f32.mrf.mxu0
        %v5881 = vadd.f32 %v5822, %v5880
        %v5882 = vpop.f32.mrf.mxu0
        %v5883 = vadd.f32 %v5824, %v5882
        %5884 = vmatmul.bf16.gmra.mxu0 %v4527
        %v5885 = vpop.f32.mrf.mxu0
        %v5886 = vadd.f32 %v5827, %v5885
        %v5887 = vpop.f32.mrf.mxu0
        %v5888 = vadd.f32 %v5829, %v5887
        %5889 = vmatmul.bf16.gmra.mxu0 %v4531
        %v5890 = vpop.f32.mrf.mxu0
        %v5891 = vadd.f32 %v5832, %v5890
        %v5892 = vpop.f32.mrf.mxu0
        %v5893 = vadd.f32 %v5834, %v5892
        %5894 = vmatmul.bf16.gmra.mxu0 %v4535
        %v5895 = vpop.f32.mrf.mxu0
        %v5896 = vadd.f32 %v5837, %v5895
        %v5897 = vpop.f32.mrf.mxu0
        %v5898 = vadd.f32 %v5839, %v5897
        %5899 = vmatmul.bf16.gmra.mxu0 %v4539
        %v5900 = vpop.f32.mrf.mxu0
        %v5901 = vadd.f32 %v5842, %v5900
        %v5902 = vpop.f32.mrf.mxu0
        %v5903 = vadd.f32 %v5844, %v5902
        %5904 = vmatmul.bf16.gmra.mxu0 %v4543
        %v5905 = vpop.f32.mrf.mxu0
        %v5906 = vadd.f32 %v5847, %v5905
        %v5907 = vpop.f32.mrf.mxu0
        %v5908 = vadd.f32 %v5849, %v5907
        %5909 = vmatmul.bf16.gmra.mxu0 %v4547
        %v5910 = vpop.f32.mrf.mxu0
        %v5911 = vadd.f32 %v5852, %v5910
        %v5912 = vpop.f32.mrf.mxu0
        %v5913 = vadd.f32 %v5854, %v5912
        %5914 = vmatmul.bf16.gmra.mxu0 %v4551
        %v5915 = vpop.f32.mrf.mxu0
        %v5916 = vadd.f32 %v5857, %v5915
        %v5917 = vpop.f32.mrf.mxu0
        %v5918 = vadd.f32 %v5859, %v5917
        %5919 = vmatmul.bf16.gmra.mxu0 %v4555
        %v5920 = vpop.f32.mrf.mxu0
        %v5921 = vadd.f32 %v5862, %v5920
        %v5922 = vpop.f32.mrf.mxu0
        %v5923 = vadd.f32 %v5864, %v5922
        %5924 = vmatmul.bf16.gmra.mxu0 %v4559
        %v5925 = vpop.f32.mrf.mxu0
        %v5926 = vadd.f32 %v5867, %v5925
        %v5927 = vpop.f32.mrf.mxu0
        %v5928 = vadd.f32 %v5869, %v5927
        %5929 = vdwg.mxu0
        %5930 = vmatpush.bf16.msra.mxu0 %v5178
        %5931 = vmatpush.bf16.msra.mxu0 %v5174
        %5932 = vmatpush.bf16.msra.mxu0 %v5170
        %5933 = vmatpush.bf16.msra.mxu0 %v5166
        %5934 = vmatpush.bf16.msra.mxu0 %v5162
        %5935 = vmatpush.bf16.msra.mxu0 %v5158
        %5936 = vmatpush.bf16.msra.mxu0 %v5154
        %5937 = vmatpush.bf16.msra.mxu0 %v5150
        %5938 = vmatmul.bf16.gmra.mxu0 %v4524
        %v5939 = vpop.f32.mrf.mxu0
        %v5940 = vadd.f32 %v5881, %v5939
        %v5941 = vpop.f32.mrf.mxu0
        %v5942 = vadd.f32 %v5883, %v5941
        %5943 = vmatmul.bf16.gmra.mxu0 %v4528
        %v5944 = vpop.f32.mrf.mxu0
        %v5945 = vadd.f32 %v5886, %v5944
        %v5946 = vpop.f32.mrf.mxu0
        %v5947 = vadd.f32 %v5888, %v5946
        %5948 = vmatmul.bf16.gmra.mxu0 %v4532
        %v5949 = vpop.f32.mrf.mxu0
        %v5950 = vadd.f32 %v5891, %v5949
        %v5951 = vpop.f32.mrf.mxu0
        %v5952 = vadd.f32 %v5893, %v5951
        %5953 = vmatmul.bf16.gmra.mxu0 %v4536
        %v5954 = vpop.f32.mrf.mxu0
        %v5955 = vadd.f32 %v5896, %v5954
        %v5956 = vpop.f32.mrf.mxu0
        %v5957 = vadd.f32 %v5898, %v5956
        %5958 = vmatmul.bf16.gmra.mxu0 %v4540
        %v5959 = vpop.f32.mrf.mxu0
        %v5960 = vadd.f32 %v5901, %v5959
        %v5961 = vpop.f32.mrf.mxu0
        %v5962 = vadd.f32 %v5903, %v5961
        %5963 = vmatmul.bf16.gmra.mxu0 %v4544
        %v5964 = vpop.f32.mrf.mxu0
        %v5965 = vadd.f32 %v5906, %v5964
        %v5966 = vpop.f32.mrf.mxu0
        %v5967 = vadd.f32 %v5908, %v5966
        %5968 = vmatmul.bf16.gmra.mxu0 %v4548
        %v5969 = vpop.f32.mrf.mxu0
        %v5970 = vadd.f32 %v5911, %v5969
        %v5971 = vpop.f32.mrf.mxu0
        %v5972 = vadd.f32 %v5913, %v5971
        %5973 = vmatmul.bf16.gmra.mxu0 %v4552
        %v5974 = vpop.f32.mrf.mxu0
        %v5975 = vadd.f32 %v5916, %v5974
        %v5976 = vpop.f32.mrf.mxu0
        %v5977 = vadd.f32 %v5918, %v5976
        %5978 = vmatmul.bf16.gmra.mxu0 %v4556
        %v5979 = vpop.f32.mrf.mxu0
        %v5980 = vadd.f32 %v5921, %v5979
        %v5981 = vpop.f32.mrf.mxu0
        %v5982 = vadd.f32 %v5923, %v5981
        %5983 = vmatmul.bf16.gmra.mxu0 %v4560
        %v5984 = vpop.f32.mrf.mxu0
        %v5985 = vadd.f32 %v5926, %v5984
        %v5986 = vpop.f32.mrf.mxu0
        %v5987 = vadd.f32 %v5928, %v5986
        %5988 = vdwg.mxu0
        %5989 = vmatpush.bf16.msra.mxu0 %v5210
        %5990 = vmatpush.bf16.msra.mxu0 %v5206
        %5991 = vmatpush.bf16.msra.mxu0 %v5202
        %5992 = vmatpush.bf16.msra.mxu0 %v5198
        %5993 = vmatpush.bf16.msra.mxu0 %v5194
        %5994 = vmatpush.bf16.msra.mxu0 %v5190
        %5995 = vmatpush.bf16.msra.mxu0 %v5186
        %5996 = vmatpush.bf16.msra.mxu0 %v5182
        %5997 = vmatmul.bf16.gmra.mxu0 %v4525
        %v5998 = vpop.f32.mrf.mxu0
        %v5999 = vadd.f32 %v5940, %v5998
        %v6000 = vpop.f32.mrf.mxu0
        %v6001 = vadd.f32 %v5942, %v6000
        %6002 = vmatmul.bf16.gmra.mxu0 %v4529
        %v6003 = vpop.f32.mrf.mxu0
        %v6004 = vadd.f32 %v5945, %v6003
        %v6005 = vpop.f32.mrf.mxu0
        %v6006 = vadd.f32 %v5947, %v6005
        %6007 = vmatmul.bf16.gmra.mxu0 %v4533
        %v6008 = vpop.f32.mrf.mxu0
        %v6009 = vadd.f32 %v5950, %v6008
        %v6010 = vpop.f32.mrf.mxu0
        %v6011 = vadd.f32 %v5952, %v6010
        %6012 = vmatmul.bf16.gmra.mxu0 %v4537
        %v6013 = vpop.f32.mrf.mxu0
        %v6014 = vadd.f32 %v5955, %v6013
        %v6015 = vpop.f32.mrf.mxu0
        %v6016 = vadd.f32 %v5957, %v6015
        %6017 = vmatmul.bf16.gmra.mxu0 %v4541
        %v6018 = vpop.f32.mrf.mxu0
        %v6019 = vadd.f32 %v5960, %v6018
        %v6020 = vpop.f32.mrf.mxu0
        %v6021 = vadd.f32 %v5962, %v6020
        %6022 = vmatmul.bf16.gmra.mxu0 %v4545
        %v6023 = vpop.f32.mrf.mxu0
        %v6024 = vadd.f32 %v5965, %v6023
        %v6025 = vpop.f32.mrf.mxu0
        %v6026 = vadd.f32 %v5967, %v6025
        %6027 = vmatmul.bf16.gmra.mxu0 %v4549
        %v6028 = vpop.f32.mrf.mxu0
        %v6029 = vadd.f32 %v5970, %v6028
        %v6030 = vpop.f32.mrf.mxu0
        %v6031 = vadd.f32 %v5972, %v6030
        %6032 = vmatmul.bf16.gmra.mxu0 %v4553
        %v6033 = vpop.f32.mrf.mxu0
        %v6034 = vadd.f32 %v5975, %v6033
        %v6035 = vpop.f32.mrf.mxu0
        %v6036 = vadd.f32 %v5977, %v6035
        %6037 = vmatmul.bf16.gmra.mxu0 %v4557
        %v6038 = vpop.f32.mrf.mxu0
        %v6039 = vadd.f32 %v5980, %v6038
        %v6040 = vpop.f32.mrf.mxu0
        %v6041 = vadd.f32 %v5982, %v6040
        %6042 = vmatmul.bf16.gmra.mxu0 %v4561
        %v6043 = vpop.f32.mrf.mxu0
        %v6044 = vadd.f32 %v5985, %v6043
        %v6045 = vpop.f32.mrf.mxu0
        %v6046 = vadd.f32 %v5987, %v6045
        %6047 = vdwg.mxu0
        %6048 = vmatpush.bf16.msra.mxu0 %v5115
        %6049 = vmatpush.bf16.msra.mxu0 %v5111
        %6050 = vmatpush.bf16.msra.mxu0 %v5107
        %6051 = vmatpush.bf16.msra.mxu0 %v5103
        %6052 = vmatpush.bf16.msra.mxu0 %v5099
        %6053 = vmatpush.bf16.msra.mxu0 %v5095
        %6054 = vmatpush.bf16.msra.mxu0 %v5091
        %6055 = vmatpush.bf16.msra.mxu0 %v5087
        %6056 = vmatmul.bf16.gmra.mxu0 %v4522
        %v6057 = vpop.f32.mrf.mxu0
        %v6058 = vadd.f32 %v4695, %v6057
        %v6059 = vpop.f32.mrf.mxu0
        %v6060 = vadd.f32 %v4695, %v6059
        %6061 = vmatmul.bf16.gmra.mxu0 %v4526
        %v6062 = vpop.f32.mrf.mxu0
        %v6063 = vadd.f32 %v4695, %v6062
        %v6064 = vpop.f32.mrf.mxu0
        %v6065 = vadd.f32 %v4695, %v6064
        %6066 = vmatmul.bf16.gmra.mxu0 %v4530
        %v6067 = vpop.f32.mrf.mxu0
        %v6068 = vadd.f32 %v4695, %v6067
        %v6069 = vpop.f32.mrf.mxu0
        %v6070 = vadd.f32 %v4695, %v6069
        %6071 = vmatmul.bf16.gmra.mxu0 %v4534
        %v6072 = vpop.f32.mrf.mxu0
        %v6073 = vadd.f32 %v4695, %v6072
        %v6074 = vpop.f32.mrf.mxu0
        %v6075 = vadd.f32 %v4695, %v6074
        %6076 = vmatmul.bf16.gmra.mxu0 %v4538
        %v6077 = vpop.f32.mrf.mxu0
        %v6078 = vadd.f32 %v4695, %v6077
        %v6079 = vpop.f32.mrf.mxu0
        %v6080 = vadd.f32 %v4695, %v6079
        %6081 = vmatmul.bf16.gmra.mxu0 %v4542
        %v6082 = vpop.f32.mrf.mxu0
        %v6083 = vadd.f32 %v4695, %v6082
        %v6084 = vpop.f32.mrf.mxu0
        %v6085 = vadd.f32 %v4695, %v6084
        %6086 = vmatmul.bf16.gmra.mxu0 %v4546
        %v6087 = vpop.f32.mrf.mxu0
        %v6088 = vadd.f32 %v4695, %v6087
        %v6089 = vpop.f32.mrf.mxu0
        %v6090 = vadd.f32 %v4695, %v6089
        %6091 = vmatmul.bf16.gmra.mxu0 %v4550
        %v6092 = vpop.f32.mrf.mxu0
        %v6093 = vadd.f32 %v4695, %v6092
        %v6094 = vpop.f32.mrf.mxu0
        %v6095 = vadd.f32 %v4695, %v6094
        %6096 = vmatmul.bf16.gmra.mxu0 %v4554
        %v6097 = vpop.f32.mrf.mxu0
        %v6098 = vadd.f32 %v4695, %v6097
        %v6099 = vpop.f32.mrf.mxu0
        %v6100 = vadd.f32 %v4695, %v6099
        %6101 = vmatmul.bf16.gmra.mxu0 %v4558
        %v6102 = vpop.f32.mrf.mxu0
        %v6103 = vadd.f32 %v4695, %v6102
        %v6104 = vpop.f32.mrf.mxu0
        %v6105 = vadd.f32 %v4695, %v6104
        %6106 = vdwg.mxu0
        %6107 = vmatpush.bf16.msra.mxu0 %v5147
        %6108 = vmatpush.bf16.msra.mxu0 %v5143
        %6109 = vmatpush.bf16.msra.mxu0 %v5139
        %6110 = vmatpush.bf16.msra.mxu0 %v5135
        %6111 = vmatpush.bf16.msra.mxu0 %v5131
        %6112 = vmatpush.bf16.msra.mxu0 %v5127
        %6113 = vmatpush.bf16.msra.mxu0 %v5123
        %6114 = vmatpush.bf16.msra.mxu0 %v5119
        %6115 = vmatmul.bf16.gmra.mxu0 %v4523
        %v6116 = vpop.f32.mrf.mxu0
        %v6117 = vadd.f32 %v6058, %v6116
        %v6118 = vpop.f32.mrf.mxu0
        %v6119 = vadd.f32 %v6060, %v6118
        %6120 = vmatmul.bf16.gmra.mxu0 %v4527
        %v6121 = vpop.f32.mrf.mxu0
        %v6122 = vadd.f32 %v6063, %v6121
        %v6123 = vpop.f32.mrf.mxu0
        %v6124 = vadd.f32 %v6065, %v6123
        %6125 = vmatmul.bf16.gmra.mxu0 %v4531
        %v6126 = vpop.f32.mrf.mxu0
        %v6127 = vadd.f32 %v6068, %v6126
        %v6128 = vpop.f32.mrf.mxu0
        %v6129 = vadd.f32 %v6070, %v6128
        %6130 = vmatmul.bf16.gmra.mxu0 %v4535
        %v6131 = vpop.f32.mrf.mxu0
        %v6132 = vadd.f32 %v6073, %v6131
        %v6133 = vpop.f32.mrf.mxu0
        %v6134 = vadd.f32 %v6075, %v6133
        %6135 = vmatmul.bf16.gmra.mxu0 %v4539
        %v6136 = vpop.f32.mrf.mxu0
        %v6137 = vadd.f32 %v6078, %v6136
        %v6138 = vpop.f32.mrf.mxu0
        %v6139 = vadd.f32 %v6080, %v6138
        %6140 = vmatmul.bf16.gmra.mxu0 %v4543
        %v6141 = vpop.f32.mrf.mxu0
        %v6142 = vadd.f32 %v6083, %v6141
        %v6143 = vpop.f32.mrf.mxu0
        %v6144 = vadd.f32 %v6085, %v6143
        %6145 = vmatmul.bf16.gmra.mxu0 %v4547
        %v6146 = vpop.f32.mrf.mxu0
        %v6147 = vadd.f32 %v6088, %v6146
        %v6148 = vpop.f32.mrf.mxu0
        %v6149 = vadd.f32 %v6090, %v6148
        %6150 = vmatmul.bf16.gmra.mxu0 %v4551
        %v6151 = vpop.f32.mrf.mxu0
        %v6152 = vadd.f32 %v6093, %v6151
        %v6153 = vpop.f32.mrf.mxu0
        %v6154 = vadd.f32 %v6095, %v6153
        %6155 = vmatmul.bf16.gmra.mxu0 %v4555
        %v6156 = vpop.f32.mrf.mxu0
        %v6157 = vadd.f32 %v6098, %v6156
        %v6158 = vpop.f32.mrf.mxu0
        %v6159 = vadd.f32 %v6100, %v6158
        %6160 = vmatmul.bf16.gmra.mxu0 %v4559
        %v6161 = vpop.f32.mrf.mxu0
        %v6162 = vadd.f32 %v6103, %v6161
        %v6163 = vpop.f32.mrf.mxu0
        %v6164 = vadd.f32 %v6105, %v6163
        %6165 = vdwg.mxu0
        %6166 = vmatpush.bf16.msra.mxu0 %v5179
        %6167 = vmatpush.bf16.msra.mxu0 %v5175
        %6168 = vmatpush.bf16.msra.mxu0 %v5171
        %6169 = vmatpush.bf16.msra.mxu0 %v5167
        %6170 = vmatpush.bf16.msra.mxu0 %v5163
        %6171 = vmatpush.bf16.msra.mxu0 %v5159
        %6172 = vmatpush.bf16.msra.mxu0 %v5155
        %6173 = vmatpush.bf16.msra.mxu0 %v5151
        %6174 = vmatmul.bf16.gmra.mxu0 %v4524
        %v6175 = vpop.f32.mrf.mxu0
        %v6176 = vadd.f32 %v6117, %v6175
        %v6177 = vpop.f32.mrf.mxu0
        %v6178 = vadd.f32 %v6119, %v6177
        %6179 = vmatmul.bf16.gmra.mxu0 %v4528
        %v6180 = vpop.f32.mrf.mxu0
        %v6181 = vadd.f32 %v6122, %v6180
        %v6182 = vpop.f32.mrf.mxu0
        %v6183 = vadd.f32 %v6124, %v6182
        %6184 = vmatmul.bf16.gmra.mxu0 %v4532
        %v6185 = vpop.f32.mrf.mxu0
        %v6186 = vadd.f32 %v6127, %v6185
        %v6187 = vpop.f32.mrf.mxu0
        %v6188 = vadd.f32 %v6129, %v6187
        %6189 = vmatmul.bf16.gmra.mxu0 %v4536
        %v6190 = vpop.f32.mrf.mxu0
        %v6191 = vadd.f32 %v6132, %v6190
        %v6192 = vpop.f32.mrf.mxu0
        %v6193 = vadd.f32 %v6134, %v6192
        %6194 = vmatmul.bf16.gmra.mxu0 %v4540
        %v6195 = vpop.f32.mrf.mxu0
        %v6196 = vadd.f32 %v6137, %v6195
        %v6197 = vpop.f32.mrf.mxu0
        %v6198 = vadd.f32 %v6139, %v6197
        %6199 = vmatmul.bf16.gmra.mxu0 %v4544
        %v6200 = vpop.f32.mrf.mxu0
        %v6201 = vadd.f32 %v6142, %v6200
        %v6202 = vpop.f32.mrf.mxu0
        %v6203 = vadd.f32 %v6144, %v6202
        %6204 = vmatmul.bf16.gmra.mxu0 %v4548
        %v6205 = vpop.f32.mrf.mxu0
        %v6206 = vadd.f32 %v6147, %v6205
        %v6207 = vpop.f32.mrf.mxu0
        %v6208 = vadd.f32 %v6149, %v6207
        %6209 = vmatmul.bf16.gmra.mxu0 %v4552
        %v6210 = vpop.f32.mrf.mxu0
        %v6211 = vadd.f32 %v6152, %v6210
        %v6212 = vpop.f32.mrf.mxu0
        %v6213 = vadd.f32 %v6154, %v6212
        %6214 = vmatmul.bf16.gmra.mxu0 %v4556
        %v6215 = vpop.f32.mrf.mxu0
        %v6216 = vadd.f32 %v6157, %v6215
        %v6217 = vpop.f32.mrf.mxu0
        %v6218 = vadd.f32 %v6159, %v6217
        %6219 = vmatmul.bf16.gmra.mxu0 %v4560
        %v6220 = vpop.f32.mrf.mxu0
        %v6221 = vadd.f32 %v6162, %v6220
        %v6222 = vpop.f32.mrf.mxu0
        %v6223 = vadd.f32 %v6164, %v6222
        %6224 = vdwg.mxu0
        %6225 = vmatpush.bf16.msra.mxu0 %v5211
        %6226 = vmatpush.bf16.msra.mxu0 %v5207
        %6227 = vmatpush.bf16.msra.mxu0 %v5203
        %6228 = vmatpush.bf16.msra.mxu0 %v5199
        %6229 = vmatpush.bf16.msra.mxu0 %v5195
        %6230 = vmatpush.bf16.msra.mxu0 %v5191
        %6231 = vmatpush.bf16.msra.mxu0 %v5187
        %6232 = vmatpush.bf16.msra.mxu0 %v5183
        %6233 = vmatmul.bf16.gmra.mxu0 %v4525
        %v6234 = vpop.f32.mrf.mxu0
        %v6235 = vadd.f32 %v6176, %v6234
        %v6236 = vpop.f32.mrf.mxu0
        %v6237 = vadd.f32 %v6178, %v6236
        %6238 = vmatmul.bf16.gmra.mxu0 %v4529
        %v6239 = vpop.f32.mrf.mxu0
        %v6240 = vadd.f32 %v6181, %v6239
        %v6241 = vpop.f32.mrf.mxu0
        %v6242 = vadd.f32 %v6183, %v6241
        %6243 = vmatmul.bf16.gmra.mxu0 %v4533
        %v6244 = vpop.f32.mrf.mxu0
        %v6245 = vadd.f32 %v6186, %v6244
        %v6246 = vpop.f32.mrf.mxu0
        %v6247 = vadd.f32 %v6188, %v6246
        %6248 = vmatmul.bf16.gmra.mxu0 %v4537
        %v6249 = vpop.f32.mrf.mxu0
        %v6250 = vadd.f32 %v6191, %v6249
        %v6251 = vpop.f32.mrf.mxu0
        %v6252 = vadd.f32 %v6193, %v6251
        %6253 = vmatmul.bf16.gmra.mxu0 %v4541
        %v6254 = vpop.f32.mrf.mxu0
        %v6255 = vadd.f32 %v6196, %v6254
        %v6256 = vpop.f32.mrf.mxu0
        %v6257 = vadd.f32 %v6198, %v6256
        %6258 = vmatmul.bf16.gmra.mxu0 %v4545
        %v6259 = vpop.f32.mrf.mxu0
        %v6260 = vadd.f32 %v6201, %v6259
        %v6261 = vpop.f32.mrf.mxu0
        %v6262 = vadd.f32 %v6203, %v6261
        %6263 = vmatmul.bf16.gmra.mxu0 %v4549
        %v6264 = vpop.f32.mrf.mxu0
        %v6265 = vadd.f32 %v6206, %v6264
        %v6266 = vpop.f32.mrf.mxu0
        %v6267 = vadd.f32 %v6208, %v6266
        %6268 = vmatmul.bf16.gmra.mxu0 %v4553
        %v6269 = vpop.f32.mrf.mxu0
        %v6270 = vadd.f32 %v6211, %v6269
        %v6271 = vpop.f32.mrf.mxu0
        %v6272 = vadd.f32 %v6213, %v6271
        %6273 = vmatmul.bf16.gmra.mxu0 %v4557
        %v6274 = vpop.f32.mrf.mxu0
        %v6275 = vadd.f32 %v6216, %v6274
        %v6276 = vpop.f32.mrf.mxu0
        %v6277 = vadd.f32 %v6218, %v6276
        %6278 = vmatmul.bf16.gmra.mxu0 %v4561
        %v6279 = vpop.f32.mrf.mxu0
        %v6280 = vadd.f32 %v6221, %v6279
        %v6281 = vpop.f32.mrf.mxu0
        %v6282 = vadd.f32 %v6223, %v6281
        %6283 = vdwg.mxu0
        %v6284 = vmax.f32 %v5527, 0.0
        %v6285 = vmax.f32 %v5763, 0.0
        %v6286 = vmax.f32 %v5999, 0.0
        %v6287 = vmax.f32 %v6235, 0.0
        %v6288 = vmax.f32 %v5529, 0.0
        %v6289 = vmax.f32 %v5765, 0.0
        %v6290 = vmax.f32 %v6001, 0.0
        %v6291 = vmax.f32 %v6237, 0.0
        %v6292 = vmax.f32 %v5532, 0.0
        %v6293 = vmax.f32 %v5768, 0.0
        %v6294 = vmax.f32 %v6004, 0.0
        %v6295 = vmax.f32 %v6240, 0.0
        %v6296 = vmax.f32 %v5534, 0.0
        %v6297 = vmax.f32 %v5770, 0.0
        %v6298 = vmax.f32 %v6006, 0.0
        %v6299 = vmax.f32 %v6242, 0.0
        %v6300 = vmax.f32 %v5537, 0.0
        %v6301 = vmax.f32 %v5773, 0.0
        %v6302 = vmax.f32 %v6009, 0.0
        %v6303 = vmax.f32 %v6245, 0.0
        %v6304 = vmax.f32 %v5539, 0.0
        %v6305 = vmax.f32 %v5775, 0.0
        %v6306 = vmax.f32 %v6011, 0.0
        %v6307 = vmax.f32 %v6247, 0.0
        %v6308 = vmax.f32 %v5542, 0.0
        %v6309 = vmax.f32 %v5778, 0.0
        %v6310 = vmax.f32 %v6014, 0.0
        %v6311 = vmax.f32 %v6250, 0.0
        %v6312 = vmax.f32 %v5544, 0.0
        %v6313 = vmax.f32 %v5780, 0.0
        %v6314 = vmax.f32 %v6016, 0.0
        %v6315 = vmax.f32 %v6252, 0.0
        %v6316 = vmax.f32 %v5547, 0.0
        %v6317 = vmax.f32 %v5783, 0.0
        %v6318 = vmax.f32 %v6019, 0.0
        %v6319 = vmax.f32 %v6255, 0.0
        %v6320 = vmax.f32 %v5549, 0.0
        %v6321 = vmax.f32 %v5785, 0.0
        %v6322 = vmax.f32 %v6021, 0.0
        %v6323 = vmax.f32 %v6257, 0.0
        %v6324 = vmax.f32 %v5552, 0.0
        %v6325 = vmax.f32 %v5788, 0.0
        %v6326 = vmax.f32 %v6024, 0.0
        %v6327 = vmax.f32 %v6260, 0.0
        %v6328 = vmax.f32 %v5554, 0.0
        %v6329 = vmax.f32 %v5790, 0.0
        %v6330 = vmax.f32 %v6026, 0.0
        %v6331 = vmax.f32 %v6262, 0.0
        %v6332 = vmax.f32 %v5557, 0.0
        %v6333 = vmax.f32 %v5793, 0.0
        %v6334 = vmax.f32 %v6029, 0.0
        %v6335 = vmax.f32 %v6265, 0.0
        %v6336 = vmax.f32 %v5559, 0.0
        %v6337 = vmax.f32 %v5795, 0.0
        %v6338 = vmax.f32 %v6031, 0.0
        %v6339 = vmax.f32 %v6267, 0.0
        %v6340 = vmax.f32 %v5562, 0.0
        %v6341 = vmax.f32 %v5798, 0.0
        %v6342 = vmax.f32 %v6034, 0.0
        %v6343 = vmax.f32 %v6270, 0.0
        %v6344 = vmax.f32 %v5564, 0.0
        %v6345 = vmax.f32 %v5800, 0.0
        %v6346 = vmax.f32 %v6036, 0.0
        %v6347 = vmax.f32 %v6272, 0.0
        %v6348 = vmax.f32 %v5567, 0.0
        %v6349 = vmax.f32 %v5803, 0.0
        %v6350 = vmax.f32 %v6039, 0.0
        %v6351 = vmax.f32 %v6275, 0.0
        %v6352 = vmax.f32 %v5569, 0.0
        %v6353 = vmax.f32 %v5805, 0.0
        %v6354 = vmax.f32 %v6041, 0.0
        %v6355 = vmax.f32 %v6277, 0.0
        %v6356 = vmax.f32 %v5572, 0.0
        %v6357 = vmax.f32 %v5808, 0.0
        %v6358 = vmax.f32 %v6044, 0.0
        %v6359 = vmax.f32 %v6280, 0.0
        %v6360 = vmax.f32 %v5574, 0.0
        %v6361 = vmax.f32 %v5810, 0.0
        %v6362 = vmax.f32 %v6046, 0.0
        %v6363 = vmax.f32 %v6282, 0.0
        %v6364 = vadd.f32 %v4362, 1.0
        %v6365 = vadd.f32 %v4363, 1.0
        %v6366 = vadd.f32 %v4364, 1.0
        %v6367 = vadd.f32 %v4365, 1.0
        %v6368 = vadd.f32 %v4366, 1.0
        %v6369 = vadd.f32 %v4367, 1.0
        %v6370 = vadd.f32 %v4368, 1.0
        %v6371 = vadd.f32 %v4369, 1.0
        %v6372 = vadd.f32 %v4370, 1.0
        %v6373 = vadd.f32 %v4371, 1.0
        %v6374 = vadd.f32 %v4372, 1.0
        %v6375 = vadd.f32 %v4373, 1.0
        %v6376 = vadd.f32 %v4374, 1.0
        %v6377 = vadd.f32 %v4375, 1.0
        %v6378 = vadd.f32 %v4376, 1.0
        %v6379 = vadd.f32 %v4377, 1.0
        %v6380 = vadd.f32 %v4378, 1.0
        %v6381 = vadd.f32 %v4379, 1.0
        %v6382 = vadd.f32 %v4380, 1.0
        %v6383 = vadd.f32 %v4381, 1.0
        %v6384 = vadd.f32 %v4382, 1.0
        %v6385 = vadd.f32 %v4383, 1.0
        %v6386 = vadd.f32 %v4384, 1.0
        %v6387 = vadd.f32 %v4385, 1.0
        %v6388 = vadd.f32 %v4386, 1.0
        %v6389 = vadd.f32 %v4387, 1.0
        %v6390 = vadd.f32 %v4388, 1.0
        %v6391 = vadd.f32 %v4389, 1.0
        %v6392 = vadd.f32 %v4390, 1.0
        %v6393 = vadd.f32 %v4391, 1.0
        %v6394 = vadd.f32 %v4392, 1.0
        %v6395 = vadd.f32 %v4393, 1.0
        %v6396 = vadd.f32 %v4394, 1.0
        %v6397 = vadd.f32 %v4395, 1.0
        %v6398 = vadd.f32 %v4396, 1.0
        %v6399 = vadd.f32 %v4397, 1.0
        %v6400 = vadd.f32 %v4398, 1.0
        %v6401 = vadd.f32 %v4399, 1.0
        %v6402 = vadd.f32 %v4400, 1.0
        %v6403 = vadd.f32 %v4401, 1.0
        %v6404 = vadd.f32 %v4402, 1.0
        %v6405 = vadd.f32 %v4403, 1.0
        %v6406 = vadd.f32 %v4404, 1.0
        %v6407 = vadd.f32 %v4405, 1.0
        %v6408 = vadd.f32 %v4406, 1.0
        %v6409 = vadd.f32 %v4407, 1.0
        %v6410 = vadd.f32 %v4408, 1.0
        %v6411 = vadd.f32 %v4409, 1.0
        %v6412 = vadd.f32 %v4410, 1.0
        %v6413 = vadd.f32 %v4411, 1.0
        %v6414 = vadd.f32 %v4412, 1.0
        %v6415 = vadd.f32 %v4413, 1.0
        %v6416 = vadd.f32 %v4414, 1.0
        %v6417 = vadd.f32 %v4415, 1.0
        %v6418 = vadd.f32 %v4416, 1.0
        %v6419 = vadd.f32 %v4417, 1.0
        %v6420 = vadd.f32 %v4418, 1.0
        %v6421 = vadd.f32 %v4419, 1.0
        %v6422 = vadd.f32 %v4420, 1.0
        %v6423 = vadd.f32 %v4421, 1.0
        %v6424 = vadd.f32 %v4422, 1.0
        %v6425 = vadd.f32 %v4423, 1.0
        %v6426 = vadd.f32 %v4424, 1.0
        %v6427 = vadd.f32 %v4425, 1.0
        %v6428 = vadd.f32 %v4426, 1.0
        %v6429 = vadd.f32 %v4427, 1.0
        %v6430 = vadd.f32 %v4428, 1.0
        %v6431 = vadd.f32 %v4429, 1.0
        %v6432 = vadd.f32 %v4430, 1.0
        %v6433 = vadd.f32 %v4431, 1.0
        %v6434 = vadd.f32 %v4432, 1.0
        %v6435 = vadd.f32 %v4433, 1.0
        %v6436 = vadd.f32 %v4434, 1.0
        %v6437 = vadd.f32 %v4435, 1.0
        %v6438 = vadd.f32 %v4436, 1.0
        %v6439 = vadd.f32 %v4437, 1.0
        %v6440 = vadd.f32 %v4438, 1.0
        %v6441 = vadd.f32 %v4439, 1.0
        %v6442 = vadd.f32 %v4440, 1.0
        %v6443 = vadd.f32 %v4441, 1.0
        %v6444 = vmul.f32 %v6364, %v6284
        %v6445 = vmul.f32 %v6365, %v6285
        %v6446 = vmul.f32 %v6366, %v6286
        %v6447 = vmul.f32 %v6367, %v6287
        %v6448 = vmul.f32 %v6368, %v6288
        %v6449 = vmul.f32 %v6369, %v6289
        %v6450 = vmul.f32 %v6370, %v6290
        %v6451 = vmul.f32 %v6371, %v6291
        %v6452 = vmul.f32 %v6372, %v6292
        %v6453 = vmul.f32 %v6373, %v6293
        %v6454 = vmul.f32 %v6374, %v6294
        %v6455 = vmul.f32 %v6375, %v6295
        %v6456 = vmul.f32 %v6376, %v6296
        %v6457 = vmul.f32 %v6377, %v6297
        %v6458 = vmul.f32 %v6378, %v6298
        %v6459 = vmul.f32 %v6379, %v6299
        %v6460 = vmul.f32 %v6380, %v6300
        %v6461 = vmul.f32 %v6381, %v6301
        %v6462 = vmul.f32 %v6382, %v6302
        %v6463 = vmul.f32 %v6383, %v6303
        %v6464 = vmul.f32 %v6384, %v6304
        %v6465 = vmul.f32 %v6385, %v6305
        %v6466 = vmul.f32 %v6386, %v6306
        %v6467 = vmul.f32 %v6387, %v6307
        %v6468 = vmul.f32 %v6388, %v6308
        %v6469 = vmul.f32 %v6389, %v6309
        %v6470 = vmul.f32 %v6390, %v6310
        %v6471 = vmul.f32 %v6391, %v6311
        %v6472 = vmul.f32 %v6392, %v6312
        %v6473 = vmul.f32 %v6393, %v6313
        %v6474 = vmul.f32 %v6394, %v6314
        %v6475 = vmul.f32 %v6395, %v6315
        %v6476 = vmul.f32 %v6396, %v6316
        %v6477 = vmul.f32 %v6397, %v6317
        %v6478 = vmul.f32 %v6398, %v6318
        %v6479 = vmul.f32 %v6399, %v6319
        %v6480 = vmul.f32 %v6400, %v6320
        %v6481 = vmul.f32 %v6401, %v6321
        %v6482 = vmul.f32 %v6402, %v6322
        %v6483 = vmul.f32 %v6403, %v6323
        %v6484 = vmul.f32 %v6404, %v6324
        %v6485 = vmul.f32 %v6405, %v6325
        %v6486 = vmul.f32 %v6406, %v6326
        %v6487 = vmul.f32 %v6407, %v6327
        %v6488 = vmul.f32 %v6408, %v6328
        %v6489 = vmul.f32 %v6409, %v6329
        %v6490 = vmul.f32 %v6410, %v6330
        %v6491 = vmul.f32 %v6411, %v6331
        %v6492 = vmul.f32 %v6412, %v6332
        %v6493 = vmul.f32 %v6413, %v6333
        %v6494 = vmul.f32 %v6414, %v6334
        %v6495 = vmul.f32 %v6415, %v6335
        %v6496 = vmul.f32 %v6416, %v6336
        %v6497 = vmul.f32 %v6417, %v6337
        %v6498 = vmul.f32 %v6418, %v6338
        %v6499 = vmul.f32 %v6419, %v6339
        %v6500 = vmul.f32 %v6420, %v6340
        %v6501 = vmul.f32 %v6421, %v6341
        %v6502 = vmul.f32 %v6422, %v6342
        %v6503 = vmul.f32 %v6423, %v6343
        %v6504 = vmul.f32 %v6424, %v6344
        %v6505 = vmul.f32 %v6425, %v6345
        %v6506 = vmul.f32 %v6426, %v6346
        %v6507 = vmul.f32 %v6427, %v6347
        %v6508 = vmul.f32 %v6428, %v6348
        %v6509 = vmul.f32 %v6429, %v6349
        %v6510 = vmul.f32 %v6430, %v6350
        %v6511 = vmul.f32 %v6431, %v6351
        %v6512 = vmul.f32 %v6432, %v6352
        %v6513 = vmul.f32 %v6433, %v6353
        %v6514 = vmul.f32 %v6434, %v6354
        %v6515 = vmul.f32 %v6435, %v6355
        %v6516 = vmul.f32 %v6436, %v6356
        %v6517 = vmul.f32 %v6437, %v6357
        %v6518 = vmul.f32 %v6438, %v6358
        %v6519 = vmul.f32 %v6439, %v6359
        %v6520 = vmul.f32 %v6440, %v6360
        %v6521 = vmul.f32 %v6441, %v6361
        %v6522 = vmul.f32 %v6442, %v6362
        %v6523 = vmul.f32 %v6443, %v6363
        %v6524 = vpack.c.bf16 %v6448, %v6444
        %v6525 = vpack.c.bf16 %v6449, %v6445
        %v6526 = vpack.c.bf16 %v6450, %v6446
        %v6527 = vpack.c.bf16 %v6451, %v6447
        %v6528 = vpack.c.bf16 %v6456, %v6452
        %v6529 = vpack.c.bf16 %v6457, %v6453
        %v6530 = vpack.c.bf16 %v6458, %v6454
        %v6531 = vpack.c.bf16 %v6459, %v6455
        %v6532 = vpack.c.bf16 %v6464, %v6460
        %v6533 = vpack.c.bf16 %v6465, %v6461
        %v6534 = vpack.c.bf16 %v6466, %v6462
        %v6535 = vpack.c.bf16 %v6467, %v6463
        %v6536 = vpack.c.bf16 %v6472, %v6468
        %v6537 = vpack.c.bf16 %v6473, %v6469
        %v6538 = vpack.c.bf16 %v6474, %v6470
        %v6539 = vpack.c.bf16 %v6475, %v6471
        %v6540 = vpack.c.bf16 %v6480, %v6476
        %v6541 = vpack.c.bf16 %v6481, %v6477
        %v6542 = vpack.c.bf16 %v6482, %v6478
        %v6543 = vpack.c.bf16 %v6483, %v6479
        %v6544 = vpack.c.bf16 %v6488, %v6484
        %v6545 = vpack.c.bf16 %v6489, %v6485
        %v6546 = vpack.c.bf16 %v6490, %v6486
        %v6547 = vpack.c.bf16 %v6491, %v6487
        %v6548 = vpack.c.bf16 %v6496, %v6492
        %v6549 = vpack.c.bf16 %v6497, %v6493
        %v6550 = vpack.c.bf16 %v6498, %v6494
        %v6551 = vpack.c.bf16 %v6499, %v6495
        %v6552 = vpack.c.bf16 %v6504, %v6500
        %v6553 = vpack.c.bf16 %v6505, %v6501
        %v6554 = vpack.c.bf16 %v6506, %v6502
        %v6555 = vpack.c.bf16 %v6507, %v6503
        %v6556 = vpack.c.bf16 %v6512, %v6508
        %v6557 = vpack.c.bf16 %v6513, %v6509
        %v6558 = vpack.c.bf16 %v6514, %v6510
        %v6559 = vpack.c.bf16 %v6515, %v6511
        %v6560 = vpack.c.bf16 %v6520, %v6516
        %v6561 = vpack.c.bf16 %v6521, %v6517
        %v6562 = vpack.c.bf16 %v6522, %v6518
        %v6563 = vpack.c.bf16 %v6523, %v6519
        %v6564 = vld [vmem:[#allocation7] sm:$0xff]
        %v6565 = vld [vmem:[#allocation7 + $0x8] sm:$0xff]
        %v6566 = vld [vmem:[#allocation7 + $0x10] sm:$0xff]
        %v6567 = vld [vmem:[#allocation7 + $0x18] sm:$0xff]
        %v6568 = vld [vmem:[#allocation7 + $0x20] sm:$0xff]
        %v6569 = vld [vmem:[#allocation7 + $0x28] sm:$0xff]
        %v6570 = vld [vmem:[#allocation7 + $0x30] sm:$0xff]
        %v6571 = vld [vmem:[#allocation7 + $0x38] sm:$0xff]
        %v6572 = vld [vmem:[#allocation7 + $0x40] sm:$0xff]
        %v6573 = vld [vmem:[#allocation7 + $0x48] sm:$0xff]
        %v6574 = vld [vmem:[#allocation7 + $0x50] sm:$0xff]
        %v6575 = vld [vmem:[#allocation7 + $0x58] sm:$0xff]
        %v6576 = vld [vmem:[#allocation7 + $0x60] sm:$0xff]
        %v6577 = vld [vmem:[#allocation7 + $0x68] sm:$0xff]
        %v6578 = vld [vmem:[#allocation7 + $0x70] sm:$0xff]
        %v6579 = vld [vmem:[#allocation7 + $0x78] sm:$0xff]
        %v6580 = vld [vmem:[#allocation7 + $0x80] sm:$0xff]
        %v6581 = vld [vmem:[#allocation7 + $0x88] sm:$0xff]
        %v6582 = vld [vmem:[#allocation7 + $0x90] sm:$0xff]
        %v6583 = vld [vmem:[#allocation7 + $0x98] sm:$0xff]
        %v6584 = vld [vmem:[#allocation7 + $0xa0] sm:$0xff]
        %v6585 = vld [vmem:[#allocation7 + $0xa8] sm:$0xff]
        %v6586 = vld [vmem:[#allocation7 + $0xb0] sm:$0xff]
        %v6587 = vld [vmem:[#allocation7 + $0xb8] sm:$0xff]
        %v6588 = vld [vmem:[#allocation7 + $0xc0] sm:$0xff]
        %v6589 = vld [vmem:[#allocation7 + $0xc8] sm:$0xff]
        %v6590 = vld [vmem:[#allocation7 + $0xd0] sm:$0xff]
        %v6591 = vld [vmem:[#allocation7 + $0xd8] sm:$0xff]
        %v6592 = vld [vmem:[#allocation7 + $0xe0] sm:$0xff]
        %v6593 = vld [vmem:[#allocation7 + $0xe8] sm:$0xff]
        %v6594 = vld [vmem:[#allocation7 + $0xf0] sm:$0xff]
        %v6595 = vld [vmem:[#allocation7 + $0xf8] sm:$0xff]
        %v6596 = vld [vmem:[#allocation7 + $0x100] sm:$0xff]
        %v6597 = vld [vmem:[#allocation7 + $0x108] sm:$0xff]
        %v6598 = vld [vmem:[#allocation7 + $0x110] sm:$0xff]
        %v6599 = vld [vmem:[#allocation7 + $0x118] sm:$0xff]
        %v6600 = vld [vmem:[#allocation7 + $0x120] sm:$0xff]
        %v6601 = vld [vmem:[#allocation7 + $0x128] sm:$0xff]
        %v6602 = vld [vmem:[#allocation7 + $0x130] sm:$0xff]
        %v6603 = vld [vmem:[#allocation7 + $0x138] sm:$0xff]
        %v6604 = vld [vmem:[#allocation7 + $0x140] sm:$0xff]
        %v6605 = vld [vmem:[#allocation7 + $0x148] sm:$0xff]
        %v6606 = vld [vmem:[#allocation7 + $0x150] sm:$0xff]
        %v6607 = vld [vmem:[#allocation7 + $0x158] sm:$0xff]
        %v6608 = vld [vmem:[#allocation7 + $0x160] sm:$0xff]
        %v6609 = vld [vmem:[#allocation7 + $0x168] sm:$0xff]
        %v6610 = vld [vmem:[#allocation7 + $0x170] sm:$0xff]
        %v6611 = vld [vmem:[#allocation7 + $0x178] sm:$0xff]
        %v6612 = vld [vmem:[#allocation7 + $0x180] sm:$0xff]
        %v6613 = vld [vmem:[#allocation7 + $0x188] sm:$0xff]
        %v6614 = vld [vmem:[#allocation7 + $0x190] sm:$0xff]
        %v6615 = vld [vmem:[#allocation7 + $0x198] sm:$0xff]
        %v6616 = vld [vmem:[#allocation7 + $0x1a0] sm:$0xff]
        %v6617 = vld [vmem:[#allocation7 + $0x1a8] sm:$0xff]
        %v6618 = vld [vmem:[#allocation7 + $0x1b0] sm:$0xff]
        %v6619 = vld [vmem:[#allocation7 + $0x1b8] sm:$0xff]
        %v6620 = vld [vmem:[#allocation7 + $0x1c0] sm:$0xff]
        %v6621 = vld [vmem:[#allocation7 + $0x1c8] sm:$0xff]
        %v6622 = vld [vmem:[#allocation7 + $0x1d0] sm:$0xff]
        %v6623 = vld [vmem:[#allocation7 + $0x1d8] sm:$0xff]
        %v6624 = vld [vmem:[#allocation7 + $0x1e0] sm:$0xff]
        %v6625 = vld [vmem:[#allocation7 + $0x1e8] sm:$0xff]
        %v6626 = vld [vmem:[#allocation7 + $0x1f0] sm:$0xff]
        %v6627 = vld [vmem:[#allocation7 + $0x1f8] sm:$0xff]
        %v6628 = vld [vmem:[#allocation7 + $0x200] sm:$0xff]
        %v6629 = vld [vmem:[#allocation7 + $0x208] sm:$0xff]
        %v6630 = vld [vmem:[#allocation7 + $0x210] sm:$0xff]
        %v6631 = vld [vmem:[#allocation7 + $0x218] sm:$0xff]
        %v6632 = vld [vmem:[#allocation7 + $0x220] sm:$0xff]
        %v6633 = vld [vmem:[#allocation7 + $0x228] sm:$0xff]
        %v6634 = vld [vmem:[#allocation7 + $0x230] sm:$0xff]
        %v6635 = vld [vmem:[#allocation7 + $0x238] sm:$0xff]
        %v6636 = vld [vmem:[#allocation7 + $0x240] sm:$0xff]
        %v6637 = vld [vmem:[#allocation7 + $0x248] sm:$0xff]
        %v6638 = vld [vmem:[#allocation7 + $0x250] sm:$0xff]
        %v6639 = vld [vmem:[#allocation7 + $0x258] sm:$0xff]
        %v6640 = vld [vmem:[#allocation7 + $0x260] sm:$0xff]
        %v6641 = vld [vmem:[#allocation7 + $0x268] sm:$0xff]
        %v6642 = vld [vmem:[#allocation7 + $0x270] sm:$0xff]
        %v6643 = vld [vmem:[#allocation7 + $0x278] sm:$0xff]
        %v6644 = vld [vmem:[#allocation7 + $0x280] sm:$0xff]
        %v6645 = vld [vmem:[#allocation7 + $0x288] sm:$0xff]
        %v6646 = vld [vmem:[#allocation7 + $0x290] sm:$0xff]
        %v6647 = vld [vmem:[#allocation7 + $0x298] sm:$0xff]
        %v6648 = vld [vmem:[#allocation7 + $0x2a0] sm:$0xff]
        %v6649 = vld [vmem:[#allocation7 + $0x2a8] sm:$0xff]
        %v6650 = vld [vmem:[#allocation7 + $0x2b0] sm:$0xff]
        %v6651 = vld [vmem:[#allocation7 + $0x2b8] sm:$0xff]
        %v6652 = vld [vmem:[#allocation7 + $0x2c0] sm:$0xff]
        %v6653 = vld [vmem:[#allocation7 + $0x2c8] sm:$0xff]
        %v6654 = vld [vmem:[#allocation7 + $0x2d0] sm:$0xff]
        %v6655 = vld [vmem:[#allocation7 + $0x2d8] sm:$0xff]
        %v6656 = vld [vmem:[#allocation7 + $0x2e0] sm:$0xff]
        %v6657 = vld [vmem:[#allocation7 + $0x2e8] sm:$0xff]
        %v6658 = vld [vmem:[#allocation7 + $0x2f0] sm:$0xff]
        %v6659 = vld [vmem:[#allocation7 + $0x2f8] sm:$0xff]
        %v6660 = vld [vmem:[#allocation7 + $0x300] sm:$0xff]
        %v6661 = vld [vmem:[#allocation7 + $0x308] sm:$0xff]
        %v6662 = vld [vmem:[#allocation7 + $0x310] sm:$0xff]
        %v6663 = vld [vmem:[#allocation7 + $0x318] sm:$0xff]
        %v6664 = vld [vmem:[#allocation7 + $0x320] sm:$0xff]
        %v6665 = vld [vmem:[#allocation7 + $0x328] sm:$0xff]
        %v6666 = vld [vmem:[#allocation7 + $0x330] sm:$0xff]
        %v6667 = vld [vmem:[#allocation7 + $0x338] sm:$0xff]
        %v6668 = vld [vmem:[#allocation7 + $0x340] sm:$0xff]
        %v6669 = vld [vmem:[#allocation7 + $0x348] sm:$0xff]
        %v6670 = vld [vmem:[#allocation7 + $0x350] sm:$0xff]
        %v6671 = vld [vmem:[#allocation7 + $0x358] sm:$0xff]
        %v6672 = vld [vmem:[#allocation7 + $0x360] sm:$0xff]
        %v6673 = vld [vmem:[#allocation7 + $0x368] sm:$0xff]
        %v6674 = vld [vmem:[#allocation7 + $0x370] sm:$0xff]
        %v6675 = vld [vmem:[#allocation7 + $0x378] sm:$0xff]
        %v6676 = vld [vmem:[#allocation7 + $0x380] sm:$0xff]
        %v6677 = vld [vmem:[#allocation7 + $0x388] sm:$0xff]
        %v6678 = vld [vmem:[#allocation7 + $0x390] sm:$0xff]
        %v6679 = vld [vmem:[#allocation7 + $0x398] sm:$0xff]
        %v6680 = vld [vmem:[#allocation7 + $0x3a0] sm:$0xff]
        %v6681 = vld [vmem:[#allocation7 + $0x3a8] sm:$0xff]
        %v6682 = vld [vmem:[#allocation7 + $0x3b0] sm:$0xff]
        %v6683 = vld [vmem:[#allocation7 + $0x3b8] sm:$0xff]
        %v6684 = vld [vmem:[#allocation7 + $0x3c0] sm:$0xff]
        %v6685 = vld [vmem:[#allocation7 + $0x3c8] sm:$0xff]
        %v6686 = vld [vmem:[#allocation7 + $0x3d0] sm:$0xff]
        %v6687 = vld [vmem:[#allocation7 + $0x3d8] sm:$0xff]
        %v6688 = vld [vmem:[#allocation7 + $0x3e0] sm:$0xff]
        %v6689 = vld [vmem:[#allocation7 + $0x3e8] sm:$0xff]
        %v6690 = vld [vmem:[#allocation7 + $0x3f0] sm:$0xff]
        %v6691 = vld [vmem:[#allocation7 + $0x3f8] sm:$0xff]
        %v6692 = vld [vmem:[%s9] sm:$0xf]
        %v6694 = vperm.slane %v6692, 0
        %v6695 = vperm.slane %v6692, 1
        %v6696 = vperm.slane %v6692, 2
        %v6697 = vperm.slane %v6692, 3
        %v6830 = vunpack.c.l.b16 %v6564
        %v6831 = vunpack.c.h.b16 %v6564
        %v6832 = vunpack.c.l.b16 %v6565
        %v6833 = vunpack.c.h.b16 %v6565
        %v6834 = vunpack.c.l.b16 %v6566
        %v6835 = vunpack.c.h.b16 %v6566
        %v6836 = vunpack.c.l.b16 %v6567
        %v6837 = vunpack.c.h.b16 %v6567
        %v6838 = vunpack.c.l.b16 %v6568
        %v6839 = vunpack.c.h.b16 %v6568
        %v6840 = vunpack.c.l.b16 %v6569
        %v6841 = vunpack.c.h.b16 %v6569
        %v6842 = vunpack.c.l.b16 %v6570
        %v6843 = vunpack.c.h.b16 %v6570
        %v6844 = vunpack.c.l.b16 %v6571
        %v6845 = vunpack.c.h.b16 %v6571
        %v6846 = vunpack.c.l.b16 %v6572
        %v6847 = vunpack.c.h.b16 %v6572
        %v6848 = vunpack.c.l.b16 %v6573
        %v6849 = vunpack.c.h.b16 %v6573
        %v6850 = vunpack.c.l.b16 %v6574
        %v6851 = vunpack.c.h.b16 %v6574
        %v6852 = vunpack.c.l.b16 %v6575
        %v6853 = vunpack.c.h.b16 %v6575
        %v6854 = vunpack.c.l.b16 %v6576
        %v6855 = vunpack.c.h.b16 %v6576
        %v6856 = vunpack.c.l.b16 %v6577
        %v6857 = vunpack.c.h.b16 %v6577
        %v6858 = vunpack.c.l.b16 %v6578
        %v6859 = vunpack.c.h.b16 %v6578
        %v6860 = vunpack.c.l.b16 %v6579
        %v6861 = vunpack.c.h.b16 %v6579
        %v6862 = vunpack.c.l.b16 %v6580
        %v6863 = vunpack.c.h.b16 %v6580
        %v6864 = vunpack.c.l.b16 %v6581
        %v6865 = vunpack.c.h.b16 %v6581
        %v6866 = vunpack.c.l.b16 %v6582
        %v6867 = vunpack.c.h.b16 %v6582
        %v6868 = vunpack.c.l.b16 %v6583
        %v6869 = vunpack.c.h.b16 %v6583
        %v6870 = vunpack.c.l.b16 %v6584
        %v6871 = vunpack.c.h.b16 %v6584
        %v6872 = vunpack.c.l.b16 %v6585
        %v6873 = vunpack.c.h.b16 %v6585
        %v6874 = vunpack.c.l.b16 %v6586
        %v6875 = vunpack.c.h.b16 %v6586
        %v6876 = vunpack.c.l.b16 %v6587
        %v6877 = vunpack.c.h.b16 %v6587
        %v6878 = vunpack.c.l.b16 %v6588
        %v6879 = vunpack.c.h.b16 %v6588
        %v6880 = vunpack.c.l.b16 %v6589
        %v6881 = vunpack.c.h.b16 %v6589
        %v6882 = vunpack.c.l.b16 %v6590
        %v6883 = vunpack.c.h.b16 %v6590
        %v6884 = vunpack.c.l.b16 %v6591
        %v6885 = vunpack.c.h.b16 %v6591
        %v6886 = vunpack.c.l.b16 %v6592
        %v6887 = vunpack.c.h.b16 %v6592
        %v6888 = vunpack.c.l.b16 %v6593
        %v6889 = vunpack.c.h.b16 %v6593
        %v6890 = vunpack.c.l.b16 %v6594
        %v6891 = vunpack.c.h.b16 %v6594
        %v6892 = vunpack.c.l.b16 %v6595
        %v6893 = vunpack.c.h.b16 %v6595
        %v6894 = vunpack.c.l.b16 %v6596
        %v6895 = vunpack.c.h.b16 %v6596
        %v6896 = vunpack.c.l.b16 %v6597
        %v6897 = vunpack.c.h.b16 %v6597
        %v6898 = vunpack.c.l.b16 %v6598
        %v6899 = vunpack.c.h.b16 %v6598
        %v6900 = vunpack.c.l.b16 %v6599
        %v6901 = vunpack.c.h.b16 %v6599
        %v6902 = vunpack.c.l.b16 %v6600
        %v6903 = vunpack.c.h.b16 %v6600
        %v6904 = vunpack.c.l.b16 %v6601
        %v6905 = vunpack.c.h.b16 %v6601
        %v6906 = vunpack.c.l.b16 %v6602
        %v6907 = vunpack.c.h.b16 %v6602
        %v6908 = vunpack.c.l.b16 %v6603
        %v6909 = vunpack.c.h.b16 %v6603
        %v6910 = vunpack.c.l.b16 %v6604
        %v6911 = vunpack.c.h.b16 %v6604
        %v6912 = vunpack.c.l.b16 %v6605
        %v6913 = vunpack.c.h.b16 %v6605
        %v6914 = vunpack.c.l.b16 %v6606
        %v6915 = vunpack.c.h.b16 %v6606
        %v6916 = vunpack.c.l.b16 %v6607
        %v6917 = vunpack.c.h.b16 %v6607
        %v6918 = vunpack.c.l.b16 %v6608
        %v6919 = vunpack.c.h.b16 %v6608
        %v6920 = vunpack.c.l.b16 %v6609
        %v6921 = vunpack.c.h.b16 %v6609
        %v6922 = vunpack.c.l.b16 %v6610
        %v6923 = vunpack.c.h.b16 %v6610
        %v6924 = vunpack.c.l.b16 %v6611
        %v6925 = vunpack.c.h.b16 %v6611
        %v6926 = vunpack.c.l.b16 %v6612
        %v6927 = vunpack.c.h.b16 %v6612
        %v6928 = vunpack.c.l.b16 %v6613
        %v6929 = vunpack.c.h.b16 %v6613
        %v6930 = vunpack.c.l.b16 %v6614
        %v6931 = vunpack.c.h.b16 %v6614
        %v6932 = vunpack.c.l.b16 %v6615
        %v6933 = vunpack.c.h.b16 %v6615
        %v6934 = vunpack.c.l.b16 %v6616
        %v6935 = vunpack.c.h.b16 %v6616
        %v6936 = vunpack.c.l.b16 %v6617
        %v6937 = vunpack.c.h.b16 %v6617
        %v6938 = vunpack.c.l.b16 %v6618
        %v6939 = vunpack.c.h.b16 %v6618
        %v6940 = vunpack.c.l.b16 %v6619
        %v6941 = vunpack.c.h.b16 %v6619
        %v6942 = vunpack.c.l.b16 %v6620
        %v6943 = vunpack.c.h.b16 %v6620
        %v6944 = vunpack.c.l.b16 %v6621
        %v6945 = vunpack.c.h.b16 %v6621
        %v6946 = vunpack.c.l.b16 %v6622
        %v6947 = vunpack.c.h.b16 %v6622
        %v6948 = vunpack.c.l.b16 %v6623
        %v6949 = vunpack.c.h.b16 %v6623
        %v6950 = vunpack.c.l.b16 %v6624
        %v6951 = vunpack.c.h.b16 %v6624
        %v6952 = vunpack.c.l.b16 %v6625
        %v6953 = vunpack.c.h.b16 %v6625
        %v6954 = vunpack.c.l.b16 %v6626
        %v6955 = vunpack.c.h.b16 %v6626
        %v6956 = vunpack.c.l.b16 %v6627
        %v6957 = vunpack.c.h.b16 %v6627
        %v6958 = vunpack.c.l.b16 %v6628
        %v6959 = vunpack.c.h.b16 %v6628
        %v6960 = vunpack.c.l.b16 %v6629
        %v6961 = vunpack.c.h.b16 %v6629
        %v6962 = vunpack.c.l.b16 %v6630
        %v6963 = vunpack.c.h.b16 %v6630
        %v6964 = vunpack.c.l.b16 %v6631
        %v6965 = vunpack.c.h.b16 %v6631
        %v6966 = vunpack.c.l.b16 %v6632
        %v6967 = vunpack.c.h.b16 %v6632
        %v6968 = vunpack.c.l.b16 %v6633
        %v6969 = vunpack.c.h.b16 %v6633
        %v6970 = vunpack.c.l.b16 %v6634
        %v6971 = vunpack.c.h.b16 %v6634
        %v6972 = vunpack.c.l.b16 %v6635
        %v6973 = vunpack.c.h.b16 %v6635
        %v6974 = vunpack.c.l.b16 %v6636
        %v6975 = vunpack.c.h.b16 %v6636
        %v6976 = vunpack.c.l.b16 %v6637
        %v6977 = vunpack.c.h.b16 %v6637
        %v6978 = vunpack.c.l.b16 %v6638
        %v6979 = vunpack.c.h.b16 %v6638
        %v6980 = vunpack.c.l.b16 %v6639
        %v6981 = vunpack.c.h.b16 %v6639
        %v6982 = vunpack.c.l.b16 %v6640
        %v6983 = vunpack.c.h.b16 %v6640
        %v6984 = vunpack.c.l.b16 %v6641
        %v6985 = vunpack.c.h.b16 %v6641
        %v6986 = vunpack.c.l.b16 %v6642
        %v6987 = vunpack.c.h.b16 %v6642
        %v6988 = vunpack.c.l.b16 %v6643
        %v6989 = vunpack.c.h.b16 %v6643
        %v6990 = vunpack.c.l.b16 %v6644
        %v6991 = vunpack.c.h.b16 %v6644
        %v6992 = vunpack.c.l.b16 %v6645
        %v6993 = vunpack.c.h.b16 %v6645
        %v6994 = vunpack.c.l.b16 %v6646
        %v6995 = vunpack.c.h.b16 %v6646
        %v6996 = vunpack.c.l.b16 %v6647
        %v6997 = vunpack.c.h.b16 %v6647
        %v6998 = vunpack.c.l.b16 %v6648
        %v6999 = vunpack.c.h.b16 %v6648
        %v7000 = vunpack.c.l.b16 %v6649
        %v7001 = vunpack.c.h.b16 %v6649
        %v7002 = vunpack.c.l.b16 %v6650
        %v7003 = vunpack.c.h.b16 %v6650
        %v7004 = vunpack.c.l.b16 %v6651
        %v7005 = vunpack.c.h.b16 %v6651
        %v7006 = vunpack.c.l.b16 %v6652
        %v7007 = vunpack.c.h.b16 %v6652
        %v7008 = vunpack.c.l.b16 %v6653
        %v7009 = vunpack.c.h.b16 %v6653
        %v7010 = vunpack.c.l.b16 %v6654
        %v7011 = vunpack.c.h.b16 %v6654
        %v7012 = vunpack.c.l.b16 %v6655
        %v7013 = vunpack.c.h.b16 %v6655
        %v7014 = vunpack.c.l.b16 %v6656
        %v7015 = vunpack.c.h.b16 %v6656
        %v7016 = vunpack.c.l.b16 %v6657
        %v7017 = vunpack.c.h.b16 %v6657
        %v7018 = vunpack.c.l.b16 %v6658
        %v7019 = vunpack.c.h.b16 %v6658
        %v7020 = vunpack.c.l.b16 %v6659
        %v7021 = vunpack.c.h.b16 %v6659
        %v7022 = vunpack.c.l.b16 %v6660
        %v7023 = vunpack.c.h.b16 %v6660
        %v7024 = vunpack.c.l.b16 %v6661
        %v7025 = vunpack.c.h.b16 %v6661
        %v7026 = vunpack.c.l.b16 %v6662
        %v7027 = vunpack.c.h.b16 %v6662
        %v7028 = vunpack.c.l.b16 %v6663
        %v7029 = vunpack.c.h.b16 %v6663
        %v7030 = vunpack.c.l.b16 %v6664
        %v7031 = vunpack.c.h.b16 %v6664
        %v7032 = vunpack.c.l.b16 %v6665
        %v7033 = vunpack.c.h.b16 %v6665
        %v7034 = vunpack.c.l.b16 %v6666
        %v7035 = vunpack.c.h.b16 %v6666
        %v7036 = vunpack.c.l.b16 %v6667
        %v7037 = vunpack.c.h.b16 %v6667
        %v7038 = vunpack.c.l.b16 %v6668
        %v7039 = vunpack.c.h.b16 %v6668
        %v7040 = vunpack.c.l.b16 %v6669
        %v7041 = vunpack.c.h.b16 %v6669
        %v7042 = vunpack.c.l.b16 %v6670
        %v7043 = vunpack.c.h.b16 %v6670
        %v7044 = vunpack.c.l.b16 %v6671
        %v7045 = vunpack.c.h.b16 %v6671
        %v7046 = vunpack.c.l.b16 %v6672
        %v7047 = vunpack.c.h.b16 %v6672
        %v7048 = vunpack.c.l.b16 %v6673
        %v7049 = vunpack.c.h.b16 %v6673
        %v7050 = vunpack.c.l.b16 %v6674
        %v7051 = vunpack.c.h.b16 %v6674
        %v7052 = vunpack.c.l.b16 %v6675
        %v7053 = vunpack.c.h.b16 %v6675
        %v7054 = vunpack.c.l.b16 %v6676
        %v7055 = vunpack.c.h.b16 %v6676
        %v7056 = vunpack.c.l.b16 %v6677
        %v7057 = vunpack.c.h.b16 %v6677
        %v7058 = vunpack.c.l.b16 %v6678
        %v7059 = vunpack.c.h.b16 %v6678
        %v7060 = vunpack.c.l.b16 %v6679
        %v7061 = vunpack.c.h.b16 %v6679
        %v7062 = vunpack.c.l.b16 %v6680
        %v7063 = vunpack.c.h.b16 %v6680
        %v7064 = vunpack.c.l.b16 %v6681
        %v7065 = vunpack.c.h.b16 %v6681
        %v7066 = vunpack.c.l.b16 %v6682
        %v7067 = vunpack.c.h.b16 %v6682
        %v7068 = vunpack.c.l.b16 %v6683
        %v7069 = vunpack.c.h.b16 %v6683
        %v7070 = vunpack.c.l.b16 %v6684
        %v7071 = vunpack.c.h.b16 %v6684
        %v7072 = vunpack.c.l.b16 %v6685
        %v7073 = vunpack.c.h.b16 %v6685
        %v7074 = vunpack.c.l.b16 %v6686
        %v7075 = vunpack.c.h.b16 %v6686
        %v7076 = vunpack.c.l.b16 %v6687
        %v7077 = vunpack.c.h.b16 %v6687
        %v7078 = vunpack.c.l.b16 %v6688
        %v7079 = vunpack.c.h.b16 %v6688
        %v7080 = vunpack.c.l.b16 %v6689
        %v7081 = vunpack.c.h.b16 %v6689
        %v7082 = vunpack.c.l.b16 %v6690
        %v7083 = vunpack.c.h.b16 %v6690
        %v7084 = vunpack.c.l.b16 %v6691
        %v7085 = vunpack.c.h.b16 %v6691
        %v7086 = vpack.c.b16 %v6834, %v6830
        %v7087 = vpack.c.b16 %v6835, %v6831
        %v7088 = vpack.c.b16 %v6836, %v6832
        %v7089 = vpack.c.b16 %v6837, %v6833
        %v7090 = vpack.c.b16 %v6842, %v6838
        %v7091 = vpack.c.b16 %v6843, %v6839
        %v7092 = vpack.c.b16 %v6844, %v6840
        %v7093 = vpack.c.b16 %v6845, %v6841
        %v7094 = vpack.c.b16 %v6850, %v6846
        %v7095 = vpack.c.b16 %v6851, %v6847
        %v7096 = vpack.c.b16 %v6852, %v6848
        %v7097 = vpack.c.b16 %v6853, %v6849
        %v7098 = vpack.c.b16 %v6858, %v6854
        %v7099 = vpack.c.b16 %v6859, %v6855
        %v7100 = vpack.c.b16 %v6860, %v6856
        %v7101 = vpack.c.b16 %v6861, %v6857
        %v7102 = vpack.c.b16 %v6866, %v6862
        %v7103 = vpack.c.b16 %v6867, %v6863
        %v7104 = vpack.c.b16 %v6868, %v6864
        %v7105 = vpack.c.b16 %v6869, %v6865
        %v7106 = vpack.c.b16 %v6874, %v6870
        %v7107 = vpack.c.b16 %v6875, %v6871
        %v7108 = vpack.c.b16 %v6876, %v6872
        %v7109 = vpack.c.b16 %v6877, %v6873
        %v7110 = vpack.c.b16 %v6882, %v6878
        %v7111 = vpack.c.b16 %v6883, %v6879
        %v7112 = vpack.c.b16 %v6884, %v6880
        %v7113 = vpack.c.b16 %v6885, %v6881
        %v7114 = vpack.c.b16 %v6890, %v6886
        %v7115 = vpack.c.b16 %v6891, %v6887
        %v7116 = vpack.c.b16 %v6892, %v6888
        %v7117 = vpack.c.b16 %v6893, %v6889
        %v7118 = vpack.c.b16 %v6898, %v6894
        %v7119 = vpack.c.b16 %v6899, %v6895
        %v7120 = vpack.c.b16 %v6900, %v6896
        %v7121 = vpack.c.b16 %v6901, %v6897
        %v7122 = vpack.c.b16 %v6906, %v6902
        %v7123 = vpack.c.b16 %v6907, %v6903
        %v7124 = vpack.c.b16 %v6908, %v6904
        %v7125 = vpack.c.b16 %v6909, %v6905
        %v7126 = vpack.c.b16 %v6914, %v6910
        %v7127 = vpack.c.b16 %v6915, %v6911
        %v7128 = vpack.c.b16 %v6916, %v6912
        %v7129 = vpack.c.b16 %v6917, %v6913
        %v7130 = vpack.c.b16 %v6922, %v6918
        %v7131 = vpack.c.b16 %v6923, %v6919
        %v7132 = vpack.c.b16 %v6924, %v6920
        %v7133 = vpack.c.b16 %v6925, %v6921
        %v7134 = vpack.c.b16 %v6930, %v6926
        %v7135 = vpack.c.b16 %v6931, %v6927
        %v7136 = vpack.c.b16 %v6932, %v6928
        %v7137 = vpack.c.b16 %v6933, %v6929
        %v7138 = vpack.c.b16 %v6938, %v6934
        %v7139 = vpack.c.b16 %v6939, %v6935
        %v7140 = vpack.c.b16 %v6940, %v6936
        %v7141 = vpack.c.b16 %v6941, %v6937
        %v7142 = vpack.c.b16 %v6946, %v6942
        %v7143 = vpack.c.b16 %v6947, %v6943
        %v7144 = vpack.c.b16 %v6948, %v6944
        %v7145 = vpack.c.b16 %v6949, %v6945
        %v7146 = vpack.c.b16 %v6954, %v6950
        %v7147 = vpack.c.b16 %v6955, %v6951
        %v7148 = vpack.c.b16 %v6956, %v6952
        %v7149 = vpack.c.b16 %v6957, %v6953
        %v7150 = vpack.c.b16 %v6962, %v6958
        %v7151 = vpack.c.b16 %v6963, %v6959
        %v7152 = vpack.c.b16 %v6964, %v6960
        %v7153 = vpack.c.b16 %v6965, %v6961
        %v7154 = vpack.c.b16 %v6970, %v6966
        %v7155 = vpack.c.b16 %v6971, %v6967
        %v7156 = vpack.c.b16 %v6972, %v6968
        %v7157 = vpack.c.b16 %v6973, %v6969
        %v7158 = vpack.c.b16 %v6978, %v6974
        %v7159 = vpack.c.b16 %v6979, %v6975
        %v7160 = vpack.c.b16 %v6980, %v6976
        %v7161 = vpack.c.b16 %v6981, %v6977
        %v7162 = vpack.c.b16 %v6986, %v6982
        %v7163 = vpack.c.b16 %v6987, %v6983
        %v7164 = vpack.c.b16 %v6988, %v6984
        %v7165 = vpack.c.b16 %v6989, %v6985
        %v7166 = vpack.c.b16 %v6994, %v6990
        %v7167 = vpack.c.b16 %v6995, %v6991
        %v7168 = vpack.c.b16 %v6996, %v6992
        %v7169 = vpack.c.b16 %v6997, %v6993
        %v7170 = vpack.c.b16 %v7002, %v6998
        %v7171 = vpack.c.b16 %v7003, %v6999
        %v7172 = vpack.c.b16 %v7004, %v7000
        %v7173 = vpack.c.b16 %v7005, %v7001
        %v7174 = vpack.c.b16 %v7010, %v7006
        %v7175 = vpack.c.b16 %v7011, %v7007
        %v7176 = vpack.c.b16 %v7012, %v7008
        %v7177 = vpack.c.b16 %v7013, %v7009
        %v7178 = vpack.c.b16 %v7018, %v7014
        %v7179 = vpack.c.b16 %v7019, %v7015
        %v7180 = vpack.c.b16 %v7020, %v7016
        %v7181 = vpack.c.b16 %v7021, %v7017
        %v7182 = vpack.c.b16 %v7026, %v7022
        %v7183 = vpack.c.b16 %v7027, %v7023
        %v7184 = vpack.c.b16 %v7028, %v7024
        %v7185 = vpack.c.b16 %v7029, %v7025
        %v7186 = vpack.c.b16 %v7034, %v7030
        %v7187 = vpack.c.b16 %v7035, %v7031
        %v7188 = vpack.c.b16 %v7036, %v7032
        %v7189 = vpack.c.b16 %v7037, %v7033
        %v7190 = vpack.c.b16 %v7042, %v7038
        %v7191 = vpack.c.b16 %v7043, %v7039
        %v7192 = vpack.c.b16 %v7044, %v7040
        %v7193 = vpack.c.b16 %v7045, %v7041
        %v7194 = vpack.c.b16 %v7050, %v7046
        %v7195 = vpack.c.b16 %v7051, %v7047
        %v7196 = vpack.c.b16 %v7052, %v7048
        %v7197 = vpack.c.b16 %v7053, %v7049
        %v7198 = vpack.c.b16 %v7058, %v7054
        %v7199 = vpack.c.b16 %v7059, %v7055
        %v7200 = vpack.c.b16 %v7060, %v7056
        %v7201 = vpack.c.b16 %v7061, %v7057
        %v7202 = vpack.c.b16 %v7066, %v7062
        %v7203 = vpack.c.b16 %v7067, %v7063
        %v7204 = vpack.c.b16 %v7068, %v7064
        %v7205 = vpack.c.b16 %v7069, %v7065
        %v7206 = vpack.c.b16 %v7074, %v7070
        %v7207 = vpack.c.b16 %v7075, %v7071
        %v7208 = vpack.c.b16 %v7076, %v7072
        %v7209 = vpack.c.b16 %v7077, %v7073
        %v7210 = vpack.c.b16 %v7082, %v7078
        %v7211 = vpack.c.b16 %v7083, %v7079
        %v7212 = vpack.c.b16 %v7084, %v7080
        %v7213 = vpack.c.b16 %v7085, %v7081
        %7342 = vmatpush.bf16.msra.mxu0 %v7114
        %7343 = vmatpush.bf16.msra.mxu0 %v7110
        %7344 = vmatpush.bf16.msra.mxu0 %v7106
        %7345 = vmatpush.bf16.msra.mxu0 %v7102
        %7346 = vmatpush.bf16.msra.mxu0 %v7098
        %7347 = vmatpush.bf16.msra.mxu0 %v7094
        %7348 = vmatpush.bf16.msra.mxu0 %v7090
        %7349 = vmatpush.bf16.msra.mxu0 %v7086
        %7350 = vmatmul.bf16.gmra.mxu0 %v6524
        %v7351 = vpop.f32.mrf.mxu0
        %v7352 = vadd.f32 %v6694, %v7351
        %v7353 = vpop.f32.mrf.mxu0
        %v7354 = vadd.f32 %v6694, %v7353
        %7355 = vmatmul.bf16.gmra.mxu0 %v6528
        %v7356 = vpop.f32.mrf.mxu0
        %v7357 = vadd.f32 %v6694, %v7356
        %v7358 = vpop.f32.mrf.mxu0
        %v7359 = vadd.f32 %v6694, %v7358
        %7360 = vmatmul.bf16.gmra.mxu0 %v6532
        %v7361 = vpop.f32.mrf.mxu0
        %v7362 = vadd.f32 %v6694, %v7361
        %v7363 = vpop.f32.mrf.mxu0
        %v7364 = vadd.f32 %v6694, %v7363
        %7365 = vmatmul.bf16.gmra.mxu0 %v6536
        %v7366 = vpop.f32.mrf.mxu0
        %v7367 = vadd.f32 %v6694, %v7366
        %v7368 = vpop.f32.mrf.mxu0
        %v7369 = vadd.f32 %v6694, %v7368
        %7370 = vmatmul.bf16.gmra.mxu0 %v6540
        %v7371 = vpop.f32.mrf.mxu0
        %v7372 = vadd.f32 %v6694, %v7371
        %v7373 = vpop.f32.mrf.mxu0
        %v7374 = vadd.f32 %v6694, %v7373
        %7375 = vmatmul.bf16.gmra.mxu0 %v6544
        %v7376 = vpop.f32.mrf.mxu0
        %v7377 = vadd.f32 %v6694, %v7376
        %v7378 = vpop.f32.mrf.mxu0
        %v7379 = vadd.f32 %v6694, %v7378
        %7380 = vmatmul.bf16.gmra.mxu0 %v6548
        %v7381 = vpop.f32.mrf.mxu0
        %v7382 = vadd.f32 %v6694, %v7381
        %v7383 = vpop.f32.mrf.mxu0
        %v7384 = vadd.f32 %v6694, %v7383
        %7385 = vmatmul.bf16.gmra.mxu0 %v6552
        %v7386 = vpop.f32.mrf.mxu0
        %v7387 = vadd.f32 %v6694, %v7386
        %v7388 = vpop.f32.mrf.mxu0
        %v7389 = vadd.f32 %v6694, %v7388
        %7390 = vmatmul.bf16.gmra.mxu0 %v6556
        %v7391 = vpop.f32.mrf.mxu0
        %v7392 = vadd.f32 %v6694, %v7391
        %v7393 = vpop.f32.mrf.mxu0
        %v7394 = vadd.f32 %v6694, %v7393
        %7395 = vmatmul.bf16.gmra.mxu0 %v6560
        %v7396 = vpop.f32.mrf.mxu0
        %v7397 = vadd.f32 %v6694, %v7396
        %v7398 = vpop.f32.mrf.mxu0
        %v7399 = vadd.f32 %v6694, %v7398
        %7400 = vdwg.mxu0
        %7401 = vmatpush.bf16.msra.mxu0 %v7146
        %7402 = vmatpush.bf16.msra.mxu0 %v7142
        %7403 = vmatpush.bf16.msra.mxu0 %v7138
        %7404 = vmatpush.bf16.msra.mxu0 %v7134
        %7405 = vmatpush.bf16.msra.mxu0 %v7130
        %7406 = vmatpush.bf16.msra.mxu0 %v7126
        %7407 = vmatpush.bf16.msra.mxu0 %v7122
        %7408 = vmatpush.bf16.msra.mxu0 %v7118
        %7409 = vmatmul.bf16.gmra.mxu0 %v6525
        %v7410 = vpop.f32.mrf.mxu0
        %v7411 = vadd.f32 %v7352, %v7410
        %v7412 = vpop.f32.mrf.mxu0
        %v7413 = vadd.f32 %v7354, %v7412
        %7414 = vmatmul.bf16.gmra.mxu0 %v6529
        %v7415 = vpop.f32.mrf.mxu0
        %v7416 = vadd.f32 %v7357, %v7415
        %v7417 = vpop.f32.mrf.mxu0
        %v7418 = vadd.f32 %v7359, %v7417
        %7419 = vmatmul.bf16.gmra.mxu0 %v6533
        %v7420 = vpop.f32.mrf.mxu0
        %v7421 = vadd.f32 %v7362, %v7420
        %v7422 = vpop.f32.mrf.mxu0
        %v7423 = vadd.f32 %v7364, %v7422
        %7424 = vmatmul.bf16.gmra.mxu0 %v6537
        %v7425 = vpop.f32.mrf.mxu0
        %v7426 = vadd.f32 %v7367, %v7425
        %v7427 = vpop.f32.mrf.mxu0
        %v7428 = vadd.f32 %v7369, %v7427
        %7429 = vmatmul.bf16.gmra.mxu0 %v6541
        %v7430 = vpop.f32.mrf.mxu0
        %v7431 = vadd.f32 %v7372, %v7430
        %v7432 = vpop.f32.mrf.mxu0
        %v7433 = vadd.f32 %v7374, %v7432
        %7434 = vmatmul.bf16.gmra.mxu0 %v6545
        %v7435 = vpop.f32.mrf.mxu0
        %v7436 = vadd.f32 %v7377, %v7435
        %v7437 = vpop.f32.mrf.mxu0
        %v7438 = vadd.f32 %v7379, %v7437
        %7439 = vmatmul.bf16.gmra.mxu0 %v6549
        %v7440 = vpop.f32.mrf.mxu0
        %v7441 = vadd.f32 %v7382, %v7440
        %v7442 = vpop.f32.mrf.mxu0
        %v7443 = vadd.f32 %v7384, %v7442
        %7444 = vmatmul.bf16.gmra.mxu0 %v6553
        %v7445 = vpop.f32.mrf.mxu0
        %v7446 = vadd.f32 %v7387, %v7445
        %v7447 = vpop.f32.mrf.mxu0
        %v7448 = vadd.f32 %v7389, %v7447
        %7449 = vmatmul.bf16.gmra.mxu0 %v6557
        %v7450 = vpop.f32.mrf.mxu0
        %v7451 = vadd.f32 %v7392, %v7450
        %v7452 = vpop.f32.mrf.mxu0
        %v7453 = vadd.f32 %v7394, %v7452
        %7454 = vmatmul.bf16.gmra.mxu0 %v6561
        %v7455 = vpop.f32.mrf.mxu0
        %v7456 = vadd.f32 %v7397, %v7455
        %v7457 = vpop.f32.mrf.mxu0
        %v7458 = vadd.f32 %v7399, %v7457
        %7459 = vdwg.mxu0
        %7460 = vmatpush.bf16.msra.mxu0 %v7178
        %7461 = vmatpush.bf16.msra.mxu0 %v7174
        %7462 = vmatpush.bf16.msra.mxu0 %v7170
        %7463 = vmatpush.bf16.msra.mxu0 %v7166
        %7464 = vmatpush.bf16.msra.mxu0 %v7162
        %7465 = vmatpush.bf16.msra.mxu0 %v7158
        %7466 = vmatpush.bf16.msra.mxu0 %v7154
        %7467 = vmatpush.bf16.msra.mxu0 %v7150
        %7468 = vmatmul.bf16.gmra.mxu0 %v6526
        %v7469 = vpop.f32.mrf.mxu0
        %v7470 = vadd.f32 %v7411, %v7469
        %v7471 = vpop.f32.mrf.mxu0
        %v7472 = vadd.f32 %v7413, %v7471
        %7473 = vmatmul.bf16.gmra.mxu0 %v6530
        %v7474 = vpop.f32.mrf.mxu0
        %v7475 = vadd.f32 %v7416, %v7474
        %v7476 = vpop.f32.mrf.mxu0
        %v7477 = vadd.f32 %v7418, %v7476
        %7478 = vmatmul.bf16.gmra.mxu0 %v6534
        %v7479 = vpop.f32.mrf.mxu0
        %v7480 = vadd.f32 %v7421, %v7479
        %v7481 = vpop.f32.mrf.mxu0
        %v7482 = vadd.f32 %v7423, %v7481
        %7483 = vmatmul.bf16.gmra.mxu0 %v6538
        %v7484 = vpop.f32.mrf.mxu0
        %v7485 = vadd.f32 %v7426, %v7484
        %v7486 = vpop.f32.mrf.mxu0
        %v7487 = vadd.f32 %v7428, %v7486
        %7488 = vmatmul.bf16.gmra.mxu0 %v6542
        %v7489 = vpop.f32.mrf.mxu0
        %v7490 = vadd.f32 %v7431, %v7489
        %v7491 = vpop.f32.mrf.mxu0
        %v7492 = vadd.f32 %v7433, %v7491
        %7493 = vmatmul.bf16.gmra.mxu0 %v6546
        %v7494 = vpop.f32.mrf.mxu0
        %v7495 = vadd.f32 %v7436, %v7494
        %v7496 = vpop.f32.mrf.mxu0
        %v7497 = vadd.f32 %v7438, %v7496
        %7498 = vmatmul.bf16.gmra.mxu0 %v6550
        %v7499 = vpop.f32.mrf.mxu0
        %v7500 = vadd.f32 %v7441, %v7499
        %v7501 = vpop.f32.mrf.mxu0
        %v7502 = vadd.f32 %v7443, %v7501
        %7503 = vmatmul.bf16.gmra.mxu0 %v6554
        %v7504 = vpop.f32.mrf.mxu0
        %v7505 = vadd.f32 %v7446, %v7504
        %v7506 = vpop.f32.mrf.mxu0
        %v7507 = vadd.f32 %v7448, %v7506
        %7508 = vmatmul.bf16.gmra.mxu0 %v6558
        %v7509 = vpop.f32.mrf.mxu0
        %v7510 = vadd.f32 %v7451, %v7509
        %v7511 = vpop.f32.mrf.mxu0
        %v7512 = vadd.f32 %v7453, %v7511
        %7513 = vmatmul.bf16.gmra.mxu0 %v6562
        %v7514 = vpop.f32.mrf.mxu0
        %v7515 = vadd.f32 %v7456, %v7514
        %v7516 = vpop.f32.mrf.mxu0
        %v7517 = vadd.f32 %v7458, %v7516
        %7518 = vdwg.mxu0
        %7519 = vmatpush.bf16.msra.mxu0 %v7210
        %7520 = vmatpush.bf16.msra.mxu0 %v7206
        %7521 = vmatpush.bf16.msra.mxu0 %v7202
        %7522 = vmatpush.bf16.msra.mxu0 %v7198
        %7523 = vmatpush.bf16.msra.mxu0 %v7194
        %7524 = vmatpush.bf16.msra.mxu0 %v7190
        %7525 = vmatpush.bf16.msra.mxu0 %v7186
        %7526 = vmatpush.bf16.msra.mxu0 %v7182
        %7527 = vmatmul.bf16.gmra.mxu0 %v6527
        %v7528 = vpop.f32.mrf.mxu0
        %v7529 = vadd.f32 %v7470, %v7528
        %v7530 = vpop.f32.mrf.mxu0
        %v7531 = vadd.f32 %v7472, %v7530
        %7532 = vmatmul.bf16.gmra.mxu0 %v6531
        %v7533 = vpop.f32.mrf.mxu0
        %v7534 = vadd.f32 %v7475, %v7533
        %v7535 = vpop.f32.mrf.mxu0
        %v7536 = vadd.f32 %v7477, %v7535
        %7537 = vmatmul.bf16.gmra.mxu0 %v6535
        %v7538 = vpop.f32.mrf.mxu0
        %v7539 = vadd.f32 %v7480, %v7538
        %v7540 = vpop.f32.mrf.mxu0
        %v7541 = vadd.f32 %v7482, %v7540
        %7542 = vmatmul.bf16.gmra.mxu0 %v6539
        %v7543 = vpop.f32.mrf.mxu0
        %v7544 = vadd.f32 %v7485, %v7543
        %v7545 = vpop.f32.mrf.mxu0
        %v7546 = vadd.f32 %v7487, %v7545
        %7547 = vmatmul.bf16.gmra.mxu0 %v6543
        %v7548 = vpop.f32.mrf.mxu0
        %v7549 = vadd.f32 %v7490, %v7548
        %v7550 = vpop.f32.mrf.mxu0
        %v7551 = vadd.f32 %v7492, %v7550
        %7552 = vmatmul.bf16.gmra.mxu0 %v6547
        %v7553 = vpop.f32.mrf.mxu0
        %v7554 = vadd.f32 %v7495, %v7553
        %v7555 = vpop.f32.mrf.mxu0
        %v7556 = vadd.f32 %v7497, %v7555
        %7557 = vmatmul.bf16.gmra.mxu0 %v6551
        %v7558 = vpop.f32.mrf.mxu0
        %v7559 = vadd.f32 %v7500, %v7558
        %v7560 = vpop.f32.mrf.mxu0
        %v7561 = vadd.f32 %v7502, %v7560
        %7562 = vmatmul.bf16.gmra.mxu0 %v6555
        %v7563 = vpop.f32.mrf.mxu0
        %v7564 = vadd.f32 %v7505, %v7563
        %v7565 = vpop.f32.mrf.mxu0
        %v7566 = vadd.f32 %v7507, %v7565
        %7567 = vmatmul.bf16.gmra.mxu0 %v6559
        %v7568 = vpop.f32.mrf.mxu0
        %v7569 = vadd.f32 %v7510, %v7568
        %v7570 = vpop.f32.mrf.mxu0
        %v7571 = vadd.f32 %v7512, %v7570
        %7572 = vmatmul.bf16.gmra.mxu0 %v6563
        %v7573 = vpop.f32.mrf.mxu0
        %v7574 = vadd.f32 %v7515, %v7573
        %v7575 = vpop.f32.mrf.mxu0
        %v7576 = vadd.f32 %v7517, %v7575
        %7577 = vdwg.mxu0
        %7578 = vmatpush.bf16.msra.mxu0 %v7115
        %7579 = vmatpush.bf16.msra.mxu0 %v7111
        %7580 = vmatpush.bf16.msra.mxu0 %v7107
        %7581 = vmatpush.bf16.msra.mxu0 %v7103
        %7582 = vmatpush.bf16.msra.mxu0 %v7099
        %7583 = vmatpush.bf16.msra.mxu0 %v7095
        %7584 = vmatpush.bf16.msra.mxu0 %v7091
        %7585 = vmatpush.bf16.msra.mxu0 %v7087
        %7586 = vmatmul.bf16.gmra.mxu0 %v6524
        %v7587 = vpop.f32.mrf.mxu0
        %v7588 = vadd.f32 %v6695, %v7587
        %v7589 = vpop.f32.mrf.mxu0
        %v7590 = vadd.f32 %v6695, %v7589
        %7591 = vmatmul.bf16.gmra.mxu0 %v6528
        %v7592 = vpop.f32.mrf.mxu0
        %v7593 = vadd.f32 %v6695, %v7592
        %v7594 = vpop.f32.mrf.mxu0
        %v7595 = vadd.f32 %v6695, %v7594
        %7596 = vmatmul.bf16.gmra.mxu0 %v6532
        %v7597 = vpop.f32.mrf.mxu0
        %v7598 = vadd.f32 %v6695, %v7597
        %v7599 = vpop.f32.mrf.mxu0
        %v7600 = vadd.f32 %v6695, %v7599
        %7601 = vmatmul.bf16.gmra.mxu0 %v6536
        %v7602 = vpop.f32.mrf.mxu0
        %v7603 = vadd.f32 %v6695, %v7602
        %v7604 = vpop.f32.mrf.mxu0
        %v7605 = vadd.f32 %v6695, %v7604
        %7606 = vmatmul.bf16.gmra.mxu0 %v6540
        %v7607 = vpop.f32.mrf.mxu0
        %v7608 = vadd.f32 %v6695, %v7607
        %v7609 = vpop.f32.mrf.mxu0
        %v7610 = vadd.f32 %v6695, %v7609
        %7611 = vmatmul.bf16.gmra.mxu0 %v6544
        %v7612 = vpop.f32.mrf.mxu0
        %v7613 = vadd.f32 %v6695, %v7612
        %v7614 = vpop.f32.mrf.mxu0
        %v7615 = vadd.f32 %v6695, %v7614
        %7616 = vmatmul.bf16.gmra.mxu0 %v6548
        %v7617 = vpop.f32.mrf.mxu0
        %v7618 = vadd.f32 %v6695, %v7617
        %v7619 = vpop.f32.mrf.mxu0
        %v7620 = vadd.f32 %v6695, %v7619
        %7621 = vmatmul.bf16.gmra.mxu0 %v6552
        %v7622 = vpop.f32.mrf.mxu0
        %v7623 = vadd.f32 %v6695, %v7622
        %v7624 = vpop.f32.mrf.mxu0
        %v7625 = vadd.f32 %v6695, %v7624
        %7626 = vmatmul.bf16.gmra.mxu0 %v6556
        %v7627 = vpop.f32.mrf.mxu0
        %v7628 = vadd.f32 %v6695, %v7627
        %v7629 = vpop.f32.mrf.mxu0
        %v7630 = vadd.f32 %v6695, %v7629
        %7631 = vmatmul.bf16.gmra.mxu0 %v6560
        %v7632 = vpop.f32.mrf.mxu0
        %v7633 = vadd.f32 %v6695, %v7632
        %v7634 = vpop.f32.mrf.mxu0
        %v7635 = vadd.f32 %v6695, %v7634
        %7636 = vdwg.mxu0
        %7637 = vmatpush.bf16.msra.mxu0 %v7147
        %7638 = vmatpush.bf16.msra.mxu0 %v7143
        %7639 = vmatpush.bf16.msra.mxu0 %v7139
        %7640 = vmatpush.bf16.msra.mxu0 %v7135
        %7641 = vmatpush.bf16.msra.mxu0 %v7131
        %7642 = vmatpush.bf16.msra.mxu0 %v7127
        %7643 = vmatpush.bf16.msra.mxu0 %v7123
        %7644 = vmatpush.bf16.msra.mxu0 %v7119
        %7645 = vmatmul.bf16.gmra.mxu0 %v6525
        %v7646 = vpop.f32.mrf.mxu0
        %v7647 = vadd.f32 %v7588, %v7646
        %v7648 = vpop.f32.mrf.mxu0
        %v7649 = vadd.f32 %v7590, %v7648
        %7650 = vmatmul.bf16.gmra.mxu0 %v6529
        %v7651 = vpop.f32.mrf.mxu0
        %v7652 = vadd.f32 %v7593, %v7651
        %v7653 = vpop.f32.mrf.mxu0
        %v7654 = vadd.f32 %v7595, %v7653
        %7655 = vmatmul.bf16.gmra.mxu0 %v6533
        %v7656 = vpop.f32.mrf.mxu0
        %v7657 = vadd.f32 %v7598, %v7656
        %v7658 = vpop.f32.mrf.mxu0
        %v7659 = vadd.f32 %v7600, %v7658
        %7660 = vmatmul.bf16.gmra.mxu0 %v6537
        %v7661 = vpop.f32.mrf.mxu0
        %v7662 = vadd.f32 %v7603, %v7661
        %v7663 = vpop.f32.mrf.mxu0
        %v7664 = vadd.f32 %v7605, %v7663
        %7665 = vmatmul.bf16.gmra.mxu0 %v6541
        %v7666 = vpop.f32.mrf.mxu0
        %v7667 = vadd.f32 %v7608, %v7666
        %v7668 = vpop.f32.mrf.mxu0
        %v7669 = vadd.f32 %v7610, %v7668
        %7670 = vmatmul.bf16.gmra.mxu0 %v6545
        %v7671 = vpop.f32.mrf.mxu0
        %v7672 = vadd.f32 %v7613, %v7671
        %v7673 = vpop.f32.mrf.mxu0
        %v7674 = vadd.f32 %v7615, %v7673
        %7675 = vmatmul.bf16.gmra.mxu0 %v6549
        %v7676 = vpop.f32.mrf.mxu0
        %v7677 = vadd.f32 %v7618, %v7676
        %v7678 = vpop.f32.mrf.mxu0
        %v7679 = vadd.f32 %v7620, %v7678
        %7680 = vmatmul.bf16.gmra.mxu0 %v6553
        %v7681 = vpop.f32.mrf.mxu0
        %v7682 = vadd.f32 %v7623, %v7681
        %v7683 = vpop.f32.mrf.mxu0
        %v7684 = vadd.f32 %v7625, %v7683
        %7685 = vmatmul.bf16.gmra.mxu0 %v6557
        %v7686 = vpop.f32.mrf.mxu0
        %v7687 = vadd.f32 %v7628, %v7686
        %v7688 = vpop.f32.mrf.mxu0
        %v7689 = vadd.f32 %v7630, %v7688
        %7690 = vmatmul.bf16.gmra.mxu0 %v6561
        %v7691 = vpop.f32.mrf.mxu0
        %v7692 = vadd.f32 %v7633, %v7691
        %v7693 = vpop.f32.mrf.mxu0
        %v7694 = vadd.f32 %v7635, %v7693
        %7695 = vdwg.mxu0
        %7696 = vmatpush.bf16.msra.mxu0 %v7179
        %7697 = vmatpush.bf16.msra.mxu0 %v7175
        %7698 = vmatpush.bf16.msra.mxu0 %v7171
        %7699 = vmatpush.bf16.msra.mxu0 %v7167
        %7700 = vmatpush.bf16.msra.mxu0 %v7163
        %7701 = vmatpush.bf16.msra.mxu0 %v7159
        %7702 = vmatpush.bf16.msra.mxu0 %v7155
        %7703 = vmatpush.bf16.msra.mxu0 %v7151
        %7704 = vmatmul.bf16.gmra.mxu0 %v6526
        %v7705 = vpop.f32.mrf.mxu0
        %v7706 = vadd.f32 %v7647, %v7705
        %v7707 = vpop.f32.mrf.mxu0
        %v7708 = vadd.f32 %v7649, %v7707
        %7709 = vmatmul.bf16.gmra.mxu0 %v6530
        %v7710 = vpop.f32.mrf.mxu0
        %v7711 = vadd.f32 %v7652, %v7710
        %v7712 = vpop.f32.mrf.mxu0
        %v7713 = vadd.f32 %v7654, %v7712
        %7714 = vmatmul.bf16.gmra.mxu0 %v6534
        %v7715 = vpop.f32.mrf.mxu0
        %v7716 = vadd.f32 %v7657, %v7715
        %v7717 = vpop.f32.mrf.mxu0
        %v7718 = vadd.f32 %v7659, %v7717
        %7719 = vmatmul.bf16.gmra.mxu0 %v6538
        %v7720 = vpop.f32.mrf.mxu0
        %v7721 = vadd.f32 %v7662, %v7720
        %v7722 = vpop.f32.mrf.mxu0
        %v7723 = vadd.f32 %v7664, %v7722
        %7724 = vmatmul.bf16.gmra.mxu0 %v6542
        %v7725 = vpop.f32.mrf.mxu0
        %v7726 = vadd.f32 %v7667, %v7725
        %v7727 = vpop.f32.mrf.mxu0
        %v7728 = vadd.f32 %v7669, %v7727
        %7729 = vmatmul.bf16.gmra.mxu0 %v6546
        %v7730 = vpop.f32.mrf.mxu0
        %v7731 = vadd.f32 %v7672, %v7730
        %v7732 = vpop.f32.mrf.mxu0
        %v7733 = vadd.f32 %v7674, %v7732
        %7734 = vmatmul.bf16.gmra.mxu0 %v6550
        %v7735 = vpop.f32.mrf.mxu0
        %v7736 = vadd.f32 %v7677, %v7735
        %v7737 = vpop.f32.mrf.mxu0
        %v7738 = vadd.f32 %v7679, %v7737
        %7739 = vmatmul.bf16.gmra.mxu0 %v6554
        %v7740 = vpop.f32.mrf.mxu0
        %v7741 = vadd.f32 %v7682, %v7740
        %v7742 = vpop.f32.mrf.mxu0
        %v7743 = vadd.f32 %v7684, %v7742
        %7744 = vmatmul.bf16.gmra.mxu0 %v6558
        %v7745 = vpop.f32.mrf.mxu0
        %v7746 = vadd.f32 %v7687, %v7745
        %v7747 = vpop.f32.mrf.mxu0
        %v7748 = vadd.f32 %v7689, %v7747
        %7749 = vmatmul.bf16.gmra.mxu0 %v6562
        %v7750 = vpop.f32.mrf.mxu0
        %v7751 = vadd.f32 %v7692, %v7750
        %v7752 = vpop.f32.mrf.mxu0
        %v7753 = vadd.f32 %v7694, %v7752
        %7754 = vdwg.mxu0
        %7755 = vmatpush.bf16.msra.mxu0 %v7211
        %7756 = vmatpush.bf16.msra.mxu0 %v7207
        %7757 = vmatpush.bf16.msra.mxu0 %v7203
        %7758 = vmatpush.bf16.msra.mxu0 %v7199
        %7759 = vmatpush.bf16.msra.mxu0 %v7195
        %7760 = vmatpush.bf16.msra.mxu0 %v7191
        %7761 = vmatpush.bf16.msra.mxu0 %v7187
        %7762 = vmatpush.bf16.msra.mxu0 %v7183
        %7763 = vmatmul.bf16.gmra.mxu0 %v6527
        %v7764 = vpop.f32.mrf.mxu0
        %v7765 = vadd.f32 %v7706, %v7764
        %v7766 = vpop.f32.mrf.mxu0
        %v7767 = vadd.f32 %v7708, %v7766
        %7768 = vmatmul.bf16.gmra.mxu0 %v6531
        %v7769 = vpop.f32.mrf.mxu0
        %v7770 = vadd.f32 %v7711, %v7769
        %v7771 = vpop.f32.mrf.mxu0
        %v7772 = vadd.f32 %v7713, %v7771
        %7773 = vmatmul.bf16.gmra.mxu0 %v6535
        %v7774 = vpop.f32.mrf.mxu0
        %v7775 = vadd.f32 %v7716, %v7774
        %v7776 = vpop.f32.mrf.mxu0
        %v7777 = vadd.f32 %v7718, %v7776
        %7778 = vmatmul.bf16.gmra.mxu0 %v6539
        %v7779 = vpop.f32.mrf.mxu0
        %v7780 = vadd.f32 %v7721, %v7779
        %v7781 = vpop.f32.mrf.mxu0
        %v7782 = vadd.f32 %v7723, %v7781
        %7783 = vmatmul.bf16.gmra.mxu0 %v6543
        %v7784 = vpop.f32.mrf.mxu0
        %v7785 = vadd.f32 %v7726, %v7784
        %v7786 = vpop.f32.mrf.mxu0
        %v7787 = vadd.f32 %v7728, %v7786
        %7788 = vmatmul.bf16.gmra.mxu0 %v6547
        %v7789 = vpop.f32.mrf.mxu0
        %v7790 = vadd.f32 %v7731, %v7789
        %v7791 = vpop.f32.mrf.mxu0
        %v7792 = vadd.f32 %v7733, %v7791
        %7793 = vmatmul.bf16.gmra.mxu0 %v6551
        %v7794 = vpop.f32.mrf.mxu0
        %v7795 = vadd.f32 %v7736, %v7794
        %v7796 = vpop.f32.mrf.mxu0
        %v7797 = vadd.f32 %v7738, %v7796
        %7798 = vmatmul.bf16.gmra.mxu0 %v6555
        %v7799 = vpop.f32.mrf.mxu0
        %v7800 = vadd.f32 %v7741, %v7799
        %v7801 = vpop.f32.mrf.mxu0
        %v7802 = vadd.f32 %v7743, %v7801
        %7803 = vmatmul.bf16.gmra.mxu0 %v6559
        %v7804 = vpop.f32.mrf.mxu0
        %v7805 = vadd.f32 %v7746, %v7804
        %v7806 = vpop.f32.mrf.mxu0
        %v7807 = vadd.f32 %v7748, %v7806
        %7808 = vmatmul.bf16.gmra.mxu0 %v6563
        %v7809 = vpop.f32.mrf.mxu0
        %v7810 = vadd.f32 %v7751, %v7809
        %v7811 = vpop.f32.mrf.mxu0
        %v7812 = vadd.f32 %v7753, %v7811
        %7813 = vdwg.mxu0
        %7814 = vmatpush.bf16.msra.mxu0 %v7116
        %7815 = vmatpush.bf16.msra.mxu0 %v7112
        %7816 = vmatpush.bf16.msra.mxu0 %v7108
        %7817 = vmatpush.bf16.msra.mxu0 %v7104
        %7818 = vmatpush.bf16.msra.mxu0 %v7100
        %7819 = vmatpush.bf16.msra.mxu0 %v7096
        %7820 = vmatpush.bf16.msra.mxu0 %v7092
        %7821 = vmatpush.bf16.msra.mxu0 %v7088
        %7822 = vmatmul.bf16.gmra.mxu0 %v6524
        %v7823 = vpop.f32.mrf.mxu0
        %v7824 = vadd.f32 %v6696, %v7823
        %v7825 = vpop.f32.mrf.mxu0
        %v7826 = vadd.f32 %v6696, %v7825
        %7827 = vmatmul.bf16.gmra.mxu0 %v6528
        %v7828 = vpop.f32.mrf.mxu0
        %v7829 = vadd.f32 %v6696, %v7828
        %v7830 = vpop.f32.mrf.mxu0
        %v7831 = vadd.f32 %v6696, %v7830
        %7832 = vmatmul.bf16.gmra.mxu0 %v6532
        %v7833 = vpop.f32.mrf.mxu0
        %v7834 = vadd.f32 %v6696, %v7833
        %v7835 = vpop.f32.mrf.mxu0
        %v7836 = vadd.f32 %v6696, %v7835
        %7837 = vmatmul.bf16.gmra.mxu0 %v6536
        %v7838 = vpop.f32.mrf.mxu0
        %v7839 = vadd.f32 %v6696, %v7838
        %v7840 = vpop.f32.mrf.mxu0
        %v7841 = vadd.f32 %v6696, %v7840
        %7842 = vmatmul.bf16.gmra.mxu0 %v6540
        %v7843 = vpop.f32.mrf.mxu0
        %v7844 = vadd.f32 %v6696, %v7843
        %v7845 = vpop.f32.mrf.mxu0
        %v7846 = vadd.f32 %v6696, %v7845
        %7847 = vmatmul.bf16.gmra.mxu0 %v6544
        %v7848 = vpop.f32.mrf.mxu0
        %v7849 = vadd.f32 %v6696, %v7848
        %v7850 = vpop.f32.mrf.mxu0
        %v7851 = vadd.f32 %v6696, %v7850
        %7852 = vmatmul.bf16.gmra.mxu0 %v6548
        %v7853 = vpop.f32.mrf.mxu0
        %v7854 = vadd.f32 %v6696, %v7853
        %v7855 = vpop.f32.mrf.mxu0
        %v7856 = vadd.f32 %v6696, %v7855
        %7857 = vmatmul.bf16.gmra.mxu0 %v6552
        %v7858 = vpop.f32.mrf.mxu0
        %v7859 = vadd.f32 %v6696, %v7858
        %v7860 = vpop.f32.mrf.mxu0
        %v7861 = vadd.f32 %v6696, %v7860
        %7862 = vmatmul.bf16.gmra.mxu0 %v6556
        %v7863 = vpop.f32.mrf.mxu0
        %v7864 = vadd.f32 %v6696, %v7863
        %v7865 = vpop.f32.mrf.mxu0
        %v7866 = vadd.f32 %v6696, %v7865
        %7867 = vmatmul.bf16.gmra.mxu0 %v6560
        %v7868 = vpop.f32.mrf.mxu0
        %v7869 = vadd.f32 %v6696, %v7868
        %v7870 = vpop.f32.mrf.mxu0
        %v7871 = vadd.f32 %v6696, %v7870
        %7872 = vdwg.mxu0
        %7873 = vmatpush.bf16.msra.mxu0 %v7148
        %7874 = vmatpush.bf16.msra.mxu0 %v7144
        %7875 = vmatpush.bf16.msra.mxu0 %v7140
        %7876 = vmatpush.bf16.msra.mxu0 %v7136
        %7877 = vmatpush.bf16.msra.mxu0 %v7132
        %7878 = vmatpush.bf16.msra.mxu0 %v7128
        %7879 = vmatpush.bf16.msra.mxu0 %v7124
        %7880 = vmatpush.bf16.msra.mxu0 %v7120
        %7881 = vmatmul.bf16.gmra.mxu0 %v6525
        %v7882 = vpop.f32.mrf.mxu0
        %v7883 = vadd.f32 %v7824, %v7882
        %v7884 = vpop.f32.mrf.mxu0
        %v7885 = vadd.f32 %v7826, %v7884
        %7886 = vmatmul.bf16.gmra.mxu0 %v6529
        %v7887 = vpop.f32.mrf.mxu0
        %v7888 = vadd.f32 %v7829, %v7887
        %v7889 = vpop.f32.mrf.mxu0
        %v7890 = vadd.f32 %v7831, %v7889
        %7891 = vmatmul.bf16.gmra.mxu0 %v6533
        %v7892 = vpop.f32.mrf.mxu0
        %v7893 = vadd.f32 %v7834, %v7892
        %v7894 = vpop.f32.mrf.mxu0
        %v7895 = vadd.f32 %v7836, %v7894
        %7896 = vmatmul.bf16.gmra.mxu0 %v6537
        %v7897 = vpop.f32.mrf.mxu0
        %v7898 = vadd.f32 %v7839, %v7897
        %v7899 = vpop.f32.mrf.mxu0
        %v7900 = vadd.f32 %v7841, %v7899
        %7901 = vmatmul.bf16.gmra.mxu0 %v6541
        %v7902 = vpop.f32.mrf.mxu0
        %v7903 = vadd.f32 %v7844, %v7902
        %v7904 = vpop.f32.mrf.mxu0
        %v7905 = vadd.f32 %v7846, %v7904
        %7906 = vmatmul.bf16.gmra.mxu0 %v6545
        %v7907 = vpop.f32.mrf.mxu0
        %v7908 = vadd.f32 %v7849, %v7907
        %v7909 = vpop.f32.mrf.mxu0
        %v7910 = vadd.f32 %v7851, %v7909
        %7911 = vmatmul.bf16.gmra.mxu0 %v6549
        %v7912 = vpop.f32.mrf.mxu0
        %v7913 = vadd.f32 %v7854, %v7912
        %v7914 = vpop.f32.mrf.mxu0
        %v7915 = vadd.f32 %v7856, %v7914
        %7916 = vmatmul.bf16.gmra.mxu0 %v6553
        %v7917 = vpop.f32.mrf.mxu0
        %v7918 = vadd.f32 %v7859, %v7917
        %v7919 = vpop.f32.mrf.mxu0
        %v7920 = vadd.f32 %v7861, %v7919
        %7921 = vmatmul.bf16.gmra.mxu0 %v6557
        %v7922 = vpop.f32.mrf.mxu0
        %v7923 = vadd.f32 %v7864, %v7922
        %v7924 = vpop.f32.mrf.mxu0
        %v7925 = vadd.f32 %v7866, %v7924
        %7926 = vmatmul.bf16.gmra.mxu0 %v6561
        %v7927 = vpop.f32.mrf.mxu0
        %v7928 = vadd.f32 %v7869, %v7927
        %v7929 = vpop.f32.mrf.mxu0
        %v7930 = vadd.f32 %v7871, %v7929
        %7931 = vdwg.mxu0
        %7932 = vmatpush.bf16.msra.mxu0 %v7180
        %7933 = vmatpush.bf16.msra.mxu0 %v7176
        %7934 = vmatpush.bf16.msra.mxu0 %v7172
        %7935 = vmatpush.bf16.msra.mxu0 %v7168
        %7936 = vmatpush.bf16.msra.mxu0 %v7164
        %7937 = vmatpush.bf16.msra.mxu0 %v7160
        %7938 = vmatpush.bf16.msra.mxu0 %v7156
        %7939 = vmatpush.bf16.msra.mxu0 %v7152
        %7940 = vmatmul.bf16.gmra.mxu0 %v6526
        %v7941 = vpop.f32.mrf.mxu0
        %v7942 = vadd.f32 %v7883, %v7941
        %v7943 = vpop.f32.mrf.mxu0
        %v7944 = vadd.f32 %v7885, %v7943
        %7945 = vmatmul.bf16.gmra.mxu0 %v6530
        %v7946 = vpop.f32.mrf.mxu0
        %v7947 = vadd.f32 %v7888, %v7946
        %v7948 = vpop.f32.mrf.mxu0
        %v7949 = vadd.f32 %v7890, %v7948
        %7950 = vmatmul.bf16.gmra.mxu0 %v6534
        %v7951 = vpop.f32.mrf.mxu0
        %v7952 = vadd.f32 %v7893, %v7951
        %v7953 = vpop.f32.mrf.mxu0
        %v7954 = vadd.f32 %v7895, %v7953
        %7955 = vmatmul.bf16.gmra.mxu0 %v6538
        %v7956 = vpop.f32.mrf.mxu0
        %v7957 = vadd.f32 %v7898, %v7956
        %v7958 = vpop.f32.mrf.mxu0
        %v7959 = vadd.f32 %v7900, %v7958
        %7960 = vmatmul.bf16.gmra.mxu0 %v6542
        %v7961 = vpop.f32.mrf.mxu0
        %v7962 = vadd.f32 %v7903, %v7961
        %v7963 = vpop.f32.mrf.mxu0
        %v7964 = vadd.f32 %v7905, %v7963
        %7965 = vmatmul.bf16.gmra.mxu0 %v6546
        %v7966 = vpop.f32.mrf.mxu0
        %v7967 = vadd.f32 %v7908, %v7966
        %v7968 = vpop.f32.mrf.mxu0
        %v7969 = vadd.f32 %v7910, %v7968
        %7970 = vmatmul.bf16.gmra.mxu0 %v6550
        %v7971 = vpop.f32.mrf.mxu0
        %v7972 = vadd.f32 %v7913, %v7971
        %v7973 = vpop.f32.mrf.mxu0
        %v7974 = vadd.f32 %v7915, %v7973
        %7975 = vmatmul.bf16.gmra.mxu0 %v6554
        %v7976 = vpop.f32.mrf.mxu0
        %v7977 = vadd.f32 %v7918, %v7976
        %v7978 = vpop.f32.mrf.mxu0
        %v7979 = vadd.f32 %v7920, %v7978
        %7980 = vmatmul.bf16.gmra.mxu0 %v6558
        %v7981 = vpop.f32.mrf.mxu0
        %v7982 = vadd.f32 %v7923, %v7981
        %v7983 = vpop.f32.mrf.mxu0
        %v7984 = vadd.f32 %v7925, %v7983
        %7985 = vmatmul.bf16.gmra.mxu0 %v6562
        %v7986 = vpop.f32.mrf.mxu0
        %v7987 = vadd.f32 %v7928, %v7986
        %v7988 = vpop.f32.mrf.mxu0
        %v7989 = vadd.f32 %v7930, %v7988
        %7990 = vdwg.mxu0
        %7991 = vmatpush.bf16.msra.mxu0 %v7212
        %7992 = vmatpush.bf16.msra.mxu0 %v7208
        %7993 = vmatpush.bf16.msra.mxu0 %v7204
        %7994 = vmatpush.bf16.msra.mxu0 %v7200
        %7995 = vmatpush.bf16.msra.mxu0 %v7196
        %7996 = vmatpush.bf16.msra.mxu0 %v7192
        %7997 = vmatpush.bf16.msra.mxu0 %v7188
        %7998 = vmatpush.bf16.msra.mxu0 %v7184
        %7999 = vmatmul.bf16.gmra.mxu0 %v6527
        %v8000 = vpop.f32.mrf.mxu0
        %v8001 = vadd.f32 %v7942, %v8000
        %v8002 = vpop.f32.mrf.mxu0
        %v8003 = vadd.f32 %v7944, %v8002
        %8004 = vmatmul.bf16.gmra.mxu0 %v6531
        %v8005 = vpop.f32.mrf.mxu0
        %v8006 = vadd.f32 %v7947, %v8005
        %v8007 = vpop.f32.mrf.mxu0
        %v8008 = vadd.f32 %v7949, %v8007
        %8009 = vmatmul.bf16.gmra.mxu0 %v6535
        %v8010 = vpop.f32.mrf.mxu0
        %v8011 = vadd.f32 %v7952, %v8010
        %v8012 = vpop.f32.mrf.mxu0
        %v8013 = vadd.f32 %v7954, %v8012
        %8014 = vmatmul.bf16.gmra.mxu0 %v6539
        %v8015 = vpop.f32.mrf.mxu0
        %v8016 = vadd.f32 %v7957, %v8015
        %v8017 = vpop.f32.mrf.mxu0
        %v8018 = vadd.f32 %v7959, %v8017
        %8019 = vmatmul.bf16.gmra.mxu0 %v6543
        %v8020 = vpop.f32.mrf.mxu0
        %v8021 = vadd.f32 %v7962, %v8020
        %v8022 = vpop.f32.mrf.mxu0
        %v8023 = vadd.f32 %v7964, %v8022
        %8024 = vmatmul.bf16.gmra.mxu0 %v6547
        %v8025 = vpop.f32.mrf.mxu0
        %v8026 = vadd.f32 %v7967, %v8025
        %v8027 = vpop.f32.mrf.mxu0
        %v8028 = vadd.f32 %v7969, %v8027
        %8029 = vmatmul.bf16.gmra.mxu0 %v6551
        %v8030 = vpop.f32.mrf.mxu0
        %v8031 = vadd.f32 %v7972, %v8030
        %v8032 = vpop.f32.mrf.mxu0
        %v8033 = vadd.f32 %v7974, %v8032
        %8034 = vmatmul.bf16.gmra.mxu0 %v6555
        %v8035 = vpop.f32.mrf.mxu0
        %v8036 = vadd.f32 %v7977, %v8035
        %v8037 = vpop.f32.mrf.mxu0
        %v8038 = vadd.f32 %v7979, %v8037
        %8039 = vmatmul.bf16.gmra.mxu0 %v6559
        %v8040 = vpop.f32.mrf.mxu0
        %v8041 = vadd.f32 %v7982, %v8040
        %v8042 = vpop.f32.mrf.mxu0
        %v8043 = vadd.f32 %v7984, %v8042
        %8044 = vmatmul.bf16.gmra.mxu0 %v6563
        %v8045 = vpop.f32.mrf.mxu0
        %v8046 = vadd.f32 %v7987, %v8045
        %v8047 = vpop.f32.mrf.mxu0
        %v8048 = vadd.f32 %v7989, %v8047
        %8049 = vdwg.mxu0
        %8050 = vmatpush.bf16.msra.mxu0 %v7117
        %8051 = vmatpush.bf16.msra.mxu0 %v7113
        %8052 = vmatpush.bf16.msra.mxu0 %v7109
        %8053 = vmatpush.bf16.msra.mxu0 %v7105
        %8054 = vmatpush.bf16.msra.mxu0 %v7101
        %8055 = vmatpush.bf16.msra.mxu0 %v7097
        %8056 = vmatpush.bf16.msra.mxu0 %v7093
        %8057 = vmatpush.bf16.msra.mxu0 %v7089
        %8058 = vmatmul.bf16.gmra.mxu0 %v6524
        %v8059 = vpop.f32.mrf.mxu0
        %v8060 = vadd.f32 %v6697, %v8059
        %v8061 = vpop.f32.mrf.mxu0
        %v8062 = vadd.f32 %v6697, %v8061
        %8063 = vmatmul.bf16.gmra.mxu0 %v6528
        %v8064 = vpop.f32.mrf.mxu0
        %v8065 = vadd.f32 %v6697, %v8064
        %v8066 = vpop.f32.mrf.mxu0
        %v8067 = vadd.f32 %v6697, %v8066
        %8068 = vmatmul.bf16.gmra.mxu0 %v6532
        %v8069 = vpop.f32.mrf.mxu0
        %v8070 = vadd.f32 %v6697, %v8069
        %v8071 = vpop.f32.mrf.mxu0
        %v8072 = vadd.f32 %v6697, %v8071
        %8073 = vmatmul.bf16.gmra.mxu0 %v6536
        %v8074 = vpop.f32.mrf.mxu0
        %v8075 = vadd.f32 %v6697, %v8074
        %v8076 = vpop.f32.mrf.mxu0
        %v8077 = vadd.f32 %v6697, %v8076
        %8078 = vmatmul.bf16.gmra.mxu0 %v6540
        %v8079 = vpop.f32.mrf.mxu0
        %v8080 = vadd.f32 %v6697, %v8079
        %v8081 = vpop.f32.mrf.mxu0
        %v8082 = vadd.f32 %v6697, %v8081
        %8083 = vmatmul.bf16.gmra.mxu0 %v6544
        %v8084 = vpop.f32.mrf.mxu0
        %v8085 = vadd.f32 %v6697, %v8084
        %v8086 = vpop.f32.mrf.mxu0
        %v8087 = vadd.f32 %v6697, %v8086
        %8088 = vmatmul.bf16.gmra.mxu0 %v6548
        %v8089 = vpop.f32.mrf.mxu0
        %v8090 = vadd.f32 %v6697, %v8089
        %v8091 = vpop.f32.mrf.mxu0
        %v8092 = vadd.f32 %v6697, %v8091
        %8093 = vmatmul.bf16.gmra.mxu0 %v6552
        %v8094 = vpop.f32.mrf.mxu0
        %v8095 = vadd.f32 %v6697, %v8094
        %v8096 = vpop.f32.mrf.mxu0
        %v8097 = vadd.f32 %v6697, %v8096
        %8098 = vmatmul.bf16.gmra.mxu0 %v6556
        %v8099 = vpop.f32.mrf.mxu0
        %v8100 = vadd.f32 %v6697, %v8099
        %v8101 = vpop.f32.mrf.mxu0
        %v8102 = vadd.f32 %v6697, %v8101
        %8103 = vmatmul.bf16.gmra.mxu0 %v6560
        %v8104 = vpop.f32.mrf.mxu0
        %v8105 = vadd.f32 %v6697, %v8104
        %v8106 = vpop.f32.mrf.mxu0
        %v8107 = vadd.f32 %v6697, %v8106
        %8108 = vdwg.mxu0
        %8109 = vmatpush.bf16.msra.mxu0 %v7149
        %8110 = vmatpush.bf16.msra.mxu0 %v7145
        %8111 = vmatpush.bf16.msra.mxu0 %v7141
        %8112 = vmatpush.bf16.msra.mxu0 %v7137
        %8113 = vmatpush.bf16.msra.mxu0 %v7133
        %8114 = vmatpush.bf16.msra.mxu0 %v7129
        %8115 = vmatpush.bf16.msra.mxu0 %v7125
        %8116 = vmatpush.bf16.msra.mxu0 %v7121
        %8117 = vmatmul.bf16.gmra.mxu0 %v6525
        %v8118 = vpop.f32.mrf.mxu0
        %v8119 = vadd.f32 %v8060, %v8118
        %v8120 = vpop.f32.mrf.mxu0
        %v8121 = vadd.f32 %v8062, %v8120
        %8122 = vmatmul.bf16.gmra.mxu0 %v6529
        %v8123 = vpop.f32.mrf.mxu0
        %v8124 = vadd.f32 %v8065, %v8123
        %v8125 = vpop.f32.mrf.mxu0
        %v8126 = vadd.f32 %v8067, %v8125
        %8127 = vmatmul.bf16.gmra.mxu0 %v6533
        %v8128 = vpop.f32.mrf.mxu0
        %v8129 = vadd.f32 %v8070, %v8128
        %v8130 = vpop.f32.mrf.mxu0
        %v8131 = vadd.f32 %v8072, %v8130
        %8132 = vmatmul.bf16.gmra.mxu0 %v6537
        %v8133 = vpop.f32.mrf.mxu0
        %v8134 = vadd.f32 %v8075, %v8133
        %v8135 = vpop.f32.mrf.mxu0
        %v8136 = vadd.f32 %v8077, %v8135
        %8137 = vmatmul.bf16.gmra.mxu0 %v6541
        %v8138 = vpop.f32.mrf.mxu0
        %v8139 = vadd.f32 %v8080, %v8138
        %v8140 = vpop.f32.mrf.mxu0
        %v8141 = vadd.f32 %v8082, %v8140
        %8142 = vmatmul.bf16.gmra.mxu0 %v6545
        %v8143 = vpop.f32.mrf.mxu0
        %v8144 = vadd.f32 %v8085, %v8143
        %v8145 = vpop.f32.mrf.mxu0
        %v8146 = vadd.f32 %v8087, %v8145
        %8147 = vmatmul.bf16.gmra.mxu0 %v6549
        %v8148 = vpop.f32.mrf.mxu0
        %v8149 = vadd.f32 %v8090, %v8148
        %v8150 = vpop.f32.mrf.mxu0
        %v8151 = vadd.f32 %v8092, %v8150
        %8152 = vmatmul.bf16.gmra.mxu0 %v6553
        %v8153 = vpop.f32.mrf.mxu0
        %v8154 = vadd.f32 %v8095, %v8153
        %v8155 = vpop.f32.mrf.mxu0
        %v8156 = vadd.f32 %v8097, %v8155
        %8157 = vmatmul.bf16.gmra.mxu0 %v6557
        %v8158 = vpop.f32.mrf.mxu0
        %v8159 = vadd.f32 %v8100, %v8158
        %v8160 = vpop.f32.mrf.mxu0
        %v8161 = vadd.f32 %v8102, %v8160
        %8162 = vmatmul.bf16.gmra.mxu0 %v6561
        %v8163 = vpop.f32.mrf.mxu0
        %v8164 = vadd.f32 %v8105, %v8163
        %v8165 = vpop.f32.mrf.mxu0
        %v8166 = vadd.f32 %v8107, %v8165
        %8167 = vdwg.mxu0
        %8168 = vmatpush.bf16.msra.mxu0 %v7181
        %8169 = vmatpush.bf16.msra.mxu0 %v7177
        %8170 = vmatpush.bf16.msra.mxu0 %v7173
        %8171 = vmatpush.bf16.msra.mxu0 %v7169
        %8172 = vmatpush.bf16.msra.mxu0 %v7165
        %8173 = vmatpush.bf16.msra.mxu0 %v7161
        %8174 = vmatpush.bf16.msra.mxu0 %v7157
        %8175 = vmatpush.bf16.msra.mxu0 %v7153
        %8176 = vmatmul.bf16.gmra.mxu0 %v6526
        %v8177 = vpop.f32.mrf.mxu0
        %v8178 = vadd.f32 %v8119, %v8177
        %v8179 = vpop.f32.mrf.mxu0
        %v8180 = vadd.f32 %v8121, %v8179
        %8181 = vmatmul.bf16.gmra.mxu0 %v6530
        %v8182 = vpop.f32.mrf.mxu0
        %v8183 = vadd.f32 %v8124, %v8182
        %v8184 = vpop.f32.mrf.mxu0
        %v8185 = vadd.f32 %v8126, %v8184
        %8186 = vmatmul.bf16.gmra.mxu0 %v6534
        %v8187 = vpop.f32.mrf.mxu0
        %v8188 = vadd.f32 %v8129, %v8187
        %v8189 = vpop.f32.mrf.mxu0
        %v8190 = vadd.f32 %v8131, %v8189
        %8191 = vmatmul.bf16.gmra.mxu0 %v6538
        %v8192 = vpop.f32.mrf.mxu0
        %v8193 = vadd.f32 %v8134, %v8192
        %v8194 = vpop.f32.mrf.mxu0
        %v8195 = vadd.f32 %v8136, %v8194
        %8196 = vmatmul.bf16.gmra.mxu0 %v6542
        %v8197 = vpop.f32.mrf.mxu0
        %v8198 = vadd.f32 %v8139, %v8197
        %v8199 = vpop.f32.mrf.mxu0
        %v8200 = vadd.f32 %v8141, %v8199
        %8201 = vmatmul.bf16.gmra.mxu0 %v6546
        %v8202 = vpop.f32.mrf.mxu0
        %v8203 = vadd.f32 %v8144, %v8202
        %v8204 = vpop.f32.mrf.mxu0
        %v8205 = vadd.f32 %v8146, %v8204
        %8206 = vmatmul.bf16.gmra.mxu0 %v6550
        %v8207 = vpop.f32.mrf.mxu0
        %v8208 = vadd.f32 %v8149, %v8207
        %v8209 = vpop.f32.mrf.mxu0
        %v8210 = vadd.f32 %v8151, %v8209
        %8211 = vmatmul.bf16.gmra.mxu0 %v6554
        %v8212 = vpop.f32.mrf.mxu0
        %v8213 = vadd.f32 %v8154, %v8212
        %v8214 = vpop.f32.mrf.mxu0
        %v8215 = vadd.f32 %v8156, %v8214
        %8216 = vmatmul.bf16.gmra.mxu0 %v6558
        %v8217 = vpop.f32.mrf.mxu0
        %v8218 = vadd.f32 %v8159, %v8217
        %v8219 = vpop.f32.mrf.mxu0
        %v8220 = vadd.f32 %v8161, %v8219
        %8221 = vmatmul.bf16.gmra.mxu0 %v6562
        %v8222 = vpop.f32.mrf.mxu0
        %v8223 = vadd.f32 %v8164, %v8222
        %v8224 = vpop.f32.mrf.mxu0
        %v8225 = vadd.f32 %v8166, %v8224
        %8226 = vdwg.mxu0
        %8227 = vmatpush.bf16.msra.mxu0 %v7213
        %8228 = vmatpush.bf16.msra.mxu0 %v7209
        %8229 = vmatpush.bf16.msra.mxu0 %v7205
        %8230 = vmatpush.bf16.msra.mxu0 %v7201
        %8231 = vmatpush.bf16.msra.mxu0 %v7197
        %8232 = vmatpush.bf16.msra.mxu0 %v7193
        %8233 = vmatpush.bf16.msra.mxu0 %v7189
        %8234 = vmatpush.bf16.msra.mxu0 %v7185
        %8235 = vmatmul.bf16.gmra.mxu0 %v6527
        %v8236 = vpop.f32.mrf.mxu0
        %v8237 = vadd.f32 %v8178, %v8236
        %v8238 = vpop.f32.mrf.mxu0
        %v8239 = vadd.f32 %v8180, %v8238
        %8240 = vmatmul.bf16.gmra.mxu0 %v6531
        %v8241 = vpop.f32.mrf.mxu0
        %v8242 = vadd.f32 %v8183, %v8241
        %v8243 = vpop.f32.mrf.mxu0
        %v8244 = vadd.f32 %v8185, %v8243
        %8245 = vmatmul.bf16.gmra.mxu0 %v6535
        %v8246 = vpop.f32.mrf.mxu0
        %v8247 = vadd.f32 %v8188, %v8246
        %v8248 = vpop.f32.mrf.mxu0
        %v8249 = vadd.f32 %v8190, %v8248
        %8250 = vmatmul.bf16.gmra.mxu0 %v6539
        %v8251 = vpop.f32.mrf.mxu0
        %v8252 = vadd.f32 %v8193, %v8251
        %v8253 = vpop.f32.mrf.mxu0
        %v8254 = vadd.f32 %v8195, %v8253
        %8255 = vmatmul.bf16.gmra.mxu0 %v6543
        %v8256 = vpop.f32.mrf.mxu0
        %v8257 = vadd.f32 %v8198, %v8256
        %v8258 = vpop.f32.mrf.mxu0
        %v8259 = vadd.f32 %v8200, %v8258
        %8260 = vmatmul.bf16.gmra.mxu0 %v6547
        %v8261 = vpop.f32.mrf.mxu0
        %v8262 = vadd.f32 %v8203, %v8261
        %v8263 = vpop.f32.mrf.mxu0
        %v8264 = vadd.f32 %v8205, %v8263
        %8265 = vmatmul.bf16.gmra.mxu0 %v6551
        %v8266 = vpop.f32.mrf.mxu0
        %v8267 = vadd.f32 %v8208, %v8266
        %v8268 = vpop.f32.mrf.mxu0
        %v8269 = vadd.f32 %v8210, %v8268
        %8270 = vmatmul.bf16.gmra.mxu0 %v6555
        %v8271 = vpop.f32.mrf.mxu0
        %v8272 = vadd.f32 %v8213, %v8271
        %v8273 = vpop.f32.mrf.mxu0
        %v8274 = vadd.f32 %v8215, %v8273
        %8275 = vmatmul.bf16.gmra.mxu0 %v6559
        %v8276 = vpop.f32.mrf.mxu0
        %v8277 = vadd.f32 %v8218, %v8276
        %v8278 = vpop.f32.mrf.mxu0
        %v8279 = vadd.f32 %v8220, %v8278
        %8280 = vmatmul.bf16.gmra.mxu0 %v6563
        %v8281 = vpop.f32.mrf.mxu0
        %v8282 = vadd.f32 %v8223, %v8281
        %v8283 = vpop.f32.mrf.mxu0
        %v8284 = vadd.f32 %v8225, %v8283
        %8285 = vdwg.mxu0
        %v8286 = vmax.f32 %v7529, 0.0
        %v8287 = vmax.f32 %v7765, 0.0
        %v8288 = vmax.f32 %v8001, 0.0
        %v8289 = vmax.f32 %v8237, 0.0
        %v8290 = vmax.f32 %v7531, 0.0
        %v8291 = vmax.f32 %v7767, 0.0
        %v8292 = vmax.f32 %v8003, 0.0
        %v8293 = vmax.f32 %v8239, 0.0
        %v8294 = vmax.f32 %v7534, 0.0
        %v8295 = vmax.f32 %v7770, 0.0
        %v8296 = vmax.f32 %v8006, 0.0
        %v8297 = vmax.f32 %v8242, 0.0
        %v8298 = vmax.f32 %v7536, 0.0
        %v8299 = vmax.f32 %v7772, 0.0
        %v8300 = vmax.f32 %v8008, 0.0
        %v8301 = vmax.f32 %v8244, 0.0
        %v8302 = vmax.f32 %v7539, 0.0
        %v8303 = vmax.f32 %v7775, 0.0
        %v8304 = vmax.f32 %v8011, 0.0
        %v8305 = vmax.f32 %v8247, 0.0
        %v8306 = vmax.f32 %v7541, 0.0
        %v8307 = vmax.f32 %v7777, 0.0
        %v8308 = vmax.f32 %v8013, 0.0
        %v8309 = vmax.f32 %v8249, 0.0
        %v8310 = vmax.f32 %v7544, 0.0
        %v8311 = vmax.f32 %v7780, 0.0
        %v8312 = vmax.f32 %v8016, 0.0
        %v8313 = vmax.f32 %v8252, 0.0
        %v8314 = vmax.f32 %v7546, 0.0
        %v8315 = vmax.f32 %v7782, 0.0
        %v8316 = vmax.f32 %v8018, 0.0
        %v8317 = vmax.f32 %v8254, 0.0
        %v8318 = vmax.f32 %v7549, 0.0
        %v8319 = vmax.f32 %v7785, 0.0
        %v8320 = vmax.f32 %v8021, 0.0
        %v8321 = vmax.f32 %v8257, 0.0
        %v8322 = vmax.f32 %v7551, 0.0
        %v8323 = vmax.f32 %v7787, 0.0
        %v8324 = vmax.f32 %v8023, 0.0
        %v8325 = vmax.f32 %v8259, 0.0
        %v8326 = vmax.f32 %v7554, 0.0
        %v8327 = vmax.f32 %v7790, 0.0
        %v8328 = vmax.f32 %v8026, 0.0
        %v8329 = vmax.f32 %v8262, 0.0
        %v8330 = vmax.f32 %v7556, 0.0
        %v8331 = vmax.f32 %v7792, 0.0
        %v8332 = vmax.f32 %v8028, 0.0
        %v8333 = vmax.f32 %v8264, 0.0
        %v8334 = vmax.f32 %v7559, 0.0
        %v8335 = vmax.f32 %v7795, 0.0
        %v8336 = vmax.f32 %v8031, 0.0
        %v8337 = vmax.f32 %v8267, 0.0
        %v8338 = vmax.f32 %v7561, 0.0
        %v8339 = vmax.f32 %v7797, 0.0
        %v8340 = vmax.f32 %v8033, 0.0
        %v8341 = vmax.f32 %v8269, 0.0
        %v8342 = vmax.f32 %v7564, 0.0
        %v8343 = vmax.f32 %v7800, 0.0
        %v8344 = vmax.f32 %v8036, 0.0
        %v8345 = vmax.f32 %v8272, 0.0
        %v8346 = vmax.f32 %v7566, 0.0
        %v8347 = vmax.f32 %v7802, 0.0
        %v8348 = vmax.f32 %v8038, 0.0
        %v8349 = vmax.f32 %v8274, 0.0
        %v8350 = vmax.f32 %v7569, 0.0
        %v8351 = vmax.f32 %v7805, 0.0
        %v8352 = vmax.f32 %v8041, 0.0
        %v8353 = vmax.f32 %v8277, 0.0
        %v8354 = vmax.f32 %v7571, 0.0
        %v8355 = vmax.f32 %v7807, 0.0
        %v8356 = vmax.f32 %v8043, 0.0
        %v8357 = vmax.f32 %v8279, 0.0
        %v8358 = vmax.f32 %v7574, 0.0
        %v8359 = vmax.f32 %v7810, 0.0
        %v8360 = vmax.f32 %v8046, 0.0
        %v8361 = vmax.f32 %v8282, 0.0
        %v8362 = vmax.f32 %v7576, 0.0
        %v8363 = vmax.f32 %v7812, 0.0
        %v8364 = vmax.f32 %v8048, 0.0
        %v8365 = vmax.f32 %v8284, 0.0
        %8366 = vst [vmem:[%s453] sm:$0xff] %v8286
        %8367 = vst [vmem:[%s453 + $0x8] sm:$0xff] %v8287
        %8368 = vst [vmem:[%s453 + $0x10] sm:$0xff] %v8288
        %8369 = vst [vmem:[%s453 + $0x18] sm:$0xff] %v8289
        %8370 = vst [vmem:[%s453 + $0x20] sm:$0xff] %v8290
        %8371 = vst [vmem:[%s453 + $0x28] sm:$0xff] %v8291
        %8372 = vst [vmem:[%s453 + $0x30] sm:$0xff] %v8292
        %8373 = vst [vmem:[%s453 + $0x38] sm:$0xff] %v8293
        %8374 = vst [vmem:[%s453 + $0x40] sm:$0xff] %v8294
        %8375 = vst [vmem:[%s453 + $0x48] sm:$0xff] %v8295
        %8376 = vst [vmem:[%s453 + $0x50] sm:$0xff] %v8296
        %8377 = vst [vmem:[%s453 + $0x58] sm:$0xff] %v8297
        %8378 = vst [vmem:[%s453 + $0x60] sm:$0xff] %v8298
        %8379 = vst [vmem:[%s453 + $0x68] sm:$0xff] %v8299
        %8380 = vst [vmem:[%s453 + $0x70] sm:$0xff] %v8300
        %8381 = vst [vmem:[%s453 + $0x78] sm:$0xff] %v8301
        %8382 = vst [vmem:[%s453 + $0x80] sm:$0xff] %v8302
        %8383 = vst [vmem:[%s453 + $0x88] sm:$0xff] %v8303
        %8384 = vst [vmem:[%s453 + $0x90] sm:$0xff] %v8304
        %8385 = vst [vmem:[%s453 + $0x98] sm:$0xff] %v8305
        %8386 = vst [vmem:[%s453 + $0xa0] sm:$0xff] %v8306
        %8387 = vst [vmem:[%s453 + $0xa8] sm:$0xff] %v8307
        %8388 = vst [vmem:[%s453 + $0xb0] sm:$0xff] %v8308
        %8389 = vst [vmem:[%s453 + $0xb8] sm:$0xff] %v8309
        %8390 = vst [vmem:[%s453 + $0xc0] sm:$0xff] %v8310
        %8391 = vst [vmem:[%s453 + $0xc8] sm:$0xff] %v8311
        %8392 = vst [vmem:[%s453 + $0xd0] sm:$0xff] %v8312
        %8393 = vst [vmem:[%s453 + $0xd8] sm:$0xff] %v8313
        %8394 = vst [vmem:[%s453 + $0xe0] sm:$0xff] %v8314
        %8395 = vst [vmem:[%s453 + $0xe8] sm:$0xff] %v8315
        %8396 = vst [vmem:[%s453 + $0xf0] sm:$0xff] %v8316
        %8397 = vst [vmem:[%s453 + $0xf8] sm:$0xff] %v8317
        %8398 = vst [vmem:[%s453 + $0x100] sm:$0xff] %v8318
        %8399 = vst [vmem:[%s453 + $0x108] sm:$0xff] %v8319
        %8400 = vst [vmem:[%s453 + $0x110] sm:$0xff] %v8320
        %8401 = vst [vmem:[%s453 + $0x118] sm:$0xff] %v8321
        %8402 = vst [vmem:[%s453 + $0x120] sm:$0xff] %v8322
        %8403 = vst [vmem:[%s453 + $0x128] sm:$0xff] %v8323
        %8404 = vst [vmem:[%s453 + $0x130] sm:$0xff] %v8324
        %8405 = vst [vmem:[%s453 + $0x138] sm:$0xff] %v8325
        %8406 = vst [vmem:[%s453 + $0x140] sm:$0xff] %v8326
        %8407 = vst [vmem:[%s453 + $0x148] sm:$0xff] %v8327
        %8408 = vst [vmem:[%s453 + $0x150] sm:$0xff] %v8328
        %8409 = vst [vmem:[%s453 + $0x158] sm:$0xff] %v8329
        %8410 = vst [vmem:[%s453 + $0x160] sm:$0xff] %v8330
        %8411 = vst [vmem:[%s453 + $0x168] sm:$0xff] %v8331
        %8412 = vst [vmem:[%s453 + $0x170] sm:$0xff] %v8332
        %8413 = vst [vmem:[%s453 + $0x178] sm:$0xff] %v8333
        %8414 = vst [vmem:[%s453 + $0x180] sm:$0xff] %v8334
        %8415 = vst [vmem:[%s453 + $0x188] sm:$0xff] %v8335
        %8416 = vst [vmem:[%s453 + $0x190] sm:$0xff] %v8336
        %8417 = vst [vmem:[%s453 + $0x198] sm:$0xff] %v8337
        %8418 = vst [vmem:[%s453 + $0x1a0] sm:$0xff] %v8338
        %8419 = vst [vmem:[%s453 + $0x1a8] sm:$0xff] %v8339
        %8420 = vst [vmem:[%s453 + $0x1b0] sm:$0xff] %v8340
        %8421 = vst [vmem:[%s453 + $0x1b8] sm:$0xff] %v8341
        %8422 = vst [vmem:[%s453 + $0x1c0] sm:$0xff] %v8342
        %8423 = vst [vmem:[%s453 + $0x1c8] sm:$0xff] %v8343
        %8424 = vst [vmem:[%s453 + $0x1d0] sm:$0xff] %v8344
        %8425 = vst [vmem:[%s453 + $0x1d8] sm:$0xff] %v8345
        %8426 = vst [vmem:[%s453 + $0x1e0] sm:$0xff] %v8346
        %8427 = vst [vmem:[%s453 + $0x1e8] sm:$0xff] %v8347
        %8428 = vst [vmem:[%s453 + $0x1f0] sm:$0xff] %v8348
        %8429 = vst [vmem:[%s453 + $0x1f8] sm:$0xff] %v8349
        %8430 = vst [vmem:[%s453 + $0x200] sm:$0xff] %v8350
        %8431 = vst [vmem:[%s453 + $0x208] sm:$0xff] %v8351
        %8432 = vst [vmem:[%s453 + $0x210] sm:$0xff] %v8352
        %8433 = vst [vmem:[%s453 + $0x218] sm:$0xff] %v8353
        %8434 = vst [vmem:[%s453 + $0x220] sm:$0xff] %v8354
        %8435 = vst [vmem:[%s453 + $0x228] sm:$0xff] %v8355
        %8436 = vst [vmem:[%s453 + $0x230] sm:$0xff] %v8356
        %8437 = vst [vmem:[%s453 + $0x238] sm:$0xff] %v8357
        %8438 = vst [vmem:[%s453 + $0x240] sm:$0xff] %v8358
        %8439 = vst [vmem:[%s453 + $0x248] sm:$0xff] %v8359
        %8440 = vst [vmem:[%s453 + $0x250] sm:$0xff] %v8360
        %8441 = vst [vmem:[%s453 + $0x258] sm:$0xff] %v8361
        %8442 = vst [vmem:[%s453 + $0x260] sm:$0xff] %v8362
        %8443 = vst [vmem:[%s453 + $0x268] sm:$0xff] %v8363
        %8444 = vst [vmem:[%s453 + $0x270] sm:$0xff] %v8364
        %8445 = vst [vmem:[%s453 + $0x278] sm:$0xff] %v8365
        %s8446 = sand.u32 %s254, 1
        %s8447 = scalar_lea.sflag [#allocation4], %s8446
        %s8448 = sand.u32 %s254, 1
        %s8449 = smul.addr %s8448, 640
        %s8450 = scalar_lea.vmem [#allocation8], %s8449
        // Predicated region
        $region73: #{tpu_custom_call.1} parent=59 // pred_check
          %p8451 = pneg %p264
        $region74: #{tpu_custom_call.1} parent=59 // pred_check_branch
          %8453 = sbr.rel (%p8451) target = $region76
        $region75: #{tpu_custom_call.1} parent=59 // pred_region
          %s8454 = smul.u32 20, %s26
          %s8455 = ssub.s32 38, %s8454
          %p8456 = scmp.lt.s32.totalorder %s8455, 20
          %s8457 = scalar_select %p8456, %s8455, 20
          %s8458 = smul.u32 8, %s8457
          %s8459 = smul.u32 %s8458, 4
          %s8460 = ssub.s32 640, %s8459
          %s8461 = sshll.u32 %s8460, 4
          %8462 = vsyncadd %s8447, %s8461
          %p8463 = scmp.ne.s32.totalorder 0, %s8459
          %s8464 = smul.addr %s8454, 4
          %s8465 = smul.addr %s8464, 8
          %s8466 = scalar_lea.hbm %s10, %s8465
          %s8467 = smul.u32 32, %s8457
          %s8468 = sshll.u32 %s8450, 4
          %s8469 = int_to_ptr.vmem [resolvable:$true] %s8468
          %s8470 = sshll.u32 %s8466, 4
          %s8471 = int_to_ptr.hbm [resolvable:$true] %s8470
          %s8472 = sshll.u32 %s8467, 4
          %8476 = dma.vmem_to_hbm [thread:$0]  (%p8463), %s8469, %s8472, %s8471, %s8447, 512, 512, 32
        $region76: #{tpu_custom_call.1} parent=59 // pred_fallthru
          _
      $region60: #{tpu_custom_call.1} parent=5 // pred_fallthru
        _
      %p8477 = scmp.le.s32.totalorder 2, %s21
      // Predicated region
      $region77: #{tpu_custom_call.1} parent=5 // pred_check
        %p8478 = pneg %p8477
      $region78: #{tpu_custom_call.1} parent=5 // pred_check_branch
        %8480 = sbr.rel (%p8478) target = $region80
      $region79: #{tpu_custom_call.1} parent=5 // pred_region
        %s8481 = ssub.s32 %s21, 2
        // Predicated region
        $region81: #{tpu_custom_call.1} parent=79 // pred_check
          %p8482 = pneg %p270
        $region82: #{tpu_custom_call.1} parent=79 // pred_check_branch
          %8484 = sbr.rel (%p8482) target = $region84
        $region83: #{tpu_custom_call.1} parent=79 // pred_region
          %s8485 = sand.u32 %s255, 1
          %s8486 = scalar_lea.sflag [#allocation4], %s8485
          %s8487 = sand.u32 %s255, 1
          %s8488 = smul.addr %s8487, 640
          %s8489 = scalar_lea.vmem [#allocation8], %s8488
          %8491 = dma.done %s8486, 10240
        $region84: #{tpu_custom_call.1} parent=79 // pred_fallthru
          _
      $region80: #{tpu_custom_call.1} parent=5 // pred_fallthru
        _
    $region6: #{tpu_custom_call.1} parent=1 // loop_footer
      %s25 = sadd.s32 1, %s21
    $region7: #{tpu_custom_call.1} parent=1 // loop_footer_branch
      %20 = sbr.rel target = $region3
    $region8: #{tpu_custom_call.1} parent=1 // loop_exit
      _
    %8492 = vsyncpa [#allocation3], 1
    %s8493 = scalar_lea.sflag [#allocation3], 1
    %8494 = vsyncpa %s8493, 1
    %8495 = vsyncpa [#allocation6], 1
    %8496 = vsyncpa [#allocation4], 1
    %s8497 = scalar_lea.sflag [#allocation4], 1
    %8498 = vsyncpa %s8497, 1

</llo_original>
